<compile_context>
chip_gen: v6e
topology: v6e:2x2x1
jax: 0.10.0
libtpu: 0.0.40
codegen_flags: <defaults>
</compile_context>

<pallas_src>
import functools

import jax
import jax.numpy as jnp
from jax.experimental import pallas as pl
from jax.experimental.pallas import tpu as pltpu

MASK_VAL = -1e30   # additive mask value for non-edges
M_FLOOR = -1e20    # running-max floor: masked logits still underflow to 0 in exp()


# --------------------------------------------------------------------------
# Helpers
# --------------------------------------------------------------------------
def _vmem_budget_bytes():
    """~3/4 of physical VMEM: ~48 MiB on v7x, ~96 MiB on v5e/v6e."""
    cap = 128 << 20
    try:
        info = pltpu.get_tpu_info()
        cap = int(getattr(info, "vmem_capacity_bytes", cap))
    except Exception:
        pass
    return (3 * cap) // 4


def _compiler_params(streamed_bytes, resident_bytes, dims):
    # Only pipelined (grid-varying) blocks are double-buffered; resident blocks, scratch
    # and in-kernel temporaries are counted once.
    need = 2 * int(streamed_bytes) + int(resident_bytes) + (2 << 20)
    vmem = min(max(need, 8 << 20), _vmem_budget_bytes())
    return pltpu.CompilerParams(dimension_semantics=dims, vmem_limit_bytes=vmem)


def _pick_proj_tile(n):
    # Multiple of 128 keeps the transposed alpha_src output block lane-aligned.
    for t in (512, 256, 128):
        if n % t == 0 and n // t >= 2:
            return t
    for t in (512, 256, 128):
        if n % t == 0:
            return t
    return n


def _pick_row_tile(n):
    # >= 4 row tiles so each v7x TensorCore still gets a >= 2-deep software pipeline;
    # larger tiles for big graphs help the single-TC v5e/v6e reach the HBM roofline.
    for t in (512, 256, 128, 64, 32, 16, 8):
        if n % t == 0 and n // t >= 4:
            return t
    for t in (512, 256, 128, 64, 32, 16, 8):
        if n % t == 0:
            return t
    return n


def _pick_k_tile(n):
    # Source-node (reduction) tile: bounds live VMEM to O(T*TK) instead of O(T*N).
    for t in (512, 256, 128):
        if n % t == 0 and n // t >= 2:
            return t
    for t in (512, 256, 128):
        if n % t == 0:
            return t
    return n


def _block_diag_att(a):
    """[H, F] per-head attention vector -> [H*F, H] block-diagonal matrix so that all heads'
    logits come from a single MXU matmul."""
    h, f = a.shape
    eye = jnp.eye(h, dtype=a.dtype)
    return (a[:, :, None] * eye[:, None, :]).reshape(h * f, h)


def _fold_bn(gamma, beta, mean, var, eps=1e-5):
    scale = gamma / jnp.sqrt(var + eps)
    shift = beta - mean * scale
    return scale.astype(jnp.float32), shift.astype(jnp.float32)


# --------------------------------------------------------------------------
# (A) Projection kernel: xp = x @ W plus all-head attention logits (row tiled).
#     alpha_src is emitted already transposed as [H, N] (XLU transpose, otherwise idle).
# --------------------------------------------------------------------------
def gat_project_kernel(x_ref, w_ref, acat_ref, xp_ref, asrc_t_ref, adst_ref, *, heads):
    x = x_ref[...].astype(jnp.bfloat16)                                     # [T, Cin]
    xp = jnp.dot(x, w_ref[...], preferred_element_type=jnp.float32)        # [T, H*F]
    xp_bf = xp.astype(jnp.bfloat16)
    # One bf16 MXU matmul for src+dst logits of ALL heads ([a_src | a_dst] block-diag).
    al = jnp.dot(xp_bf, acat_ref[...], preferred_element_type=jnp.float32)  # [T, 2H]
    asrc_t_ref[...] = jnp.transpose(al)[:heads, :]                          # [H, T]
    adst_ref[...] = al[:, heads:]                                           # [T, H]
    xp_ref[...] = xp_bf


def gat_project(x, w, a_src, a_dst, *, heads, feats, tile):
    n, c_in = x.shape
    hf = heads * feats
    w_bf = w.astype(jnp.bfloat16)
    acat = jnp.concatenate([_block_diag_att(a_src), _block_diag_att(a_dst)],
                           axis=1).astype(jnp.bfloat16)                     # [H*F, 2H]

    streamed = tile * c_in * 4 + tile * hf * 2 + heads * tile * 4 + tile * heads * 4
    resident = c_in * hf * 2 + hf * 2 * heads * 2 + 2 * tile * hf * 4 + tile * 2 * heads * 4
    return pl.pallas_call(
        functools.partial(gat_project_kernel, heads=heads),
        out_shape=(jax.ShapeDtypeStruct((n, hf), jnp.bfloat16),
                   jax.ShapeDtypeStruct((heads, n), jnp.float32),
                   jax.ShapeDtypeStruct((n, heads), jnp.float32)),
        grid=(n // tile,),
        in_specs=[
            pl.BlockSpec((tile, c_in), lambda i: (i, 0)),      # node-feature rows
            pl.BlockSpec((c_in, hf), lambda i: (0, 0)),        # W (bf16, resident)
            pl.BlockSpec((hf, 2 * heads), lambda i: (0, 0)),   # [a_src | a_dst] block-diag
        ],
        out_specs=(
            pl.BlockSpec((tile, hf), lambda i: (i, 0)),        # xp (bf16)
            pl.BlockSpec((heads, tile), lambda i: (0, i)),     # alpha_src already [H, N]
            pl.BlockSpec((tile, heads), lambda i: (i, 0)),     # alpha_dst [N, H]
        ),
        compiler_params=_compiler_params(streamed, resident, ("parallel",)),
    )(x, w_bf, acat)


# --------------------------------------------------------------------------
# (B) Attention kernel (layers 1-2, concat=True): online softmax over source-node blocks,
#     fused GATConv bias + ReLU + eval-mode BatchNorm, single full-width output store.
# --------------------------------------------------------------------------
def gat_attend_kernel(mask_ref, xp_ref, asrc_ref, adst_ref, bias_ref, scale_ref, shift_ref,
                      out_ref, m_sc, l_sc, acc_sc, *, heads, feats, negative_slope=0.2):
    k = pl.program_id(1)

    @pl.when(k == 0)
    def _init():
        m_sc[...] = jnp.full_like(m_sc, M_FLOOR)
        l_sc[...] = jnp.zeros_like(l_sc)
        acc_sc[...] = jnp.zeros_like(acc_sc)

    mask_add = mask_ref[...].astype(jnp.float32)     # [T, TK] additive mask (0 / -1e30)
    xp = xp_ref[...]                                 # [TK, H*F] bf16
    asrc_t = asrc_ref[...]                           # [H, TK]
    adst = adst_ref[...]                             # [T, H]
    m_old = m_sc[...]                                # [T, H]
    l_old = l_sc[...]                                # [T, H]
    t = adst.shape[0]

    m_cols, l_cols, rescale, delta = [], [], [], []
    for h in range(heads):                           # unrolled; heavy math stays [T, TK]
        e = adst[:, h:h + 1] + asrc_t[h:h + 1, :]                  # [T, TK]
        e = jnp.maximum(e, negative_slope * e) + mask_add          # LeakyReLU(0.2) + mask
        m_h = jnp.maximum(m_old[:, h:h + 1], jnp.max(e, axis=-1, keepdims=True))
        a_h = jnp.exp(m_old[:, h:h + 1] - m_h)                     # online-softmax rescale
        p = jnp.exp(e - m_h)                                       # masked entries -> 0
        m_cols.append(m_h)
        l_cols.append(a_h * l_old[:, h:h + 1] + jnp.sum(p, axis=-1, keepdims=True))
        rescale.append(jnp.broadcast_to(a_h, (t, feats)))
        # NOTE: [T,TK]x[TK,F] uses only F of the MXU output columns; push-latency bound,
        # acceptable while the softmax VPU/EUP work dominates.
        delta.append(jnp.dot(p.astype(jnp.bfloat16), xp[:, h * feats:(h + 1) * feats],
                             preferred_element_type=jnp.float32))
    # Full-width [T, H*F] scratch update: no per-head 32-lane partial writes.
    m_sc[...] = jnp.concatenate(m_cols, axis=-1)
    l_sc[...] = jnp.concatenate(l_cols, axis=-1)
    acc_sc[...] = jnp.concatenate(rescale, axis=-1) * acc_sc[...] + jnp.concatenate(delta, axis=-1)

    @pl.when(k == pl.num_programs(1) - 1)
    def _finalize():
        inv = pl.reciprocal(jnp.maximum(l_sc[...], jnp.float32(1e-37)), approx=True)  # [T, H]
        inv_full = jnp.concatenate(
            [jnp.broadcast_to(inv[:, h:h + 1], (t, feats)) for h in range(heads)], axis=-1)
        y = jnp.maximum(acc_sc[...] * inv_full + bias_ref[...], 0.0)   # bias + ReLU
        out_ref[...] = y * scale_ref[...] + shift_ref[...]             # BN (eval), one lane-dense store


def gat_attend(mask, xp, asrc_t, adst, bias, bn_scale, bn_shift,
               *, heads, feats, tile_t, tile_k):
    n = xp.shape[0]
    hf = heads * feats
    kernel = functools.partial(gat_attend_kernel, heads=heads, feats=feats)

    streamed = (tile_t * tile_k * 2 + tile_k * hf * 2 + heads * tile_k * 4
                + tile_t * heads * 4 + tile_t * hf * 4)
    resident = (3 * hf * 4 + 2 * tile_t * heads * 4 + tile_t * hf * 4
                + 4 * tile_t * tile_k * 4)
    return pl.pallas_call(
        kernel,
        out_shape=jax.ShapeDtypeStruct((n, hf), jnp.float32),
        grid=(n // tile_t, n // tile_k),
        in_specs=[
            pl.BlockSpec((tile_t, tile_k), lambda i, k: (i, k)),   # additive edge-mask block
            pl.BlockSpec((tile_k, hf), lambda i, k: (k, 0)),       # xp of the source block
            pl.BlockSpec((heads, tile_k), lambda i, k: (0, k)),    # alpha_src lane rows
            pl.BlockSpec((tile_t, heads), lambda i, k: (i, 0)),    # alpha_dst of target rows
            pl.BlockSpec((1, hf), lambda i, k: (0, 0)),            # GATConv bias
            pl.BlockSpec((1, hf), lambda i, k: (0, 0)),            # BN scale (folded)
            pl.BlockSpec((1, hf), lambda i, k: (0, 0)),            # BN shift (folded)
        ],
        out_specs=pl.BlockSpec((tile_t, hf), lambda i, k: (i, 0)),
        scratch_shapes=[pltpu.VMEM((tile_t, heads), jnp.float32),   # running max
                        pltpu.VMEM((tile_t, heads), jnp.float32),   # running denom
                        pltpu.VMEM((tile_t, hf), jnp.float32)],     # accumulator
        compiler_params=_compiler_params(streamed, resident, ("parallel", "arbitrary")),
    )(mask, xp, asrc_t, adst, bias, bn_scale, bn_shift)


# --------------------------------------------------------------------------
# (C) Final fused kernel: layer-3 attention (heads=1, concat=False) + ReLU + BN +
#     global_mean_pool + Linear.  Only the [G, C] logits ever hit HBM.
# --------------------------------------------------------------------------
def gat_final_kernel(mask_ref, xp_ref, asrc_ref, adst_ref, bias_ref, scale_ref, shift_ref,
                     pool_ref, wfc_ref, bfc_ref, out_ref,
                     m_sc, l_sc, acc_sc, pooled_sc, *, negative_slope=0.2):
    i = pl.program_id(0)
    k = pl.program_id(1)
    last_i = pl.num_programs(0) - 1
    last_k = pl.num_programs(1) - 1

    @pl.when(jnp.logical_and(i == 0, k == 0))
    def _init_pool():
        pooled_sc[...] = jnp.zeros_like(pooled_sc)

    @pl.when(k == 0)
    def _init_row():
        m_sc[...] = jnp.full_like(m_sc, M_FLOOR)
        l_sc[...] = jnp.zeros_like(l_sc)
        acc_sc[...] = jnp.zeros_like(acc_sc)

    e = adst_ref[...] + asrc_ref[...]                                # [T,1]+[1,TK] -> [T,TK]
    e = jnp.maximum(e, negative_slope * e) + mask_ref[...].astype(jnp.float32)
    m_new = jnp.maximum(m_sc[...], jnp.max(e, axis=-1, keepdims=True))
    a = jnp.exp(m_sc[...] - m_new)
    p = jnp.exp(e - m_new)                                           # masked entries -> 0
    l_sc[...] = a * l_sc[...] + jnp.sum(p, axis=-1, keepdims=True)
    acc_sc[...] = a * acc_sc[...] + jnp.dot(p.astype(jnp.bfloat16), xp_ref[...],
                                            preferred_element_type=jnp.float32)
    m_sc[...] = m_new

    @pl.when(k == last_k)
    def _finish_rows():
        inv = pl.reciprocal(jnp.maximum(l_sc[...], jnp.float32(1e-37)), approx=True)
        y = jnp.maximum(acc_sc[...] * inv + bias_ref[...], 0.0)      # heads=1 -> mean == identity
        y = y * scale_ref[...] + shift_ref[...]                      # BN3 (eval)
        # Partial global_mean_pool for this row tile (contract over the node axis).
        pooled_sc[...] += jax.lax.dot_general(
            pool_ref[...], y, (((0,), (0,)), ((), ())),
            preferred_element_type=jnp.float32)                      # [G, F]

    @pl.when(jnp.logical_and(i == last_i, k == last_k))
    def _fc():
        out_ref[...] = (jnp.dot(pooled_sc[...], wfc_ref[...],
                                preferred_element_type=jnp.float32) + bfc_ref[...])


def gat_attend_pool_fc(mask, xp, asrc_t, adst, bias, bn_scale, bn_shift, pool_t, w_fc, b_fc,
                       *, feats, tile_t, tile_k):
    n = xp.shape[0]
    g = pool_t.shape[1]
    c = w_fc.shape[1]

    streamed = (tile_t * tile_k * 2 + tile_k * feats * 2 + tile_k * 4
                + tile_t * 4 + tile_t * g * 4)
    resident = (3 * feats * 4 + feats * c * 4 + c * 4 + 2 * tile_t * 4
                + tile_t * feats * 4 + g * feats * 4 + 4 * tile_t * tile_k * 4 + g * c * 4)
    return pl.pallas_call(
        gat_final_kernel,
        out_shape=jax.ShapeDtypeStruct((g, c), jnp.float32),
        grid=(n // tile_t, n // tile_k),
        in_specs=[
            pl.BlockSpec((tile_t, tile_k), lambda i, k: (i, k)),    # edge-mask block
            pl.BlockSpec((tile_k, feats), lambda i, k: (k, 0)),     # xp of the source block
            pl.BlockSpec((1, tile_k), lambda i, k: (0, k)),         # alpha_src [1, N] lane row
            pl.BlockSpec((tile_t, 1), lambda i, k: (i, 0)),         # alpha_dst [N, 1]
            pl.BlockSpec((1, feats), lambda i, k: (0, 0)),          # GATConv bias
            pl.BlockSpec((1, feats), lambda i, k: (0, 0)),          # BN scale
            pl.BlockSpec((1, feats), lambda i, k: (0, 0)),          # BN shift
            pl.BlockSpec((tile_t, g), lambda i, k: (i, 0)),         # pooling weights (1/count)
            pl.BlockSpec((feats, c), lambda i, k: (0, 0)),          # FC weight
            pl.BlockSpec((1, c), lambda i, k: (0, 0)),              # FC bias
        ],
        out_specs=pl.BlockSpec((g, c), lambda i, k: (0, 0)),
        scratch_shapes=[pltpu.VMEM((tile_t, 1), jnp.float32),       # running max
                        pltpu.VMEM((tile_t, 1), jnp.float32),       # running denom
                        pltpu.VMEM((tile_t, feats), jnp.float32),   # per-row accumulator
                        pltpu.VMEM((g, feats), jnp.float32)],       # pooled accumulator
        compiler_params=_compiler_params(streamed, resident, ("arbitrary", "arbitrary")),
    )(mask, xp, asrc_t, adst, bias, bn_scale, bn_shift, pool_t, w_fc, b_fc)


# --------------------------------------------------------------------------
# Full GAT forward (glue in plain JAX, hot paths in Pallas).
# --------------------------------------------------------------------------
def gat_forward(params, x, mask, pool_t, *, hidden, num_heads=4):
    n = x.shape[0]
    tp = _pick_proj_tile(n)
    tt = _pick_row_tile(n)
    tk = _pick_k_tile(n)

    def bn(idx):
        return _fold_bn(params[f"bn{idx}_gamma"], params[f"bn{idx}_beta"],
                        params[f"bn{idx}_mean"], params[f"bn{idx}_var"])

    def project(h, idx, heads):
        return gat_project(h, params[f"w{idx}"], params[f"a{idx}_src"], params[f"a{idx}_dst"],
                           heads=heads, feats=hidden, tile=tp)

    # conv1 + ReLU + bn1 (dropout = identity in eval)
    sc1, sh1 = bn(1)
    xp, a_s, a_d = project(x, 1, num_heads)
    h = gat_attend(mask, xp, a_s, a_d, params["b1"], sc1, sh1,
                   heads=num_heads, feats=hidden, tile_t=tt, tile_k=tk)
    # conv2 + ReLU + bn2
    sc2, sh2 = bn(2)
    xp, a_s, a_d = project(h, 2, 4)
    h = gat_attend(mask, xp, a_s, a_d, params["b2"], sc2, sh2,
                   heads=4, feats=hidden, tile_t=tt, tile_k=tk)
    # conv3 (heads=1, concat=False) + ReLU + bn3 + global_mean_pool + fc, all fused
    sc3, sh3 = bn(3)
    xp, a_s, a_d = project(h, 3, 1)
    return gat_attend_pool_fc(mask, xp, a_s, a_d, params["b3"], sc3, sh3,
                              pool_t, params["w_fc"], params["b_fc"],
                              feats=hidden, tile_t=tt, tile_k=tk)


def init_params(key, in_channels, hidden, num_classes, num_heads=4):
    ks = jax.random.split(key, 16)

    def nrm(k, shp, s=0.1):
        return (s * jax.random.normal(k, shp)).astype(jnp.float32)

    def bn(k, d):
        k1, k2, k3, k4 = jax.random.split(k, 4)
        return {
            "gamma": (1.0 + 0.05 * jax.random.normal(k1, (1, d))).astype(jnp.float32),
            "beta": nrm(k2, (1, d)),
            "mean": nrm(k3, (1, d)),
            "var": (1.0 + 0.1 * jax.random.uniform(k4, (1, d))).astype(jnp.float32),
        }

    hH = hidden * num_heads
    p = {
        "w1": nrm(ks[0], (in_channels, hH)),
        "a1_src": nrm(ks[1], (num_heads, hidden)),
        "a1_dst": nrm(ks[2], (num_heads, hidden)),
        "b1": jnp.zeros((1, hH), jnp.float32),
        "w2": nrm(ks[3], (hH, hidden * 4)),
        "a2_src": nrm(ks[4], (4, hidden)),
        "a2_dst": nrm(ks[5], (4, hidden)),
        "b2": jnp.zeros((1, hidden * 4), jnp.float32),
        "w3": nrm(ks[6], (hidden * 4, hidden)),
        "a3_src": nrm(ks[7], (1, hidden)),
        "a3_dst": nrm(ks[8], (1, hidden)),
        "b3": jnp.zeros((1, hidden), jnp.float32),
        "w_fc": nrm(ks[9], (hidden, num_classes)),
        "b_fc": nrm(ks[10], (1, num_classes)),
    }
    for idx, d, k in ((1, hH, ks[11]), (2, hidden * 4, ks[12]), (3, hidden, ks[13])):
        stats = bn(k, d)
        p[f"bn{idx}_gamma"] = stats["gamma"]
        p[f"bn{idx}_beta"] = stats["beta"]
        p[f"bn{idx}_mean"] = stats["mean"]
        p[f"bn{idx}_var"] = stats["var"]
    return p


if __name__ == "__main__":
    key = jax.random.PRNGKey(0)
    # hidden=32 with 4 heads -> 128-lane (lane-dense) layer outputs.
    in_channels, hidden_units, num_classes, num_heads = 16, 32, 3, 4
    n_graphs, nodes_per_graph = 4, 64
    n_nodes = n_graphs * nodes_per_graph          # 256 nodes -> row tile 64, k tile 128

    k_x, k_p = jax.random.split(key)
    x = jax.random.normal(k_x, (n_nodes, in_channels), jnp.float32)

    # Bidirectional ring edges within each graph (every node has >= 2 incoming edges).
    srcs, dsts = [], []
    for g in range(n_graphs):
        base = g * nodes_per_graph
        for i in range(nodes_per_graph):
            j = (i + 1) % nodes_per_graph
            srcs += [base + i, base + j]
            dsts += [base + j, base + i]
    edge_index = jnp.array([srcs, dsts], jnp.int32)                                  # [2, 512]
    batch = jnp.repeat(jnp.arange(n_graphs, dtype=jnp.int32), nodes_per_graph)       # [256]

    params = init_params(k_p, in_channels, hidden_units, num_classes, num_heads)

    # Static graph structure -> additive bf16 edge mask and [N, G] mean-pool weights are built
    # once, OUTSIDE the jitted forward, and shared by all three layers.
    mask = jnp.full((n_nodes, n_nodes), MASK_VAL, jnp.bfloat16)
    mask = mask.at[edge_index[1], edge_index[0]].set(0)          # mask[dst, src] = 0 on edges
    one_hot = (batch[:, None] == jnp.arange(n_graphs)[None, :]).astype(jnp.float32)  # [N, G]
    pool_t = one_hot / jnp.maximum(one_hot.sum(axis=0, keepdims=True), 1.0)

    fwd = jax.jit(functools.partial(gat_forward, hidden=hidden_units, num_heads=num_heads))
    out = fwd(params, x, mask, pool_t)            # [4, 3]
    out = jax.block_until_ready(out)
    assert out.shape == (n_graphs, num_classes)
    assert bool(jnp.all(jnp.isfinite(out)))
    print("KERNEL_OK")
</pallas_src>

<mosaic_0001>
module attributes {stable_mosaic.version = 11 : i64} {
  func.func @gat_project_kernel(%arg0: i32, %arg1: memref<128x16xf32, #tpu.memory_space<vmem>>, %arg2: memref<16x128xbf16, #tpu.memory_space<vmem>>, %arg3: memref<128x8xbf16, #tpu.memory_space<vmem>>, %arg4: memref<128x128xbf16, #tpu.memory_space<vmem>>, %arg5: memref<4x128xf32, #tpu.memory_space<vmem>>, %arg6: memref<128x4xf32, #tpu.memory_space<vmem>>) attributes {dimension_semantics = [#tpu.dimension_semantics<parallel>], iteration_bounds = array<i64: 2>, scalar_prefetch = 0 : i64, scratch_operands = 0 : i64, tpu.core_type = #tpu.core_type<tc>, window_params = [{transform_indices = @transform_0, window_bounds = array<i64: 128, 16>}, {pipeline_mode = #tpu.pipeline_mode<synchronous>, transform_indices = @transform_1, window_bounds = array<i64: 16, 128>}, {pipeline_mode = #tpu.pipeline_mode<synchronous>, transform_indices = @transform_2, window_bounds = array<i64: 128, 8>}, {transform_indices = @transform_3, window_bounds = array<i64: 128, 128>}, {transform_indices = @transform_4, window_bounds = array<i64: 4, 128>}, {transform_indices = @transform_5, window_bounds = array<i64: 128, 4>}]} {
    %c0 = arith.constant 0 : index
    %c0_0 = arith.constant 0 : index
    %0 = vector.load %arg1[%c0, %c0_0] : memref<128x16xf32, #tpu.memory_space<vmem>>, vector<128x16xf32>
    %1 = arith.truncf %0 : vector<128x16xf32> to vector<128x16xbf16>
    %c0_1 = arith.constant 0 : index
    %c0_2 = arith.constant 0 : index
    %2 = vector.load %arg2[%c0_1, %c0_2] : memref<16x128xbf16, #tpu.memory_space<vmem>>, vector<16x128xbf16>
    %cst = arith.constant dense<0.000000e+00> : vector<128x128xf32>
    %3 = tpu.matmul %1, %2, %cst {dimension_numbers = #tpu.dot_dimension_numbers<[1], [0], [0], [1], [0, 0, 1, 1], [], []>} : vector<128x16xbf16>, vector<16x128xbf16>, vector<128x128xf32> -> vector<128x128xf32>
    %4 = arith.truncf %3 : vector<128x128xf32> to vector<128x128xbf16>
    %c0_3 = arith.constant 0 : index
    %c0_4 = arith.constant 0 : index
    %5 = vector.load %arg3[%c0_3, %c0_4] : memref<128x8xbf16, #tpu.memory_space<vmem>>, vector<128x8xbf16>
    %cst_5 = arith.constant dense<0.000000e+00> : vector<128x8xf32>
    %6 = tpu.matmul %4, %5, %cst_5 {dimension_numbers = #tpu.dot_dimension_numbers<[1], [0], [0], [1], [0, 0, 1, 1], [], []>} : vector<128x128xbf16>, vector<128x8xbf16>, vector<128x8xf32> -> vector<128x8xf32>
    %7 = tpu.transpose %6, [1, 0] : vector<128x8xf32> -> vector<8x128xf32>
    %8 = vector.extract_strided_slice %7 {offsets = [0, 0], sizes = [4, 128], strides = [1, 1]} : vector<8x128xf32> to vector<4x128xf32>
    %c0_6 = arith.constant 0 : index
    %c0_7 = arith.constant 0 : index
    %9 = vector.load %arg5[%c0_6, %c0_7] : memref<4x128xf32, #tpu.memory_space<vmem>>, vector<4x128xf32>
    tpu.vector_store %arg5[%c0_6, %c0_7], %8 {strides = array<i32>} : memref<4x128xf32, #tpu.memory_space<vmem>>, vector<4x128xf32>,
    %10 = vector.extract_strided_slice %6 {offsets = [0, 4], sizes = [128, 4], strides = [1, 1]} : vector<128x8xf32> to vector<128x4xf32>
    %c0_8 = arith.constant 0 : index
    %c0_9 = arith.constant 0 : index
    %11 = vector.load %arg6[%c0_8, %c0_9] : memref<128x4xf32, #tpu.memory_space<vmem>>, vector<128x4xf32>
    tpu.vector_store %arg6[%c0_8, %c0_9], %10 {strides = array<i32>} : memref<128x4xf32, #tpu.memory_space<vmem>>, vector<128x4xf32>,
    %c0_10 = arith.constant 0 : index
    %c0_11 = arith.constant 0 : index
    %12 = vector.load %arg4[%c0_10, %c0_11] : memref<128x128xbf16, #tpu.memory_space<vmem>>, vector<128x128xbf16>
    tpu.vector_store %arg4[%c0_10, %c0_11], %4 {strides = array<i32>} : memref<128x128xbf16, #tpu.memory_space<vmem>>, vector<128x128xbf16>,
    return
  }
  func.func @transform_0(%arg0: i32) -> (i32, i32) {
    %c0_i32 = arith.constant 0 : i32
    %c0_i32_0 = arith.constant 0 : i32
    return %arg0, %c0_i32 : i32, i32
  }
  func.func @transform_1(%arg0: i32) -> (i32, i32) {
    %c0_i32 = arith.constant 0 : i32
    %c0_i32_0 = arith.constant 0 : i32
    %c0_i32_1 = arith.constant 0 : i32
    return %c0_i32, %c0_i32_0 : i32, i32
  }
  func.func @transform_2(%arg0: i32) -> (i32, i32) {
    %c0_i32 = arith.constant 0 : i32
    %c0_i32_0 = arith.constant 0 : i32
    %c0_i32_1 = arith.constant 0 : i32
    return %c0_i32, %c0_i32_0 : i32, i32
  }
  func.func @transform_3(%arg0: i32) -> (i32, i32) {
    %c0_i32 = arith.constant 0 : i32
    %c0_i32_0 = arith.constant 0 : i32
    return %arg0, %c0_i32 : i32, i32
  }
  func.func @transform_4(%arg0: i32) -> (i32, i32) {
    %c0_i32 = arith.constant 0 : i32
    %c0_i32_0 = arith.constant 0 : i32
    return %c0_i32, %arg0 : i32, i32
  }
  func.func @transform_5(%arg0: i32) -> (i32, i32) {
    %c0_i32 = arith.constant 0 : i32
    %c0_i32_0 = arith.constant 0 : i32
    return %arg0, %c0_i32 : i32, i32
  }
}

module attributes {stable_mosaic.version = 11 : i64} {
  func.func @gat_attend_kernel(%arg0: i32, %arg1: i32, %arg2: memref<64x128xbf16, #tpu.memory_space<vmem>>, %arg3: memref<128x128xbf16, #tpu.memory_space<vmem>>, %arg4: memref<4x128xf32, #tpu.memory_space<vmem>>, %arg5: memref<64x4xf32, #tpu.memory_space<vmem>>, %arg6: memref<1x128xf32, #tpu.memory_space<vmem>>, %arg7: memref<1x128xf32, #tpu.memory_space<vmem>>, %arg8: memref<1x128xf32, #tpu.memory_space<vmem>>, %arg9: memref<64x128xf32, #tpu.memory_space<vmem>>, %arg10: memref<64x4xf32, #tpu.memory_space<vmem>>, %arg11: memref<64x4xf32, #tpu.memory_space<vmem>>, %arg12: memref<64x128xf32, #tpu.memory_space<vmem>>) attributes {dimension_semantics = [#tpu.dimension_semantics<parallel>, #tpu.dimension_semantics<arbitrary>], iteration_bounds = array<i64: 4, 2>, scalar_prefetch = 0 : i64, scratch_operands = 3 : i64, tpu.core_type = #tpu.core_type<tc>, window_params = [{transform_indices = @transform_0, window_bounds = array<i64: 64, 128>}, {transform_indices = @transform_1, window_bounds = array<i64: 128, 128>}, {transform_indices = @transform_2, window_bounds = array<i64: 4, 128>}, {transform_indices = @transform_3, window_bounds = array<i64: 64, 4>}, {pipeline_mode = #tpu.pipeline_mode<synchronous>, transform_indices = @transform_4, window_bounds = array<i64: 1, 128>}, {pipeline_mode = #tpu.pipeline_mode<synchronous>, transform_indices = @transform_5, window_bounds = array<i64: 1, 128>}, {pipeline_mode = #tpu.pipeline_mode<synchronous>, transform_indices = @transform_6, window_bounds = array<i64: 1, 128>}, {transform_indices = @transform_7, window_bounds = array<i64: 64, 128>}]} {
    %c0_i32 = arith.constant 0 : i32
    %0 = arith.cmpi eq, %arg1, %c0_i32 : i32
    %1 = arith.extui %0 : i1 to i32
    %c0_i32_0 = arith.constant 0 : i32
    %2 = arith.cmpi ne, %1, %c0_i32_0 : i32
    scf.if %2 {
      %cst_36 = arith.constant -1.000000e+20 : f32
      %139 = vector.broadcast %cst_36 : f32 to vector<64x4xf32>
      %c0_37 = arith.constant 0 : index
      %c0_38 = arith.constant 0 : index
      %140 = vector.load %arg10[%c0_37, %c0_38] : memref<64x4xf32, #tpu.memory_space<vmem>>, vector<64x4xf32>
      tpu.vector_store %arg10[%c0_37, %c0_38], %139 {strides = array<i32>} : memref<64x4xf32, #tpu.memory_space<vmem>>, vector<64x4xf32>,
      %cst_39 = arith.constant 0.000000e+00 : f32
      %141 = vector.broadcast %cst_39 : f32 to vector<64x4xf32>
      %c0_40 = arith.constant 0 : index
      %c0_41 = arith.constant 0 : index
      %142 = vector.load %arg11[%c0_40, %c0_41] : memref<64x4xf32, #tpu.memory_space<vmem>>, vector<64x4xf32>
      tpu.vector_store %arg11[%c0_40, %c0_41], %141 {strides = array<i32>} : memref<64x4xf32, #tpu.memory_space<vmem>>, vector<64x4xf32>,
      %cst_42 = arith.constant 0.000000e+00 : f32
      %143 = vector.broadcast %cst_42 : f32 to vector<64x128xf32>
      %c0_43 = arith.constant 0 : index
      %c0_44 = arith.constant 0 : index
      %144 = vector.load %arg12[%c0_43, %c0_44] : memref<64x128xf32, #tpu.memory_space<vmem>>, vector<64x128xf32>
      tpu.vector_store %arg12[%c0_43, %c0_44], %143 {strides = array<i32>} : memref<64x128xf32, #tpu.memory_space<vmem>>, vector<64x128xf32>,
    } else {
    }
    %c0 = arith.constant 0 : index
    %c0_1 = arith.constant 0 : index
    %3 = vector.load %arg2[%c0, %c0_1] : memref<64x128xbf16, #tpu.memory_space<vmem>>, vector<64x128xbf16>
    %4 = arith.extf %3 : vector<64x128xbf16> to vector<64x128xf32>
    %c0_2 = arith.constant 0 : index
    %c0_3 = arith.constant 0 : index
    %5 = vector.load %arg3[%c0_2, %c0_3] : memref<128x128xbf16, #tpu.memory_space<vmem>>, vector<128x128xbf16>
    %c0_4 = arith.constant 0 : index
    %c0_5 = arith.constant 0 : index
    %6 = vector.load %arg4[%c0_4, %c0_5] : memref<4x128xf32, #tpu.memory_space<vmem>>, vector<4x128xf32>
    %c0_6 = arith.constant 0 : index
    %c0_7 = arith.constant 0 : index
    %7 = vector.load %arg5[%c0_6, %c0_7] : memref<64x4xf32, #tpu.memory_space<vmem>>, vector<64x4xf32>
    %c0_8 = arith.constant 0 : index
    %c0_9 = arith.constant 0 : index
    %8 = vector.load %arg10[%c0_8, %c0_9] : memref<64x4xf32, #tpu.memory_space<vmem>>, vector<64x4xf32>
    %c0_10 = arith.constant 0 : index
    %c0_11 = arith.constant 0 : index
    %9 = vector.load %arg11[%c0_10, %c0_11] : memref<64x4xf32, #tpu.memory_space<vmem>>, vector<64x4xf32>
    %10 = vector.extract_strided_slice %7 {offsets = [0, 0], sizes = [64, 1], strides = [1, 1]} : vector<64x4xf32> to vector<64x1xf32>
    %11 = vector.extract_strided_slice %6 {offsets = [0, 0], sizes = [1, 128], strides = [1, 1]} : vector<4x128xf32> to vector<1x128xf32>
    %12 = vector.broadcast %10 : vector<64x1xf32> to vector<64x128xf32>
    %13 = vector.broadcast %11 : vector<1x128xf32> to vector<64x128xf32>
    %14 = arith.addf %12, %13 : vector<64x128xf32>
    %cst = arith.constant 2.000000e-01 : f32
    %15 = vector.broadcast %cst : f32 to vector<64x128xf32>
    %16 = arith.mulf %15, %14 : vector<64x128xf32>
    %17 = arith.maximumf %14, %16 : vector<64x128xf32>
    %18 = arith.addf %17, %4 : vector<64x128xf32>
    %19 = vector.extract_strided_slice %8 {offsets = [0, 0], sizes = [64, 1], strides = [1, 1]} : vector<64x4xf32> to vector<64x1xf32>
    %cst_12 = arith.constant dense<0xFF800000> : vector<64xf32>
    %20 = vector.multi_reduction <maximumf>, %18, %cst_12 [1] : vector<64x128xf32> to vector<64xf32>
    %21 = vector.shape_cast %20 : vector<64xf32> to vector<64x1xf32>
    %22 = arith.maximumf %19, %21 : vector<64x1xf32>
    %23 = vector.extract_strided_slice %8 {offsets = [0, 0], sizes = [64, 1], strides = [1, 1]} : vector<64x4xf32> to vector<64x1xf32>
    %24 = arith.subf %23, %22 : vector<64x1xf32>
    %25 = math.exp %24 : vector<64x1xf32>
    %26 = vector.broadcast %22 : vector<64x1xf32> to vector<64x128xf32>
    %27 = arith.subf %18, %26 : vector<64x128xf32>
    %28 = math.exp %27 : vector<64x128xf32>
    %29 = vector.extract_strided_slice %9 {offsets = [0, 0], sizes = [64, 1], strides = [1, 1]} : vector<64x4xf32> to vector<64x1xf32>
    %30 = arith.mulf %25, %29 : vector<64x1xf32>
    %cst_13 = arith.constant dense<0.000000e+00> : vector<64xf32>
    %31 = vector.multi_reduction <add>, %28, %cst_13 [1] : vector<64x128xf32> to vector<64xf32>
    %32 = vector.shape_cast %31 : vector<64xf32> to vector<64x1xf32>
    %33 = arith.addf %30, %32 : vector<64x1xf32>
    %34 = vector.shape_cast %25 : vector<64x1xf32> to vector<64x1xf32>
    %35 = vector.broadcast %34 : vector<64x1xf32> to vector<64x32xf32>
    %36 = arith.truncf %28 : vector<64x128xf32> to vector<64x128xbf16>
    %37 = vector.extract_strided_slice %5 {offsets = [0, 0], sizes = [128, 32], strides = [1, 1]} : vector<128x128xbf16> to vector<128x32xbf16>
    %cst_14 = arith.constant dense<0.000000e+00> : vector<64x32xf32>
    %38 = tpu.matmul %36, %37, %cst_14 {dimension_numbers = #tpu.dot_dimension_numbers<[1], [0], [0], [1], [0, 0, 1, 1], [], []>} : vector<64x128xbf16>, vector<128x32xbf16>, vector<64x32xf32> -> vector<64x32xf32>
    %39 = vector.extract_strided_slice %7 {offsets = [0, 1], sizes = [64, 1], strides = [1, 1]} : vector<64x4xf32> to vector<64x1xf32>
    %40 = vector.extract_strided_slice %6 {offsets = [1, 0], sizes = [1, 128], strides = [1, 1]} : vector<4x128xf32> to vector<1x128xf32>
    %41 = vector.broadcast %39 : vector<64x1xf32> to vector<64x128xf32>
    %42 = vector.broadcast %40 : vector<1x128xf32> to vector<64x128xf32>
    %43 = arith.addf %41, %42 : vector<64x128xf32>
    %cst_15 = arith.constant 2.000000e-01 : f32
    %44 = vector.broadcast %cst_15 : f32 to vector<64x128xf32>
    %45 = arith.mulf %44, %43 : vector<64x128xf32>
    %46 = arith.maximumf %43, %45 : vector<64x128xf32>
    %47 = arith.addf %46, %4 : vector<64x128xf32>
    %48 = vector.extract_strided_slice %8 {offsets = [0, 1], sizes = [64, 1], strides = [1, 1]} : vector<64x4xf32> to vector<64x1xf32>
    %cst_16 = arith.constant dense<0xFF800000> : vector<64xf32>
    %49 = vector.multi_reduction <maximumf>, %47, %cst_16 [1] : vector<64x128xf32> to vector<64xf32>
    %50 = vector.shape_cast %49 : vector<64xf32> to vector<64x1xf32>
    %51 = arith.maximumf %48, %50 : vector<64x1xf32>
    %52 = vector.extract_strided_slice %8 {offsets = [0, 1], sizes = [64, 1], strides = [1, 1]} : vector<64x4xf32> to vector<64x1xf32>
    %53 = arith.subf %52, %51 : vector<64x1xf32>
    %54 = math.exp %53 : vector<64x1xf32>
    %55 = vector.broadcast %51 : vector<64x1xf32> to vector<64x128xf32>
    %56 = arith.subf %47, %55 : vector<64x128xf32>
    %57 = math.exp %56 : vector<64x128xf32>
    %58 = vector.extract_strided_slice %9 {offsets = [0, 1], sizes = [64, 1], strides = [1, 1]} : vector<64x4xf32> to vector<64x1xf32>
    %59 = arith.mulf %54, %58 : vector<64x1xf32>
    %cst_17 = arith.constant dense<0.000000e+00> : vector<64xf32>
    %60 = vector.multi_reduction <add>, %57, %cst_17 [1] : vector<64x128xf32> to vector<64xf32>
    %61 = vector.shape_cast %60 : vector<64xf32> to vector<64x1xf32>
    %62 = arith.addf %59, %61 : vector<64x1xf32>
    %63 = vector.shape_cast %54 : vector<64x1xf32> to vector<64x1xf32>
    %64 = vector.broadcast %63 : vector<64x1xf32> to vector<64x32xf32>
    %65 = arith.truncf %57 : vector<64x128xf32> to vector<64x128xbf16>
    %66 = vector.extract_strided_slice %5 {offsets = [0, 32], sizes = [128, 32], strides = [1, 1]} : vector<128x128xbf16> to vector<128x32xbf16>
    %cst_18 = arith.constant dense<0.000000e+00> : vector<64x32xf32>
    %67 = tpu.matmul %65, %66, %cst_18 {dimension_numbers = #tpu.dot_dimension_numbers<[1], [0], [0], [1], [0, 0, 1, 1], [], []>} : vector<64x128xbf16>, vector<128x32xbf16>, vector<64x32xf32> -> vector<64x32xf32>
    %68 = vector.extract_strided_slice %7 {offsets = [0, 2], sizes = [64, 1], strides = [1, 1]} : vector<64x4xf32> to vector<64x1xf32>
    %69 = vector.extract_strided_slice %6 {offsets = [2, 0], sizes = [1, 128], strides = [1, 1]} : vector<4x128xf32> to vector<1x128xf32>
    %70 = vector.broadcast %68 : vector<64x1xf32> to vector<64x128xf32>
    %71 = vector.broadcast %69 : vector<1x128xf32> to vector<64x128xf32>
    %72 = arith.addf %70, %71 : vector<64x128xf32>
    %cst_19 = arith.constant 2.000000e-01 : f32
    %73 = vector.broadcast %cst_19 : f32 to vector<64x128xf32>
    %74 = arith.mulf %73, %72 : vector<64x128xf32>
    %75 = arith.maximumf %72, %74 : vector<64x128xf32>
    %76 = arith.addf %75, %4 : vector<64x128xf32>
    %77 = vector.extract_strided_slice %8 {offsets = [0, 2], sizes = [64, 1], strides = [1, 1]} : vector<64x4xf32> to vector<64x1xf32>
    %cst_20 = arith.constant dense<0xFF800000> : vector<64xf32>
    %78 = vector.multi_reduction <maximumf>, %76, %cst_20 [1] : vector<64x128xf32> to vector<64xf32>
    %79 = vector.shape_cast %78 : vector<64xf32> to vector<64x1xf32>
    %80 = arith.maximumf %77, %79 : vector<64x1xf32>
    %81 = vector.extract_strided_slice %8 {offsets = [0, 2], sizes = [64, 1], strides = [1, 1]} : vector<64x4xf32> to vector<64x1xf32>
    %82 = arith.subf %81, %80 : vector<64x1xf32>
    %83 = math.exp %82 : vector<64x1xf32>
    %84 = vector.broadcast %80 : vector<64x1xf32> to vector<64x128xf32>
    %85 = arith.subf %76, %84 : vector<64x128xf32>
    %86 = math.exp %85 : vector<64x128xf32>
    %87 = vector.extract_strided_slice %9 {offsets = [0, 2], sizes = [64, 1], strides = [1, 1]} : vector<64x4xf32> to vector<64x1xf32>
    %88 = arith.mulf %83, %87 : vector<64x1xf32>
    %cst_21 = arith.constant dense<0.000000e+00> : vector<64xf32>
    %89 = vector.multi_reduction <add>, %86, %cst_21 [1] : vector<64x128xf32> to vector<64xf32>
    %90 = vector.shape_cast %89 : vector<64xf32> to vector<64x1xf32>
    %91 = arith.addf %88, %90 : vector<64x1xf32>
    %92 = vector.shape_cast %83 : vector<64x1xf32> to vector<64x1xf32>
    %93 = vector.broadcast %92 : vector<64x1xf32> to vector<64x32xf32>
    %94 = arith.truncf %86 : vector<64x128xf32> to vector<64x128xbf16>
    %95 = vector.extract_strided_slice %5 {offsets = [0, 64], sizes = [128, 32], strides = [1, 1]} : vector<128x128xbf16> to vector<128x32xbf16>
    %cst_22 = arith.constant dense<0.000000e+00> : vector<64x32xf32>
    %96 = tpu.matmul %94, %95, %cst_22 {dimension_numbers = #tpu.dot_dimension_numbers<[1], [0], [0], [1], [0, 0, 1, 1], [], []>} : vector<64x128xbf16>, vector<128x32xbf16>, vector<64x32xf32> -> vector<64x32xf32>
    %97 = vector.extract_strided_slice %7 {offsets = [0, 3], sizes = [64, 1], strides = [1, 1]} : vector<64x4xf32> to vector<64x1xf32>
    %98 = vector.extract_strided_slice %6 {offsets = [3, 0], sizes = [1, 128], strides = [1, 1]} : vector<4x128xf32> to vector<1x128xf32>
    %99 = vector.broadcast %97 : vector<64x1xf32> to vector<64x128xf32>
    %100 = vector.broadcast %98 : vector<1x128xf32> to vector<64x128xf32>
    %101 = arith.addf %99, %100 : vector<64x128xf32>
    %cst_23 = arith.constant 2.000000e-01 : f32
    %102 = vector.broadcast %cst_23 : f32 to vector<64x128xf32>
    %103 = arith.mulf %102, %101 : vector<64x128xf32>
    %104 = arith.maximumf %101, %103 : vector<64x128xf32>
    %105 = arith.addf %104, %4 : vector<64x128xf32>
    %106 = vector.extract_strided_slice %8 {offsets = [0, 3], sizes = [64, 1], strides = [1, 1]} : vector<64x4xf32> to vector<64x1xf32>
    %cst_24 = arith.constant dense<0xFF800000> : vector<64xf32>
    %107 = vector.multi_reduction <maximumf>, %105, %cst_24 [1] : vector<64x128xf32> to vector<64xf32>
    %108 = vector.shape_cast %107 : vector<64xf32> to vector<64x1xf32>
    %109 = arith.maximumf %106, %108 : vector<64x1xf32>
    %110 = vector.extract_strided_slice %8 {offsets = [0, 3], sizes = [64, 1], strides = [1, 1]} : vector<64x4xf32> to vector<64x1xf32>
    %111 = arith.subf %110, %109 : vector<64x1xf32>
    %112 = math.exp %111 : vector<64x1xf32>
    %113 = vector.broadcast %109 : vector<64x1xf32> to vector<64x128xf32>
    %114 = arith.subf %105, %113 : vector<64x128xf32>
    %115 = math.exp %114 : vector<64x128xf32>
    %116 = vector.extract_strided_slice %9 {offsets = [0, 3], sizes = [64, 1], strides = [1, 1]} : vector<64x4xf32> to vector<64x1xf32>
    %117 = arith.mulf %112, %116 : vector<64x1xf32>
    %cst_25 = arith.constant dense<0.000000e+00> : vector<64xf32>
    %118 = vector.multi_reduction <add>, %115, %cst_25 [1] : vector<64x128xf32> to vector<64xf32>
    %119 = vector.shape_cast %118 : vector<64xf32> to vector<64x1xf32>
    %120 = arith.addf %117, %119 : vector<64x1xf32>
    %121 = vector.shape_cast %112 : vector<64x1xf32> to vector<64x1xf32>
    %122 = vector.broadcast %121 : vector<64x1xf32> to vector<64x32xf32>
    %123 = arith.truncf %115 : vector<64x128xf32> to vector<64x128xbf16>
    %124 = vector.extract_strided_slice %5 {offsets = [0, 96], sizes = [128, 32], strides = [1, 1]} : vector<128x128xbf16> to vector<128x32xbf16>
    %cst_26 = arith.constant dense<0.000000e+00> : vector<64x32xf32>
    %125 = tpu.matmul %123, %124, %cst_26 {dimension_numbers = #tpu.dot_dimension_numbers<[1], [0], [0], [1], [0, 0, 1, 1], [], []>} : vector<64x128xbf16>, vector<128x32xbf16>, vector<64x32xf32> -> vector<64x32xf32>
    %126 = tpu.concatenate %22, %51, %80, %109 in 1 : vector<64x1xf32>, vector<64x1xf32>, vector<64x1xf32>, vector<64x1xf32> -> vector<64x4xf32>
    %c0_27 = arith.constant 0 : index
    %c0_28 = arith.constant 0 : index
    %127 = vector.load %arg10[%c0_27, %c0_28] : memref<64x4xf32, #tpu.memory_space<vmem>>, vector<64x4xf32>
    tpu.vector_store %arg10[%c0_27, %c0_28], %126 {strides = array<i32>} : memref<64x4xf32, #tpu.memory_space<vmem>>, vector<64x4xf32>,
    %128 = tpu.concatenate %33, %62, %91, %120 in 1 : vector<64x1xf32>, vector<64x1xf32>, vector<64x1xf32>, vector<64x1xf32> -> vector<64x4xf32>
    %c0_29 = arith.constant 0 : index
    %c0_30 = arith.constant 0 : index
    %129 = vector.load %arg11[%c0_29, %c0_30] : memref<64x4xf32, #tpu.memory_space<vmem>>, vector<64x4xf32>
    tpu.vector_store %arg11[%c0_29, %c0_30], %128 {strides = array<i32>} : memref<64x4xf32, #tpu.memory_space<vmem>>, vector<64x4xf32>,
    %130 = tpu.concatenate %35, %64, %93, %122 in 1 : vector<64x32xf32>, vector<64x32xf32>, vector<64x32xf32>, vector<64x32xf32> -> vector<64x128xf32>
    %c0_31 = arith.constant 0 : index
    %c0_32 = arith.constant 0 : index
    %131 = vector.load %arg12[%c0_31, %c0_32] : memref<64x128xf32, #tpu.memory_space<vmem>>, vector<64x128xf32>
    %132 = arith.mulf %130, %131 : vector<64x128xf32>
    %133 = tpu.concatenate %38, %67, %96, %125 in 1 : vector<64x32xf32>, vector<64x32xf32>, vector<64x32xf32>, vector<64x32xf32> -> vector<64x128xf32>
    %134 = arith.addf %132, %133 : vector<64x128xf32>
    %c0_33 = arith.constant 0 : index
    %c0_34 = arith.constant 0 : index
    %135 = vector.load %arg12[%c0_33, %c0_34] : memref<64x128xf32, #tpu.memory_space<vmem>>, vector<64x128xf32>
    tpu.vector_store %arg12[%c0_33, %c0_34], %134 {strides = array<i32>} : memref<64x128xf32, #tpu.memory_space<vmem>>, vector<64x128xf32>,
    %c1_i32 = arith.constant 1 : i32
    %136 = arith.cmpi eq, %arg1, %c1_i32 : i32
    %137 = arith.extui %136 : i1 to i32
    %c0_i32_35 = arith.constant 0 : i32
    %138 = arith.cmpi ne, %137, %c0_i32_35 : i32
    scf.if %138 {
      %c0_36 = arith.constant 0 : index
      %c0_37 = arith.constant 0 : index
      %139 = vector.load %arg11[%c0_36, %c0_37] : memref<64x4xf32, #tpu.memory_space<vmem>>, vector<64x4xf32>
      %cst_38 = arith.constant 9.99999991E-38 : f32
      %140 = vector.broadcast %cst_38 : f32 to vector<64x4xf32>
      %141 = arith.maximumf %139, %140 : vector<64x4xf32>
      %142 = tpu.reciprocal %141 {approx = true} : vector<64x4xf32> -> vector<64x4xf32>
      %143 = vector.extract_strided_slice %142 {offsets = [0, 0], sizes = [64, 1], strides = [1, 1]} : vector<64x4xf32> to vector<64x1xf32>
      %144 = vector.shape_cast %143 : vector<64x1xf32> to vector<64x1xf32>
      %145 = vector.broadcast %144 : vector<64x1xf32> to vector<64x32xf32>
      %146 = vector.extract_strided_slice %142 {offsets = [0, 1], sizes = [64, 1], strides = [1, 1]} : vector<64x4xf32> to vector<64x1xf32>
      %147 = vector.shape_cast %146 : vector<64x1xf32> to vector<64x1xf32>
      %148 = vector.broadcast %147 : vector<64x1xf32> to vector<64x32xf32>
      %149 = vector.extract_strided_slice %142 {offsets = [0, 2], sizes = [64, 1], strides = [1, 1]} : vector<64x4xf32> to vector<64x1xf32>
      %150 = vector.shape_cast %149 : vector<64x1xf32> to vector<64x1xf32>
      %151 = vector.broadcast %150 : vector<64x1xf32> to vector<64x32xf32>
      %152 = vector.extract_strided_slice %142 {offsets = [0, 3], sizes = [64, 1], strides = [1, 1]} : vector<64x4xf32> to vector<64x1xf32>
      %153 = vector.shape_cast %152 : vector<64x1xf32> to vector<64x1xf32>
      %154 = vector.broadcast %153 : vector<64x1xf32> to vector<64x32xf32>
      %155 = tpu.concatenate %145, %148, %151, %154 in 1 : vector<64x32xf32>, vector<64x32xf32>, vector<64x32xf32>, vector<64x32xf32> -> vector<64x128xf32>
      %c0_39 = arith.constant 0 : index
      %c0_40 = arith.constant 0 : index
      %156 = vector.load %arg12[%c0_39, %c0_40] : memref<64x128xf32, #tpu.memory_space<vmem>>, vector<64x128xf32>
      %157 = arith.mulf %156, %155 : vector<64x128xf32>
      %c0_41 = arith.constant 0 : index
      %c0_42 = arith.constant 0 : index
      %158 = vector.load %arg6[%c0_41, %c0_42] : memref<1x128xf32, #tpu.memory_space<vmem>>, vector<1x128xf32>
      %159 = vector.broadcast %158 : vector<1x128xf32> to vector<64x128xf32>
      %160 = arith.addf %157, %159 : vector<64x128xf32>
      %cst_43 = arith.constant 0.000000e+00 : f32
      %161 = vector.broadcast %cst_43 : f32 to vector<64x128xf32>
      %162 = arith.maximumf %160, %161 : vector<64x128xf32>
      %c0_44 = arith.constant 0 : index
      %c0_45 = arith.constant 0 : index
      %163 = vector.load %arg7[%c0_44, %c0_45] : memref<1x128xf32, #tpu.memory_space<vmem>>, vector<1x128xf32>
      %164 = vector.broadcast %163 : vector<1x128xf32> to vector<64x128xf32>
      %165 = arith.mulf %162, %164 : vector<64x128xf32>
      %c0_46 = arith.constant 0 : index
      %c0_47 = arith.constant 0 : index
      %166 = vector.load %arg8[%c0_46, %c0_47] : memref<1x128xf32, #tpu.memory_space<vmem>>, vector<1x128xf32>
      %167 = vector.broadcast %166 : vector<1x128xf32> to vector<64x128xf32>
      %168 = arith.addf %165, %167 : vector<64x128xf32>
      %c0_48 = arith.constant 0 : index
      %c0_49 = arith.constant 0 : index
      %169 = vector.load %arg9[%c0_48, %c0_49] : memref<64x128xf32, #tpu.memory_space<vmem>>, vector<64x128xf32>
      tpu.vector_store %arg9[%c0_48, %c0_49], %168 {strides = array<i32>} : memref<64x128xf32, #tpu.memory_space<vmem>>, vector<64x128xf32>,
    } else {
    }
    return
  }
  func.func @transform_0(%arg0: i32, %arg1: i32) -> (i32, i32) {
    %c0_i32 = arith.constant 0 : i32
    return %arg0, %arg1 : i32, i32
  }
  func.func @transform_1(%arg0: i32, %arg1: i32) -> (i32, i32) {
    %c0_i32 = arith.constant 0 : i32
    %c0_i32_0 = arith.constant 0 : i32
    return %arg1, %c0_i32 : i32, i32
  }
  func.func @transform_2(%arg0: i32, %arg1: i32) -> (i32, i32) {
    %c0_i32 = arith.constant 0 : i32
    %c0_i32_0 = arith.constant 0 : i32
    return %c0_i32, %arg1 : i32, i32
  }
  func.func @transform_3(%arg0: i32, %arg1: i32) -> (i32, i32) {
    %c0_i32 = arith.constant 0 : i32
    %c0_i32_0 = arith.constant 0 : i32
    return %arg0, %c0_i32 : i32, i32
  }
  func.func @transform_4(%arg0: i32, %arg1: i32) -> (i32, i32) {
    %c0_i32 = arith.constant 0 : i32
    %c0_i32_0 = arith.constant 0 : i32
    %c0_i32_1 = arith.constant 0 : i32
    return %c0_i32, %c0_i32_0 : i32, i32
  }
  func.func @transform_5(%arg0: i32, %arg1: i32) -> (i32, i32) {
    %c0_i32 = arith.constant 0 : i32
    %c0_i32_0 = arith.constant 0 : i32
    %c0_i32_1 = arith.constant 0 : i32
    return %c0_i32, %c0_i32_0 : i32, i32
  }
  func.func @transform_6(%arg0: i32, %arg1: i32) -> (i32, i32) {
    %c0_i32 = arith.constant 0 : i32
    %c0_i32_0 = arith.constant 0 : i32
    %c0_i32_1 = arith.constant 0 : i32
    return %c0_i32, %c0_i32_0 : i32, i32
  }
  func.func @transform_7(%arg0: i32, %arg1: i32) -> (i32, i32) {
    %c0_i32 = arith.constant 0 : i32
    %c0_i32_0 = arith.constant 0 : i32
    return %arg0, %c0_i32 : i32, i32
  }
}

module attributes {stable_mosaic.version = 11 : i64} {
  func.func @gat_project_kernel(%arg0: i32, %arg1: memref<128x128xf32, #tpu.memory_space<vmem>>, %arg2: memref<128x128xbf16, #tpu.memory_space<vmem>>, %arg3: memref<128x8xbf16, #tpu.memory_space<vmem>>, %arg4: memref<128x128xbf16, #tpu.memory_space<vmem>>, %arg5: memref<4x128xf32, #tpu.memory_space<vmem>>, %arg6: memref<128x4xf32, #tpu.memory_space<vmem>>) attributes {dimension_semantics = [#tpu.dimension_semantics<parallel>], iteration_bounds = array<i64: 2>, scalar_prefetch = 0 : i64, scratch_operands = 0 : i64, tpu.core_type = #tpu.core_type<tc>, window_params = [{transform_indices = @transform_0, window_bounds = array<i64: 128, 128>}, {pipeline_mode = #tpu.pipeline_mode<synchronous>, transform_indices = @transform_1, window_bounds = array<i64: 128, 128>}, {pipeline_mode = #tpu.pipeline_mode<synchronous>, transform_indices = @transform_2, window_bounds = array<i64: 128, 8>}, {transform_indices = @transform_3, window_bounds = array<i64: 128, 128>}, {transform_indices = @transform_4, window_bounds = array<i64: 4, 128>}, {transform_indices = @transform_5, window_bounds = array<i64: 128, 4>}]} {
    %c0 = arith.constant 0 : index
    %c0_0 = arith.constant 0 : index
    %0 = vector.load %arg1[%c0, %c0_0] : memref<128x128xf32, #tpu.memory_space<vmem>>, vector<128x128xf32>
    %1 = arith.truncf %0 : vector<128x128xf32> to vector<128x128xbf16>
    %c0_1 = arith.constant 0 : index
    %c0_2 = arith.constant 0 : index
    %2 = vector.load %arg2[%c0_1, %c0_2] : memref<128x128xbf16, #tpu.memory_space<vmem>>, vector<128x128xbf16>
    %cst = arith.constant dense<0.000000e+00> : vector<128x128xf32>
    %3 = tpu.matmul %1, %2, %cst {dimension_numbers = #tpu.dot_dimension_numbers<[1], [0], [0], [1], [0, 0, 1, 1], [], []>} : vector<128x128xbf16>, vector<128x128xbf16>, vector<128x128xf32> -> vector<128x128xf32>
    %4 = arith.truncf %3 : vector<128x128xf32> to vector<128x128xbf16>
    %c0_3 = arith.constant 0 : index
    %c0_4 = arith.constant 0 : index
    %5 = vector.load %arg3[%c0_3, %c0_4] : memref<128x8xbf16, #tpu.memory_space<vmem>>, vector<128x8xbf16>
    %cst_5 = arith.constant dense<0.000000e+00> : vector<128x8xf32>
    %6 = tpu.matmul %4, %5, %cst_5 {dimension_numbers = #tpu.dot_dimension_numbers<[1], [0], [0], [1], [0, 0, 1, 1], [], []>} : vector<128x128xbf16>, vector<128x8xbf16>, vector<128x8xf32> -> vector<128x8xf32>
    %7 = tpu.transpose %6, [1, 0] : vector<128x8xf32> -> vector<8x128xf32>
    %8 = vector.extract_strided_slice %7 {offsets = [0, 0], sizes = [4, 128], strides = [1, 1]} : vector<8x128xf32> to vector<4x128xf32>
    %c0_6 = arith.constant 0 : index
    %c0_7 = arith.constant 0 : index
    %9 = vector.load %arg5[%c0_6, %c0_7] : memref<4x128xf32, #tpu.memory_space<vmem>>, vector<4x128xf32>
    tpu.vector_store %arg5[%c0_6, %c0_7], %8 {strides = array<i32>} : memref<4x128xf32, #tpu.memory_space<vmem>>, vector<4x128xf32>,
    %10 = vector.extract_strided_slice %6 {offsets = [0, 4], sizes = [128, 4], strides = [1, 1]} : vector<128x8xf32> to vector<128x4xf32>
    %c0_8 = arith.constant 0 : index
    %c0_9 = arith.constant 0 : index
    %11 = vector.load %arg6[%c0_8, %c0_9] : memref<128x4xf32, #tpu.memory_space<vmem>>, vector<128x4xf32>
    tpu.vector_store %arg6[%c0_8, %c0_9], %10 {strides = array<i32>} : memref<128x4xf32, #tpu.memory_space<vmem>>, vector<128x4xf32>,
    %c0_10 = arith.constant 0 : index
    %c0_11 = arith.constant 0 : index
    %12 = vector.load %arg4[%c0_10, %c0_11] : memref<128x128xbf16, #tpu.memory_space<vmem>>, vector<128x128xbf16>
    tpu.vector_store %arg4[%c0_10, %c0_11], %4 {strides = array<i32>} : memref<128x128xbf16, #tpu.memory_space<vmem>>, vector<128x128xbf16>,
    return
  }
  func.func @transform_0(%arg0: i32) -> (i32, i32) {
    %c0_i32 = arith.constant 0 : i32
    %c0_i32_0 = arith.constant 0 : i32
    return %arg0, %c0_i32 : i32, i32
  }
  func.func @transform_1(%arg0: i32) -> (i32, i32) {
    %c0_i32 = arith.constant 0 : i32
    %c0_i32_0 = arith.constant 0 : i32
    %c0_i32_1 = arith.constant 0 : i32
    return %c0_i32, %c0_i32_0 : i32, i32
  }
  func.func @transform_2(%arg0: i32) -> (i32, i32) {
    %c0_i32 = arith.constant 0 : i32
    %c0_i32_0 = arith.constant 0 : i32
    %c0_i32_1 = arith.constant 0 : i32
    return %c0_i32, %c0_i32_0 : i32, i32
  }
  func.func @transform_3(%arg0: i32) -> (i32, i32) {
    %c0_i32 = arith.constant 0 : i32
    %c0_i32_0 = arith.constant 0 : i32
    return %arg0, %c0_i32 : i32, i32
  }
  func.func @transform_4(%arg0: i32) -> (i32, i32) {
    %c0_i32 = arith.constant 0 : i32
    %c0_i32_0 = arith.constant 0 : i32
    return %c0_i32, %arg0 : i32, i32
  }
  func.func @transform_5(%arg0: i32) -> (i32, i32) {
    %c0_i32 = arith.constant 0 : i32
    %c0_i32_0 = arith.constant 0 : i32
    return %arg0, %c0_i32 : i32, i32
  }
}

module attributes {stable_mosaic.version = 11 : i64} {
  func.func @gat_project_kernel(%arg0: i32, %arg1: memref<128x128xf32, #tpu.memory_space<vmem>>, %arg2: memref<128x32xbf16, #tpu.memory_space<vmem>>, %arg3: memref<32x2xbf16, #tpu.memory_space<vmem>>, %arg4: memref<128x32xbf16, #tpu.memory_space<vmem>>, %arg5: memref<1x128xf32, #tpu.memory_space<vmem>>, %arg6: memref<128x1xf32, #tpu.memory_space<vmem>>) attributes {dimension_semantics = [#tpu.dimension_semantics<parallel>], iteration_bounds = array<i64: 2>, scalar_prefetch = 0 : i64, scratch_operands = 0 : i64, tpu.core_type = #tpu.core_type<tc>, window_params = [{transform_indices = @transform_0, window_bounds = array<i64: 128, 128>}, {pipeline_mode = #tpu.pipeline_mode<synchronous>, transform_indices = @transform_1, window_bounds = array<i64: 128, 32>}, {pipeline_mode = #tpu.pipeline_mode<synchronous>, transform_indices = @transform_2, window_bounds = array<i64: 32, 2>}, {transform_indices = @transform_3, window_bounds = array<i64: 128, 32>}, {transform_indices = @transform_4, window_bounds = array<i64: 1, 128>}, {transform_indices = @transform_5, window_bounds = array<i64: 128, 1>}]} {
    %c0 = arith.constant 0 : index
    %c0_0 = arith.constant 0 : index
    %0 = vector.load %arg1[%c0, %c0_0] : memref<128x128xf32, #tpu.memory_space<vmem>>, vector<128x128xf32>
    %1 = arith.truncf %0 : vector<128x128xf32> to vector<128x128xbf16>
    %c0_1 = arith.constant 0 : index
    %c0_2 = arith.constant 0 : index
    %2 = vector.load %arg2[%c0_1, %c0_2] : memref<128x32xbf16, #tpu.memory_space<vmem>>, vector<128x32xbf16>
    %cst = arith.constant dense<0.000000e+00> : vector<128x32xf32>
    %3 = tpu.matmul %1, %2, %cst {dimension_numbers = #tpu.dot_dimension_numbers<[1], [0], [0], [1], [0, 0, 1, 1], [], []>} : vector<128x128xbf16>, vector<128x32xbf16>, vector<128x32xf32> -> vector<128x32xf32>
    %4 = arith.truncf %3 : vector<128x32xf32> to vector<128x32xbf16>
    %c0_3 = arith.constant 0 : index
    %c0_4 = arith.constant 0 : index
    %5 = vector.load %arg3[%c0_3, %c0_4] : memref<32x2xbf16, #tpu.memory_space<vmem>>, vector<32x2xbf16>
    %cst_5 = arith.constant dense<0.000000e+00> : vector<128x2xf32>
    %6 = tpu.matmul %4, %5, %cst_5 {dimension_numbers = #tpu.dot_dimension_numbers<[1], [0], [0], [1], [0, 0, 1, 1], [], []>} : vector<128x32xbf16>, vector<32x2xbf16>, vector<128x2xf32> -> vector<128x2xf32>
    %7 = tpu.transpose %6, [1, 0] : vector<128x2xf32> -> vector<2x128xf32>
    %8 = vector.extract_strided_slice %7 {offsets = [0, 0], sizes = [1, 128], strides = [1, 1]} : vector<2x128xf32> to vector<1x128xf32>
    %c0_6 = arith.constant 0 : index
    %c0_7 = arith.constant 0 : index
    %9 = vector.load %arg5[%c0_6, %c0_7] : memref<1x128xf32, #tpu.memory_space<vmem>>, vector<1x128xf32>
    tpu.vector_store %arg5[%c0_6, %c0_7], %8 {strides = array<i32>} : memref<1x128xf32, #tpu.memory_space<vmem>>, vector<1x128xf32>,
    %10 = vector.extract_strided_slice %6 {offsets = [0, 1], sizes = [128, 1], strides = [1, 1]} : vector<128x2xf32> to vector<128x1xf32>
    %c0_8 = arith.constant 0 : index
    %c0_9 = arith.constant 0 : index
    %11 = vector.load %arg6[%c0_8, %c0_9] : memref<128x1xf32, #tpu.memory_space<vmem>>, vector<128x1xf32>
    tpu.vector_store %arg6[%c0_8, %c0_9], %10 {strides = array<i32>} : memref<128x1xf32, #tpu.memory_space<vmem>>, vector<128x1xf32>,
    %c0_10 = arith.constant 0 : index
    %c0_11 = arith.constant 0 : index
    %12 = vector.load %arg4[%c0_10, %c0_11] : memref<128x32xbf16, #tpu.memory_space<vmem>>, vector<128x32xbf16>
    tpu.vector_store %arg4[%c0_10, %c0_11], %4 {strides = array<i32>} : memref<128x32xbf16, #tpu.memory_space<vmem>>, vector<128x32xbf16>,
    return
  }
  func.func @transform_0(%arg0: i32) -> (i32, i32) {
    %c0_i32 = arith.constant 0 : i32
    %c0_i32_0 = arith.constant 0 : i32
    return %arg0, %c0_i32 : i32, i32
  }
  func.func @transform_1(%arg0: i32) -> (i32, i32) {
    %c0_i32 = arith.constant 0 : i32
    %c0_i32_0 = arith.constant 0 : i32
    %c0_i32_1 = arith.constant 0 : i32
    return %c0_i32, %c0_i32_0 : i32, i32
  }
  func.func @transform_2(%arg0: i32) -> (i32, i32) {
    %c0_i32 = arith.constant 0 : i32
    %c0_i32_0 = arith.constant 0 : i32
    %c0_i32_1 = arith.constant 0 : i32
    return %c0_i32, %c0_i32_0 : i32, i32
  }
  func.func @transform_3(%arg0: i32) -> (i32, i32) {
    %c0_i32 = arith.constant 0 : i32
    %c0_i32_0 = arith.constant 0 : i32
    return %arg0, %c0_i32 : i32, i32
  }
  func.func @transform_4(%arg0: i32) -> (i32, i32) {
    %c0_i32 = arith.constant 0 : i32
    %c0_i32_0 = arith.constant 0 : i32
    return %c0_i32, %arg0 : i32, i32
  }
  func.func @transform_5(%arg0: i32) -> (i32, i32) {
    %c0_i32 = arith.constant 0 : i32
    %c0_i32_0 = arith.constant 0 : i32
    return %arg0, %c0_i32 : i32, i32
  }
}

module attributes {stable_mosaic.version = 11 : i64} {
  func.func @gat_final_kernel(%arg0: i32, %arg1: i32, %arg2: memref<64x128xbf16, #tpu.memory_space<vmem>>, %arg3: memref<128x32xbf16, #tpu.memory_space<vmem>>, %arg4: memref<1x128xf32, #tpu.memory_space<vmem>>, %arg5: memref<64x1xf32, #tpu.memory_space<vmem>>, %arg6: memref<1x32xf32, #tpu.memory_space<vmem>>, %arg7: memref<1x32xf32, #tpu.memory_space<vmem>>, %arg8: memref<1x32xf32, #tpu.memory_space<vmem>>, %arg9: memref<64x4xf32, #tpu.memory_space<vmem>>, %arg10: memref<32x3xf32, #tpu.memory_space<vmem>>, %arg11: memref<1x3xf32, #tpu.memory_space<vmem>>, %arg12: memref<4x3xf32, #tpu.memory_space<vmem>>, %arg13: memref<64x1xf32, #tpu.memory_space<vmem>>, %arg14: memref<64x1xf32, #tpu.memory_space<vmem>>, %arg15: memref<64x32xf32, #tpu.memory_space<vmem>>, %arg16: memref<4x32xf32, #tpu.memory_space<vmem>>) attributes {dimension_semantics = [#tpu.dimension_semantics<arbitrary>, #tpu.dimension_semantics<arbitrary>], iteration_bounds = array<i64: 4, 2>, scalar_prefetch = 0 : i64, scratch_operands = 4 : i64, tpu.core_type = #tpu.core_type<tc>, window_params = [{transform_indices = @transform_0, window_bounds = array<i64: 64, 128>}, {transform_indices = @transform_1, window_bounds = array<i64: 128, 32>}, {transform_indices = @transform_2, window_bounds = array<i64: 1, 128>}, {transform_indices = @transform_3, window_bounds = array<i64: 64, 1>}, {pipeline_mode = #tpu.pipeline_mode<synchronous>, transform_indices = @transform_4, window_bounds = array<i64: 1, 32>}, {pipeline_mode = #tpu.pipeline_mode<synchronous>, transform_indices = @transform_5, window_bounds = array<i64: 1, 32>}, {pipeline_mode = #tpu.pipeline_mode<synchronous>, transform_indices = @transform_6, window_bounds = array<i64: 1, 32>}, {transform_indices = @transform_7, window_bounds = array<i64: 64, 4>}, {pipeline_mode = #tpu.pipeline_mode<synchronous>, transform_indices = @transform_8, window_bounds = array<i64: 32, 3>}, {pipeline_mode = #tpu.pipeline_mode<synchronous>, transform_indices = @transform_9, window_bounds = array<i64: 1, 3>}, {pipeline_mode = #tpu.pipeline_mode<synchronous>, transform_indices = @transform_10, window_bounds = array<i64: 4, 3>}]} {
    %c0_i32 = arith.constant 0 : i32
    %0 = arith.cmpi eq, %arg0, %c0_i32 : i32
    %c0_i32_0 = arith.constant 0 : i32
    %1 = arith.cmpi eq, %arg1, %c0_i32_0 : i32
    %2 = arith.andi %0, %1 : i1
    %3 = arith.extui %2 : i1 to i32
    %c0_i32_1 = arith.constant 0 : i32
    %4 = arith.cmpi ne, %3, %c0_i32_1 : i32
    scf.if %4 {
      %cst_31 = arith.constant 0.000000e+00 : f32
      %52 = vector.broadcast %cst_31 : f32 to vector<4x32xf32>
      %c0_32 = arith.constant 0 : index
      %c0_33 = arith.constant 0 : index
      %53 = vector.load %arg16[%c0_32, %c0_33] : memref<4x32xf32, #tpu.memory_space<vmem>>, vector<4x32xf32>
      tpu.vector_store %arg16[%c0_32, %c0_33], %52 {strides = array<i32>} : memref<4x32xf32, #tpu.memory_space<vmem>>, vector<4x32xf32>,
    } else {
    }
    %c0_i32_2 = arith.constant 0 : i32
    %5 = arith.cmpi eq, %arg1, %c0_i32_2 : i32
    %6 = arith.extui %5 : i1 to i32
    %c0_i32_3 = arith.constant 0 : i32
    %7 = arith.cmpi ne, %6, %c0_i32_3 : i32
    scf.if %7 {
      %cst_31 = arith.constant -1.000000e+20 : f32
      %52 = vector.broadcast %cst_31 : f32 to vector<64x1xf32>
      %c0_32 = arith.constant 0 : index
      %c0_33 = arith.constant 0 : index
      %53 = vector.load %arg13[%c0_32, %c0_33] : memref<64x1xf32, #tpu.memory_space<vmem>>, vector<64x1xf32>
      tpu.vector_store %arg13[%c0_32, %c0_33], %52 {strides = array<i32>} : memref<64x1xf32, #tpu.memory_space<vmem>>, vector<64x1xf32>,
      %cst_34 = arith.constant 0.000000e+00 : f32
      %54 = vector.broadcast %cst_34 : f32 to vector<64x1xf32>
      %c0_35 = arith.constant 0 : index
      %c0_36 = arith.constant 0 : index
      %55 = vector.load %arg14[%c0_35, %c0_36] : memref<64x1xf32, #tpu.memory_space<vmem>>, vector<64x1xf32>
      tpu.vector_store %arg14[%c0_35, %c0_36], %54 {strides = array<i32>} : memref<64x1xf32, #tpu.memory_space<vmem>>, vector<64x1xf32>,
      %cst_37 = arith.constant 0.000000e+00 : f32
      %56 = vector.broadcast %cst_37 : f32 to vector<64x32xf32>
      %c0_38 = arith.constant 0 : index
      %c0_39 = arith.constant 0 : index
      %57 = vector.load %arg15[%c0_38, %c0_39] : memref<64x32xf32, #tpu.memory_space<vmem>>, vector<64x32xf32>
      tpu.vector_store %arg15[%c0_38, %c0_39], %56 {strides = array<i32>} : memref<64x32xf32, #tpu.memory_space<vmem>>, vector<64x32xf32>,
    } else {
    }
    %c0 = arith.constant 0 : index
    %c0_4 = arith.constant 0 : index
    %8 = vector.load %arg5[%c0, %c0_4] : memref<64x1xf32, #tpu.memory_space<vmem>>, vector<64x1xf32>
    %c0_5 = arith.constant 0 : index
    %c0_6 = arith.constant 0 : index
    %9 = vector.load %arg4[%c0_5, %c0_6] : memref<1x128xf32, #tpu.memory_space<vmem>>, vector<1x128xf32>
    %10 = vector.broadcast %8 : vector<64x1xf32> to vector<64x128xf32>
    %11 = vector.broadcast %9 : vector<1x128xf32> to vector<64x128xf32>
    %12 = arith.addf %10, %11 : vector<64x128xf32>
    %cst = arith.constant 2.000000e-01 : f32
    %13 = vector.broadcast %cst : f32 to vector<64x128xf32>
    %14 = arith.mulf %13, %12 : vector<64x128xf32>
    %15 = arith.maximumf %12, %14 : vector<64x128xf32>
    %c0_7 = arith.constant 0 : index
    %c0_8 = arith.constant 0 : index
    %16 = vector.load %arg2[%c0_7, %c0_8] : memref<64x128xbf16, #tpu.memory_space<vmem>>, vector<64x128xbf16>
    %17 = arith.extf %16 : vector<64x128xbf16> to vector<64x128xf32>
    %18 = arith.addf %15, %17 : vector<64x128xf32>
    %c0_9 = arith.constant 0 : index
    %c0_10 = arith.constant 0 : index
    %19 = vector.load %arg13[%c0_9, %c0_10] : memref<64x1xf32, #tpu.memory_space<vmem>>, vector<64x1xf32>
    %cst_11 = arith.constant dense<0xFF800000> : vector<64xf32>
    %20 = vector.multi_reduction <maximumf>, %18, %cst_11 [1] : vector<64x128xf32> to vector<64xf32>
    %21 = vector.shape_cast %20 : vector<64xf32> to vector<64x1xf32>
    %22 = arith.maximumf %19, %21 : vector<64x1xf32>
    %c0_12 = arith.constant 0 : index
    %c0_13 = arith.constant 0 : index
    %23 = vector.load %arg13[%c0_12, %c0_13] : memref<64x1xf32, #tpu.memory_space<vmem>>, vector<64x1xf32>
    %24 = arith.subf %23, %22 : vector<64x1xf32>
    %25 = math.exp %24 : vector<64x1xf32>
    %26 = vector.broadcast %22 : vector<64x1xf32> to vector<64x128xf32>
    %27 = arith.subf %18, %26 : vector<64x128xf32>
    %28 = math.exp %27 : vector<64x128xf32>
    %c0_14 = arith.constant 0 : index
    %c0_15 = arith.constant 0 : index
    %29 = vector.load %arg14[%c0_14, %c0_15] : memref<64x1xf32, #tpu.memory_space<vmem>>, vector<64x1xf32>
    %30 = arith.mulf %25, %29 : vector<64x1xf32>
    %cst_16 = arith.constant dense<0.000000e+00> : vector<64xf32>
    %31 = vector.multi_reduction <add>, %28, %cst_16 [1] : vector<64x128xf32> to vector<64xf32>
    %32 = vector.shape_cast %31 : vector<64xf32> to vector<64x1xf32>
    %33 = arith.addf %30, %32 : vector<64x1xf32>
    %c0_17 = arith.constant 0 : index
    %c0_18 = arith.constant 0 : index
    %34 = vector.load %arg14[%c0_17, %c0_18] : memref<64x1xf32, #tpu.memory_space<vmem>>, vector<64x1xf32>
    tpu.vector_store %arg14[%c0_17, %c0_18], %33 {strides = array<i32>} : memref<64x1xf32, #tpu.memory_space<vmem>>, vector<64x1xf32>,
    %c0_19 = arith.constant 0 : index
    %c0_20 = arith.constant 0 : index
    %35 = vector.load %arg15[%c0_19, %c0_20] : memref<64x32xf32, #tpu.memory_space<vmem>>, vector<64x32xf32>
    %36 = vector.broadcast %25 : vector<64x1xf32> to vector<64x32xf32>
    %37 = arith.mulf %36, %35 : vector<64x32xf32>
    %38 = arith.truncf %28 : vector<64x128xf32> to vector<64x128xbf16>
    %c0_21 = arith.constant 0 : index
    %c0_22 = arith.constant 0 : index
    %39 = vector.load %arg3[%c0_21, %c0_22] : memref<128x32xbf16, #tpu.memory_space<vmem>>, vector<128x32xbf16>
    %cst_23 = arith.constant dense<0.000000e+00> : vector<64x32xf32>
    %40 = tpu.matmul %38, %39, %cst_23 {dimension_numbers = #tpu.dot_dimension_numbers<[1], [0], [0], [1], [0, 0, 1, 1], [], []>} : vector<64x128xbf16>, vector<128x32xbf16>, vector<64x32xf32> -> vector<64x32xf32>
    %41 = arith.addf %37, %40 : vector<64x32xf32>
    %c0_24 = arith.constant 0 : index
    %c0_25 = arith.constant 0 : index
    %42 = vector.load %arg15[%c0_24, %c0_25] : memref<64x32xf32, #tpu.memory_space<vmem>>, vector<64x32xf32>
    tpu.vector_store %arg15[%c0_24, %c0_25], %41 {strides = array<i32>} : memref<64x32xf32, #tpu.memory_space<vmem>>, vector<64x32xf32>,
    %c0_26 = arith.constant 0 : index
    %c0_27 = arith.constant 0 : index
    %43 = vector.load %arg13[%c0_26, %c0_27] : memref<64x1xf32, #tpu.memory_space<vmem>>, vector<64x1xf32>
    tpu.vector_store %arg13[%c0_26, %c0_27], %22 {strides = array<i32>} : memref<64x1xf32, #tpu.memory_space<vmem>>, vector<64x1xf32>,
    %c1_i32 = arith.constant 1 : i32
    %44 = arith.cmpi eq, %arg1, %c1_i32 : i32
    %45 = arith.extui %44 : i1 to i32
    %c0_i32_28 = arith.constant 0 : i32
    %46 = arith.cmpi ne, %45, %c0_i32_28 : i32
    scf.if %46 {
      %c0_31 = arith.constant 0 : index
      %c0_32 = arith.constant 0 : index
      %52 = vector.load %arg14[%c0_31, %c0_32] : memref<64x1xf32, #tpu.memory_space<vmem>>, vector<64x1xf32>
      %cst_33 = arith.constant 9.99999991E-38 : f32
      %53 = vector.broadcast %cst_33 : f32 to vector<64x1xf32>
      %54 = arith.maximumf %52, %53 : vector<64x1xf32>
      %55 = tpu.reciprocal %54 {approx = true} : vector<64x1xf32> -> vector<64x1xf32>
      %c0_34 = arith.constant 0 : index
      %c0_35 = arith.constant 0 : index
      %56 = vector.load %arg15[%c0_34, %c0_35] : memref<64x32xf32, #tpu.memory_space<vmem>>, vector<64x32xf32>
      %57 = vector.broadcast %55 : vector<64x1xf32> to vector<64x32xf32>
      %58 = arith.mulf %56, %57 : vector<64x32xf32>
      %c0_36 = arith.constant 0 : index
      %c0_37 = arith.constant 0 : index
      %59 = vector.load %arg6[%c0_36, %c0_37] : memref<1x32xf32, #tpu.memory_space<vmem>>, vector<1x32xf32>
      %60 = vector.broadcast %59 : vector<1x32xf32> to vector<64x32xf32>
      %61 = arith.addf %58, %60 : vector<64x32xf32>
      %cst_38 = arith.constant 0.000000e+00 : f32
      %62 = vector.broadcast %cst_38 : f32 to vector<64x32xf32>
      %63 = arith.maximumf %61, %62 : vector<64x32xf32>
      %c0_39 = arith.constant 0 : index
      %c0_40 = arith.constant 0 : index
      %64 = vector.load %arg7[%c0_39, %c0_40] : memref<1x32xf32, #tpu.memory_space<vmem>>, vector<1x32xf32>
      %65 = vector.broadcast %64 : vector<1x32xf32> to vector<64x32xf32>
      %66 = arith.mulf %63, %65 : vector<64x32xf32>
      %c0_41 = arith.constant 0 : index
      %c0_42 = arith.constant 0 : index
      %67 = vector.load %arg8[%c0_41, %c0_42] : memref<1x32xf32, #tpu.memory_space<vmem>>, vector<1x32xf32>
      %68 = vector.broadcast %67 : vector<1x32xf32> to vector<64x32xf32>
      %69 = arith.addf %66, %68 : vector<64x32xf32>
      %c0_43 = arith.constant 0 : index
      %c0_44 = arith.constant 0 : index
      %70 = vector.load %arg16[%c0_43, %c0_44] : memref<4x32xf32, #tpu.memory_space<vmem>>, vector<4x32xf32>
      %c0_45 = arith.constant 0 : index
      %c0_46 = arith.constant 0 : index
      %71 = vector.load %arg9[%c0_45, %c0_46] : memref<64x4xf32, #tpu.memory_space<vmem>>, vector<64x4xf32>
      %cst_47 = arith.constant dense<0.000000e+00> : vector<4x32xf32>
      %72 = tpu.matmul %71, %69, %cst_47 {dimension_numbers = #tpu.dot_dimension_numbers<[0], [0], [1], [1], [0, 1, 1, 1], [], []>} : vector<64x4xf32>, vector<64x32xf32>, vector<4x32xf32> -> vector<4x32xf32>
      %73 = arith.addf %70, %72 : vector<4x32xf32>
      %c0_48 = arith.constant 0 : index
      %c0_49 = arith.constant 0 : index
      %74 = vector.load %arg16[%c0_48, %c0_49] : memref<4x32xf32, #tpu.memory_space<vmem>>, vector<4x32xf32>
      tpu.vector_store %arg16[%c0_48, %c0_49], %73 {strides = array<i32>} : memref<4x32xf32, #tpu.memory_space<vmem>>, vector<4x32xf32>,
    } else {
    }
    %c3_i32 = arith.constant 3 : i32
    %47 = arith.cmpi eq, %arg0, %c3_i32 : i32
    %c1_i32_29 = arith.constant 1 : i32
    %48 = arith.cmpi eq, %arg1, %c1_i32_29 : i32
    %49 = arith.andi %47, %48 : i1
    %50 = arith.extui %49 : i1 to i32
    %c0_i32_30 = arith.constant 0 : i32
    %51 = arith.cmpi ne, %50, %c0_i32_30 : i32
    scf.if %51 {
      %c0_31 = arith.constant 0 : index
      %c0_32 = arith.constant 0 : index
      %52 = vector.load %arg16[%c0_31, %c0_32] : memref<4x32xf32, #tpu.memory_space<vmem>>, vector<4x32xf32>
      %c0_33 = arith.constant 0 : index
      %c0_34 = arith.constant 0 : index
      %53 = vector.load %arg10[%c0_33, %c0_34] : memref<32x3xf32, #tpu.memory_space<vmem>>, vector<32x3xf32>
      %cst_35 = arith.constant dense<0.000000e+00> : vector<4x3xf32>
      %54 = tpu.matmul %52, %53, %cst_35 {dimension_numbers = #tpu.dot_dimension_numbers<[1], [0], [0], [1], [0, 0, 1, 1], [], []>} : vector<4x32xf32>, vector<32x3xf32>, vector<4x3xf32> -> vector<4x3xf32>
      %c0_36 = arith.constant 0 : index
      %c0_37 = arith.constant 0 : index
      %55 = vector.load %arg11[%c0_36, %c0_37] : memref<1x3xf32, #tpu.memory_space<vmem>>, vector<1x3xf32>
      %56 = vector.broadcast %55 : vector<1x3xf32> to vector<4x3xf32>
      %57 = arith.addf %54, %56 : vector<4x3xf32>
      %c0_38 = arith.constant 0 : index
      %c0_39 = arith.constant 0 : index
      %58 = vector.load %arg12[%c0_38, %c0_39] : memref<4x3xf32, #tpu.memory_space<vmem>>, vector<4x3xf32>
      tpu.vector_store %arg12[%c0_38, %c0_39], %57 {strides = array<i32>} : memref<4x3xf32, #tpu.memory_space<vmem>>, vector<4x3xf32>,
    } else {
    }
    return
  }
  func.func @transform_0(%arg0: i32, %arg1: i32) -> (i32, i32) {
    %c0_i32 = arith.constant 0 : i32
    return %arg0, %arg1 : i32, i32
  }
  func.func @transform_1(%arg0: i32, %arg1: i32) -> (i32, i32) {
    %c0_i32 = arith.constant 0 : i32
    %c0_i32_0 = arith.constant 0 : i32
    return %arg1, %c0_i32 : i32, i32
  }
  func.func @transform_2(%arg0: i32, %arg1: i32) -> (i32, i32) {
    %c0_i32 = arith.constant 0 : i32
    %c0_i32_0 = arith.constant 0 : i32
    return %c0_i32, %arg1 : i32, i32
  }
  func.func @transform_3(%arg0: i32, %arg1: i32) -> (i32, i32) {
    %c0_i32 = arith.constant 0 : i32
    %c0_i32_0 = arith.constant 0 : i32
    return %arg0, %c0_i32 : i32, i32
  }
  func.func @transform_4(%arg0: i32, %arg1: i32) -> (i32, i32) {
    %c0_i32 = arith.constant 0 : i32
    %c0_i32_0 = arith.constant 0 : i32
    %c0_i32_1 = arith.constant 0 : i32
    return %c0_i32, %c0_i32_0 : i32, i32
  }
  func.func @transform_5(%arg0: i32, %arg1: i32) -> (i32, i32) {
    %c0_i32 = arith.constant 0 : i32
    %c0_i32_0 = arith.constant 0 : i32
    %c0_i32_1 = arith.constant 0 : i32
    return %c0_i32, %c0_i32_0 : i32, i32
  }
  func.func @transform_6(%arg0: i32, %arg1: i32) -> (i32, i32) {
    %c0_i32 = arith.constant 0 : i32
    %c0_i32_0 = arith.constant 0 : i32
    %c0_i32_1 = arith.constant 0 : i32
    return %c0_i32, %c0_i32_0 : i32, i32
  }
  func.func @transform_7(%arg0: i32, %arg1: i32) -> (i32, i32) {
    %c0_i32 = arith.constant 0 : i32
    %c0_i32_0 = arith.constant 0 : i32
    return %arg0, %c0_i32 : i32, i32
  }
  func.func @transform_8(%arg0: i32, %arg1: i32) -> (i32, i32) {
    %c0_i32 = arith.constant 0 : i32
    %c0_i32_0 = arith.constant 0 : i32
    %c0_i32_1 = arith.constant 0 : i32
    return %c0_i32, %c0_i32_0 : i32, i32
  }
  func.func @transform_9(%arg0: i32, %arg1: i32) -> (i32, i32) {
    %c0_i32 = arith.constant 0 : i32
    %c0_i32_0 = arith.constant 0 : i32
    %c0_i32_1 = arith.constant 0 : i32
    return %c0_i32, %c0_i32_0 : i32, i32
  }
  func.func @transform_10(%arg0: i32, %arg1: i32) -> (i32, i32) {
    %c0_i32 = arith.constant 0 : i32
    %c0_i32_0 = arith.constant 0 : i32
    %c0_i32_1 = arith.constant 0 : i32
    return %c0_i32, %c0_i32_0 : i32, i32
  }
}

</mosaic_0001>

<llo_original>
// kernel: gat_forward.6
$region0: #{gat_forward.6}
  #allocation0 [shape = 'u32[]', space=smem, size = 0x4, offset = 0x4, fixed_abs, tag = 'smem constant byte address 0x4 - core index']
  #allocation1 [shape = 'u32[144,128]{1,0:T(1,128)}', space=vmem, size = 0x12000, scoped, tag = 'internal scratch']
  %s0 = inlined_call_operand.vmem [shape: f32[256,16], index: 0, kind: input, shape index: {}]
  %s1 = inlined_call_operand.vmem [shape: bf16[16,128], index: 1, kind: input, shape index: {}]
  %s2 = inlined_call_operand.vmem [shape: bf16[128,8], index: 2, kind: input, shape index: {}]
  %s3 = inlined_call_operand.vmem [shape: bf16[256,128], index: 3, kind: output, shape index: {0}]
  %s4 = inlined_call_operand.vmem [shape: f32[4,256], index: 4, kind: output, shape index: {1}]
  %s5 = inlined_call_operand.vmem [shape: f32[256,4], index: 5, kind: output, shape index: {2}]
  %6 = xla_tuple %s3, %s4, %s5
  %s7 = sld [smem:[#allocation0]]
  $region61: #{gat_forward.6} parent=0
    _
  %s9 = ssub.s32 1, %s7
  %s10 = scalar_select 0, %s9, %s7
  loop: start=0, step=1, limit=4
  $region2: #{gat_forward.6} parent=0 // loop_pre_header
    _
  $region3: #{gat_forward.6} parent=0 // loop_header
    %s12 = sphi 0, %s16
    %p13 = scmp.ge.s32.totalorder %s12, 4
    %s22 = sphi 0, %s24
    %s25 = sphi 0, %s22
    %s26 = sphi 0, %s25
    %s42 = sphi 0, %s26
    %s46 = sphi 0, %s46
    %s48 = sphi 0, %s46
    %s49 = sphi 0, %s48
    %s63 = sphi 0, %s49
    %s67 = sphi 0, %s67
    %s69 = sphi 0, %s67
    %s70 = sphi 0, %s69
    %s84 = sphi 0, %s70
    %s90 = sphi 0, %s92
    %s93 = sphi 0, %s90
    %s94 = sphi 0, %s93
    %s110 = sphi 0, %s94
    %s116 = sphi 0, %s118
    %s119 = sphi 0, %s116
    %s120 = sphi 0, %s119
    %s136 = sphi 0, %s120
    %s142 = sphi 0, %s144
    %s145 = sphi 0, %s142
    %s146 = sphi 0, %s145
    %s162 = sphi 0, %s146
  $region4: #{gat_forward.6} parent=0 // loop_header_branch
    %15 = sbr.rel (%p13) target = $region8
  $region5: #{gat_forward.6} parent=0 // loop_body
    %s17 = ssub.s32 %s12, 1
    %s18 = ssub.s32 %s12, 2
    %s19 = sadd.s32 %s12, 1
    %s20 = ssub.s32 %s12, %s19
    %p21 = scmp.eq.s32.totalorder %s20, 0
    %s23 = sadd.s32 %s22, 1
    %s24 = scalar_select %p21, %s22, %s23
    %p27 = pneg %p21
    %p28 = scmp.eq.s32.totalorder %s12, 1
    %p29 = por %p27, %p28
    %p30 = scmp.ne.s32.totalorder %s22, %s25
    %p31 = scmp.eq.s32.totalorder %s12, 0
    %p32 = por %p30, %p31
    %p33 = scmp.ne.s32.totalorder %s22, %s25
    %p34 = scmp.eq.s32.totalorder %s17, 1
    %p35 = por %p33, %p34
    %p36 = scmp.ne.s32.totalorder %s25, %s26
    %p37 = scmp.eq.s32.totalorder %s17, 0
    %p38 = por %p36, %p37
    %p39 = scmp.ne.s32.totalorder %s25, %s26
    %p40 = scmp.eq.s32.totalorder %s18, 1
    %p41 = por %p39, %p40
    %p43 = scmp.ne.s32.totalorder %s26, %s42
    %p44 = scmp.eq.s32.totalorder %s18, 0
    %p45 = por %p43, %p44
    %s47 = sadd.s32 %s46, 1
    %p50 = scmp.eq.s32.totalorder %s12, 1
    %p51 = scmp.ne.s32.totalorder %s46, %s48
    %p52 = scmp.eq.s32.totalorder %s12, 0
    %p53 = por %p51, %p52
    %p54 = scmp.ne.s32.totalorder %s46, %s48
    %p55 = scmp.eq.s32.totalorder %s17, 1
    %p56 = por %p54, %p55
    %p57 = scmp.ne.s32.totalorder %s48, %s49
    %p58 = scmp.eq.s32.totalorder %s17, 0
    %p59 = por %p57, %p58
    %p60 = scmp.ne.s32.totalorder %s48, %s49
    %p61 = scmp.eq.s32.totalorder %s18, 1
    %p62 = por %p60, %p61
    %p64 = scmp.ne.s32.totalorder %s49, %s63
    %p65 = scmp.eq.s32.totalorder %s18, 0
    %p66 = por %p64, %p65
    %s68 = sadd.s32 %s67, 1
    %p71 = scmp.eq.s32.totalorder %s12, 1
    %p72 = scmp.ne.s32.totalorder %s67, %s69
    %p73 = scmp.eq.s32.totalorder %s12, 0
    %p74 = por %p72, %p73
    %p75 = scmp.ne.s32.totalorder %s67, %s69
    %p76 = scmp.eq.s32.totalorder %s17, 1
    %p77 = por %p75, %p76
    %p78 = scmp.ne.s32.totalorder %s69, %s70
    %p79 = scmp.eq.s32.totalorder %s17, 0
    %p80 = por %p78, %p79
    %p81 = scmp.ne.s32.totalorder %s69, %s70
    %p82 = scmp.eq.s32.totalorder %s18, 1
    %p83 = por %p81, %p82
    %p85 = scmp.ne.s32.totalorder %s70, %s84
    %p86 = scmp.eq.s32.totalorder %s18, 0
    %p87 = por %p85, %p86
    %s88 = ssub.s32 %s12, %s19
    %p89 = scmp.eq.s32.totalorder %s88, 0
    %s91 = sadd.s32 %s90, 1
    %s92 = scalar_select %p89, %s90, %s91
    %p95 = pneg %p89
    %p96 = scmp.eq.s32.totalorder %s12, 1
    %p97 = por %p95, %p96
    %p98 = scmp.ne.s32.totalorder %s90, %s93
    %p99 = scmp.eq.s32.totalorder %s12, 0
    %p100 = por %p98, %p99
    %p101 = scmp.ne.s32.totalorder %s90, %s93
    %p102 = scmp.eq.s32.totalorder %s17, 1
    %p103 = por %p101, %p102
    %p104 = scmp.ne.s32.totalorder %s93, %s94
    %p105 = scmp.eq.s32.totalorder %s17, 0
    %p106 = por %p104, %p105
    %p107 = scmp.ne.s32.totalorder %s93, %s94
    %p108 = scmp.eq.s32.totalorder %s18, 1
    %p109 = por %p107, %p108
    %p111 = scmp.ne.s32.totalorder %s94, %s110
    %p112 = scmp.eq.s32.totalorder %s18, 0
    %p113 = por %p111, %p112
    %s114 = ssub.s32 %s12, %s19
    %p115 = scmp.eq.s32.totalorder %s114, 0
    %s117 = sadd.s32 %s116, 1
    %s118 = scalar_select %p115, %s116, %s117
    %p121 = pneg %p115
    %p122 = scmp.eq.s32.totalorder %s12, 1
    %p123 = por %p121, %p122
    %p124 = scmp.ne.s32.totalorder %s116, %s119
    %p125 = scmp.eq.s32.totalorder %s12, 0
    %p126 = por %p124, %p125
    %p127 = scmp.ne.s32.totalorder %s116, %s119
    %p128 = scmp.eq.s32.totalorder %s17, 1
    %p129 = por %p127, %p128
    %p130 = scmp.ne.s32.totalorder %s119, %s120
    %p131 = scmp.eq.s32.totalorder %s17, 0
    %p132 = por %p130, %p131
    %p133 = scmp.ne.s32.totalorder %s119, %s120
    %p134 = scmp.eq.s32.totalorder %s18, 1
    %p135 = por %p133, %p134
    %p137 = scmp.ne.s32.totalorder %s120, %s136
    %p138 = scmp.eq.s32.totalorder %s18, 0
    %p139 = por %p137, %p138
    %s140 = ssub.s32 %s12, %s19
    %p141 = scmp.eq.s32.totalorder %s140, 0
    %s143 = sadd.s32 %s142, 1
    %s144 = scalar_select %p141, %s142, %s143
    %p147 = pneg %p141
    %p148 = scmp.eq.s32.totalorder %s12, 1
    %p149 = por %p147, %p148
    %p150 = scmp.ne.s32.totalorder %s142, %s145
    %p151 = scmp.eq.s32.totalorder %s12, 0
    %p152 = por %p150, %p151
    %p153 = scmp.ne.s32.totalorder %s142, %s145
    %p154 = scmp.eq.s32.totalorder %s17, 1
    %p155 = por %p153, %p154
    %p156 = scmp.ne.s32.totalorder %s145, %s146
    %p157 = scmp.eq.s32.totalorder %s17, 0
    %p158 = por %p156, %p157
    %p159 = scmp.ne.s32.totalorder %s145, %s146
    %p160 = scmp.eq.s32.totalorder %s18, 1
    %p161 = por %p159, %p160
    %p163 = scmp.ne.s32.totalorder %s146, %s162
    %p164 = scmp.eq.s32.totalorder %s18, 0
    %p165 = por %p163, %p164
    %p166 = scmp.le.s32.totalorder 1, %s12
    %p167 = scmp.lt.s32.totalorder %s12, 3
    %p168 = pnand %p166, %p167
    %p169 = pneg %p168
    // Predicated region
    $region9: #{gat_forward.6} parent=5 // pred_check
      _
    $region10: #{gat_forward.6} parent=5 // pred_check_branch
      %171 = sbr.rel (%p168) target = $region12
    $region11: #{gat_forward.6} parent=5 // pred_region
      %s172 = ssub.s32 %s12, 1
      // Predicated region
      $region13: #{gat_forward.6} parent=11 // pred_check
        %p173 = pneg %p59
      $region14: #{gat_forward.6} parent=11 // pred_check_branch
        %175 = sbr.rel (%p173) target = $region16
      $region15: #{gat_forward.6} parent=11 // pred_region
        _
      $region16: #{gat_forward.6} parent=11 // pred_fallthru
        _
      // Predicated region
      $region17: #{gat_forward.6} parent=11 // pred_check
        %p176 = pneg %p80
      $region18: #{gat_forward.6} parent=11 // pred_check_branch
        %178 = sbr.rel (%p176) target = $region20
      $region19: #{gat_forward.6} parent=11 // pred_region
        _
      $region20: #{gat_forward.6} parent=11 // pred_fallthru
        _
    $region12: #{gat_forward.6} parent=5 // pred_fallthru
      _
    %p179 = scmp.lt.s32.totalorder %s12, 2
    // Predicated region
    $region21: #{gat_forward.6} parent=5 // pred_check
      %p180 = pneg %p179
    $region22: #{gat_forward.6} parent=5 // pred_check_branch
      %182 = sbr.rel (%p180) target = $region24
    $region23: #{gat_forward.6} parent=5 // pred_region
      // Predicated region
      $region25: #{gat_forward.6} parent=23 // pred_check
        %p183 = pneg %p32
      $region26: #{gat_forward.6} parent=23 // pred_check_branch
        %185 = sbr.rel (%p183) target = $region28
      $region27: #{gat_forward.6} parent=23 // pred_region
        %s186 = smul.u32 16, %s12
        %p187 = scmp.lt.s32.totalorder %s186, 31
        %s188 = scalar_select %p187, %s186, 31
        %s189 = smul.addr %s188, 8
        %s190 = scalar_lea.vmem %s0, %s189
        %s191 = smul.u32 16, %s12
      $region28: #{gat_forward.6} parent=23 // pred_fallthru
        _
    $region24: #{gat_forward.6} parent=5 // pred_fallthru
      _
    %p192 = scmp.le.s32.totalorder 1, %s12
    %p193 = scmp.lt.s32.totalorder %s12, 3
    %p194 = pnand %p192, %p193
    %p195 = pneg %p194
    // Predicated region
    $region29: #{gat_forward.6} parent=5 // pred_check
      _
    $region30: #{gat_forward.6} parent=5 // pred_check_branch
      %197 = sbr.rel (%p194) target = $region32
    $region31: #{gat_forward.6} parent=5 // pred_region
      %s198 = ssub.s32 %s12, 1
      %s199 = smul.u32 16, %s17
      %p200 = scmp.lt.s32.totalorder %s199, 31
      %s201 = scalar_select %p200, %s199, 31
      %s202 = smul.addr %s201, 8
      %s203 = scalar_lea.vmem %s0, %s202
      %p204 = pneg %p38
      %p205 = pneg %p35
      %p206 = pneg %p59
      %p207 = pneg %p56
      %p208 = pneg %p80
      %p209 = pneg %p77
      %p210 = pneg %p106
      %p211 = pneg %p103
      %s212 = smul.u32 16, %s17
      %p213 = scmp.lt.s32.totalorder %s212, 31
      %s214 = scalar_select %p213, %s212, 31
      %s215 = smul.addr %s214, 4
      %s216 = scalar_lea.vmem %s3, %s215
      %p217 = pneg %p132
      %p218 = pneg %p129
      %p219 = scmp.lt.s32.totalorder %s17, 1
      %s220 = scalar_select %p219, %s17, 1
      %s221 = smul.addr %s220, 4
      %s222 = scalar_lea.vmem %s4, %s221
      %p223 = pneg %p158
      %p224 = pneg %p155
      %s225 = smul.u32 16, %s17
      %p226 = scmp.lt.s32.totalorder %s225, 31
      %s227 = scalar_select %p226, %s225, 31
      %s228 = smul.addr %s227, 8
      %s229 = scalar_lea.vmem %s5, %s228
      %s230 = smul.u32 16, %s17
      %p231 = scmp.lt.s32.totalorder %s230, 31
      %s232 = scalar_select %p231, %s230, 31
      %s233 = smul.addr %s232, 8
      %s234 = scalar_lea.vmem %s0, %s233
      %s235 = smul.u32 16, %s17
      %s236 = smul.u32 16, %s17
      %p237 = scmp.lt.s32.totalorder %s236, 31
      %s238 = scalar_select %p237, %s236, 31
      %s239 = smul.addr %s238, 4
      %s240 = scalar_lea.vmem %s3, %s239
      %s241 = smul.u32 16, %s17
      %p242 = scmp.lt.s32.totalorder %s17, 1
      %s243 = scalar_select %p242, %s17, 1
      %s244 = smul.addr %s243, 4
      %s245 = scalar_lea.vmem %s4, %s244
      %s246 = smul.u32 16, %s17
      %p247 = scmp.lt.s32.totalorder %s246, 31
      %s248 = scalar_select %p247, %s246, 31
      %s249 = smul.addr %s248, 8
      %s250 = scalar_lea.vmem %s5, %s249
      %s251 = smul.u32 16, %s17
      %v253 = vld [vmem:[%s234] sm:$0xff]
      %v254 = vld [vmem:[%s234 + $0x8] sm:$0xff]
      %v255 = vld [vmem:[%s234 + $0x10] sm:$0xff]
      %v256 = vld [vmem:[%s234 + $0x18] sm:$0xff]
      %v257 = vld [vmem:[%s234 + $0x20] sm:$0xff]
      %v258 = vld [vmem:[%s234 + $0x28] sm:$0xff]
      %v259 = vld [vmem:[%s234 + $0x30] sm:$0xff]
      %v260 = vld [vmem:[%s234 + $0x38] sm:$0xff]
      %v261 = vld [vmem:[%s234 + $0x40] sm:$0xff]
      %v262 = vld [vmem:[%s234 + $0x48] sm:$0xff]
      %v263 = vld [vmem:[%s234 + $0x50] sm:$0xff]
      %v264 = vld [vmem:[%s234 + $0x58] sm:$0xff]
      %v265 = vld [vmem:[%s234 + $0x60] sm:$0xff]
      %v266 = vld [vmem:[%s234 + $0x68] sm:$0xff]
      %v267 = vld [vmem:[%s234 + $0x70] sm:$0xff]
      %v268 = vld [vmem:[%s234 + $0x78] sm:$0xff]
      %v269 = vpack.c.bf16 %v254, %v253
      %v270 = vpack.c.bf16 %v256, %v255
      %v271 = vpack.c.bf16 %v258, %v257
      %v272 = vpack.c.bf16 %v260, %v259
      %v273 = vpack.c.bf16 %v262, %v261
      %v274 = vpack.c.bf16 %v264, %v263
      %v275 = vpack.c.bf16 %v266, %v265
      %v276 = vpack.c.bf16 %v268, %v267
      %v277 = vld [vmem:[%s1] sm:$0xf]
      %v278 = vld [vmem:[%s1 + $0x4] sm:$0xf]
      %v281 = vunpack.c.l.b16 %v277
      %v282 = vunpack.c.l.b16 %v278
      %v283 = vpack.c.b16 %v282, %v281
      %vm285 = vcmask 130048
      %v287 = vsel %vm285, %v269, 0
      %v290 = vsel %vm285, %v270, 0
      %v293 = vsel %vm285, %v271, 0
      %v296 = vsel %vm285, %v272, 0
      %v299 = vsel %vm285, %v273, 0
      %v302 = vsel %vm285, %v274, 0
      %v305 = vsel %vm285, %v275, 0
      %v308 = vsel %vm285, %v276, 0
      %310 = vmatprep.subr.bf16.mxu0 0
      %311 = vmatpush1.bf16.msra.mxu0 0
      %312 = vmatprep.subr.bf16.mxu0 0
      %313 = vmatpush1.bf16.msra.mxu0 0
      %314 = vmatprep.subr.bf16.mxu0 0
      %315 = vmatpush1.bf16.msra.mxu0 0
      %316 = vmatprep.subr.bf16.mxu0 0
      %317 = vmatpush1.bf16.msra.mxu0 0
      %318 = vmatprep.subr.bf16.mxu0 0
      %319 = vmatpush1.bf16.msra.mxu0 0
      %320 = vmatprep.subr.bf16.mxu0 0
      %321 = vmatpush1.bf16.msra.mxu0 0
      %322 = vmatprep.subr.bf16.mxu0 0
      %323 = vmatpush1.bf16.msra.mxu0 0
      %324 = vmatprep.subr.bf16.mxu0 0
      %325 = vmatpush1.bf16.msra.mxu0 %v283
      %326 = vmatprep.subr.bf16.mxu0 0
      %327 = vmatpush2.bf16.msra.mxu0 0
      %328 = vmatprep.subr.bf16.mxu0 0
      %329 = vmatpush2.bf16.msra.mxu0 0
      %330 = vmatprep.subr.bf16.mxu0 0
      %331 = vmatpush2.bf16.msra.mxu0 0
      %332 = vmatprep.subr.bf16.mxu0 0
      %333 = vmatpush2.bf16.msra.mxu0 0
      %334 = vmatprep.subr.bf16.mxu0 0
      %335 = vmatpush2.bf16.msra.mxu0 0
      %336 = vmatprep.subr.bf16.mxu0 0
      %337 = vmatpush2.bf16.msra.mxu0 0
      %338 = vmatprep.subr.bf16.mxu0 0
      %339 = vmatpush2.bf16.msra.mxu0 0
      %340 = vmatprep.subr.bf16.mxu0 0
      %341 = vmatpush2.bf16.msra.mxu0 0
      %342 = vmatprep.mubr.bf16.mxu0 0
      %343 = vmatmul.mubr.bf16.gmra.mxu0 %v287
      %v344 = vpop.f32.mrf.mxu0
      %v345 = vadd.f32 0.0, %v344
      %v346 = vpop.f32.mrf.mxu0
      %v347 = vpop.f32.mrf.mxu0
      %v348 = vadd.f32 0.0, %v347
      %v349 = vpop.f32.mrf.mxu0
      %350 = vmatprep.mubr.bf16.mxu0 0
      %351 = vmatmul.mubr.bf16.gmra.mxu0 %v290
      %v352 = vpop.f32.mrf.mxu0
      %v353 = vadd.f32 0.0, %v352
      %v354 = vpop.f32.mrf.mxu0
      %v355 = vpop.f32.mrf.mxu0
      %v356 = vadd.f32 0.0, %v355
      %v357 = vpop.f32.mrf.mxu0
      %358 = vmatprep.mubr.bf16.mxu0 0
      %359 = vmatmul.mubr.bf16.gmra.mxu0 %v293
      %v360 = vpop.f32.mrf.mxu0
      %v361 = vadd.f32 0.0, %v360
      %v362 = vpop.f32.mrf.mxu0
      %v363 = vpop.f32.mrf.mxu0
      %v364 = vadd.f32 0.0, %v363
      %v365 = vpop.f32.mrf.mxu0
      %366 = vmatprep.mubr.bf16.mxu0 0
      %367 = vmatmul.mubr.bf16.gmra.mxu0 %v296
      %v368 = vpop.f32.mrf.mxu0
      %v369 = vadd.f32 0.0, %v368
      %v370 = vpop.f32.mrf.mxu0
      %v371 = vpop.f32.mrf.mxu0
      %v372 = vadd.f32 0.0, %v371
      %v373 = vpop.f32.mrf.mxu0
      %374 = vmatprep.mubr.bf16.mxu0 0
      %375 = vmatmul.mubr.bf16.gmra.mxu0 %v299
      %v376 = vpop.f32.mrf.mxu0
      %v377 = vadd.f32 0.0, %v376
      %v378 = vpop.f32.mrf.mxu0
      %v379 = vpop.f32.mrf.mxu0
      %v380 = vadd.f32 0.0, %v379
      %v381 = vpop.f32.mrf.mxu0
      %382 = vmatprep.mubr.bf16.mxu0 0
      %383 = vmatmul.mubr.bf16.gmra.mxu0 %v302
      %v384 = vpop.f32.mrf.mxu0
      %v385 = vadd.f32 0.0, %v384
      %v386 = vpop.f32.mrf.mxu0
      %v387 = vpop.f32.mrf.mxu0
      %v388 = vadd.f32 0.0, %v387
      %v389 = vpop.f32.mrf.mxu0
      %390 = vmatprep.mubr.bf16.mxu0 0
      %391 = vmatmul.mubr.bf16.gmra.mxu0 %v305
      %v392 = vpop.f32.mrf.mxu0
      %v393 = vadd.f32 0.0, %v392
      %v394 = vpop.f32.mrf.mxu0
      %v395 = vpop.f32.mrf.mxu0
      %v396 = vadd.f32 0.0, %v395
      %v397 = vpop.f32.mrf.mxu0
      %398 = vmatprep.mubr.bf16.mxu0 0
      %399 = vmatmul.mubr.bf16.gmra.mxu0 %v308
      %v400 = vpop.f32.mrf.mxu0
      %v401 = vadd.f32 0.0, %v400
      %v402 = vpop.f32.mrf.mxu0
      %v403 = vpop.f32.mrf.mxu0
      %v404 = vadd.f32 0.0, %v403
      %v405 = vpop.f32.mrf.mxu0
      %406 = vdwg.mxu0
      %v407 = vpack.c.bf16 %v348, %v345
      %v408 = vpack.c.bf16 %v356, %v353
      %v409 = vpack.c.bf16 %v364, %v361
      %v410 = vpack.c.bf16 %v372, %v369
      %v411 = vpack.c.bf16 %v380, %v377
      %v412 = vpack.c.bf16 %v388, %v385
      %v413 = vpack.c.bf16 %v396, %v393
      %v414 = vpack.c.bf16 %v404, %v401
      %v415 = vld [vmem:[%s2] sm:$0xf]
      %v416 = vld [vmem:[%s2 + $0x4] sm:$0xf]
      %v417 = vld [vmem:[%s2 + $0x8] sm:$0xf]
      %v418 = vld [vmem:[%s2 + $0xc] sm:$0xf]
      %v419 = vld [vmem:[%s2 + $0x10] sm:$0xf]
      %v420 = vld [vmem:[%s2 + $0x14] sm:$0xf]
      %v421 = vld [vmem:[%s2 + $0x18] sm:$0xf]
      %v422 = vld [vmem:[%s2 + $0x1c] sm:$0xf]
      %v423 = vld [vmem:[%s2 + $0x20] sm:$0xf]
      %v424 = vld [vmem:[%s2 + $0x24] sm:$0xf]
      %v425 = vld [vmem:[%s2 + $0x28] sm:$0xf]
      %v426 = vld [vmem:[%s2 + $0x2c] sm:$0xf]
      %v427 = vld [vmem:[%s2 + $0x30] sm:$0xf]
      %v428 = vld [vmem:[%s2 + $0x34] sm:$0xf]
      %v429 = vld [vmem:[%s2 + $0x38] sm:$0xf]
      %v430 = vld [vmem:[%s2 + $0x3c] sm:$0xf]
      %v447 = vunpack.c.l.b16 %v415
      %v448 = vunpack.c.l.b16 %v416
      %v449 = vunpack.c.l.b16 %v417
      %v450 = vunpack.c.l.b16 %v418
      %v451 = vunpack.c.l.b16 %v419
      %v452 = vunpack.c.l.b16 %v420
      %v453 = vunpack.c.l.b16 %v421
      %v454 = vunpack.c.l.b16 %v422
      %v455 = vunpack.c.l.b16 %v423
      %v456 = vunpack.c.l.b16 %v424
      %v457 = vunpack.c.l.b16 %v425
      %v458 = vunpack.c.l.b16 %v426
      %v459 = vunpack.c.l.b16 %v427
      %v460 = vunpack.c.l.b16 %v428
      %v461 = vunpack.c.l.b16 %v429
      %v462 = vunpack.c.l.b16 %v430
      %v463 = vpack.c.b16 %v448, %v447
      %v464 = vpack.c.b16 %v450, %v449
      %v465 = vpack.c.b16 %v452, %v451
      %v466 = vpack.c.b16 %v454, %v453
      %v467 = vpack.c.b16 %v456, %v455
      %v468 = vpack.c.b16 %v458, %v457
      %v469 = vpack.c.b16 %v460, %v459
      %v470 = vpack.c.b16 %v462, %v461
      %479 = vmatprep.subr.bf16.mxu0 0
      %480 = vmatpush1.bf16.msra.mxu0 %v470
      %481 = vmatprep.subr.bf16.mxu0 0
      %482 = vmatpush1.bf16.msra.mxu0 %v469
      %483 = vmatprep.subr.bf16.mxu0 0
      %484 = vmatpush1.bf16.msra.mxu0 %v468
      %485 = vmatprep.subr.bf16.mxu0 0
      %486 = vmatpush1.bf16.msra.mxu0 %v467
      %487 = vmatprep.subr.bf16.mxu0 0
      %488 = vmatpush1.bf16.msra.mxu0 %v466
      %489 = vmatprep.subr.bf16.mxu0 0
      %490 = vmatpush1.bf16.msra.mxu0 %v465
      %491 = vmatprep.subr.bf16.mxu0 0
      %492 = vmatpush1.bf16.msra.mxu0 %v464
      %493 = vmatprep.subr.bf16.mxu0 0
      %494 = vmatpush1.bf16.msra.mxu0 %v463
      %495 = vmatprep.subr.bf16.mxu0 0
      %496 = vmatpush2.bf16.msra.mxu0 0
      %497 = vmatprep.subr.bf16.mxu0 0
      %498 = vmatpush2.bf16.msra.mxu0 0
      %499 = vmatprep.subr.bf16.mxu0 0
      %500 = vmatpush2.bf16.msra.mxu0 0
      %501 = vmatprep.subr.bf16.mxu0 0
      %502 = vmatpush2.bf16.msra.mxu0 0
      %503 = vmatprep.subr.bf16.mxu0 0
      %504 = vmatpush2.bf16.msra.mxu0 0
      %505 = vmatprep.subr.bf16.mxu0 0
      %506 = vmatpush2.bf16.msra.mxu0 0
      %507 = vmatprep.subr.bf16.mxu0 0
      %508 = vmatpush2.bf16.msra.mxu0 0
      %509 = vmatprep.subr.bf16.mxu0 0
      %510 = vmatpush2.bf16.msra.mxu0 0
      %511 = vmatprep.mubr.bf16.mxu0 0
      %512 = vmatmul.mubr.bf16.gmra.mxu0 %v407
      %v513 = vpop.f32.mrf.mxu0
      %v514 = vadd.f32 0.0, %v513
      %v515 = vpop.f32.mrf.mxu0
      %v516 = vpop.f32.mrf.mxu0
      %v517 = vadd.f32 0.0, %v516
      %v518 = vpop.f32.mrf.mxu0
      %519 = vmatprep.mubr.bf16.mxu0 0
      %520 = vmatmul.mubr.bf16.gmra.mxu0 %v408
      %v521 = vpop.f32.mrf.mxu0
      %v522 = vadd.f32 0.0, %v521
      %v523 = vpop.f32.mrf.mxu0
      %v524 = vpop.f32.mrf.mxu0
      %v525 = vadd.f32 0.0, %v524
      %v526 = vpop.f32.mrf.mxu0
      %527 = vmatprep.mubr.bf16.mxu0 0
      %528 = vmatmul.mubr.bf16.gmra.mxu0 %v409
      %v529 = vpop.f32.mrf.mxu0
      %v530 = vadd.f32 0.0, %v529
      %v531 = vpop.f32.mrf.mxu0
      %v532 = vpop.f32.mrf.mxu0
      %v533 = vadd.f32 0.0, %v532
      %v534 = vpop.f32.mrf.mxu0
      %535 = vmatprep.mubr.bf16.mxu0 0
      %536 = vmatmul.mubr.bf16.gmra.mxu0 %v410
      %v537 = vpop.f32.mrf.mxu0
      %v538 = vadd.f32 0.0, %v537
      %v539 = vpop.f32.mrf.mxu0
      %v540 = vpop.f32.mrf.mxu0
      %v541 = vadd.f32 0.0, %v540
      %v542 = vpop.f32.mrf.mxu0
      %543 = vmatprep.mubr.bf16.mxu0 0
      %544 = vmatmul.mubr.bf16.gmra.mxu0 %v411
      %v545 = vpop.f32.mrf.mxu0
      %v546 = vadd.f32 0.0, %v545
      %v547 = vpop.f32.mrf.mxu0
      %v548 = vpop.f32.mrf.mxu0
      %v549 = vadd.f32 0.0, %v548
      %v550 = vpop.f32.mrf.mxu0
      %551 = vmatprep.mubr.bf16.mxu0 0
      %552 = vmatmul.mubr.bf16.gmra.mxu0 %v412
      %v553 = vpop.f32.mrf.mxu0
      %v554 = vadd.f32 0.0, %v553
      %v555 = vpop.f32.mrf.mxu0
      %v556 = vpop.f32.mrf.mxu0
      %v557 = vadd.f32 0.0, %v556
      %v558 = vpop.f32.mrf.mxu0
      %559 = vmatprep.mubr.bf16.mxu0 0
      %560 = vmatmul.mubr.bf16.gmra.mxu0 %v413
      %v561 = vpop.f32.mrf.mxu0
      %v562 = vadd.f32 0.0, %v561
      %v563 = vpop.f32.mrf.mxu0
      %v564 = vpop.f32.mrf.mxu0
      %v565 = vadd.f32 0.0, %v564
      %v566 = vpop.f32.mrf.mxu0
      %567 = vmatprep.mubr.bf16.mxu0 0
      %568 = vmatmul.mubr.bf16.gmra.mxu0 %v414
      %v569 = vpop.f32.mrf.mxu0
      %v570 = vadd.f32 0.0, %v569
      %v571 = vpop.f32.mrf.mxu0
      %v572 = vpop.f32.mrf.mxu0
      %v573 = vadd.f32 0.0, %v572
      %v574 = vpop.f32.mrf.mxu0
      %575 = vdwg.mxu0
      %576 = vxpose.xlu0.b32.start [1/16] %v514, 128
      %577 = vxpose.xlu0.b32.cont [2/16] %v517, 128
      %578 = vxpose.xlu0.b32.cont [3/16] %v522, 128
      %579 = vxpose.xlu0.b32.cont [4/16] %v525, 128
      %580 = vxpose.xlu0.b32.cont [5/16] %v530, 128
      %581 = vxpose.xlu0.b32.cont [6/16] %v533, 128
      %582 = vxpose.xlu0.b32.cont [7/16] %v538, 128
      %583 = vxpose.xlu0.b32.cont [8/16] %v541, 128
      %584 = vxpose.xlu0.b32.cont [9/16] %v546, 128
      %585 = vxpose.xlu0.b32.cont [10/16] %v549, 128
      %586 = vxpose.xlu0.b32.cont [11/16] %v554, 128
      %587 = vxpose.xlu0.b32.cont [12/16] %v557, 128
      %588 = vxpose.xlu0.b32.cont [13/16] %v562, 128
      %589 = vxpose.xlu0.b32.cont [14/16] %v565, 128
      %590 = vxpose.xlu0.b32.cont [15/16] %v570, 128
      %591 = vxpose.xlu0.b32.end [16/16] %v573, 128
      %v592 = vpop.trf.xlu0
      %v593 = vpop.trf.xlu0
      %v594 = vpop.trf.xlu0
      %v595 = vpop.trf.xlu0
      %v596 = vpop.trf.xlu0
      %v597 = vpop.trf.xlu0
      %v598 = vpop.trf.xlu0
      %v599 = vpop.trf.xlu0
      %v600 = vpop.trf.xlu0
      %v601 = vpop.trf.xlu0
      %v602 = vpop.trf.xlu0
      %v603 = vpop.trf.xlu0
      %v604 = vpop.trf.xlu0
      %v605 = vpop.trf.xlu0
      %v606 = vpop.trf.xlu0
      %v607 = vpop.trf.xlu0
      %608 = vst [vmem:[%s245] sm:$0xf] %v592
      %625 = vrot.lane.b32.xlu0 %v514, 124
      %v626 = vpop.permute.xlu0 %625
      %627 = vrot.lane.b32.xlu0 %v517, 124
      %v628 = vpop.permute.xlu0 %627
      %629 = vrot.lane.b32.xlu0 %v522, 124
      %v630 = vpop.permute.xlu0 %629
      %631 = vrot.lane.b32.xlu0 %v525, 124
      %v632 = vpop.permute.xlu0 %631
      %633 = vrot.lane.b32.xlu0 %v530, 124
      %v634 = vpop.permute.xlu0 %633
      %635 = vrot.lane.b32.xlu0 %v533, 124
      %v636 = vpop.permute.xlu0 %635
      %637 = vrot.lane.b32.xlu0 %v538, 124
      %v638 = vpop.permute.xlu0 %637
      %639 = vrot.lane.b32.xlu0 %v541, 124
      %v640 = vpop.permute.xlu0 %639
      %641 = vrot.lane.b32.xlu0 %v546, 124
      %v642 = vpop.permute.xlu0 %641
      %643 = vrot.lane.b32.xlu0 %v549, 124
      %v644 = vpop.permute.xlu0 %643
      %645 = vrot.lane.b32.xlu0 %v554, 124
      %v646 = vpop.permute.xlu0 %645
      %647 = vrot.lane.b32.xlu0 %v557, 124
      %v648 = vpop.permute.xlu0 %647
      %649 = vrot.lane.b32.xlu0 %v562, 124
      %v650 = vpop.permute.xlu0 %649
      %651 = vrot.lane.b32.xlu0 %v565, 124
      %v652 = vpop.permute.xlu0 %651
      %653 = vrot.lane.b32.xlu0 %v570, 124
      %v654 = vpop.permute.xlu0 %653
      %655 = vrot.lane.b32.xlu0 %v573, 124
      %v656 = vpop.permute.xlu0 %655
      %vm673 = vcmask 31744
      %674 = vst.msk [vmem:[%s250] sm:$0xff] %vm673, %v626
      %675 = vst.msk [vmem:[%s250 + $0x8] sm:$0xff] %vm673, %v628
      %676 = vst.msk [vmem:[%s250 + $0x10] sm:$0xff] %vm673, %v630
      %677 = vst.msk [vmem:[%s250 + $0x18] sm:$0xff] %vm673, %v632
      %678 = vst.msk [vmem:[%s250 + $0x20] sm:$0xff] %vm673, %v634
      %679 = vst.msk [vmem:[%s250 + $0x28] sm:$0xff] %vm673, %v636
      %680 = vst.msk [vmem:[%s250 + $0x30] sm:$0xff] %vm673, %v638
      %681 = vst.msk [vmem:[%s250 + $0x38] sm:$0xff] %vm673, %v640
      %682 = vst.msk [vmem:[%s250 + $0x40] sm:$0xff] %vm673, %v642
      %683 = vst.msk [vmem:[%s250 + $0x48] sm:$0xff] %vm673, %v644
      %684 = vst.msk [vmem:[%s250 + $0x50] sm:$0xff] %vm673, %v646
      %685 = vst.msk [vmem:[%s250 + $0x58] sm:$0xff] %vm673, %v648
      %686 = vst.msk [vmem:[%s250 + $0x60] sm:$0xff] %vm673, %v650
      %687 = vst.msk [vmem:[%s250 + $0x68] sm:$0xff] %vm673, %v652
      %688 = vst.msk [vmem:[%s250 + $0x70] sm:$0xff] %vm673, %v654
      %689 = vst.msk [vmem:[%s250 + $0x78] sm:$0xff] %vm673, %v656
      %v698 = vunpack.c.l.b16 %v407
      %v699 = vunpack.c.h.b16 %v407
      %v700 = vunpack.c.l.b16 %v408
      %v701 = vunpack.c.h.b16 %v408
      %v702 = vunpack.c.l.b16 %v409
      %v703 = vunpack.c.h.b16 %v409
      %v704 = vunpack.c.l.b16 %v410
      %v705 = vunpack.c.h.b16 %v410
      %v706 = vunpack.c.l.b16 %v411
      %v707 = vunpack.c.h.b16 %v411
      %v708 = vunpack.c.l.b16 %v412
      %v709 = vunpack.c.h.b16 %v412
      %v710 = vunpack.c.l.b16 %v413
      %v711 = vunpack.c.h.b16 %v413
      %v712 = vunpack.c.l.b16 %v414
      %v713 = vunpack.c.h.b16 %v414
      %v714 = vpack.c.b16 %v698, %v698
      %v715 = vpack.c.b16 %v699, %v699
      %v716 = vpack.c.b16 %v700, %v700
      %v717 = vpack.c.b16 %v701, %v701
      %v718 = vpack.c.b16 %v702, %v702
      %v719 = vpack.c.b16 %v703, %v703
      %v720 = vpack.c.b16 %v704, %v704
      %v721 = vpack.c.b16 %v705, %v705
      %v722 = vpack.c.b16 %v706, %v706
      %v723 = vpack.c.b16 %v707, %v707
      %v724 = vpack.c.b16 %v708, %v708
      %v725 = vpack.c.b16 %v709, %v709
      %v726 = vpack.c.b16 %v710, %v710
      %v727 = vpack.c.b16 %v711, %v711
      %v728 = vpack.c.b16 %v712, %v712
      %v729 = vpack.c.b16 %v713, %v713
      %746 = vst [vmem:[%s240] sm:$0xf] %v714
      %747 = vst [vmem:[%s240 + $0x4] sm:$0xf] %v715
      %748 = vst [vmem:[%s240 + $0x8] sm:$0xf] %v716
      %749 = vst [vmem:[%s240 + $0xc] sm:$0xf] %v717
      %750 = vst [vmem:[%s240 + $0x10] sm:$0xf] %v718
      %751 = vst [vmem:[%s240 + $0x14] sm:$0xf] %v719
      %752 = vst [vmem:[%s240 + $0x18] sm:$0xf] %v720
      %753 = vst [vmem:[%s240 + $0x1c] sm:$0xf] %v721
      %754 = vst [vmem:[%s240 + $0x20] sm:$0xf] %v722
      %755 = vst [vmem:[%s240 + $0x24] sm:$0xf] %v723
      %756 = vst [vmem:[%s240 + $0x28] sm:$0xf] %v724
      %757 = vst [vmem:[%s240 + $0x2c] sm:$0xf] %v725
      %758 = vst [vmem:[%s240 + $0x30] sm:$0xf] %v726
      %759 = vst [vmem:[%s240 + $0x34] sm:$0xf] %v727
      %760 = vst [vmem:[%s240 + $0x38] sm:$0xf] %v728
      %761 = vst [vmem:[%s240 + $0x3c] sm:$0xf] %v729
      %s762 = smul.u32 16, %s17
      %p763 = scmp.lt.s32.totalorder %s762, 31
      %s764 = scalar_select %p763, %s762, 31
      %s765 = smul.addr %s764, 4
      %s766 = scalar_lea.vmem %s3, %s765
      %p767 = scmp.lt.s32.totalorder %s17, 1
      %s768 = scalar_select %p767, %s17, 1
      %s769 = smul.addr %s768, 4
      %s770 = scalar_lea.vmem %s4, %s769
      %s771 = smul.u32 16, %s17
      %p772 = scmp.lt.s32.totalorder %s771, 31
      %s773 = scalar_select %p772, %s771, 31
      %s774 = smul.addr %s773, 8
      %s775 = scalar_lea.vmem %s5, %s774
      // Predicated region
      $region33: #{gat_forward.6} parent=31 // pred_check
        %p776 = pneg %p103
      $region34: #{gat_forward.6} parent=31 // pred_check_branch
        %778 = sbr.rel (%p776) target = $region36
      $region35: #{gat_forward.6} parent=31 // pred_region
        %s779 = smul.u32 16, %s17
      $region36: #{gat_forward.6} parent=31 // pred_fallthru
        _
      // Predicated region
      $region37: #{gat_forward.6} parent=31 // pred_check
        %p780 = pneg %p129
      $region38: #{gat_forward.6} parent=31 // pred_check_branch
        %782 = sbr.rel (%p780) target = $region40
      $region39: #{gat_forward.6} parent=31 // pred_region
        _
      $region40: #{gat_forward.6} parent=31 // pred_fallthru
        _
      // Predicated region
      $region41: #{gat_forward.6} parent=31 // pred_check
        %p783 = pneg %p155
      $region42: #{gat_forward.6} parent=31 // pred_check_branch
        %785 = sbr.rel (%p783) target = $region44
      $region43: #{gat_forward.6} parent=31 // pred_region
        %s786 = smul.u32 16, %s17
      $region44: #{gat_forward.6} parent=31 // pred_fallthru
        _
    $region32: #{gat_forward.6} parent=5 // pred_fallthru
      _
    %p787 = scmp.le.s32.totalorder 2, %s12
    // Predicated region
    $region45: #{gat_forward.6} parent=5 // pred_check
      %p788 = pneg %p787
    $region46: #{gat_forward.6} parent=5 // pred_check_branch
      %790 = sbr.rel (%p788) target = $region48
    $region47: #{gat_forward.6} parent=5 // pred_region
      %s791 = ssub.s32 %s12, 2
      // Predicated region
      $region49: #{gat_forward.6} parent=47 // pred_check
        %p792 = pneg %p109
      $region50: #{gat_forward.6} parent=47 // pred_check_branch
        %794 = sbr.rel (%p792) target = $region52
      $region51: #{gat_forward.6} parent=47 // pred_region
        %s795 = smul.u32 16, %s18
        %p796 = scmp.lt.s32.totalorder %s795, 31
        %s797 = scalar_select %p796, %s795, 31
        %s798 = smul.addr %s797, 4
        %s799 = scalar_lea.vmem %s3, %s798
      $region52: #{gat_forward.6} parent=47 // pred_fallthru
        _
      // Predicated region
      $region53: #{gat_forward.6} parent=47 // pred_check
        %p800 = pneg %p135
      $region54: #{gat_forward.6} parent=47 // pred_check_branch
        %802 = sbr.rel (%p800) target = $region56
      $region55: #{gat_forward.6} parent=47 // pred_region
        %p803 = scmp.lt.s32.totalorder %s18, 1
        %s804 = scalar_select %p803, %s18, 1
        %s805 = smul.addr %s804, 4
        %s806 = scalar_lea.vmem %s4, %s805
      $region56: #{gat_forward.6} parent=47 // pred_fallthru
        _
      // Predicated region
      $region57: #{gat_forward.6} parent=47 // pred_check
        %p807 = pneg %p161
      $region58: #{gat_forward.6} parent=47 // pred_check_branch
        %809 = sbr.rel (%p807) target = $region60
      $region59: #{gat_forward.6} parent=47 // pred_region
        %s810 = smul.u32 16, %s18
        %p811 = scmp.lt.s32.totalorder %s810, 31
        %s812 = scalar_select %p811, %s810, 31
        %s813 = smul.addr %s812, 8
        %s814 = scalar_lea.vmem %s5, %s813
      $region60: #{gat_forward.6} parent=47 // pred_fallthru
        _
    $region48: #{gat_forward.6} parent=5 // pred_fallthru
      _
  $region6: #{gat_forward.6} parent=0 // loop_footer
    %s16 = sadd.s32 1, %s12
  $region7: #{gat_forward.6} parent=0 // loop_footer_branch
    %11 = sbr.rel target = $region3
  $region8: #{gat_forward.6} parent=0 // loop_exit
    _

// kernel: gat_forward.10
$region0: #{gat_forward.10}
  #allocation0 [shape = 'u32[]', space=smem, size = 0x4, offset = 0x4, fixed_abs, tag = 'smem constant byte address 0x4 - core index']
  #allocation1 [shape = 'u32[144,128]{1,0:T(1,128)}', space=vmem, size = 0x12000, scoped, tag = 'internal scratch']
  %s0 = inlined_call_operand.vmem [shape: f32[256,128], index: 0, kind: input, shape index: {}]
  %s1 = inlined_call_operand.vmem [shape: bf16[128,32], index: 1, kind: input, shape index: {}]
  %s2 = inlined_call_operand.vmem [shape: bf16[32,2], index: 2, kind: input, shape index: {}]
  %s3 = inlined_call_operand.vmem [shape: bf16[256,32], index: 3, kind: output, shape index: {0}]
  %s4 = inlined_call_operand.vmem [shape: f32[1,256], index: 4, kind: output, shape index: {1}]
  %s5 = inlined_call_operand.vmem [shape: f32[256,1], index: 5, kind: output, shape index: {2}]
  %6 = xla_tuple %s3, %s4, %s5
  %s7 = sld [smem:[#allocation0]]
  $region61: #{gat_forward.10} parent=0
    _
  %s9 = ssub.s32 1, %s7
  %s10 = scalar_select 0, %s9, %s7
  loop: start=0, step=1, limit=4
  $region2: #{gat_forward.10} parent=0 // loop_pre_header
    _
  $region3: #{gat_forward.10} parent=0 // loop_header
    %s12 = sphi 0, %s16
    %p13 = scmp.ge.s32.totalorder %s12, 4
    %s22 = sphi 0, %s24
    %s25 = sphi 0, %s22
    %s26 = sphi 0, %s25
    %s42 = sphi 0, %s26
    %s46 = sphi 0, %s46
    %s48 = sphi 0, %s46
    %s49 = sphi 0, %s48
    %s63 = sphi 0, %s49
    %s67 = sphi 0, %s67
    %s69 = sphi 0, %s67
    %s70 = sphi 0, %s69
    %s84 = sphi 0, %s70
    %s90 = sphi 0, %s92
    %s93 = sphi 0, %s90
    %s94 = sphi 0, %s93
    %s110 = sphi 0, %s94
    %s116 = sphi 0, %s118
    %s119 = sphi 0, %s116
    %s120 = sphi 0, %s119
    %s136 = sphi 0, %s120
    %s142 = sphi 0, %s144
    %s145 = sphi 0, %s142
    %s146 = sphi 0, %s145
    %s162 = sphi 0, %s146
  $region4: #{gat_forward.10} parent=0 // loop_header_branch
    %15 = sbr.rel (%p13) target = $region8
  $region5: #{gat_forward.10} parent=0 // loop_body
    %s17 = ssub.s32 %s12, 1
    %s18 = ssub.s32 %s12, 2
    %s19 = sadd.s32 %s12, 1
    %s20 = ssub.s32 %s12, %s19
    %p21 = scmp.eq.s32.totalorder %s20, 0
    %s23 = sadd.s32 %s22, 1
    %s24 = scalar_select %p21, %s22, %s23
    %p27 = pneg %p21
    %p28 = scmp.eq.s32.totalorder %s12, 1
    %p29 = por %p27, %p28
    %p30 = scmp.ne.s32.totalorder %s22, %s25
    %p31 = scmp.eq.s32.totalorder %s12, 0
    %p32 = por %p30, %p31
    %p33 = scmp.ne.s32.totalorder %s22, %s25
    %p34 = scmp.eq.s32.totalorder %s17, 1
    %p35 = por %p33, %p34
    %p36 = scmp.ne.s32.totalorder %s25, %s26
    %p37 = scmp.eq.s32.totalorder %s17, 0
    %p38 = por %p36, %p37
    %p39 = scmp.ne.s32.totalorder %s25, %s26
    %p40 = scmp.eq.s32.totalorder %s18, 1
    %p41 = por %p39, %p40
    %p43 = scmp.ne.s32.totalorder %s26, %s42
    %p44 = scmp.eq.s32.totalorder %s18, 0
    %p45 = por %p43, %p44
    %s47 = sadd.s32 %s46, 1
    %p50 = scmp.eq.s32.totalorder %s12, 1
    %p51 = scmp.ne.s32.totalorder %s46, %s48
    %p52 = scmp.eq.s32.totalorder %s12, 0
    %p53 = por %p51, %p52
    %p54 = scmp.ne.s32.totalorder %s46, %s48
    %p55 = scmp.eq.s32.totalorder %s17, 1
    %p56 = por %p54, %p55
    %p57 = scmp.ne.s32.totalorder %s48, %s49
    %p58 = scmp.eq.s32.totalorder %s17, 0
    %p59 = por %p57, %p58
    %p60 = scmp.ne.s32.totalorder %s48, %s49
    %p61 = scmp.eq.s32.totalorder %s18, 1
    %p62 = por %p60, %p61
    %p64 = scmp.ne.s32.totalorder %s49, %s63
    %p65 = scmp.eq.s32.totalorder %s18, 0
    %p66 = por %p64, %p65
    %s68 = sadd.s32 %s67, 1
    %p71 = scmp.eq.s32.totalorder %s12, 1
    %p72 = scmp.ne.s32.totalorder %s67, %s69
    %p73 = scmp.eq.s32.totalorder %s12, 0
    %p74 = por %p72, %p73
    %p75 = scmp.ne.s32.totalorder %s67, %s69
    %p76 = scmp.eq.s32.totalorder %s17, 1
    %p77 = por %p75, %p76
    %p78 = scmp.ne.s32.totalorder %s69, %s70
    %p79 = scmp.eq.s32.totalorder %s17, 0
    %p80 = por %p78, %p79
    %p81 = scmp.ne.s32.totalorder %s69, %s70
    %p82 = scmp.eq.s32.totalorder %s18, 1
    %p83 = por %p81, %p82
    %p85 = scmp.ne.s32.totalorder %s70, %s84
    %p86 = scmp.eq.s32.totalorder %s18, 0
    %p87 = por %p85, %p86
    %s88 = ssub.s32 %s12, %s19
    %p89 = scmp.eq.s32.totalorder %s88, 0
    %s91 = sadd.s32 %s90, 1
    %s92 = scalar_select %p89, %s90, %s91
    %p95 = pneg %p89
    %p96 = scmp.eq.s32.totalorder %s12, 1
    %p97 = por %p95, %p96
    %p98 = scmp.ne.s32.totalorder %s90, %s93
    %p99 = scmp.eq.s32.totalorder %s12, 0
    %p100 = por %p98, %p99
    %p101 = scmp.ne.s32.totalorder %s90, %s93
    %p102 = scmp.eq.s32.totalorder %s17, 1
    %p103 = por %p101, %p102
    %p104 = scmp.ne.s32.totalorder %s93, %s94
    %p105 = scmp.eq.s32.totalorder %s17, 0
    %p106 = por %p104, %p105
    %p107 = scmp.ne.s32.totalorder %s93, %s94
    %p108 = scmp.eq.s32.totalorder %s18, 1
    %p109 = por %p107, %p108
    %p111 = scmp.ne.s32.totalorder %s94, %s110
    %p112 = scmp.eq.s32.totalorder %s18, 0
    %p113 = por %p111, %p112
    %s114 = ssub.s32 %s12, %s19
    %p115 = scmp.eq.s32.totalorder %s114, 0
    %s117 = sadd.s32 %s116, 1
    %s118 = scalar_select %p115, %s116, %s117
    %p121 = pneg %p115
    %p122 = scmp.eq.s32.totalorder %s12, 1
    %p123 = por %p121, %p122
    %p124 = scmp.ne.s32.totalorder %s116, %s119
    %p125 = scmp.eq.s32.totalorder %s12, 0
    %p126 = por %p124, %p125
    %p127 = scmp.ne.s32.totalorder %s116, %s119
    %p128 = scmp.eq.s32.totalorder %s17, 1
    %p129 = por %p127, %p128
    %p130 = scmp.ne.s32.totalorder %s119, %s120
    %p131 = scmp.eq.s32.totalorder %s17, 0
    %p132 = por %p130, %p131
    %p133 = scmp.ne.s32.totalorder %s119, %s120
    %p134 = scmp.eq.s32.totalorder %s18, 1
    %p135 = por %p133, %p134
    %p137 = scmp.ne.s32.totalorder %s120, %s136
    %p138 = scmp.eq.s32.totalorder %s18, 0
    %p139 = por %p137, %p138
    %s140 = ssub.s32 %s12, %s19
    %p141 = scmp.eq.s32.totalorder %s140, 0
    %s143 = sadd.s32 %s142, 1
    %s144 = scalar_select %p141, %s142, %s143
    %p147 = pneg %p141
    %p148 = scmp.eq.s32.totalorder %s12, 1
    %p149 = por %p147, %p148
    %p150 = scmp.ne.s32.totalorder %s142, %s145
    %p151 = scmp.eq.s32.totalorder %s12, 0
    %p152 = por %p150, %p151
    %p153 = scmp.ne.s32.totalorder %s142, %s145
    %p154 = scmp.eq.s32.totalorder %s17, 1
    %p155 = por %p153, %p154
    %p156 = scmp.ne.s32.totalorder %s145, %s146
    %p157 = scmp.eq.s32.totalorder %s17, 0
    %p158 = por %p156, %p157
    %p159 = scmp.ne.s32.totalorder %s145, %s146
    %p160 = scmp.eq.s32.totalorder %s18, 1
    %p161 = por %p159, %p160
    %p163 = scmp.ne.s32.totalorder %s146, %s162
    %p164 = scmp.eq.s32.totalorder %s18, 0
    %p165 = por %p163, %p164
    %p166 = scmp.le.s32.totalorder 1, %s12
    %p167 = scmp.lt.s32.totalorder %s12, 3
    %p168 = pnand %p166, %p167
    %p169 = pneg %p168
    // Predicated region
    $region9: #{gat_forward.10} parent=5 // pred_check
      _
    $region10: #{gat_forward.10} parent=5 // pred_check_branch
      %171 = sbr.rel (%p168) target = $region12
    $region11: #{gat_forward.10} parent=5 // pred_region
      %s172 = ssub.s32 %s12, 1
      // Predicated region
      $region13: #{gat_forward.10} parent=11 // pred_check
        %p173 = pneg %p59
      $region14: #{gat_forward.10} parent=11 // pred_check_branch
        %175 = sbr.rel (%p173) target = $region16
      $region15: #{gat_forward.10} parent=11 // pred_region
        _
      $region16: #{gat_forward.10} parent=11 // pred_fallthru
        _
      // Predicated region
      $region17: #{gat_forward.10} parent=11 // pred_check
        %p176 = pneg %p80
      $region18: #{gat_forward.10} parent=11 // pred_check_branch
        %178 = sbr.rel (%p176) target = $region20
      $region19: #{gat_forward.10} parent=11 // pred_region
        _
      $region20: #{gat_forward.10} parent=11 // pred_fallthru
        _
    $region12: #{gat_forward.10} parent=5 // pred_fallthru
      _
    %p179 = scmp.lt.s32.totalorder %s12, 2
    // Predicated region
    $region21: #{gat_forward.10} parent=5 // pred_check
      %p180 = pneg %p179
    $region22: #{gat_forward.10} parent=5 // pred_check_branch
      %182 = sbr.rel (%p180) target = $region24
    $region23: #{gat_forward.10} parent=5 // pred_region
      // Predicated region
      $region25: #{gat_forward.10} parent=23 // pred_check
        %p183 = pneg %p32
      $region26: #{gat_forward.10} parent=23 // pred_check_branch
        %185 = sbr.rel (%p183) target = $region28
      $region27: #{gat_forward.10} parent=23 // pred_region
        %s186 = smul.u32 16, %s12
        %p187 = scmp.lt.s32.totalorder %s186, 31
        %s188 = scalar_select %p187, %s186, 31
        %s189 = smul.addr %s188, 8
        %s190 = scalar_lea.vmem %s0, %s189
        %s191 = smul.u32 16, %s12
      $region28: #{gat_forward.10} parent=23 // pred_fallthru
        _
    $region24: #{gat_forward.10} parent=5 // pred_fallthru
      _
    %p192 = scmp.le.s32.totalorder 1, %s12
    %p193 = scmp.lt.s32.totalorder %s12, 3
    %p194 = pnand %p192, %p193
    %p195 = pneg %p194
    // Predicated region
    $region29: #{gat_forward.10} parent=5 // pred_check
      _
    $region30: #{gat_forward.10} parent=5 // pred_check_branch
      %197 = sbr.rel (%p194) target = $region32
    $region31: #{gat_forward.10} parent=5 // pred_region
      %s198 = ssub.s32 %s12, 1
      %s199 = smul.u32 16, %s17
      %p200 = scmp.lt.s32.totalorder %s199, 31
      %s201 = scalar_select %p200, %s199, 31
      %s202 = smul.addr %s201, 8
      %s203 = scalar_lea.vmem %s0, %s202
      %p204 = pneg %p38
      %p205 = pneg %p35
      %p206 = pneg %p59
      %p207 = pneg %p56
      %p208 = pneg %p80
      %p209 = pneg %p77
      %p210 = pneg %p106
      %p211 = pneg %p103
      %s212 = smul.u32 16, %s17
      %p213 = scmp.lt.s32.totalorder %s212, 31
      %s214 = scalar_select %p213, %s212, 31
      %s215 = smul.addr %s214, 4
      %s216 = scalar_lea.vmem %s3, %s215
      %p217 = pneg %p132
      %p218 = pneg %p129
      %p219 = scmp.lt.s32.totalorder %s17, 1
      %s220 = scalar_select %p219, %s17, 1
      %s221 = scalar_lea.vmem %s4, %s220
      %p222 = pneg %p158
      %p223 = pneg %p155
      %s224 = smul.u32 16, %s17
      %p225 = scmp.lt.s32.totalorder %s224, 31
      %s226 = scalar_select %p225, %s224, 31
      %s227 = smul.addr %s226, 8
      %s228 = scalar_lea.vmem %s5, %s227
      %s229 = smul.u32 16, %s17
      %p230 = scmp.lt.s32.totalorder %s229, 31
      %s231 = scalar_select %p230, %s229, 31
      %s232 = smul.addr %s231, 8
      %s233 = scalar_lea.vmem %s0, %s232
      %s234 = smul.u32 16, %s17
      %s235 = smul.u32 16, %s17
      %p236 = scmp.lt.s32.totalorder %s235, 31
      %s237 = scalar_select %p236, %s235, 31
      %s238 = smul.addr %s237, 4
      %s239 = scalar_lea.vmem %s3, %s238
      %s240 = smul.u32 16, %s17
      %p241 = scmp.lt.s32.totalorder %s17, 1
      %s242 = scalar_select %p241, %s17, 1
      %s243 = scalar_lea.vmem %s4, %s242
      %s244 = smul.u32 16, %s17
      %p245 = scmp.lt.s32.totalorder %s244, 31
      %s246 = scalar_select %p245, %s244, 31
      %s247 = smul.addr %s246, 8
      %s248 = scalar_lea.vmem %s5, %s247
      %s249 = smul.u32 16, %s17
      %v251 = vld [vmem:[%s233] sm:$0xff]
      %v252 = vld [vmem:[%s233 + $0x8] sm:$0xff]
      %v253 = vld [vmem:[%s233 + $0x10] sm:$0xff]
      %v254 = vld [vmem:[%s233 + $0x18] sm:$0xff]
      %v255 = vld [vmem:[%s233 + $0x20] sm:$0xff]
      %v256 = vld [vmem:[%s233 + $0x28] sm:$0xff]
      %v257 = vld [vmem:[%s233 + $0x30] sm:$0xff]
      %v258 = vld [vmem:[%s233 + $0x38] sm:$0xff]
      %v259 = vld [vmem:[%s233 + $0x40] sm:$0xff]
      %v260 = vld [vmem:[%s233 + $0x48] sm:$0xff]
      %v261 = vld [vmem:[%s233 + $0x50] sm:$0xff]
      %v262 = vld [vmem:[%s233 + $0x58] sm:$0xff]
      %v263 = vld [vmem:[%s233 + $0x60] sm:$0xff]
      %v264 = vld [vmem:[%s233 + $0x68] sm:$0xff]
      %v265 = vld [vmem:[%s233 + $0x70] sm:$0xff]
      %v266 = vld [vmem:[%s233 + $0x78] sm:$0xff]
      %v267 = vpack.c.bf16 %v252, %v251
      %v268 = vpack.c.bf16 %v254, %v253
      %v269 = vpack.c.bf16 %v256, %v255
      %v270 = vpack.c.bf16 %v258, %v257
      %v271 = vpack.c.bf16 %v260, %v259
      %v272 = vpack.c.bf16 %v262, %v261
      %v273 = vpack.c.bf16 %v264, %v263
      %v274 = vpack.c.bf16 %v266, %v265
      %v275 = vld [vmem:[%s1] sm:$0xf]
      %v276 = vld [vmem:[%s1 + $0x4] sm:$0xf]
      %v277 = vld [vmem:[%s1 + $0x8] sm:$0xf]
      %v278 = vld [vmem:[%s1 + $0xc] sm:$0xf]
      %v279 = vld [vmem:[%s1 + $0x10] sm:$0xf]
      %v280 = vld [vmem:[%s1 + $0x14] sm:$0xf]
      %v281 = vld [vmem:[%s1 + $0x18] sm:$0xf]
      %v282 = vld [vmem:[%s1 + $0x1c] sm:$0xf]
      %v283 = vld [vmem:[%s1 + $0x20] sm:$0xf]
      %v284 = vld [vmem:[%s1 + $0x24] sm:$0xf]
      %v285 = vld [vmem:[%s1 + $0x28] sm:$0xf]
      %v286 = vld [vmem:[%s1 + $0x2c] sm:$0xf]
      %v287 = vld [vmem:[%s1 + $0x30] sm:$0xf]
      %v288 = vld [vmem:[%s1 + $0x34] sm:$0xf]
      %v289 = vld [vmem:[%s1 + $0x38] sm:$0xf]
      %v290 = vld [vmem:[%s1 + $0x3c] sm:$0xf]
      %v307 = vunpack.c.l.b16 %v275
      %v308 = vunpack.c.l.b16 %v276
      %v309 = vunpack.c.l.b16 %v277
      %v310 = vunpack.c.l.b16 %v278
      %v311 = vunpack.c.l.b16 %v279
      %v312 = vunpack.c.l.b16 %v280
      %v313 = vunpack.c.l.b16 %v281
      %v314 = vunpack.c.l.b16 %v282
      %v315 = vunpack.c.l.b16 %v283
      %v316 = vunpack.c.l.b16 %v284
      %v317 = vunpack.c.l.b16 %v285
      %v318 = vunpack.c.l.b16 %v286
      %v319 = vunpack.c.l.b16 %v287
      %v320 = vunpack.c.l.b16 %v288
      %v321 = vunpack.c.l.b16 %v289
      %v322 = vunpack.c.l.b16 %v290
      %v323 = vpack.c.b16 %v308, %v307
      %v324 = vpack.c.b16 %v310, %v309
      %v325 = vpack.c.b16 %v312, %v311
      %v326 = vpack.c.b16 %v314, %v313
      %v327 = vpack.c.b16 %v316, %v315
      %v328 = vpack.c.b16 %v318, %v317
      %v329 = vpack.c.b16 %v320, %v319
      %v330 = vpack.c.b16 %v322, %v321
      %339 = vmatprep.subr.bf16.mxu0 0
      %340 = vmatpush1.bf16.msra.mxu0 %v330
      %341 = vmatprep.subr.bf16.mxu0 0
      %342 = vmatpush1.bf16.msra.mxu0 %v329
      %343 = vmatprep.subr.bf16.mxu0 0
      %344 = vmatpush1.bf16.msra.mxu0 %v328
      %345 = vmatprep.subr.bf16.mxu0 0
      %346 = vmatpush1.bf16.msra.mxu0 %v327
      %347 = vmatprep.subr.bf16.mxu0 0
      %348 = vmatpush1.bf16.msra.mxu0 %v326
      %349 = vmatprep.subr.bf16.mxu0 0
      %350 = vmatpush1.bf16.msra.mxu0 %v325
      %351 = vmatprep.subr.bf16.mxu0 0
      %352 = vmatpush1.bf16.msra.mxu0 %v324
      %353 = vmatprep.subr.bf16.mxu0 0
      %354 = vmatpush1.bf16.msra.mxu0 %v323
      %355 = vmatprep.subr.bf16.mxu0 0
      %356 = vmatpush2.bf16.msra.mxu0 0
      %357 = vmatprep.subr.bf16.mxu0 0
      %358 = vmatpush2.bf16.msra.mxu0 0
      %359 = vmatprep.subr.bf16.mxu0 0
      %360 = vmatpush2.bf16.msra.mxu0 0
      %361 = vmatprep.subr.bf16.mxu0 0
      %362 = vmatpush2.bf16.msra.mxu0 0
      %363 = vmatprep.subr.bf16.mxu0 0
      %364 = vmatpush2.bf16.msra.mxu0 0
      %365 = vmatprep.subr.bf16.mxu0 0
      %366 = vmatpush2.bf16.msra.mxu0 0
      %367 = vmatprep.subr.bf16.mxu0 0
      %368 = vmatpush2.bf16.msra.mxu0 0
      %369 = vmatprep.subr.bf16.mxu0 0
      %370 = vmatpush2.bf16.msra.mxu0 0
      %371 = vmatprep.mubr.bf16.mxu0 0
      %372 = vmatmul.mubr.bf16.gmra.mxu0 %v267
      %v373 = vpop.f32.mrf.mxu0
      %v374 = vadd.f32 0.0, %v373
      %v375 = vpop.f32.mrf.mxu0
      %v376 = vpop.f32.mrf.mxu0
      %v377 = vadd.f32 0.0, %v376
      %v378 = vpop.f32.mrf.mxu0
      %379 = vmatprep.mubr.bf16.mxu0 0
      %380 = vmatmul.mubr.bf16.gmra.mxu0 %v268
      %v381 = vpop.f32.mrf.mxu0
      %v382 = vadd.f32 0.0, %v381
      %v383 = vpop.f32.mrf.mxu0
      %v384 = vpop.f32.mrf.mxu0
      %v385 = vadd.f32 0.0, %v384
      %v386 = vpop.f32.mrf.mxu0
      %387 = vmatprep.mubr.bf16.mxu0 0
      %388 = vmatmul.mubr.bf16.gmra.mxu0 %v269
      %v389 = vpop.f32.mrf.mxu0
      %v390 = vadd.f32 0.0, %v389
      %v391 = vpop.f32.mrf.mxu0
      %v392 = vpop.f32.mrf.mxu0
      %v393 = vadd.f32 0.0, %v392
      %v394 = vpop.f32.mrf.mxu0
      %395 = vmatprep.mubr.bf16.mxu0 0
      %396 = vmatmul.mubr.bf16.gmra.mxu0 %v270
      %v397 = vpop.f32.mrf.mxu0
      %v398 = vadd.f32 0.0, %v397
      %v399 = vpop.f32.mrf.mxu0
      %v400 = vpop.f32.mrf.mxu0
      %v401 = vadd.f32 0.0, %v400
      %v402 = vpop.f32.mrf.mxu0
      %403 = vmatprep.mubr.bf16.mxu0 0
      %404 = vmatmul.mubr.bf16.gmra.mxu0 %v271
      %v405 = vpop.f32.mrf.mxu0
      %v406 = vadd.f32 0.0, %v405
      %v407 = vpop.f32.mrf.mxu0
      %v408 = vpop.f32.mrf.mxu0
      %v409 = vadd.f32 0.0, %v408
      %v410 = vpop.f32.mrf.mxu0
      %411 = vmatprep.mubr.bf16.mxu0 0
      %412 = vmatmul.mubr.bf16.gmra.mxu0 %v272
      %v413 = vpop.f32.mrf.mxu0
      %v414 = vadd.f32 0.0, %v413
      %v415 = vpop.f32.mrf.mxu0
      %v416 = vpop.f32.mrf.mxu0
      %v417 = vadd.f32 0.0, %v416
      %v418 = vpop.f32.mrf.mxu0
      %419 = vmatprep.mubr.bf16.mxu0 0
      %420 = vmatmul.mubr.bf16.gmra.mxu0 %v273
      %v421 = vpop.f32.mrf.mxu0
      %v422 = vadd.f32 0.0, %v421
      %v423 = vpop.f32.mrf.mxu0
      %v424 = vpop.f32.mrf.mxu0
      %v425 = vadd.f32 0.0, %v424
      %v426 = vpop.f32.mrf.mxu0
      %427 = vmatprep.mubr.bf16.mxu0 0
      %428 = vmatmul.mubr.bf16.gmra.mxu0 %v274
      %v429 = vpop.f32.mrf.mxu0
      %v430 = vadd.f32 0.0, %v429
      %v431 = vpop.f32.mrf.mxu0
      %v432 = vpop.f32.mrf.mxu0
      %v433 = vadd.f32 0.0, %v432
      %v434 = vpop.f32.mrf.mxu0
      %435 = vdwg.mxu0
      %v436 = vpack.c.bf16 %v377, %v374
      %v437 = vpack.c.bf16 %v385, %v382
      %v438 = vpack.c.bf16 %v393, %v390
      %v439 = vpack.c.bf16 %v401, %v398
      %v440 = vpack.c.bf16 %v409, %v406
      %v441 = vpack.c.bf16 %v417, %v414
      %v442 = vpack.c.bf16 %v425, %v422
      %v443 = vpack.c.bf16 %v433, %v430
      %v444 = vld [vmem:[%s2] sm:$0xf]
      %v445 = vld [vmem:[%s2 + $0x4] sm:$0xf]
      %v446 = vld [vmem:[%s2 + $0x8] sm:$0xf]
      %v447 = vld [vmem:[%s2 + $0xc] sm:$0xf]
      %v452 = vunpack.c.l.b16 %v444
      %v453 = vunpack.c.l.b16 %v445
      %v454 = vunpack.c.l.b16 %v446
      %v455 = vunpack.c.l.b16 %v447
      %v456 = vpack.c.b16 %v453, %v452
      %v457 = vpack.c.b16 %v455, %v454
      %vm460 = vcmask 261120
      %v462 = vsel %vm460, %v436, 0
      %v465 = vsel %vm460, %v437, 0
      %v468 = vsel %vm460, %v438, 0
      %v471 = vsel %vm460, %v439, 0
      %v474 = vsel %vm460, %v440, 0
      %v477 = vsel %vm460, %v441, 0
      %v480 = vsel %vm460, %v442, 0
      %v483 = vsel %vm460, %v443, 0
      %485 = vmatprep.subr.bf16.mxu0 0
      %486 = vmatpush1.bf16.msra.mxu0 0
      %487 = vmatprep.subr.bf16.mxu0 0
      %488 = vmatpush1.bf16.msra.mxu0 0
      %489 = vmatprep.subr.bf16.mxu0 0
      %490 = vmatpush1.bf16.msra.mxu0 0
      %491 = vmatprep.subr.bf16.mxu0 0
      %492 = vmatpush1.bf16.msra.mxu0 0
      %493 = vmatprep.subr.bf16.mxu0 0
      %494 = vmatpush1.bf16.msra.mxu0 0
      %495 = vmatprep.subr.bf16.mxu0 0
      %496 = vmatpush1.bf16.msra.mxu0 0
      %497 = vmatprep.subr.bf16.mxu0 0
      %498 = vmatpush1.bf16.msra.mxu0 %v457
      %499 = vmatprep.subr.bf16.mxu0 0
      %500 = vmatpush1.bf16.msra.mxu0 %v456
      %501 = vmatprep.subr.bf16.mxu0 0
      %502 = vmatpush2.bf16.msra.mxu0 0
      %503 = vmatprep.subr.bf16.mxu0 0
      %504 = vmatpush2.bf16.msra.mxu0 0
      %505 = vmatprep.subr.bf16.mxu0 0
      %506 = vmatpush2.bf16.msra.mxu0 0
      %507 = vmatprep.subr.bf16.mxu0 0
      %508 = vmatpush2.bf16.msra.mxu0 0
      %509 = vmatprep.subr.bf16.mxu0 0
      %510 = vmatpush2.bf16.msra.mxu0 0
      %511 = vmatprep.subr.bf16.mxu0 0
      %512 = vmatpush2.bf16.msra.mxu0 0
      %513 = vmatprep.subr.bf16.mxu0 0
      %514 = vmatpush2.bf16.msra.mxu0 0
      %515 = vmatprep.subr.bf16.mxu0 0
      %516 = vmatpush2.bf16.msra.mxu0 0
      %517 = vmatprep.mubr.bf16.mxu0 0
      %518 = vmatmul.mubr.bf16.gmra.mxu0 %v462
      %v519 = vpop.f32.mrf.mxu0
      %v520 = vadd.f32 0.0, %v519
      %v521 = vpop.f32.mrf.mxu0
      %v522 = vpop.f32.mrf.mxu0
      %v523 = vadd.f32 0.0, %v522
      %v524 = vpop.f32.mrf.mxu0
      %525 = vmatprep.mubr.bf16.mxu0 0
      %526 = vmatmul.mubr.bf16.gmra.mxu0 %v465
      %v527 = vpop.f32.mrf.mxu0
      %v528 = vadd.f32 0.0, %v527
      %v529 = vpop.f32.mrf.mxu0
      %v530 = vpop.f32.mrf.mxu0
      %v531 = vadd.f32 0.0, %v530
      %v532 = vpop.f32.mrf.mxu0
      %533 = vmatprep.mubr.bf16.mxu0 0
      %534 = vmatmul.mubr.bf16.gmra.mxu0 %v468
      %v535 = vpop.f32.mrf.mxu0
      %v536 = vadd.f32 0.0, %v535
      %v537 = vpop.f32.mrf.mxu0
      %v538 = vpop.f32.mrf.mxu0
      %v539 = vadd.f32 0.0, %v538
      %v540 = vpop.f32.mrf.mxu0
      %541 = vmatprep.mubr.bf16.mxu0 0
      %542 = vmatmul.mubr.bf16.gmra.mxu0 %v471
      %v543 = vpop.f32.mrf.mxu0
      %v544 = vadd.f32 0.0, %v543
      %v545 = vpop.f32.mrf.mxu0
      %v546 = vpop.f32.mrf.mxu0
      %v547 = vadd.f32 0.0, %v546
      %v548 = vpop.f32.mrf.mxu0
      %549 = vmatprep.mubr.bf16.mxu0 0
      %550 = vmatmul.mubr.bf16.gmra.mxu0 %v474
      %v551 = vpop.f32.mrf.mxu0
      %v552 = vadd.f32 0.0, %v551
      %v553 = vpop.f32.mrf.mxu0
      %v554 = vpop.f32.mrf.mxu0
      %v555 = vadd.f32 0.0, %v554
      %v556 = vpop.f32.mrf.mxu0
      %557 = vmatprep.mubr.bf16.mxu0 0
      %558 = vmatmul.mubr.bf16.gmra.mxu0 %v477
      %v559 = vpop.f32.mrf.mxu0
      %v560 = vadd.f32 0.0, %v559
      %v561 = vpop.f32.mrf.mxu0
      %v562 = vpop.f32.mrf.mxu0
      %v563 = vadd.f32 0.0, %v562
      %v564 = vpop.f32.mrf.mxu0
      %565 = vmatprep.mubr.bf16.mxu0 0
      %566 = vmatmul.mubr.bf16.gmra.mxu0 %v480
      %v567 = vpop.f32.mrf.mxu0
      %v568 = vadd.f32 0.0, %v567
      %v569 = vpop.f32.mrf.mxu0
      %v570 = vpop.f32.mrf.mxu0
      %v571 = vadd.f32 0.0, %v570
      %v572 = vpop.f32.mrf.mxu0
      %573 = vmatprep.mubr.bf16.mxu0 0
      %574 = vmatmul.mubr.bf16.gmra.mxu0 %v483
      %v575 = vpop.f32.mrf.mxu0
      %v576 = vadd.f32 0.0, %v575
      %v577 = vpop.f32.mrf.mxu0
      %v578 = vpop.f32.mrf.mxu0
      %v579 = vadd.f32 0.0, %v578
      %v580 = vpop.f32.mrf.mxu0
      %581 = vdwg.mxu0
      %582 = vxpose.xlu0.b32.start [1/16] %v520, 128
      %583 = vxpose.xlu0.b32.cont [2/16] %v523, 128
      %584 = vxpose.xlu0.b32.cont [3/16] %v528, 128
      %585 = vxpose.xlu0.b32.cont [4/16] %v531, 128
      %586 = vxpose.xlu0.b32.cont [5/16] %v536, 128
      %587 = vxpose.xlu0.b32.cont [6/16] %v539, 128
      %588 = vxpose.xlu0.b32.cont [7/16] %v544, 128
      %589 = vxpose.xlu0.b32.cont [8/16] %v547, 128
      %590 = vxpose.xlu0.b32.cont [9/16] %v552, 128
      %591 = vxpose.xlu0.b32.cont [10/16] %v555, 128
      %592 = vxpose.xlu0.b32.cont [11/16] %v560, 128
      %593 = vxpose.xlu0.b32.cont [12/16] %v563, 128
      %594 = vxpose.xlu0.b32.cont [13/16] %v568, 128
      %595 = vxpose.xlu0.b32.cont [14/16] %v571, 128
      %596 = vxpose.xlu0.b32.cont [15/16] %v576, 128
      %597 = vxpose.xlu0.b32.end [16/16] %v579, 128
      %v598 = vpop.trf.xlu0
      %v599 = vpop.trf.xlu0
      %v600 = vpop.trf.xlu0
      %v601 = vpop.trf.xlu0
      %v602 = vpop.trf.xlu0
      %v603 = vpop.trf.xlu0
      %v604 = vpop.trf.xlu0
      %v605 = vpop.trf.xlu0
      %v606 = vpop.trf.xlu0
      %v607 = vpop.trf.xlu0
      %v608 = vpop.trf.xlu0
      %v609 = vpop.trf.xlu0
      %v610 = vpop.trf.xlu0
      %v611 = vpop.trf.xlu0
      %v612 = vpop.trf.xlu0
      %v613 = vpop.trf.xlu0
      %614 = vst [vmem:[%s243] sm:$0x1] %v598
      %631 = vrot.lane.b32.xlu0 %v520, 127
      %v632 = vpop.permute.xlu0 %631
      %633 = vrot.lane.b32.xlu0 %v523, 127
      %v634 = vpop.permute.xlu0 %633
      %635 = vrot.lane.b32.xlu0 %v528, 127
      %v636 = vpop.permute.xlu0 %635
      %637 = vrot.lane.b32.xlu0 %v531, 127
      %v638 = vpop.permute.xlu0 %637
      %639 = vrot.lane.b32.xlu0 %v536, 127
      %v640 = vpop.permute.xlu0 %639
      %641 = vrot.lane.b32.xlu0 %v539, 127
      %v642 = vpop.permute.xlu0 %641
      %643 = vrot.lane.b32.xlu0 %v544, 127
      %v644 = vpop.permute.xlu0 %643
      %645 = vrot.lane.b32.xlu0 %v547, 127
      %v646 = vpop.permute.xlu0 %645
      %647 = vrot.lane.b32.xlu0 %v552, 127
      %v648 = vpop.permute.xlu0 %647
      %649 = vrot.lane.b32.xlu0 %v555, 127
      %v650 = vpop.permute.xlu0 %649
      %651 = vrot.lane.b32.xlu0 %v560, 127
      %v652 = vpop.permute.xlu0 %651
      %653 = vrot.lane.b32.xlu0 %v563, 127
      %v654 = vpop.permute.xlu0 %653
      %655 = vrot.lane.b32.xlu0 %v568, 127
      %v656 = vpop.permute.xlu0 %655
      %657 = vrot.lane.b32.xlu0 %v571, 127
      %v658 = vpop.permute.xlu0 %657
      %659 = vrot.lane.b32.xlu0 %v576, 127
      %v660 = vpop.permute.xlu0 %659
      %661 = vrot.lane.b32.xlu0 %v579, 127
      %v662 = vpop.permute.xlu0 %661
      %vm679 = vcmask 7168
      %680 = vst.msk [vmem:[%s248] sm:$0xff] %vm679, %v632
      %681 = vst.msk [vmem:[%s248 + $0x8] sm:$0xff] %vm679, %v634
      %682 = vst.msk [vmem:[%s248 + $0x10] sm:$0xff] %vm679, %v636
      %683 = vst.msk [vmem:[%s248 + $0x18] sm:$0xff] %vm679, %v638
      %684 = vst.msk [vmem:[%s248 + $0x20] sm:$0xff] %vm679, %v640
      %685 = vst.msk [vmem:[%s248 + $0x28] sm:$0xff] %vm679, %v642
      %686 = vst.msk [vmem:[%s248 + $0x30] sm:$0xff] %vm679, %v644
      %687 = vst.msk [vmem:[%s248 + $0x38] sm:$0xff] %vm679, %v646
      %688 = vst.msk [vmem:[%s248 + $0x40] sm:$0xff] %vm679, %v648
      %689 = vst.msk [vmem:[%s248 + $0x48] sm:$0xff] %vm679, %v650
      %690 = vst.msk [vmem:[%s248 + $0x50] sm:$0xff] %vm679, %v652
      %691 = vst.msk [vmem:[%s248 + $0x58] sm:$0xff] %vm679, %v654
      %692 = vst.msk [vmem:[%s248 + $0x60] sm:$0xff] %vm679, %v656
      %693 = vst.msk [vmem:[%s248 + $0x68] sm:$0xff] %vm679, %v658
      %694 = vst.msk [vmem:[%s248 + $0x70] sm:$0xff] %vm679, %v660
      %695 = vst.msk [vmem:[%s248 + $0x78] sm:$0xff] %vm679, %v662
      %v704 = vunpack.c.l.b16 %v436
      %v705 = vunpack.c.h.b16 %v436
      %v706 = vunpack.c.l.b16 %v437
      %v707 = vunpack.c.h.b16 %v437
      %v708 = vunpack.c.l.b16 %v438
      %v709 = vunpack.c.h.b16 %v438
      %v710 = vunpack.c.l.b16 %v439
      %v711 = vunpack.c.h.b16 %v439
      %v712 = vunpack.c.l.b16 %v440
      %v713 = vunpack.c.h.b16 %v440
      %v714 = vunpack.c.l.b16 %v441
      %v715 = vunpack.c.h.b16 %v441
      %v716 = vunpack.c.l.b16 %v442
      %v717 = vunpack.c.h.b16 %v442
      %v718 = vunpack.c.l.b16 %v443
      %v719 = vunpack.c.h.b16 %v443
      %v720 = vpack.c.b16 %v704, %v704
      %v721 = vpack.c.b16 %v705, %v705
      %v722 = vpack.c.b16 %v706, %v706
      %v723 = vpack.c.b16 %v707, %v707
      %v724 = vpack.c.b16 %v708, %v708
      %v725 = vpack.c.b16 %v709, %v709
      %v726 = vpack.c.b16 %v710, %v710
      %v727 = vpack.c.b16 %v711, %v711
      %v728 = vpack.c.b16 %v712, %v712
      %v729 = vpack.c.b16 %v713, %v713
      %v730 = vpack.c.b16 %v714, %v714
      %v731 = vpack.c.b16 %v715, %v715
      %v732 = vpack.c.b16 %v716, %v716
      %v733 = vpack.c.b16 %v717, %v717
      %v734 = vpack.c.b16 %v718, %v718
      %v735 = vpack.c.b16 %v719, %v719
      %vm752 = vcmask 257024
      %753 = vst.msk [vmem:[%s239] sm:$0xf] %vm752, %v720
      %754 = vst.msk [vmem:[%s239 + $0x4] sm:$0xf] %vm752, %v721
      %755 = vst.msk [vmem:[%s239 + $0x8] sm:$0xf] %vm752, %v722
      %756 = vst.msk [vmem:[%s239 + $0xc] sm:$0xf] %vm752, %v723
      %757 = vst.msk [vmem:[%s239 + $0x10] sm:$0xf] %vm752, %v724
      %758 = vst.msk [vmem:[%s239 + $0x14] sm:$0xf] %vm752, %v725
      %759 = vst.msk [vmem:[%s239 + $0x18] sm:$0xf] %vm752, %v726
      %760 = vst.msk [vmem:[%s239 + $0x1c] sm:$0xf] %vm752, %v727
      %761 = vst.msk [vmem:[%s239 + $0x20] sm:$0xf] %vm752, %v728
      %762 = vst.msk [vmem:[%s239 + $0x24] sm:$0xf] %vm752, %v729
      %763 = vst.msk [vmem:[%s239 + $0x28] sm:$0xf] %vm752, %v730
      %764 = vst.msk [vmem:[%s239 + $0x2c] sm:$0xf] %vm752, %v731
      %765 = vst.msk [vmem:[%s239 + $0x30] sm:$0xf] %vm752, %v732
      %766 = vst.msk [vmem:[%s239 + $0x34] sm:$0xf] %vm752, %v733
      %767 = vst.msk [vmem:[%s239 + $0x38] sm:$0xf] %vm752, %v734
      %768 = vst.msk [vmem:[%s239 + $0x3c] sm:$0xf] %vm752, %v735
      %s769 = smul.u32 16, %s17
      %p770 = scmp.lt.s32.totalorder %s769, 31
      %s771 = scalar_select %p770, %s769, 31
      %s772 = smul.addr %s771, 4
      %s773 = scalar_lea.vmem %s3, %s772
      %p774 = scmp.lt.s32.totalorder %s17, 1
      %s775 = scalar_select %p774, %s17, 1
      %s776 = scalar_lea.vmem %s4, %s775
      %s777 = smul.u32 16, %s17
      %p778 = scmp.lt.s32.totalorder %s777, 31
      %s779 = scalar_select %p778, %s777, 31
      %s780 = smul.addr %s779, 8
      %s781 = scalar_lea.vmem %s5, %s780
      // Predicated region
      $region33: #{gat_forward.10} parent=31 // pred_check
        %p782 = pneg %p103
      $region34: #{gat_forward.10} parent=31 // pred_check_branch
        %784 = sbr.rel (%p782) target = $region36
      $region35: #{gat_forward.10} parent=31 // pred_region
        %s785 = smul.u32 16, %s17
      $region36: #{gat_forward.10} parent=31 // pred_fallthru
        _
      // Predicated region
      $region37: #{gat_forward.10} parent=31 // pred_check
        %p786 = pneg %p129
      $region38: #{gat_forward.10} parent=31 // pred_check_branch
        %788 = sbr.rel (%p786) target = $region40
      $region39: #{gat_forward.10} parent=31 // pred_region
        _
      $region40: #{gat_forward.10} parent=31 // pred_fallthru
        _
      // Predicated region
      $region41: #{gat_forward.10} parent=31 // pred_check
        %p789 = pneg %p155
      $region42: #{gat_forward.10} parent=31 // pred_check_branch
        %791 = sbr.rel (%p789) target = $region44
      $region43: #{gat_forward.10} parent=31 // pred_region
        %s792 = smul.u32 16, %s17
      $region44: #{gat_forward.10} parent=31 // pred_fallthru
        _
    $region32: #{gat_forward.10} parent=5 // pred_fallthru
      _
    %p793 = scmp.le.s32.totalorder 2, %s12
    // Predicated region
    $region45: #{gat_forward.10} parent=5 // pred_check
      %p794 = pneg %p793
    $region46: #{gat_forward.10} parent=5 // pred_check_branch
      %796 = sbr.rel (%p794) target = $region48
    $region47: #{gat_forward.10} parent=5 // pred_region
      %s797 = ssub.s32 %s12, 2
      // Predicated region
      $region49: #{gat_forward.10} parent=47 // pred_check
        %p798 = pneg %p109
      $region50: #{gat_forward.10} parent=47 // pred_check_branch
        %800 = sbr.rel (%p798) target = $region52
      $region51: #{gat_forward.10} parent=47 // pred_region
        %s801 = smul.u32 16, %s18
        %p802 = scmp.lt.s32.totalorder %s801, 31
        %s803 = scalar_select %p802, %s801, 31
        %s804 = smul.addr %s803, 4
        %s805 = scalar_lea.vmem %s3, %s804
      $region52: #{gat_forward.10} parent=47 // pred_fallthru
        _
      // Predicated region
      $region53: #{gat_forward.10} parent=47 // pred_check
        %p806 = pneg %p135
      $region54: #{gat_forward.10} parent=47 // pred_check_branch
        %808 = sbr.rel (%p806) target = $region56
      $region55: #{gat_forward.10} parent=47 // pred_region
        %p809 = scmp.lt.s32.totalorder %s18, 1
        %s810 = scalar_select %p809, %s18, 1
        %s811 = scalar_lea.vmem %s4, %s810
      $region56: #{gat_forward.10} parent=47 // pred_fallthru
        _
      // Predicated region
      $region57: #{gat_forward.10} parent=47 // pred_check
        %p812 = pneg %p161
      $region58: #{gat_forward.10} parent=47 // pred_check_branch
        %814 = sbr.rel (%p812) target = $region60
      $region59: #{gat_forward.10} parent=47 // pred_region
        %s815 = smul.u32 16, %s18
        %p816 = scmp.lt.s32.totalorder %s815, 31
        %s817 = scalar_select %p816, %s815, 31
        %s818 = smul.addr %s817, 8
        %s819 = scalar_lea.vmem %s5, %s818
      $region60: #{gat_forward.10} parent=47 // pred_fallthru
        _
    $region48: #{gat_forward.10} parent=5 // pred_fallthru
      _
  $region6: #{gat_forward.10} parent=0 // loop_footer
    %s16 = sadd.s32 1, %s12
  $region7: #{gat_forward.10} parent=0 // loop_footer_branch
    %11 = sbr.rel target = $region3
  $region8: #{gat_forward.10} parent=0 // loop_exit
    _

// kernel: gat_forward.8
$region0: #{gat_forward.8}
  #allocation0 [shape = 'u32[]', space=smem, size = 0x4, offset = 0x4, fixed_abs, tag = 'smem constant byte address 0x4 - core index']
  #allocation1 [shape = 'u32[144,128]{1,0:T(1,128)}', space=vmem, size = 0x12000, scoped, tag = 'internal scratch']
  %s0 = inlined_call_operand.vmem [shape: f32[256,128], index: 0, kind: input, shape index: {}]
  %s1 = inlined_call_operand.vmem [shape: bf16[128,128], index: 1, kind: input, shape index: {}]
  %s2 = inlined_call_operand.vmem [shape: bf16[128,8], index: 2, kind: input, shape index: {}]
  %s3 = inlined_call_operand.vmem [shape: bf16[256,128], index: 3, kind: output, shape index: {0}]
  %s4 = inlined_call_operand.vmem [shape: f32[4,256], index: 4, kind: output, shape index: {1}]
  %s5 = inlined_call_operand.vmem [shape: f32[256,4], index: 5, kind: output, shape index: {2}]
  %6 = xla_tuple %s3, %s4, %s5
  %s7 = sld [smem:[#allocation0]]
  $region61: #{gat_forward.8} parent=0
    _
  %s9 = ssub.s32 1, %s7
  %s10 = scalar_select 0, %s9, %s7
  loop: start=0, step=1, limit=4
  $region2: #{gat_forward.8} parent=0 // loop_pre_header
    _
  $region3: #{gat_forward.8} parent=0 // loop_header
    %s12 = sphi 0, %s16
    %p13 = scmp.ge.s32.totalorder %s12, 4
    %s22 = sphi 0, %s24
    %s25 = sphi 0, %s22
    %s26 = sphi 0, %s25
    %s42 = sphi 0, %s26
    %s46 = sphi 0, %s46
    %s48 = sphi 0, %s46
    %s49 = sphi 0, %s48
    %s63 = sphi 0, %s49
    %s67 = sphi 0, %s67
    %s69 = sphi 0, %s67
    %s70 = sphi 0, %s69
    %s84 = sphi 0, %s70
    %s90 = sphi 0, %s92
    %s93 = sphi 0, %s90
    %s94 = sphi 0, %s93
    %s110 = sphi 0, %s94
    %s116 = sphi 0, %s118
    %s119 = sphi 0, %s116
    %s120 = sphi 0, %s119
    %s136 = sphi 0, %s120
    %s142 = sphi 0, %s144
    %s145 = sphi 0, %s142
    %s146 = sphi 0, %s145
    %s162 = sphi 0, %s146
  $region4: #{gat_forward.8} parent=0 // loop_header_branch
    %15 = sbr.rel (%p13) target = $region8
  $region5: #{gat_forward.8} parent=0 // loop_body
    %s17 = ssub.s32 %s12, 1
    %s18 = ssub.s32 %s12, 2
    %s19 = sadd.s32 %s12, 1
    %s20 = ssub.s32 %s12, %s19
    %p21 = scmp.eq.s32.totalorder %s20, 0
    %s23 = sadd.s32 %s22, 1
    %s24 = scalar_select %p21, %s22, %s23
    %p27 = pneg %p21
    %p28 = scmp.eq.s32.totalorder %s12, 1
    %p29 = por %p27, %p28
    %p30 = scmp.ne.s32.totalorder %s22, %s25
    %p31 = scmp.eq.s32.totalorder %s12, 0
    %p32 = por %p30, %p31
    %p33 = scmp.ne.s32.totalorder %s22, %s25
    %p34 = scmp.eq.s32.totalorder %s17, 1
    %p35 = por %p33, %p34
    %p36 = scmp.ne.s32.totalorder %s25, %s26
    %p37 = scmp.eq.s32.totalorder %s17, 0
    %p38 = por %p36, %p37
    %p39 = scmp.ne.s32.totalorder %s25, %s26
    %p40 = scmp.eq.s32.totalorder %s18, 1
    %p41 = por %p39, %p40
    %p43 = scmp.ne.s32.totalorder %s26, %s42
    %p44 = scmp.eq.s32.totalorder %s18, 0
    %p45 = por %p43, %p44
    %s47 = sadd.s32 %s46, 1
    %p50 = scmp.eq.s32.totalorder %s12, 1
    %p51 = scmp.ne.s32.totalorder %s46, %s48
    %p52 = scmp.eq.s32.totalorder %s12, 0
    %p53 = por %p51, %p52
    %p54 = scmp.ne.s32.totalorder %s46, %s48
    %p55 = scmp.eq.s32.totalorder %s17, 1
    %p56 = por %p54, %p55
    %p57 = scmp.ne.s32.totalorder %s48, %s49
    %p58 = scmp.eq.s32.totalorder %s17, 0
    %p59 = por %p57, %p58
    %p60 = scmp.ne.s32.totalorder %s48, %s49
    %p61 = scmp.eq.s32.totalorder %s18, 1
    %p62 = por %p60, %p61
    %p64 = scmp.ne.s32.totalorder %s49, %s63
    %p65 = scmp.eq.s32.totalorder %s18, 0
    %p66 = por %p64, %p65
    %s68 = sadd.s32 %s67, 1
    %p71 = scmp.eq.s32.totalorder %s12, 1
    %p72 = scmp.ne.s32.totalorder %s67, %s69
    %p73 = scmp.eq.s32.totalorder %s12, 0
    %p74 = por %p72, %p73
    %p75 = scmp.ne.s32.totalorder %s67, %s69
    %p76 = scmp.eq.s32.totalorder %s17, 1
    %p77 = por %p75, %p76
    %p78 = scmp.ne.s32.totalorder %s69, %s70
    %p79 = scmp.eq.s32.totalorder %s17, 0
    %p80 = por %p78, %p79
    %p81 = scmp.ne.s32.totalorder %s69, %s70
    %p82 = scmp.eq.s32.totalorder %s18, 1
    %p83 = por %p81, %p82
    %p85 = scmp.ne.s32.totalorder %s70, %s84
    %p86 = scmp.eq.s32.totalorder %s18, 0
    %p87 = por %p85, %p86
    %s88 = ssub.s32 %s12, %s19
    %p89 = scmp.eq.s32.totalorder %s88, 0
    %s91 = sadd.s32 %s90, 1
    %s92 = scalar_select %p89, %s90, %s91
    %p95 = pneg %p89
    %p96 = scmp.eq.s32.totalorder %s12, 1
    %p97 = por %p95, %p96
    %p98 = scmp.ne.s32.totalorder %s90, %s93
    %p99 = scmp.eq.s32.totalorder %s12, 0
    %p100 = por %p98, %p99
    %p101 = scmp.ne.s32.totalorder %s90, %s93
    %p102 = scmp.eq.s32.totalorder %s17, 1
    %p103 = por %p101, %p102
    %p104 = scmp.ne.s32.totalorder %s93, %s94
    %p105 = scmp.eq.s32.totalorder %s17, 0
    %p106 = por %p104, %p105
    %p107 = scmp.ne.s32.totalorder %s93, %s94
    %p108 = scmp.eq.s32.totalorder %s18, 1
    %p109 = por %p107, %p108
    %p111 = scmp.ne.s32.totalorder %s94, %s110
    %p112 = scmp.eq.s32.totalorder %s18, 0
    %p113 = por %p111, %p112
    %s114 = ssub.s32 %s12, %s19
    %p115 = scmp.eq.s32.totalorder %s114, 0
    %s117 = sadd.s32 %s116, 1
    %s118 = scalar_select %p115, %s116, %s117
    %p121 = pneg %p115
    %p122 = scmp.eq.s32.totalorder %s12, 1
    %p123 = por %p121, %p122
    %p124 = scmp.ne.s32.totalorder %s116, %s119
    %p125 = scmp.eq.s32.totalorder %s12, 0
    %p126 = por %p124, %p125
    %p127 = scmp.ne.s32.totalorder %s116, %s119
    %p128 = scmp.eq.s32.totalorder %s17, 1
    %p129 = por %p127, %p128
    %p130 = scmp.ne.s32.totalorder %s119, %s120
    %p131 = scmp.eq.s32.totalorder %s17, 0
    %p132 = por %p130, %p131
    %p133 = scmp.ne.s32.totalorder %s119, %s120
    %p134 = scmp.eq.s32.totalorder %s18, 1
    %p135 = por %p133, %p134
    %p137 = scmp.ne.s32.totalorder %s120, %s136
    %p138 = scmp.eq.s32.totalorder %s18, 0
    %p139 = por %p137, %p138
    %s140 = ssub.s32 %s12, %s19
    %p141 = scmp.eq.s32.totalorder %s140, 0
    %s143 = sadd.s32 %s142, 1
    %s144 = scalar_select %p141, %s142, %s143
    %p147 = pneg %p141
    %p148 = scmp.eq.s32.totalorder %s12, 1
    %p149 = por %p147, %p148
    %p150 = scmp.ne.s32.totalorder %s142, %s145
    %p151 = scmp.eq.s32.totalorder %s12, 0
    %p152 = por %p150, %p151
    %p153 = scmp.ne.s32.totalorder %s142, %s145
    %p154 = scmp.eq.s32.totalorder %s17, 1
    %p155 = por %p153, %p154
    %p156 = scmp.ne.s32.totalorder %s145, %s146
    %p157 = scmp.eq.s32.totalorder %s17, 0
    %p158 = por %p156, %p157
    %p159 = scmp.ne.s32.totalorder %s145, %s146
    %p160 = scmp.eq.s32.totalorder %s18, 1
    %p161 = por %p159, %p160
    %p163 = scmp.ne.s32.totalorder %s146, %s162
    %p164 = scmp.eq.s32.totalorder %s18, 0
    %p165 = por %p163, %p164
    %p166 = scmp.le.s32.totalorder 1, %s12
    %p167 = scmp.lt.s32.totalorder %s12, 3
    %p168 = pnand %p166, %p167
    %p169 = pneg %p168
    // Predicated region
    $region9: #{gat_forward.8} parent=5 // pred_check
      _
    $region10: #{gat_forward.8} parent=5 // pred_check_branch
      %171 = sbr.rel (%p168) target = $region12
    $region11: #{gat_forward.8} parent=5 // pred_region
      %s172 = ssub.s32 %s12, 1
      // Predicated region
      $region13: #{gat_forward.8} parent=11 // pred_check
        %p173 = pneg %p59
      $region14: #{gat_forward.8} parent=11 // pred_check_branch
        %175 = sbr.rel (%p173) target = $region16
      $region15: #{gat_forward.8} parent=11 // pred_region
        _
      $region16: #{gat_forward.8} parent=11 // pred_fallthru
        _
      // Predicated region
      $region17: #{gat_forward.8} parent=11 // pred_check
        %p176 = pneg %p80
      $region18: #{gat_forward.8} parent=11 // pred_check_branch
        %178 = sbr.rel (%p176) target = $region20
      $region19: #{gat_forward.8} parent=11 // pred_region
        _
      $region20: #{gat_forward.8} parent=11 // pred_fallthru
        _
    $region12: #{gat_forward.8} parent=5 // pred_fallthru
      _
    %p179 = scmp.lt.s32.totalorder %s12, 2
    // Predicated region
    $region21: #{gat_forward.8} parent=5 // pred_check
      %p180 = pneg %p179
    $region22: #{gat_forward.8} parent=5 // pred_check_branch
      %182 = sbr.rel (%p180) target = $region24
    $region23: #{gat_forward.8} parent=5 // pred_region
      // Predicated region
      $region25: #{gat_forward.8} parent=23 // pred_check
        %p183 = pneg %p32
      $region26: #{gat_forward.8} parent=23 // pred_check_branch
        %185 = sbr.rel (%p183) target = $region28
      $region27: #{gat_forward.8} parent=23 // pred_region
        %s186 = smul.u32 16, %s12
        %p187 = scmp.lt.s32.totalorder %s186, 31
        %s188 = scalar_select %p187, %s186, 31
        %s189 = smul.addr %s188, 8
        %s190 = scalar_lea.vmem %s0, %s189
        %s191 = smul.u32 16, %s12
      $region28: #{gat_forward.8} parent=23 // pred_fallthru
        _
    $region24: #{gat_forward.8} parent=5 // pred_fallthru
      _
    %p192 = scmp.le.s32.totalorder 1, %s12
    %p193 = scmp.lt.s32.totalorder %s12, 3
    %p194 = pnand %p192, %p193
    %p195 = pneg %p194
    // Predicated region
    $region29: #{gat_forward.8} parent=5 // pred_check
      _
    $region30: #{gat_forward.8} parent=5 // pred_check_branch
      %197 = sbr.rel (%p194) target = $region32
    $region31: #{gat_forward.8} parent=5 // pred_region
      %s198 = ssub.s32 %s12, 1
      %s199 = smul.u32 16, %s17
      %p200 = scmp.lt.s32.totalorder %s199, 31
      %s201 = scalar_select %p200, %s199, 31
      %s202 = smul.addr %s201, 8
      %s203 = scalar_lea.vmem %s0, %s202
      %p204 = pneg %p38
      %p205 = pneg %p35
      %p206 = pneg %p59
      %p207 = pneg %p56
      %p208 = pneg %p80
      %p209 = pneg %p77
      %p210 = pneg %p106
      %p211 = pneg %p103
      %s212 = smul.u32 16, %s17
      %p213 = scmp.lt.s32.totalorder %s212, 31
      %s214 = scalar_select %p213, %s212, 31
      %s215 = smul.addr %s214, 4
      %s216 = scalar_lea.vmem %s3, %s215
      %p217 = pneg %p132
      %p218 = pneg %p129
      %p219 = scmp.lt.s32.totalorder %s17, 1
      %s220 = scalar_select %p219, %s17, 1
      %s221 = smul.addr %s220, 4
      %s222 = scalar_lea.vmem %s4, %s221
      %p223 = pneg %p158
      %p224 = pneg %p155
      %s225 = smul.u32 16, %s17
      %p226 = scmp.lt.s32.totalorder %s225, 31
      %s227 = scalar_select %p226, %s225, 31
      %s228 = smul.addr %s227, 8
      %s229 = scalar_lea.vmem %s5, %s228
      %s230 = smul.u32 16, %s17
      %p231 = scmp.lt.s32.totalorder %s230, 31
      %s232 = scalar_select %p231, %s230, 31
      %s233 = smul.addr %s232, 8
      %s234 = scalar_lea.vmem %s0, %s233
      %s235 = smul.u32 16, %s17
      %s236 = smul.u32 16, %s17
      %p237 = scmp.lt.s32.totalorder %s236, 31
      %s238 = scalar_select %p237, %s236, 31
      %s239 = smul.addr %s238, 4
      %s240 = scalar_lea.vmem %s3, %s239
      %s241 = smul.u32 16, %s17
      %p242 = scmp.lt.s32.totalorder %s17, 1
      %s243 = scalar_select %p242, %s17, 1
      %s244 = smul.addr %s243, 4
      %s245 = scalar_lea.vmem %s4, %s244
      %s246 = smul.u32 16, %s17
      %p247 = scmp.lt.s32.totalorder %s246, 31
      %s248 = scalar_select %p247, %s246, 31
      %s249 = smul.addr %s248, 8
      %s250 = scalar_lea.vmem %s5, %s249
      %s251 = smul.u32 16, %s17
      %v253 = vld [vmem:[%s234] sm:$0xff]
      %v254 = vld [vmem:[%s234 + $0x8] sm:$0xff]
      %v255 = vld [vmem:[%s234 + $0x10] sm:$0xff]
      %v256 = vld [vmem:[%s234 + $0x18] sm:$0xff]
      %v257 = vld [vmem:[%s234 + $0x20] sm:$0xff]
      %v258 = vld [vmem:[%s234 + $0x28] sm:$0xff]
      %v259 = vld [vmem:[%s234 + $0x30] sm:$0xff]
      %v260 = vld [vmem:[%s234 + $0x38] sm:$0xff]
      %v261 = vld [vmem:[%s234 + $0x40] sm:$0xff]
      %v262 = vld [vmem:[%s234 + $0x48] sm:$0xff]
      %v263 = vld [vmem:[%s234 + $0x50] sm:$0xff]
      %v264 = vld [vmem:[%s234 + $0x58] sm:$0xff]
      %v265 = vld [vmem:[%s234 + $0x60] sm:$0xff]
      %v266 = vld [vmem:[%s234 + $0x68] sm:$0xff]
      %v267 = vld [vmem:[%s234 + $0x70] sm:$0xff]
      %v268 = vld [vmem:[%s234 + $0x78] sm:$0xff]
      %v269 = vpack.c.bf16 %v254, %v253
      %v270 = vpack.c.bf16 %v256, %v255
      %v271 = vpack.c.bf16 %v258, %v257
      %v272 = vpack.c.bf16 %v260, %v259
      %v273 = vpack.c.bf16 %v262, %v261
      %v274 = vpack.c.bf16 %v264, %v263
      %v275 = vpack.c.bf16 %v266, %v265
      %v276 = vpack.c.bf16 %v268, %v267
      %v277 = vld [vmem:[%s1] sm:$0xf]
      %v278 = vld [vmem:[%s1 + $0x4] sm:$0xf]
      %v279 = vld [vmem:[%s1 + $0x8] sm:$0xf]
      %v280 = vld [vmem:[%s1 + $0xc] sm:$0xf]
      %v281 = vld [vmem:[%s1 + $0x10] sm:$0xf]
      %v282 = vld [vmem:[%s1 + $0x14] sm:$0xf]
      %v283 = vld [vmem:[%s1 + $0x18] sm:$0xf]
      %v284 = vld [vmem:[%s1 + $0x1c] sm:$0xf]
      %v285 = vld [vmem:[%s1 + $0x20] sm:$0xf]
      %v286 = vld [vmem:[%s1 + $0x24] sm:$0xf]
      %v287 = vld [vmem:[%s1 + $0x28] sm:$0xf]
      %v288 = vld [vmem:[%s1 + $0x2c] sm:$0xf]
      %v289 = vld [vmem:[%s1 + $0x30] sm:$0xf]
      %v290 = vld [vmem:[%s1 + $0x34] sm:$0xf]
      %v291 = vld [vmem:[%s1 + $0x38] sm:$0xf]
      %v292 = vld [vmem:[%s1 + $0x3c] sm:$0xf]
      %v309 = vunpack.c.l.b16 %v277
      %v310 = vunpack.c.l.b16 %v278
      %v311 = vunpack.c.l.b16 %v279
      %v312 = vunpack.c.l.b16 %v280
      %v313 = vunpack.c.l.b16 %v281
      %v314 = vunpack.c.l.b16 %v282
      %v315 = vunpack.c.l.b16 %v283
      %v316 = vunpack.c.l.b16 %v284
      %v317 = vunpack.c.l.b16 %v285
      %v318 = vunpack.c.l.b16 %v286
      %v319 = vunpack.c.l.b16 %v287
      %v320 = vunpack.c.l.b16 %v288
      %v321 = vunpack.c.l.b16 %v289
      %v322 = vunpack.c.l.b16 %v290
      %v323 = vunpack.c.l.b16 %v291
      %v324 = vunpack.c.l.b16 %v292
      %v325 = vpack.c.b16 %v310, %v309
      %v326 = vpack.c.b16 %v312, %v311
      %v327 = vpack.c.b16 %v314, %v313
      %v328 = vpack.c.b16 %v316, %v315
      %v329 = vpack.c.b16 %v318, %v317
      %v330 = vpack.c.b16 %v320, %v319
      %v331 = vpack.c.b16 %v322, %v321
      %v332 = vpack.c.b16 %v324, %v323
      %341 = vmatprep.subr.bf16.mxu0 0
      %342 = vmatpush1.bf16.msra.mxu0 %v332
      %343 = vmatprep.subr.bf16.mxu0 0
      %344 = vmatpush1.bf16.msra.mxu0 %v331
      %345 = vmatprep.subr.bf16.mxu0 0
      %346 = vmatpush1.bf16.msra.mxu0 %v330
      %347 = vmatprep.subr.bf16.mxu0 0
      %348 = vmatpush1.bf16.msra.mxu0 %v329
      %349 = vmatprep.subr.bf16.mxu0 0
      %350 = vmatpush1.bf16.msra.mxu0 %v328
      %351 = vmatprep.subr.bf16.mxu0 0
      %352 = vmatpush1.bf16.msra.mxu0 %v327
      %353 = vmatprep.subr.bf16.mxu0 0
      %354 = vmatpush1.bf16.msra.mxu0 %v326
      %355 = vmatprep.subr.bf16.mxu0 0
      %356 = vmatpush1.bf16.msra.mxu0 %v325
      %357 = vmatprep.subr.bf16.mxu0 0
      %358 = vmatpush2.bf16.msra.mxu0 0
      %359 = vmatprep.subr.bf16.mxu0 0
      %360 = vmatpush2.bf16.msra.mxu0 0
      %361 = vmatprep.subr.bf16.mxu0 0
      %362 = vmatpush2.bf16.msra.mxu0 0
      %363 = vmatprep.subr.bf16.mxu0 0
      %364 = vmatpush2.bf16.msra.mxu0 0
      %365 = vmatprep.subr.bf16.mxu0 0
      %366 = vmatpush2.bf16.msra.mxu0 0
      %367 = vmatprep.subr.bf16.mxu0 0
      %368 = vmatpush2.bf16.msra.mxu0 0
      %369 = vmatprep.subr.bf16.mxu0 0
      %370 = vmatpush2.bf16.msra.mxu0 0
      %371 = vmatprep.subr.bf16.mxu0 0
      %372 = vmatpush2.bf16.msra.mxu0 0
      %373 = vmatprep.mubr.bf16.mxu0 0
      %374 = vmatmul.mubr.bf16.gmra.mxu0 %v269
      %v375 = vpop.f32.mrf.mxu0
      %v376 = vadd.f32 0.0, %v375
      %v377 = vpop.f32.mrf.mxu0
      %v378 = vpop.f32.mrf.mxu0
      %v379 = vadd.f32 0.0, %v378
      %v380 = vpop.f32.mrf.mxu0
      %381 = vmatprep.mubr.bf16.mxu0 0
      %382 = vmatmul.mubr.bf16.gmra.mxu0 %v270
      %v383 = vpop.f32.mrf.mxu0
      %v384 = vadd.f32 0.0, %v383
      %v385 = vpop.f32.mrf.mxu0
      %v386 = vpop.f32.mrf.mxu0
      %v387 = vadd.f32 0.0, %v386
      %v388 = vpop.f32.mrf.mxu0
      %389 = vmatprep.mubr.bf16.mxu0 0
      %390 = vmatmul.mubr.bf16.gmra.mxu0 %v271
      %v391 = vpop.f32.mrf.mxu0
      %v392 = vadd.f32 0.0, %v391
      %v393 = vpop.f32.mrf.mxu0
      %v394 = vpop.f32.mrf.mxu0
      %v395 = vadd.f32 0.0, %v394
      %v396 = vpop.f32.mrf.mxu0
      %397 = vmatprep.mubr.bf16.mxu0 0
      %398 = vmatmul.mubr.bf16.gmra.mxu0 %v272
      %v399 = vpop.f32.mrf.mxu0
      %v400 = vadd.f32 0.0, %v399
      %v401 = vpop.f32.mrf.mxu0
      %v402 = vpop.f32.mrf.mxu0
      %v403 = vadd.f32 0.0, %v402
      %v404 = vpop.f32.mrf.mxu0
      %405 = vmatprep.mubr.bf16.mxu0 0
      %406 = vmatmul.mubr.bf16.gmra.mxu0 %v273
      %v407 = vpop.f32.mrf.mxu0
      %v408 = vadd.f32 0.0, %v407
      %v409 = vpop.f32.mrf.mxu0
      %v410 = vpop.f32.mrf.mxu0
      %v411 = vadd.f32 0.0, %v410
      %v412 = vpop.f32.mrf.mxu0
      %413 = vmatprep.mubr.bf16.mxu0 0
      %414 = vmatmul.mubr.bf16.gmra.mxu0 %v274
      %v415 = vpop.f32.mrf.mxu0
      %v416 = vadd.f32 0.0, %v415
      %v417 = vpop.f32.mrf.mxu0
      %v418 = vpop.f32.mrf.mxu0
      %v419 = vadd.f32 0.0, %v418
      %v420 = vpop.f32.mrf.mxu0
      %421 = vmatprep.mubr.bf16.mxu0 0
      %422 = vmatmul.mubr.bf16.gmra.mxu0 %v275
      %v423 = vpop.f32.mrf.mxu0
      %v424 = vadd.f32 0.0, %v423
      %v425 = vpop.f32.mrf.mxu0
      %v426 = vpop.f32.mrf.mxu0
      %v427 = vadd.f32 0.0, %v426
      %v428 = vpop.f32.mrf.mxu0
      %429 = vmatprep.mubr.bf16.mxu0 0
      %430 = vmatmul.mubr.bf16.gmra.mxu0 %v276
      %v431 = vpop.f32.mrf.mxu0
      %v432 = vadd.f32 0.0, %v431
      %v433 = vpop.f32.mrf.mxu0
      %v434 = vpop.f32.mrf.mxu0
      %v435 = vadd.f32 0.0, %v434
      %v436 = vpop.f32.mrf.mxu0
      %437 = vdwg.mxu0
      %v438 = vpack.c.bf16 %v379, %v376
      %v439 = vpack.c.bf16 %v387, %v384
      %v440 = vpack.c.bf16 %v395, %v392
      %v441 = vpack.c.bf16 %v403, %v400
      %v442 = vpack.c.bf16 %v411, %v408
      %v443 = vpack.c.bf16 %v419, %v416
      %v444 = vpack.c.bf16 %v427, %v424
      %v445 = vpack.c.bf16 %v435, %v432
      %v446 = vld [vmem:[%s2] sm:$0xf]
      %v447 = vld [vmem:[%s2 + $0x4] sm:$0xf]
      %v448 = vld [vmem:[%s2 + $0x8] sm:$0xf]
      %v449 = vld [vmem:[%s2 + $0xc] sm:$0xf]
      %v450 = vld [vmem:[%s2 + $0x10] sm:$0xf]
      %v451 = vld [vmem:[%s2 + $0x14] sm:$0xf]
      %v452 = vld [vmem:[%s2 + $0x18] sm:$0xf]
      %v453 = vld [vmem:[%s2 + $0x1c] sm:$0xf]
      %v454 = vld [vmem:[%s2 + $0x20] sm:$0xf]
      %v455 = vld [vmem:[%s2 + $0x24] sm:$0xf]
      %v456 = vld [vmem:[%s2 + $0x28] sm:$0xf]
      %v457 = vld [vmem:[%s2 + $0x2c] sm:$0xf]
      %v458 = vld [vmem:[%s2 + $0x30] sm:$0xf]
      %v459 = vld [vmem:[%s2 + $0x34] sm:$0xf]
      %v460 = vld [vmem:[%s2 + $0x38] sm:$0xf]
      %v461 = vld [vmem:[%s2 + $0x3c] sm:$0xf]
      %v478 = vunpack.c.l.b16 %v446
      %v479 = vunpack.c.l.b16 %v447
      %v480 = vunpack.c.l.b16 %v448
      %v481 = vunpack.c.l.b16 %v449
      %v482 = vunpack.c.l.b16 %v450
      %v483 = vunpack.c.l.b16 %v451
      %v484 = vunpack.c.l.b16 %v452
      %v485 = vunpack.c.l.b16 %v453
      %v486 = vunpack.c.l.b16 %v454
      %v487 = vunpack.c.l.b16 %v455
      %v488 = vunpack.c.l.b16 %v456
      %v489 = vunpack.c.l.b16 %v457
      %v490 = vunpack.c.l.b16 %v458
      %v491 = vunpack.c.l.b16 %v459
      %v492 = vunpack.c.l.b16 %v460
      %v493 = vunpack.c.l.b16 %v461
      %v494 = vpack.c.b16 %v479, %v478
      %v495 = vpack.c.b16 %v481, %v480
      %v496 = vpack.c.b16 %v483, %v482
      %v497 = vpack.c.b16 %v485, %v484
      %v498 = vpack.c.b16 %v487, %v486
      %v499 = vpack.c.b16 %v489, %v488
      %v500 = vpack.c.b16 %v491, %v490
      %v501 = vpack.c.b16 %v493, %v492
      %510 = vmatprep.subr.bf16.mxu0 0
      %511 = vmatpush1.bf16.msra.mxu0 %v501
      %512 = vmatprep.subr.bf16.mxu0 0
      %513 = vmatpush1.bf16.msra.mxu0 %v500
      %514 = vmatprep.subr.bf16.mxu0 0
      %515 = vmatpush1.bf16.msra.mxu0 %v499
      %516 = vmatprep.subr.bf16.mxu0 0
      %517 = vmatpush1.bf16.msra.mxu0 %v498
      %518 = vmatprep.subr.bf16.mxu0 0
      %519 = vmatpush1.bf16.msra.mxu0 %v497
      %520 = vmatprep.subr.bf16.mxu0 0
      %521 = vmatpush1.bf16.msra.mxu0 %v496
      %522 = vmatprep.subr.bf16.mxu0 0
      %523 = vmatpush1.bf16.msra.mxu0 %v495
      %524 = vmatprep.subr.bf16.mxu0 0
      %525 = vmatpush1.bf16.msra.mxu0 %v494
      %526 = vmatprep.subr.bf16.mxu0 0
      %527 = vmatpush2.bf16.msra.mxu0 0
      %528 = vmatprep.subr.bf16.mxu0 0
      %529 = vmatpush2.bf16.msra.mxu0 0
      %530 = vmatprep.subr.bf16.mxu0 0
      %531 = vmatpush2.bf16.msra.mxu0 0
      %532 = vmatprep.subr.bf16.mxu0 0
      %533 = vmatpush2.bf16.msra.mxu0 0
      %534 = vmatprep.subr.bf16.mxu0 0
      %535 = vmatpush2.bf16.msra.mxu0 0
      %536 = vmatprep.subr.bf16.mxu0 0
      %537 = vmatpush2.bf16.msra.mxu0 0
      %538 = vmatprep.subr.bf16.mxu0 0
      %539 = vmatpush2.bf16.msra.mxu0 0
      %540 = vmatprep.subr.bf16.mxu0 0
      %541 = vmatpush2.bf16.msra.mxu0 0
      %542 = vmatprep.mubr.bf16.mxu0 0
      %543 = vmatmul.mubr.bf16.gmra.mxu0 %v438
      %v544 = vpop.f32.mrf.mxu0
      %v545 = vadd.f32 0.0, %v544
      %v546 = vpop.f32.mrf.mxu0
      %v547 = vpop.f32.mrf.mxu0
      %v548 = vadd.f32 0.0, %v547
      %v549 = vpop.f32.mrf.mxu0
      %550 = vmatprep.mubr.bf16.mxu0 0
      %551 = vmatmul.mubr.bf16.gmra.mxu0 %v439
      %v552 = vpop.f32.mrf.mxu0
      %v553 = vadd.f32 0.0, %v552
      %v554 = vpop.f32.mrf.mxu0
      %v555 = vpop.f32.mrf.mxu0
      %v556 = vadd.f32 0.0, %v555
      %v557 = vpop.f32.mrf.mxu0
      %558 = vmatprep.mubr.bf16.mxu0 0
      %559 = vmatmul.mubr.bf16.gmra.mxu0 %v440
      %v560 = vpop.f32.mrf.mxu0
      %v561 = vadd.f32 0.0, %v560
      %v562 = vpop.f32.mrf.mxu0
      %v563 = vpop.f32.mrf.mxu0
      %v564 = vadd.f32 0.0, %v563
      %v565 = vpop.f32.mrf.mxu0
      %566 = vmatprep.mubr.bf16.mxu0 0
      %567 = vmatmul.mubr.bf16.gmra.mxu0 %v441
      %v568 = vpop.f32.mrf.mxu0
      %v569 = vadd.f32 0.0, %v568
      %v570 = vpop.f32.mrf.mxu0
      %v571 = vpop.f32.mrf.mxu0
      %v572 = vadd.f32 0.0, %v571
      %v573 = vpop.f32.mrf.mxu0
      %574 = vmatprep.mubr.bf16.mxu0 0
      %575 = vmatmul.mubr.bf16.gmra.mxu0 %v442
      %v576 = vpop.f32.mrf.mxu0
      %v577 = vadd.f32 0.0, %v576
      %v578 = vpop.f32.mrf.mxu0
      %v579 = vpop.f32.mrf.mxu0
      %v580 = vadd.f32 0.0, %v579
      %v581 = vpop.f32.mrf.mxu0
      %582 = vmatprep.mubr.bf16.mxu0 0
      %583 = vmatmul.mubr.bf16.gmra.mxu0 %v443
      %v584 = vpop.f32.mrf.mxu0
      %v585 = vadd.f32 0.0, %v584
      %v586 = vpop.f32.mrf.mxu0
      %v587 = vpop.f32.mrf.mxu0
      %v588 = vadd.f32 0.0, %v587
      %v589 = vpop.f32.mrf.mxu0
      %590 = vmatprep.mubr.bf16.mxu0 0
      %591 = vmatmul.mubr.bf16.gmra.mxu0 %v444
      %v592 = vpop.f32.mrf.mxu0
      %v593 = vadd.f32 0.0, %v592
      %v594 = vpop.f32.mrf.mxu0
      %v595 = vpop.f32.mrf.mxu0
      %v596 = vadd.f32 0.0, %v595
      %v597 = vpop.f32.mrf.mxu0
      %598 = vmatprep.mubr.bf16.mxu0 0
      %599 = vmatmul.mubr.bf16.gmra.mxu0 %v445
      %v600 = vpop.f32.mrf.mxu0
      %v601 = vadd.f32 0.0, %v600
      %v602 = vpop.f32.mrf.mxu0
      %v603 = vpop.f32.mrf.mxu0
      %v604 = vadd.f32 0.0, %v603
      %v605 = vpop.f32.mrf.mxu0
      %606 = vdwg.mxu0
      %607 = vxpose.xlu0.b32.start [1/16] %v545, 128
      %608 = vxpose.xlu0.b32.cont [2/16] %v548, 128
      %609 = vxpose.xlu0.b32.cont [3/16] %v553, 128
      %610 = vxpose.xlu0.b32.cont [4/16] %v556, 128
      %611 = vxpose.xlu0.b32.cont [5/16] %v561, 128
      %612 = vxpose.xlu0.b32.cont [6/16] %v564, 128
      %613 = vxpose.xlu0.b32.cont [7/16] %v569, 128
      %614 = vxpose.xlu0.b32.cont [8/16] %v572, 128
      %615 = vxpose.xlu0.b32.cont [9/16] %v577, 128
      %616 = vxpose.xlu0.b32.cont [10/16] %v580, 128
      %617 = vxpose.xlu0.b32.cont [11/16] %v585, 128
      %618 = vxpose.xlu0.b32.cont [12/16] %v588, 128
      %619 = vxpose.xlu0.b32.cont [13/16] %v593, 128
      %620 = vxpose.xlu0.b32.cont [14/16] %v596, 128
      %621 = vxpose.xlu0.b32.cont [15/16] %v601, 128
      %622 = vxpose.xlu0.b32.end [16/16] %v604, 128
      %v623 = vpop.trf.xlu0
      %v624 = vpop.trf.xlu0
      %v625 = vpop.trf.xlu0
      %v626 = vpop.trf.xlu0
      %v627 = vpop.trf.xlu0
      %v628 = vpop.trf.xlu0
      %v629 = vpop.trf.xlu0
      %v630 = vpop.trf.xlu0
      %v631 = vpop.trf.xlu0
      %v632 = vpop.trf.xlu0
      %v633 = vpop.trf.xlu0
      %v634 = vpop.trf.xlu0
      %v635 = vpop.trf.xlu0
      %v636 = vpop.trf.xlu0
      %v637 = vpop.trf.xlu0
      %v638 = vpop.trf.xlu0
      %639 = vst [vmem:[%s245] sm:$0xf] %v623
      %656 = vrot.lane.b32.xlu0 %v545, 124
      %v657 = vpop.permute.xlu0 %656
      %658 = vrot.lane.b32.xlu0 %v548, 124
      %v659 = vpop.permute.xlu0 %658
      %660 = vrot.lane.b32.xlu0 %v553, 124
      %v661 = vpop.permute.xlu0 %660
      %662 = vrot.lane.b32.xlu0 %v556, 124
      %v663 = vpop.permute.xlu0 %662
      %664 = vrot.lane.b32.xlu0 %v561, 124
      %v665 = vpop.permute.xlu0 %664
      %666 = vrot.lane.b32.xlu0 %v564, 124
      %v667 = vpop.permute.xlu0 %666
      %668 = vrot.lane.b32.xlu0 %v569, 124
      %v669 = vpop.permute.xlu0 %668
      %670 = vrot.lane.b32.xlu0 %v572, 124
      %v671 = vpop.permute.xlu0 %670
      %672 = vrot.lane.b32.xlu0 %v577, 124
      %v673 = vpop.permute.xlu0 %672
      %674 = vrot.lane.b32.xlu0 %v580, 124
      %v675 = vpop.permute.xlu0 %674
      %676 = vrot.lane.b32.xlu0 %v585, 124
      %v677 = vpop.permute.xlu0 %676
      %678 = vrot.lane.b32.xlu0 %v588, 124
      %v679 = vpop.permute.xlu0 %678
      %680 = vrot.lane.b32.xlu0 %v593, 124
      %v681 = vpop.permute.xlu0 %680
      %682 = vrot.lane.b32.xlu0 %v596, 124
      %v683 = vpop.permute.xlu0 %682
      %684 = vrot.lane.b32.xlu0 %v601, 124
      %v685 = vpop.permute.xlu0 %684
      %686 = vrot.lane.b32.xlu0 %v604, 124
      %v687 = vpop.permute.xlu0 %686
      %vm704 = vcmask 31744
      %705 = vst.msk [vmem:[%s250] sm:$0xff] %vm704, %v657
      %706 = vst.msk [vmem:[%s250 + $0x8] sm:$0xff] %vm704, %v659
      %707 = vst.msk [vmem:[%s250 + $0x10] sm:$0xff] %vm704, %v661
      %708 = vst.msk [vmem:[%s250 + $0x18] sm:$0xff] %vm704, %v663
      %709 = vst.msk [vmem:[%s250 + $0x20] sm:$0xff] %vm704, %v665
      %710 = vst.msk [vmem:[%s250 + $0x28] sm:$0xff] %vm704, %v667
      %711 = vst.msk [vmem:[%s250 + $0x30] sm:$0xff] %vm704, %v669
      %712 = vst.msk [vmem:[%s250 + $0x38] sm:$0xff] %vm704, %v671
      %713 = vst.msk [vmem:[%s250 + $0x40] sm:$0xff] %vm704, %v673
      %714 = vst.msk [vmem:[%s250 + $0x48] sm:$0xff] %vm704, %v675
      %715 = vst.msk [vmem:[%s250 + $0x50] sm:$0xff] %vm704, %v677
      %716 = vst.msk [vmem:[%s250 + $0x58] sm:$0xff] %vm704, %v679
      %717 = vst.msk [vmem:[%s250 + $0x60] sm:$0xff] %vm704, %v681
      %718 = vst.msk [vmem:[%s250 + $0x68] sm:$0xff] %vm704, %v683
      %719 = vst.msk [vmem:[%s250 + $0x70] sm:$0xff] %vm704, %v685
      %720 = vst.msk [vmem:[%s250 + $0x78] sm:$0xff] %vm704, %v687
      %v729 = vunpack.c.l.b16 %v438
      %v730 = vunpack.c.h.b16 %v438
      %v731 = vunpack.c.l.b16 %v439
      %v732 = vunpack.c.h.b16 %v439
      %v733 = vunpack.c.l.b16 %v440
      %v734 = vunpack.c.h.b16 %v440
      %v735 = vunpack.c.l.b16 %v441
      %v736 = vunpack.c.h.b16 %v441
      %v737 = vunpack.c.l.b16 %v442
      %v738 = vunpack.c.h.b16 %v442
      %v739 = vunpack.c.l.b16 %v443
      %v740 = vunpack.c.h.b16 %v443
      %v741 = vunpack.c.l.b16 %v444
      %v742 = vunpack.c.h.b16 %v444
      %v743 = vunpack.c.l.b16 %v445
      %v744 = vunpack.c.h.b16 %v445
      %v745 = vpack.c.b16 %v729, %v729
      %v746 = vpack.c.b16 %v730, %v730
      %v747 = vpack.c.b16 %v731, %v731
      %v748 = vpack.c.b16 %v732, %v732
      %v749 = vpack.c.b16 %v733, %v733
      %v750 = vpack.c.b16 %v734, %v734
      %v751 = vpack.c.b16 %v735, %v735
      %v752 = vpack.c.b16 %v736, %v736
      %v753 = vpack.c.b16 %v737, %v737
      %v754 = vpack.c.b16 %v738, %v738
      %v755 = vpack.c.b16 %v739, %v739
      %v756 = vpack.c.b16 %v740, %v740
      %v757 = vpack.c.b16 %v741, %v741
      %v758 = vpack.c.b16 %v742, %v742
      %v759 = vpack.c.b16 %v743, %v743
      %v760 = vpack.c.b16 %v744, %v744
      %777 = vst [vmem:[%s240] sm:$0xf] %v745
      %778 = vst [vmem:[%s240 + $0x4] sm:$0xf] %v746
      %779 = vst [vmem:[%s240 + $0x8] sm:$0xf] %v747
      %780 = vst [vmem:[%s240 + $0xc] sm:$0xf] %v748
      %781 = vst [vmem:[%s240 + $0x10] sm:$0xf] %v749
      %782 = vst [vmem:[%s240 + $0x14] sm:$0xf] %v750
      %783 = vst [vmem:[%s240 + $0x18] sm:$0xf] %v751
      %784 = vst [vmem:[%s240 + $0x1c] sm:$0xf] %v752
      %785 = vst [vmem:[%s240 + $0x20] sm:$0xf] %v753
      %786 = vst [vmem:[%s240 + $0x24] sm:$0xf] %v754
      %787 = vst [vmem:[%s240 + $0x28] sm:$0xf] %v755
      %788 = vst [vmem:[%s240 + $0x2c] sm:$0xf] %v756
      %789 = vst [vmem:[%s240 + $0x30] sm:$0xf] %v757
      %790 = vst [vmem:[%s240 + $0x34] sm:$0xf] %v758
      %791 = vst [vmem:[%s240 + $0x38] sm:$0xf] %v759
      %792 = vst [vmem:[%s240 + $0x3c] sm:$0xf] %v760
      %s793 = smul.u32 16, %s17
      %p794 = scmp.lt.s32.totalorder %s793, 31
      %s795 = scalar_select %p794, %s793, 31
      %s796 = smul.addr %s795, 4
      %s797 = scalar_lea.vmem %s3, %s796
      %p798 = scmp.lt.s32.totalorder %s17, 1
      %s799 = scalar_select %p798, %s17, 1
      %s800 = smul.addr %s799, 4
      %s801 = scalar_lea.vmem %s4, %s800
      %s802 = smul.u32 16, %s17
      %p803 = scmp.lt.s32.totalorder %s802, 31
      %s804 = scalar_select %p803, %s802, 31
      %s805 = smul.addr %s804, 8
      %s806 = scalar_lea.vmem %s5, %s805
      // Predicated region
      $region33: #{gat_forward.8} parent=31 // pred_check
        %p807 = pneg %p103
      $region34: #{gat_forward.8} parent=31 // pred_check_branch
        %809 = sbr.rel (%p807) target = $region36
      $region35: #{gat_forward.8} parent=31 // pred_region
        %s810 = smul.u32 16, %s17
      $region36: #{gat_forward.8} parent=31 // pred_fallthru
        _
      // Predicated region
      $region37: #{gat_forward.8} parent=31 // pred_check
        %p811 = pneg %p129
      $region38: #{gat_forward.8} parent=31 // pred_check_branch
        %813 = sbr.rel (%p811) target = $region40
      $region39: #{gat_forward.8} parent=31 // pred_region
        _
      $region40: #{gat_forward.8} parent=31 // pred_fallthru
        _
      // Predicated region
      $region41: #{gat_forward.8} parent=31 // pred_check
        %p814 = pneg %p155
      $region42: #{gat_forward.8} parent=31 // pred_check_branch
        %816 = sbr.rel (%p814) target = $region44
      $region43: #{gat_forward.8} parent=31 // pred_region
        %s817 = smul.u32 16, %s17
      $region44: #{gat_forward.8} parent=31 // pred_fallthru
        _
    $region32: #{gat_forward.8} parent=5 // pred_fallthru
      _
    %p818 = scmp.le.s32.totalorder 2, %s12
    // Predicated region
    $region45: #{gat_forward.8} parent=5 // pred_check
      %p819 = pneg %p818
    $region46: #{gat_forward.8} parent=5 // pred_check_branch
      %821 = sbr.rel (%p819) target = $region48
    $region47: #{gat_forward.8} parent=5 // pred_region
      %s822 = ssub.s32 %s12, 2
      // Predicated region
      $region49: #{gat_forward.8} parent=47 // pred_check
        %p823 = pneg %p109
      $region50: #{gat_forward.8} parent=47 // pred_check_branch
        %825 = sbr.rel (%p823) target = $region52
      $region51: #{gat_forward.8} parent=47 // pred_region
        %s826 = smul.u32 16, %s18
        %p827 = scmp.lt.s32.totalorder %s826, 31
        %s828 = scalar_select %p827, %s826, 31
        %s829 = smul.addr %s828, 4
        %s830 = scalar_lea.vmem %s3, %s829
      $region52: #{gat_forward.8} parent=47 // pred_fallthru
        _
      // Predicated region
      $region53: #{gat_forward.8} parent=47 // pred_check
        %p831 = pneg %p135
      $region54: #{gat_forward.8} parent=47 // pred_check_branch
        %833 = sbr.rel (%p831) target = $region56
      $region55: #{gat_forward.8} parent=47 // pred_region
        %p834 = scmp.lt.s32.totalorder %s18, 1
        %s835 = scalar_select %p834, %s18, 1
        %s836 = smul.addr %s835, 4
        %s837 = scalar_lea.vmem %s4, %s836
      $region56: #{gat_forward.8} parent=47 // pred_fallthru
        _
      // Predicated region
      $region57: #{gat_forward.8} parent=47 // pred_check
        %p838 = pneg %p161
      $region58: #{gat_forward.8} parent=47 // pred_check_branch
        %840 = sbr.rel (%p838) target = $region60
      $region59: #{gat_forward.8} parent=47 // pred_region
        %s841 = smul.u32 16, %s18
        %p842 = scmp.lt.s32.totalorder %s841, 31
        %s843 = scalar_select %p842, %s841, 31
        %s844 = smul.addr %s843, 8
        %s845 = scalar_lea.vmem %s5, %s844
      $region60: #{gat_forward.8} parent=47 // pred_fallthru
        _
    $region48: #{gat_forward.8} parent=5 // pred_fallthru
      _
  $region6: #{gat_forward.8} parent=0 // loop_footer
    %s16 = sadd.s32 1, %s12
  $region7: #{gat_forward.8} parent=0 // loop_footer_branch
    %11 = sbr.rel target = $region3
  $region8: #{gat_forward.8} parent=0 // loop_exit
    _

// kernel: gat_forward.7
$region0: #{gat_forward.7}
  #allocation0 [shape = 'u32[]', space=smem, size = 0x4, offset = 0x4, fixed_abs, tag = 'smem constant byte address 0x4 - core index']
  #allocation1 [shape = 'u32[144,128]{1,0:T(1,128)}', space=vmem, size = 0x12000, scoped, tag = 'internal scratch']
  #allocation2 [shape = 'f32[64,4]{1,0:T(8,128)}', space=vmem, size = 0x8000, scoped, tag = 'scratch operand']
  #allocation3 [shape = 'f32[64,4]{1,0:T(8,128)}', space=vmem, size = 0x8000, scoped, tag = 'scratch operand']
  #allocation4 [shape = 'f32[64,128]{1,0:T(8,128)}', space=vmem, size = 0x8000, scoped, tag = 'scratch operand']
  %s0 = inlined_call_operand.vmem [shape: bf16[256,256], index: 0, kind: input, shape index: {}]
  %s1 = inlined_call_operand.vmem [shape: bf16[256,128], index: 1, kind: input, shape index: {}]
  %s2 = inlined_call_operand.vmem [shape: f32[4,256], index: 2, kind: input, shape index: {}]
  %s3 = inlined_call_operand.vmem [shape: f32[256,4], index: 3, kind: input, shape index: {}]
  %s4 = inlined_call_operand.vmem [shape: f32[1,128], index: 4, kind: input, shape index: {}]
  %s5 = inlined_call_operand.vmem [shape: f32[1,128], index: 5, kind: input, shape index: {}]
  %s6 = inlined_call_operand.vmem [shape: f32[1,128], index: 6, kind: input, shape index: {}]
  %s7 = inlined_call_operand.vmem [shape: f32[256,128], index: 7, kind: output, shape index: {}]
  %s8 = sld [smem:[#allocation0]]
  $region110: #{gat_forward.7} parent=0
    _
  %s10 = ssub.s32 1, %s8
  %s11 = scalar_select 0, %s10, %s8
  $region1: #{gat_forward.7} parent=0
    #allocation5 [shape = 'u8[32768]{0}', space=vmem, size = 0x8000, scoped, tag = 'input window, operand 0']
    loop: start=0, step=1, limit=10
    $region2: #{gat_forward.7} parent=1 // loop_pre_header
      _
    $region3: #{gat_forward.7} parent=1 // loop_header
      %s13 = sphi 0, %s17
      %p14 = scmp.ge.s32.totalorder %s13, 10
      %s20 = sphi 0, %s32
      %s21 = sphi 0, %s28
      %s22 = sphi 0, %s20
      %s23 = sphi 0, %s21
      %s24 = sphi 0, %s22
      %s25 = sphi 0, %s23
      %s37 = sphi 0, %s39
      %s40 = sphi 0, %s37
      %s41 = sphi 0, %s40
      %s57 = sphi 0, %s41
      %s63 = sphi 0, %s65
      %s66 = sphi 0, %s63
      %s67 = sphi 0, %s66
      %s83 = sphi 0, %s67
      %s89 = sphi 0, %s91
      %s92 = sphi 0, %s89
      %s93 = sphi 0, %s92
      %s109 = sphi 0, %s93
      %s115 = sphi 0, %s117
      %s118 = sphi 0, %s115
      %s119 = sphi 0, %s118
      %s135 = sphi 0, %s119
      %s139 = sphi 0, %s139
      %s141 = sphi 0, %s139
      %s142 = sphi 0, %s141
      %s156 = sphi 0, %s142
      %s160 = sphi 0, %s160
      %s162 = sphi 0, %s160
      %s163 = sphi 0, %s162
      %s177 = sphi 0, %s163
      %s181 = sphi 0, %s181
      %s183 = sphi 0, %s181
      %s184 = sphi 0, %s183
      %s198 = sphi 0, %s184
      %s204 = sphi 0, %s206
      %s207 = sphi 0, %s204
      %s208 = sphi 0, %s207
      %s224 = sphi 0, %s208
    $region4: #{gat_forward.7} parent=1 // loop_header_branch
      %16 = sbr.rel (%p14) target = $region8
    $region5: #{gat_forward.7} parent=1 // loop_body
      %s18 = ssub.s32 %s13, 1
      %s19 = ssub.s32 %s13, 2
      %s26 = sadd.s32 1, %s21
      %p27 = scmp.ge.s32.totalorder %s26, 2
      %s28 = scalar_select %p27, 0, %s26
      %s29 = sadd.s32 1, %s20
      %s30 = scalar_select %p27, %s29, %s20
      %p31 = scmp.ge.s32.totalorder %s30, 4
      %s32 = scalar_select %p31, 0, %s30
      %s33 = ssub.s32 %s20, %s32
      %s34 = ssub.s32 %s21, %s28
      %s35 = sor.u32 %s33, %s34
      %p36 = scmp.eq.s32.totalorder %s35, 0
      %s38 = sadd.s32 %s37, 1
      %s39 = scalar_select %p36, %s37, %s38
      %p42 = pneg %p36
      %p43 = scmp.eq.s32.totalorder %s13, 7
      %p44 = por %p42, %p43
      %p45 = scmp.ne.s32.totalorder %s37, %s40
      %p46 = scmp.eq.s32.totalorder %s13, 0
      %p47 = por %p45, %p46
      %p48 = scmp.ne.s32.totalorder %s37, %s40
      %p49 = scmp.eq.s32.totalorder %s18, 7
      %p50 = por %p48, %p49
      %p51 = scmp.ne.s32.totalorder %s40, %s41
      %p52 = scmp.eq.s32.totalorder %s18, 0
      %p53 = por %p51, %p52
      %p54 = scmp.ne.s32.totalorder %s40, %s41
      %p55 = scmp.eq.s32.totalorder %s19, 7
      %p56 = por %p54, %p55
      %p58 = scmp.ne.s32.totalorder %s41, %s57
      %p59 = scmp.eq.s32.totalorder %s19, 0
      %p60 = por %p58, %p59
      %s61 = ssub.s32 %s21, %s28
      %p62 = scmp.eq.s32.totalorder %s61, 0
      %s64 = sadd.s32 %s63, 1
      %s65 = scalar_select %p62, %s63, %s64
      %p68 = pneg %p62
      %p69 = scmp.eq.s32.totalorder %s13, 7
      %p70 = por %p68, %p69
      %p71 = scmp.ne.s32.totalorder %s63, %s66
      %p72 = scmp.eq.s32.totalorder %s13, 0
      %p73 = por %p71, %p72
      %p74 = scmp.ne.s32.totalorder %s63, %s66
      %p75 = scmp.eq.s32.totalorder %s18, 7
      %p76 = por %p74, %p75
      %p77 = scmp.ne.s32.totalorder %s66, %s67
      %p78 = scmp.eq.s32.totalorder %s18, 0
      %p79 = por %p77, %p78
      %p80 = scmp.ne.s32.totalorder %s66, %s67
      %p81 = scmp.eq.s32.totalorder %s19, 7
      %p82 = por %p80, %p81
      %p84 = scmp.ne.s32.totalorder %s67, %s83
      %p85 = scmp.eq.s32.totalorder %s19, 0
      %p86 = por %p84, %p85
      %s87 = ssub.s32 %s21, %s28
      %p88 = scmp.eq.s32.totalorder %s87, 0
      %s90 = sadd.s32 %s89, 1
      %s91 = scalar_select %p88, %s89, %s90
      %p94 = pneg %p88
      %p95 = scmp.eq.s32.totalorder %s13, 7
      %p96 = por %p94, %p95
      %p97 = scmp.ne.s32.totalorder %s89, %s92
      %p98 = scmp.eq.s32.totalorder %s13, 0
      %p99 = por %p97, %p98
      %p100 = scmp.ne.s32.totalorder %s89, %s92
      %p101 = scmp.eq.s32.totalorder %s18, 7
      %p102 = por %p100, %p101
      %p103 = scmp.ne.s32.totalorder %s92, %s93
      %p104 = scmp.eq.s32.totalorder %s18, 0
      %p105 = por %p103, %p104
      %p106 = scmp.ne.s32.totalorder %s92, %s93
      %p107 = scmp.eq.s32.totalorder %s19, 7
      %p108 = por %p106, %p107
      %p110 = scmp.ne.s32.totalorder %s93, %s109
      %p111 = scmp.eq.s32.totalorder %s19, 0
      %p112 = por %p110, %p111
      %s113 = ssub.s32 %s20, %s32
      %p114 = scmp.eq.s32.totalorder %s113, 0
      %s116 = sadd.s32 %s115, 1
      %s117 = scalar_select %p114, %s115, %s116
      %p120 = pneg %p114
      %p121 = scmp.eq.s32.totalorder %s13, 7
      %p122 = por %p120, %p121
      %p123 = scmp.ne.s32.totalorder %s115, %s118
      %p124 = scmp.eq.s32.totalorder %s13, 0
      %p125 = por %p123, %p124
      %p126 = scmp.ne.s32.totalorder %s115, %s118
      %p127 = scmp.eq.s32.totalorder %s18, 7
      %p128 = por %p126, %p127
      %p129 = scmp.ne.s32.totalorder %s118, %s119
      %p130 = scmp.eq.s32.totalorder %s18, 0
      %p131 = por %p129, %p130
      %p132 = scmp.ne.s32.totalorder %s118, %s119
      %p133 = scmp.eq.s32.totalorder %s19, 7
      %p134 = por %p132, %p133
      %p136 = scmp.ne.s32.totalorder %s119, %s135
      %p137 = scmp.eq.s32.totalorder %s19, 0
      %p138 = por %p136, %p137
      %s140 = sadd.s32 %s139, 1
      %p143 = scmp.eq.s32.totalorder %s13, 7
      %p144 = scmp.ne.s32.totalorder %s139, %s141
      %p145 = scmp.eq.s32.totalorder %s13, 0
      %p146 = por %p144, %p145
      %p147 = scmp.ne.s32.totalorder %s139, %s141
      %p148 = scmp.eq.s32.totalorder %s18, 7
      %p149 = por %p147, %p148
      %p150 = scmp.ne.s32.totalorder %s141, %s142
      %p151 = scmp.eq.s32.totalorder %s18, 0
      %p152 = por %p150, %p151
      %p153 = scmp.ne.s32.totalorder %s141, %s142
      %p154 = scmp.eq.s32.totalorder %s19, 7
      %p155 = por %p153, %p154
      %p157 = scmp.ne.s32.totalorder %s142, %s156
      %p158 = scmp.eq.s32.totalorder %s19, 0
      %p159 = por %p157, %p158
      %s161 = sadd.s32 %s160, 1
      %p164 = scmp.eq.s32.totalorder %s13, 7
      %p165 = scmp.ne.s32.totalorder %s160, %s162
      %p166 = scmp.eq.s32.totalorder %s13, 0
      %p167 = por %p165, %p166
      %p168 = scmp.ne.s32.totalorder %s160, %s162
      %p169 = scmp.eq.s32.totalorder %s18, 7
      %p170 = por %p168, %p169
      %p171 = scmp.ne.s32.totalorder %s162, %s163
      %p172 = scmp.eq.s32.totalorder %s18, 0
      %p173 = por %p171, %p172
      %p174 = scmp.ne.s32.totalorder %s162, %s163
      %p175 = scmp.eq.s32.totalorder %s19, 7
      %p176 = por %p174, %p175
      %p178 = scmp.ne.s32.totalorder %s163, %s177
      %p179 = scmp.eq.s32.totalorder %s19, 0
      %p180 = por %p178, %p179
      %s182 = sadd.s32 %s181, 1
      %p185 = scmp.eq.s32.totalorder %s13, 7
      %p186 = scmp.ne.s32.totalorder %s181, %s183
      %p187 = scmp.eq.s32.totalorder %s13, 0
      %p188 = por %p186, %p187
      %p189 = scmp.ne.s32.totalorder %s181, %s183
      %p190 = scmp.eq.s32.totalorder %s18, 7
      %p191 = por %p189, %p190
      %p192 = scmp.ne.s32.totalorder %s183, %s184
      %p193 = scmp.eq.s32.totalorder %s18, 0
      %p194 = por %p192, %p193
      %p195 = scmp.ne.s32.totalorder %s183, %s184
      %p196 = scmp.eq.s32.totalorder %s19, 7
      %p197 = por %p195, %p196
      %p199 = scmp.ne.s32.totalorder %s184, %s198
      %p200 = scmp.eq.s32.totalorder %s19, 0
      %p201 = por %p199, %p200
      %s202 = ssub.s32 %s20, %s32
      %p203 = scmp.eq.s32.totalorder %s202, 0
      %s205 = sadd.s32 %s204, 1
      %s206 = scalar_select %p203, %s204, %s205
      %p209 = pneg %p203
      %p210 = scmp.eq.s32.totalorder %s13, 7
      %p211 = por %p209, %p210
      %p212 = scmp.ne.s32.totalorder %s204, %s207
      %p213 = scmp.eq.s32.totalorder %s13, 0
      %p214 = por %p212, %p213
      %p215 = scmp.ne.s32.totalorder %s204, %s207
      %p216 = scmp.eq.s32.totalorder %s18, 7
      %p217 = por %p215, %p216
      %p218 = scmp.ne.s32.totalorder %s207, %s208
      %p219 = scmp.eq.s32.totalorder %s18, 0
      %p220 = por %p218, %p219
      %p221 = scmp.ne.s32.totalorder %s207, %s208
      %p222 = scmp.eq.s32.totalorder %s19, 7
      %p223 = por %p221, %p222
      %p225 = scmp.ne.s32.totalorder %s208, %s224
      %p226 = scmp.eq.s32.totalorder %s19, 0
      %p227 = por %p225, %p226
      %p228 = scmp.le.s32.totalorder 1, %s13
      %p229 = scmp.lt.s32.totalorder %s13, 9
      %p230 = pnand %p228, %p229
      %p231 = pneg %p230
      // Predicated region
      $region9: #{gat_forward.7} parent=5 // pred_check
        _
      $region10: #{gat_forward.7} parent=5 // pred_check_branch
        %233 = sbr.rel (%p230) target = $region12
      $region11: #{gat_forward.7} parent=5 // pred_region
        %s234 = ssub.s32 %s13, 1
        // Predicated region
        $region13: #{gat_forward.7} parent=11 // pred_check
          %p235 = pneg %p152
        $region14: #{gat_forward.7} parent=11 // pred_check_branch
          %237 = sbr.rel (%p235) target = $region16
        $region15: #{gat_forward.7} parent=11 // pred_region
          _
        $region16: #{gat_forward.7} parent=11 // pred_fallthru
          _
        // Predicated region
        $region17: #{gat_forward.7} parent=11 // pred_check
          %p238 = pneg %p173
        $region18: #{gat_forward.7} parent=11 // pred_check_branch
          %240 = sbr.rel (%p238) target = $region20
        $region19: #{gat_forward.7} parent=11 // pred_region
          _
        $region20: #{gat_forward.7} parent=11 // pred_fallthru
          _
        // Predicated region
        $region21: #{gat_forward.7} parent=11 // pred_check
          %p241 = pneg %p194
        $region22: #{gat_forward.7} parent=11 // pred_check_branch
          %243 = sbr.rel (%p241) target = $region24
        $region23: #{gat_forward.7} parent=11 // pred_region
          _
        $region24: #{gat_forward.7} parent=11 // pred_fallthru
          _
      $region12: #{gat_forward.7} parent=5 // pred_fallthru
        _
      %p244 = scmp.lt.s32.totalorder %s13, 8
      // Predicated region
      $region25: #{gat_forward.7} parent=5 // pred_check
        %p245 = pneg %p244
      $region26: #{gat_forward.7} parent=5 // pred_check_branch
        %247 = sbr.rel (%p245) target = $region28
      $region27: #{gat_forward.7} parent=5 // pred_region
        // Predicated region
        $region29: #{gat_forward.7} parent=27 // pred_check
          %p248 = pneg %p47
        $region30: #{gat_forward.7} parent=27 // pred_check_branch
          %250 = sbr.rel (%p248) target = $region32
        $region31: #{gat_forward.7} parent=27 // pred_region
          %s251 = sand.u32 %s37, 1
          %s252 = sand.u32 %s37, 1
          %s253 = smul.addr %s252, 32
          %s254 = scalar_lea.vmem [#allocation5], %s253
          %s255 = smul.u32 8, %s20
          %s256 = smul.addr %s255, 2
          %s257 = sadd.s32 %s21, %s256
          %s258 = smul.addr %s257, 4
          %s259 = scalar_lea.vmem %s0, %s258
          // Predicated region
          $region33: #{gat_forward.7} parent=31 // pred_check
            _
          $region34: #{gat_forward.7} parent=31 // pred_check_branch
            %261 = sbr.rel (0) target = $region36
          $region35: #{gat_forward.7} parent=31 // pred_region
            // Predicated region
            $region37: #{gat_forward.7} parent=35 // pred_check
              _
            $region38: #{gat_forward.7} parent=35 // pred_check_branch
              %263 = sbr.rel target = $region40
            $region39: #{gat_forward.7} parent=35 // pred_region
              // Predicated region
              $region52: #{gat_forward.7} parent=39 // pred_check
                _
              $region53: #{gat_forward.7} parent=39 // pred_check_branch
                %293 = sbr.rel (0) target = $region55
              $region54: #{gat_forward.7} parent=39 // pred_region
                loop: start=0, step=1, limit=1
                $region56: #{gat_forward.7} parent=54 // loop_pre_header
                  _
                $region57: #{gat_forward.7} parent=54 // loop_header
                  %s295 = sphi 0, %s299
                  %p296 = scmp.ge.s32.totalorder %s295, 1
                  %s300 = sphi %s259, %s259
                  %s301 = sphi %s254, %s254
                $region58: #{gat_forward.7} parent=54 // loop_header_branch
                  %298 = sbr.rel (%p296) target = $region62
                $region59: #{gat_forward.7} parent=54 // loop_body
                  _
                $region60: #{gat_forward.7} parent=54 // loop_footer
                  %s299 = sadd.s32 1, %s295
                $region61: #{gat_forward.7} parent=54 // loop_footer_branch
                  %294 = sbr.rel target = $region57
                $region62: #{gat_forward.7} parent=54 // loop_exit
                  _
                %s303 = ssub.s32 16, 1
                loop: start=0, step=1, limit=1
                $region63: #{gat_forward.7} parent=54 // loop_pre_header
                  _
                $region64: #{gat_forward.7} parent=54 // loop_header
                  %s305 = sphi 0, %s309
                  %p306 = scmp.ge.s32.totalorder %s305, 1
                  %s310 = sphi %s259, %s259
                  %s311 = sphi %s254, %s254
                $region65: #{gat_forward.7} parent=54 // loop_header_branch
                  %308 = sbr.rel (%p306) target = $region69
                $region66: #{gat_forward.7} parent=54 // loop_body
                  %v312 = vld [vmem:[%s310] sm:%s303]
                  %313 = vst [vmem:[%s311] sm:%s303] %v312
                  %v314 = vld [vmem:[%s310 + $0x8] sm:%s303]
                  %315 = vst [vmem:[%s311 + $0x4] sm:%s303] %v314
                  %v316 = vld [vmem:[%s310 + $0x10] sm:%s303]
                  %317 = vst [vmem:[%s311 + $0x8] sm:%s303] %v316
                  %v318 = vld [vmem:[%s310 + $0x18] sm:%s303]
                  %319 = vst [vmem:[%s311 + $0xc] sm:%s303] %v318
                  %v320 = vld [vmem:[%s310 + $0x20] sm:%s303]
                  %321 = vst [vmem:[%s311 + $0x10] sm:%s303] %v320
                  %v322 = vld [vmem:[%s310 + $0x28] sm:%s303]
                  %323 = vst [vmem:[%s311 + $0x14] sm:%s303] %v322
                  %v324 = vld [vmem:[%s310 + $0x30] sm:%s303]
                  %325 = vst [vmem:[%s311 + $0x18] sm:%s303] %v324
                  %v326 = vld [vmem:[%s310 + $0x38] sm:%s303]
                  %327 = vst [vmem:[%s311 + $0x1c] sm:%s303] %v326
                $region67: #{gat_forward.7} parent=54 // loop_footer
                  %s309 = sadd.s32 1, %s305
                $region68: #{gat_forward.7} parent=54 // loop_footer_branch
                  %304 = sbr.rel target = $region64
                $region69: #{gat_forward.7} parent=54 // loop_exit
                  _
              $region55: #{gat_forward.7} parent=39 // pred_fallthru
                _
            $region40: #{gat_forward.7} parent=35 // pred_fallthru
              _
            // Predicated region
            $region41: #{gat_forward.7} parent=35 // pred_check
              _
            $region42: #{gat_forward.7} parent=35 // pred_check_branch
              %265 = sbr.rel (0) target = $region44
            $region43: #{gat_forward.7} parent=35 // pred_region
              %s267 = ssub.s32 16, 1
              loop: start=0, step=1, limit=1
              $region45: #{gat_forward.7} parent=43 // loop_pre_header
                _
              $region46: #{gat_forward.7} parent=43 // loop_header
                %s269 = sphi 0, %s273
                %p270 = scmp.ge.s32.totalorder %s269, 1
                %s274 = sphi %s259, %s259
                %s275 = sphi %s254, %s254
              $region47: #{gat_forward.7} parent=43 // loop_header_branch
                %272 = sbr.rel (%p270) target = $region51
              $region48: #{gat_forward.7} parent=43 // loop_body
                %v276 = vld [vmem:[%s274] sm:%s267]
                %277 = vst [vmem:[%s275] sm:%s267] %v276
                %v278 = vld [vmem:[%s274 + $0x8] sm:%s267]
                %279 = vst [vmem:[%s275 + $0x4] sm:%s267] %v278
                %v280 = vld [vmem:[%s274 + $0x10] sm:%s267]
                %281 = vst [vmem:[%s275 + $0x8] sm:%s267] %v280
                %v282 = vld [vmem:[%s274 + $0x18] sm:%s267]
                %283 = vst [vmem:[%s275 + $0xc] sm:%s267] %v282
                %v284 = vld [vmem:[%s274 + $0x20] sm:%s267]
                %285 = vst [vmem:[%s275 + $0x10] sm:%s267] %v284
                %v286 = vld [vmem:[%s274 + $0x28] sm:%s267]
                %287 = vst [vmem:[%s275 + $0x14] sm:%s267] %v286
                %v288 = vld [vmem:[%s274 + $0x30] sm:%s267]
                %289 = vst [vmem:[%s275 + $0x18] sm:%s267] %v288
                %v290 = vld [vmem:[%s274 + $0x38] sm:%s267]
                %291 = vst [vmem:[%s275 + $0x1c] sm:%s267] %v290
              $region49: #{gat_forward.7} parent=43 // loop_footer
                %s273 = sadd.s32 1, %s269
              $region50: #{gat_forward.7} parent=43 // loop_footer_branch
                %268 = sbr.rel target = $region46
              $region51: #{gat_forward.7} parent=43 // loop_exit
                _
            $region44: #{gat_forward.7} parent=35 // pred_fallthru
              _
          $region36: #{gat_forward.7} parent=31 // pred_fallthru
            _
          %328 = vnop
        $region32: #{gat_forward.7} parent=27 // pred_fallthru
          _
        // Predicated region
        $region70: #{gat_forward.7} parent=27 // pred_check
          %p329 = pneg %p73
        $region71: #{gat_forward.7} parent=27 // pred_check_branch
          %331 = sbr.rel (%p329) target = $region73
        $region72: #{gat_forward.7} parent=27 // pred_region
          %s332 = smul.u32 16, %s21
          %p333 = scmp.lt.s32.totalorder %s332, 31
          %s334 = scalar_select %p333, %s332, 31
          %s335 = smul.addr %s334, 4
          %s336 = scalar_lea.vmem %s1, %s335
          %s337 = smul.u32 16, %s21
        $region73: #{gat_forward.7} parent=27 // pred_fallthru
          _
        // Predicated region
        $region74: #{gat_forward.7} parent=27 // pred_check
          %p338 = pneg %p99
        $region75: #{gat_forward.7} parent=27 // pred_check_branch
          %340 = sbr.rel (%p338) target = $region77
        $region76: #{gat_forward.7} parent=27 // pred_region
          %p341 = scmp.lt.s32.totalorder %s21, 1
          %s342 = scalar_select %p341, %s21, 1
          %s343 = smul.addr %s342, 4
          %s344 = scalar_lea.vmem %s2, %s343
        $region77: #{gat_forward.7} parent=27 // pred_fallthru
          _
        // Predicated region
        $region78: #{gat_forward.7} parent=27 // pred_check
          %p345 = pneg %p125
        $region79: #{gat_forward.7} parent=27 // pred_check_branch
          %347 = sbr.rel (%p345) target = $region81
        $region80: #{gat_forward.7} parent=27 // pred_region
          %s348 = smul.u32 8, %s20
          %p349 = scmp.lt.s32.totalorder %s348, 31
          %s350 = scalar_select %p349, %s348, 31
          %s351 = smul.addr %s350, 8
          %s352 = scalar_lea.vmem %s3, %s351
          %s353 = smul.u32 8, %s20
        $region81: #{gat_forward.7} parent=27 // pred_fallthru
          _
      $region28: #{gat_forward.7} parent=5 // pred_fallthru
        _
      %p354 = scmp.le.s32.totalorder 1, %s13
      %p355 = scmp.lt.s32.totalorder %s13, 9
      %p356 = pnand %p354, %p355
      %p357 = pneg %p356
      // Predicated region
      $region82: #{gat_forward.7} parent=5 // pred_check
        _
      $region83: #{gat_forward.7} parent=5 // pred_check_branch
        %359 = sbr.rel (%p356) target = $region85
      $region84: #{gat_forward.7} parent=5 // pred_region
        %s360 = ssub.s32 %s13, 1
        %s361 = sand.u32 %s40, 1
        %s362 = sand.u32 %s40, 1
        %s363 = smul.addr %s362, 32
        %s364 = scalar_lea.vmem [#allocation5], %s363
        // Predicated region
        $region86: #{gat_forward.7} parent=84 // pred_check
          %p365 = pneg %p53
        $region87: #{gat_forward.7} parent=84 // pred_check_branch
          %367 = sbr.rel (%p365) target = $region89
        $region88: #{gat_forward.7} parent=84 // pred_region
          _
        $region89: #{gat_forward.7} parent=84 // pred_fallthru
          _
        %s368 = sand.u32 %s40, 1
        %s369 = sand.u32 %s40, 1
        %s370 = smul.addr %s369, 32
        %s371 = scalar_lea.vmem [#allocation5], %s370
        %p372 = pneg %p53
        %p373 = pneg %p50
        %s374 = smul.u32 16, %s23
        %p375 = scmp.lt.s32.totalorder %s374, 31
        %s376 = scalar_select %p375, %s374, 31
        %s377 = smul.addr %s376, 4
        %s378 = scalar_lea.vmem %s1, %s377
        %p379 = pneg %p79
        %p380 = pneg %p76
        %p381 = scmp.lt.s32.totalorder %s23, 1
        %s382 = scalar_select %p381, %s23, 1
        %s383 = smul.addr %s382, 4
        %s384 = scalar_lea.vmem %s2, %s383
        %p385 = pneg %p105
        %p386 = pneg %p102
        %s387 = smul.u32 8, %s22
        %p388 = scmp.lt.s32.totalorder %s387, 31
        %s389 = scalar_select %p388, %s387, 31
        %s390 = smul.addr %s389, 8
        %s391 = scalar_lea.vmem %s3, %s390
        %p392 = pneg %p131
        %p393 = pneg %p128
        %p394 = pneg %p152
        %p395 = pneg %p149
        %p396 = pneg %p173
        %p397 = pneg %p170
        %p398 = pneg %p194
        %p399 = pneg %p191
        %p400 = pneg %p220
        %p401 = pneg %p217
        %s402 = smul.u32 8, %s22
        %p403 = scmp.lt.s32.totalorder %s402, 31
        %s404 = scalar_select %p403, %s402, 31
        %s405 = smul.addr %s404, 8
        %s406 = scalar_lea.vmem %s7, %s405
        %s407 = smul.u32 8, %s22
        %s408 = smul.u32 16, %s23
        %p409 = scmp.lt.s32.totalorder %s408, 31
        %s410 = scalar_select %p409, %s408, 31
        %s411 = smul.addr %s410, 4
        %s412 = scalar_lea.vmem %s1, %s411
        %s413 = smul.u32 16, %s23
        %p414 = scmp.lt.s32.totalorder %s23, 1
        %s415 = scalar_select %p414, %s23, 1
        %s416 = smul.addr %s415, 4
        %s417 = scalar_lea.vmem %s2, %s416
        %s418 = smul.u32 8, %s22
        %p419 = scmp.lt.s32.totalorder %s418, 31
        %s420 = scalar_select %p419, %s418, 31
        %s421 = smul.addr %s420, 8
        %s422 = scalar_lea.vmem %s3, %s421
        %s423 = smul.u32 8, %s22
        %s424 = smul.u32 8, %s22
        %p425 = scmp.lt.s32.totalorder %s424, 31
        %s426 = scalar_select %p425, %s424, 31
        %s427 = smul.addr %s426, 8
        %s428 = scalar_lea.vmem %s7, %s427
        %s429 = smul.u32 8, %s22
        %p431 = scmp.eq.s32.totalorder %s23, 0
        // Predicated region
        $region90: #{gat_forward.7} parent=84 // pred_check
          %p432 = pneg %p431
        $region91: #{gat_forward.7} parent=84 // pred_check_branch
          %434 = sbr.rel (%p432) target = $region93
        $region92: #{gat_forward.7} parent=84 // pred_region
          %vm435 = vcmask 31744
          %436 = vst.msk [vmem:[#allocation2] sm:$0xff] %vm435, -1e+20
          %437 = vst.msk [vmem:[#allocation2 + $0x8] sm:$0xff] %vm435, -1e+20
          %438 = vst.msk [vmem:[#allocation2 + $0x10] sm:$0xff] %vm435, -1e+20
          %439 = vst.msk [vmem:[#allocation2 + $0x18] sm:$0xff] %vm435, -1e+20
          %440 = vst.msk [vmem:[#allocation2 + $0x20] sm:$0xff] %vm435, -1e+20
          %441 = vst.msk [vmem:[#allocation2 + $0x28] sm:$0xff] %vm435, -1e+20
          %442 = vst.msk [vmem:[#allocation2 + $0x30] sm:$0xff] %vm435, -1e+20
          %443 = vst.msk [vmem:[#allocation2 + $0x38] sm:$0xff] %vm435, -1e+20
          %444 = vst.msk [vmem:[#allocation3] sm:$0xff] %vm435, 0.0
          %445 = vst.msk [vmem:[#allocation3 + $0x8] sm:$0xff] %vm435, 0.0
          %446 = vst.msk [vmem:[#allocation3 + $0x10] sm:$0xff] %vm435, 0.0
          %447 = vst.msk [vmem:[#allocation3 + $0x18] sm:$0xff] %vm435, 0.0
          %448 = vst.msk [vmem:[#allocation3 + $0x20] sm:$0xff] %vm435, 0.0
          %449 = vst.msk [vmem:[#allocation3 + $0x28] sm:$0xff] %vm435, 0.0
          %450 = vst.msk [vmem:[#allocation3 + $0x30] sm:$0xff] %vm435, 0.0
          %451 = vst.msk [vmem:[#allocation3 + $0x38] sm:$0xff] %vm435, 0.0
          %452 = vst [vmem:[#allocation4] sm:$0xff] 0.0
          %453 = vst [vmem:[#allocation4 + $0x8] sm:$0xff] 0.0
          %454 = vst [vmem:[#allocation4 + $0x10] sm:$0xff] 0.0
          %455 = vst [vmem:[#allocation4 + $0x18] sm:$0xff] 0.0
          %456 = vst [vmem:[#allocation4 + $0x20] sm:$0xff] 0.0
          %457 = vst [vmem:[#allocation4 + $0x28] sm:$0xff] 0.0
          %458 = vst [vmem:[#allocation4 + $0x30] sm:$0xff] 0.0
          %459 = vst [vmem:[#allocation4 + $0x38] sm:$0xff] 0.0
        $region93: #{gat_forward.7} parent=84 // pred_fallthru
          _
        %v460 = vld [vmem:[%s364] sm:$0xf]
        %v461 = vld [vmem:[%s364 + $0x4] sm:$0xf]
        %v462 = vld [vmem:[%s364 + $0x8] sm:$0xf]
        %v463 = vld [vmem:[%s364 + $0xc] sm:$0xf]
        %v464 = vld [vmem:[%s364 + $0x10] sm:$0xf]
        %v465 = vld [vmem:[%s364 + $0x14] sm:$0xf]
        %v466 = vld [vmem:[%s364 + $0x18] sm:$0xf]
        %v467 = vld [vmem:[%s364 + $0x1c] sm:$0xf]
        %v468 = vunpack.c.l.bf16 %v460
        %v469 = vunpack.c.l.bf16 %v461
        %v470 = vunpack.c.l.bf16 %v462
        %v471 = vunpack.c.l.bf16 %v463
        %v472 = vunpack.c.l.bf16 %v464
        %v473 = vunpack.c.l.bf16 %v465
        %v474 = vunpack.c.l.bf16 %v466
        %v475 = vunpack.c.l.bf16 %v467
        %v476 = vld [vmem:[%s412] sm:$0xf]
        %v477 = vld [vmem:[%s412 + $0x4] sm:$0xf]
        %v478 = vld [vmem:[%s412 + $0x8] sm:$0xf]
        %v479 = vld [vmem:[%s412 + $0xc] sm:$0xf]
        %v480 = vld [vmem:[%s412 + $0x10] sm:$0xf]
        %v481 = vld [vmem:[%s412 + $0x14] sm:$0xf]
        %v482 = vld [vmem:[%s412 + $0x18] sm:$0xf]
        %v483 = vld [vmem:[%s412 + $0x1c] sm:$0xf]
        %v484 = vld [vmem:[%s412 + $0x20] sm:$0xf]
        %v485 = vld [vmem:[%s412 + $0x24] sm:$0xf]
        %v486 = vld [vmem:[%s412 + $0x28] sm:$0xf]
        %v487 = vld [vmem:[%s412 + $0x2c] sm:$0xf]
        %v488 = vld [vmem:[%s412 + $0x30] sm:$0xf]
        %v489 = vld [vmem:[%s412 + $0x34] sm:$0xf]
        %v490 = vld [vmem:[%s412 + $0x38] sm:$0xf]
        %v491 = vld [vmem:[%s412 + $0x3c] sm:$0xf]
        %v492 = vld [vmem:[%s417] sm:$0xf]
        %v493 = vld [vmem:[%s422] sm:$0xff]
        %v494 = vld [vmem:[%s422 + $0x8] sm:$0xff]
        %v495 = vld [vmem:[%s422 + $0x10] sm:$0xff]
        %v496 = vld [vmem:[%s422 + $0x18] sm:$0xff]
        %v497 = vld [vmem:[%s422 + $0x20] sm:$0xff]
        %v498 = vld [vmem:[%s422 + $0x28] sm:$0xff]
        %v499 = vld [vmem:[%s422 + $0x30] sm:$0xff]
        %v500 = vld [vmem:[%s422 + $0x38] sm:$0xff]
        %v501 = vld [vmem:[#allocation2] sm:$0xff]
        %v502 = vld [vmem:[#allocation2 + $0x8] sm:$0xff]
        %v503 = vld [vmem:[#allocation2 + $0x10] sm:$0xff]
        %v504 = vld [vmem:[#allocation2 + $0x18] sm:$0xff]
        %v505 = vld [vmem:[#allocation2 + $0x20] sm:$0xff]
        %v506 = vld [vmem:[#allocation2 + $0x28] sm:$0xff]
        %v507 = vld [vmem:[#allocation2 + $0x30] sm:$0xff]
        %v508 = vld [vmem:[#allocation2 + $0x38] sm:$0xff]
        %v509 = vld [vmem:[#allocation3] sm:$0xff]
        %v510 = vld [vmem:[#allocation3 + $0x8] sm:$0xff]
        %v511 = vld [vmem:[#allocation3 + $0x10] sm:$0xff]
        %v512 = vld [vmem:[#allocation3 + $0x18] sm:$0xff]
        %v513 = vld [vmem:[#allocation3 + $0x20] sm:$0xff]
        %v514 = vld [vmem:[#allocation3 + $0x28] sm:$0xff]
        %v515 = vld [vmem:[#allocation3 + $0x30] sm:$0xff]
        %v516 = vld [vmem:[#allocation3 + $0x38] sm:$0xff]
        %518 = vset.pattern.permute.xlu0 0
        %519 = vperm.xlu0 %518, %v493
        %v520 = vpop.permute.xlu0 %519
        %523 = vset.pattern.permute.xlu0 0
        %524 = vperm.xlu0 %523, %v494
        %v525 = vpop.permute.xlu0 %524
        %528 = vset.pattern.permute.xlu0 0
        %529 = vperm.xlu0 %528, %v495
        %v530 = vpop.permute.xlu0 %529
        %533 = vset.pattern.permute.xlu0 0
        %534 = vperm.xlu0 %533, %v496
        %v535 = vpop.permute.xlu0 %534
        %538 = vset.pattern.permute.xlu0 0
        %539 = vperm.xlu0 %538, %v497
        %v540 = vpop.permute.xlu0 %539
        %543 = vset.pattern.permute.xlu0 0
        %544 = vperm.xlu0 %543, %v498
        %v545 = vpop.permute.xlu0 %544
        %548 = vset.pattern.permute.xlu0 0
        %549 = vperm.xlu0 %548, %v499
        %v550 = vpop.permute.xlu0 %549
        %553 = vset.pattern.permute.xlu0 0
        %554 = vperm.xlu0 %553, %v500
        %v555 = vpop.permute.xlu0 %554
        %v557 = vlaneseq
        %v558 = vshrl.u32 %v557, 7
        %v559 = vsub.s32 0, %v558
        %v560 = vrot.slane %v492, %v559
        %v561 = vadd.f32 %v520, %v560
        %v562 = vadd.f32 %v525, %v560
        %v563 = vadd.f32 %v530, %v560
        %v564 = vadd.f32 %v535, %v560
        %v565 = vadd.f32 %v540, %v560
        %v566 = vadd.f32 %v545, %v560
        %v567 = vadd.f32 %v550, %v560
        %v568 = vadd.f32 %v555, %v560
        %v569 = vmul.f32 %v561, 0.2
        %v570 = vmul.f32 %v562, 0.2
        %v571 = vmul.f32 %v563, 0.2
        %v572 = vmul.f32 %v564, 0.2
        %v573 = vmul.f32 %v565, 0.2
        %v574 = vmul.f32 %v566, 0.2
        %v575 = vmul.f32 %v567, 0.2
        %v576 = vmul.f32 %v568, 0.2
        %v577 = vmax.f32 %v561, %v569
        %v578 = vmax.f32 %v562, %v570
        %v579 = vmax.f32 %v563, %v571
        %v580 = vmax.f32 %v564, %v572
        %v581 = vmax.f32 %v565, %v573
        %v582 = vmax.f32 %v566, %v574
        %v583 = vmax.f32 %v567, %v575
        %v584 = vmax.f32 %v568, %v576
        %v585 = vadd.f32 %v577, %v468
        %v586 = vadd.f32 %v578, %v469
        %v587 = vadd.f32 %v579, %v470
        %v588 = vadd.f32 %v580, %v471
        %v589 = vadd.f32 %v581, %v472
        %v590 = vadd.f32 %v582, %v473
        %v591 = vadd.f32 %v583, %v474
        %v592 = vadd.f32 %v584, %v475
        %593 = vmax.xlane.f32.xlu0 %v585
        %v594 = vpop.xlane.xlu0 %593
        %595 = vmax.xlane.f32.xlu0 %v586
        %v596 = vpop.xlane.xlu0 %595
        %597 = vmax.xlane.f32.xlu0 %v587
        %v598 = vpop.xlane.xlu0 %597
        %599 = vmax.xlane.f32.xlu0 %v588
        %v600 = vpop.xlane.xlu0 %599
        %601 = vmax.xlane.f32.xlu0 %v589
        %v602 = vpop.xlane.xlu0 %601
        %603 = vmax.xlane.f32.xlu0 %v590
        %v604 = vpop.xlane.xlu0 %603
        %605 = vmax.xlane.f32.xlu0 %v591
        %v606 = vpop.xlane.xlu0 %605
        %607 = vmax.xlane.f32.xlu0 %v592
        %v608 = vpop.xlane.xlu0 %607
        %v609 = vmax.f32 %v501, %v594
        %v610 = vmax.f32 %v502, %v596
        %v611 = vmax.f32 %v503, %v598
        %v612 = vmax.f32 %v504, %v600
        %v613 = vmax.f32 %v505, %v602
        %v614 = vmax.f32 %v506, %v604
        %v615 = vmax.f32 %v507, %v606
        %v616 = vmax.f32 %v508, %v608
        %v617 = vsub.f32 %v501, %v609
        %v618 = vsub.f32 %v502, %v610
        %v619 = vsub.f32 %v503, %v611
        %v620 = vsub.f32 %v504, %v612
        %v621 = vsub.f32 %v505, %v613
        %v622 = vsub.f32 %v506, %v614
        %v623 = vsub.f32 %v507, %v615
        %v624 = vsub.f32 %v508, %v616
        %v625 = vmul.f32 %v617, 1.442695
        %v626 = vpow.pop %v625
        %v627 = vmul.f32 %v618, 1.442695
        %v628 = vpow.pop %v627
        %v629 = vmul.f32 %v619, 1.442695
        %v630 = vpow.pop %v629
        %v631 = vmul.f32 %v620, 1.442695
        %v632 = vpow.pop %v631
        %v633 = vmul.f32 %v621, 1.442695
        %v634 = vpow.pop %v633
        %v635 = vmul.f32 %v622, 1.442695
        %v636 = vpow.pop %v635
        %v637 = vmul.f32 %v623, 1.442695
        %v638 = vpow.pop %v637
        %v639 = vmul.f32 %v624, 1.442695
        %v640 = vpow.pop %v639
        %642 = vset.pattern.permute.xlu0 0
        %643 = vperm.xlu0 %642, %v609
        %v644 = vpop.permute.xlu0 %643
        %647 = vset.pattern.permute.xlu0 0
        %648 = vperm.xlu0 %647, %v610
        %v649 = vpop.permute.xlu0 %648
        %652 = vset.pattern.permute.xlu0 0
        %653 = vperm.xlu0 %652, %v611
        %v654 = vpop.permute.xlu0 %653
        %657 = vset.pattern.permute.xlu0 0
        %658 = vperm.xlu0 %657, %v612
        %v659 = vpop.permute.xlu0 %658
        %662 = vset.pattern.permute.xlu0 0
        %663 = vperm.xlu0 %662, %v613
        %v664 = vpop.permute.xlu0 %663
        %667 = vset.pattern.permute.xlu0 0
        %668 = vperm.xlu0 %667, %v614
        %v669 = vpop.permute.xlu0 %668
        %672 = vset.pattern.permute.xlu0 0
        %673 = vperm.xlu0 %672, %v615
        %v674 = vpop.permute.xlu0 %673
        %677 = vset.pattern.permute.xlu0 0
        %678 = vperm.xlu0 %677, %v616
        %v679 = vpop.permute.xlu0 %678
        %v681 = vsub.f32 %v585, %v644
        %v682 = vsub.f32 %v586, %v649
        %v683 = vsub.f32 %v587, %v654
        %v684 = vsub.f32 %v588, %v659
        %v685 = vsub.f32 %v589, %v664
        %v686 = vsub.f32 %v590, %v669
        %v687 = vsub.f32 %v591, %v674
        %v688 = vsub.f32 %v592, %v679
        %v689 = vmul.f32 %v681, 1.442695
        %v690 = vpow.pop %v689
        %v691 = vmul.f32 %v682, 1.442695
        %v692 = vpow.pop %v691
        %v693 = vmul.f32 %v683, 1.442695
        %v694 = vpow.pop %v693
        %v695 = vmul.f32 %v684, 1.442695
        %v696 = vpow.pop %v695
        %v697 = vmul.f32 %v685, 1.442695
        %v698 = vpow.pop %v697
        %v699 = vmul.f32 %v686, 1.442695
        %v700 = vpow.pop %v699
        %v701 = vmul.f32 %v687, 1.442695
        %v702 = vpow.pop %v701
        %v703 = vmul.f32 %v688, 1.442695
        %v704 = vpow.pop %v703
        %v705 = vmul.f32 %v626, %v509
        %v706 = vmul.f32 %v628, %v510
        %v707 = vmul.f32 %v630, %v511
        %v708 = vmul.f32 %v632, %v512
        %v709 = vmul.f32 %v634, %v513
        %v710 = vmul.f32 %v636, %v514
        %v711 = vmul.f32 %v638, %v515
        %v712 = vmul.f32 %v640, %v516
        %713 = vadd.xlane.f32.xlu0 %v690
        %v714 = vpop.xlane.xlu0 %713
        %715 = vadd.xlane.f32.xlu0 %v692
        %v716 = vpop.xlane.xlu0 %715
        %717 = vadd.xlane.f32.xlu0 %v694
        %v718 = vpop.xlane.xlu0 %717
        %719 = vadd.xlane.f32.xlu0 %v696
        %v720 = vpop.xlane.xlu0 %719
        %721 = vadd.xlane.f32.xlu0 %v698
        %v722 = vpop.xlane.xlu0 %721
        %723 = vadd.xlane.f32.xlu0 %v700
        %v724 = vpop.xlane.xlu0 %723
        %725 = vadd.xlane.f32.xlu0 %v702
        %v726 = vpop.xlane.xlu0 %725
        %727 = vadd.xlane.f32.xlu0 %v704
        %v728 = vpop.xlane.xlu0 %727
        %v729 = vadd.f32 %v705, %v714
        %v730 = vadd.f32 %v706, %v716
        %v731 = vadd.f32 %v707, %v718
        %v732 = vadd.f32 %v708, %v720
        %v733 = vadd.f32 %v709, %v722
        %v734 = vadd.f32 %v710, %v724
        %v735 = vadd.f32 %v711, %v726
        %v736 = vadd.f32 %v712, %v728
        %738 = vset.pattern.permute.xlu0 0
        %739 = vperm.xlu0 %738, %v626
        %v740 = vpop.permute.xlu0 %739
        %743 = vset.pattern.permute.xlu0 0
        %744 = vperm.xlu0 %743, %v628
        %v745 = vpop.permute.xlu0 %744
        %748 = vset.pattern.permute.xlu0 0
        %749 = vperm.xlu0 %748, %v630
        %v750 = vpop.permute.xlu0 %749
        %753 = vset.pattern.permute.xlu0 0
        %754 = vperm.xlu0 %753, %v632
        %v755 = vpop.permute.xlu0 %754
        %758 = vset.pattern.permute.xlu0 0
        %759 = vperm.xlu0 %758, %v634
        %v760 = vpop.permute.xlu0 %759
        %763 = vset.pattern.permute.xlu0 0
        %764 = vperm.xlu0 %763, %v636
        %v765 = vpop.permute.xlu0 %764
        %768 = vset.pattern.permute.xlu0 0
        %769 = vperm.xlu0 %768, %v638
        %v770 = vpop.permute.xlu0 %769
        %773 = vset.pattern.permute.xlu0 0
        %774 = vperm.xlu0 %773, %v640
        %v775 = vpop.permute.xlu0 %774
        %v777 = vpack.c.bf16 %v692, %v690
        %v778 = vpack.c.bf16 %v696, %v694
        %v779 = vpack.c.bf16 %v700, %v698
        %v780 = vpack.c.bf16 %v704, %v702
        %v797 = vunpack.c.l.b16 %v476
        %v798 = vunpack.c.l.b16 %v477
        %v799 = vunpack.c.l.b16 %v478
        %v800 = vunpack.c.l.b16 %v479
        %v801 = vunpack.c.l.b16 %v480
        %v802 = vunpack.c.l.b16 %v481
        %v803 = vunpack.c.l.b16 %v482
        %v804 = vunpack.c.l.b16 %v483
        %v805 = vunpack.c.l.b16 %v484
        %v806 = vunpack.c.l.b16 %v485
        %v807 = vunpack.c.l.b16 %v486
        %v808 = vunpack.c.l.b16 %v487
        %v809 = vunpack.c.l.b16 %v488
        %v810 = vunpack.c.l.b16 %v489
        %v811 = vunpack.c.l.b16 %v490
        %v812 = vunpack.c.l.b16 %v491
        %v813 = vpack.c.b16 %v798, %v797
        %v814 = vpack.c.b16 %v800, %v799
        %v815 = vpack.c.b16 %v802, %v801
        %v816 = vpack.c.b16 %v804, %v803
        %v817 = vpack.c.b16 %v806, %v805
        %v818 = vpack.c.b16 %v808, %v807
        %v819 = vpack.c.b16 %v810, %v809
        %v820 = vpack.c.b16 %v812, %v811
        %829 = vmatprep.subr.bf16.mxu0 0
        %830 = vmatpush1.bf16.msra.mxu0 %v820
        %831 = vmatprep.subr.bf16.mxu0 0
        %832 = vmatpush1.bf16.msra.mxu0 %v819
        %833 = vmatprep.subr.bf16.mxu0 0
        %834 = vmatpush1.bf16.msra.mxu0 %v818
        %835 = vmatprep.subr.bf16.mxu0 0
        %836 = vmatpush1.bf16.msra.mxu0 %v817
        %837 = vmatprep.subr.bf16.mxu0 0
        %838 = vmatpush1.bf16.msra.mxu0 %v816
        %839 = vmatprep.subr.bf16.mxu0 0
        %840 = vmatpush1.bf16.msra.mxu0 %v815
        %841 = vmatprep.subr.bf16.mxu0 0
        %842 = vmatpush1.bf16.msra.mxu0 %v814
        %843 = vmatprep.subr.bf16.mxu0 0
        %844 = vmatpush1.bf16.msra.mxu0 %v813
        %845 = vmatprep.subr.bf16.mxu0 0
        %846 = vmatpush2.bf16.msra.mxu0 0
        %847 = vmatprep.subr.bf16.mxu0 0
        %848 = vmatpush2.bf16.msra.mxu0 0
        %849 = vmatprep.subr.bf16.mxu0 0
        %850 = vmatpush2.bf16.msra.mxu0 0
        %851 = vmatprep.subr.bf16.mxu0 0
        %852 = vmatpush2.bf16.msra.mxu0 0
        %853 = vmatprep.subr.bf16.mxu0 0
        %854 = vmatpush2.bf16.msra.mxu0 0
        %855 = vmatprep.subr.bf16.mxu0 0
        %856 = vmatpush2.bf16.msra.mxu0 0
        %857 = vmatprep.subr.bf16.mxu0 0
        %858 = vmatpush2.bf16.msra.mxu0 0
        %859 = vmatprep.subr.bf16.mxu0 0
        %860 = vmatpush2.bf16.msra.mxu0 0
        %861 = vmatprep.mubr.bf16.mxu0 0
        %862 = vmatmul.mubr.bf16.gmra.mxu0 %v777
        %v863 = vpop.f32.mrf.mxu0
        %v864 = vadd.f32 0.0, %v863
        %v865 = vpop.f32.mrf.mxu0
        %v866 = vpop.f32.mrf.mxu0
        %v867 = vadd.f32 0.0, %v866
        %v868 = vpop.f32.mrf.mxu0
        %869 = vmatprep.mubr.bf16.mxu0 0
        %870 = vmatmul.mubr.bf16.gmra.mxu0 %v778
        %v871 = vpop.f32.mrf.mxu0
        %v872 = vadd.f32 0.0, %v871
        %v873 = vpop.f32.mrf.mxu0
        %v874 = vpop.f32.mrf.mxu0
        %v875 = vadd.f32 0.0, %v874
        %v876 = vpop.f32.mrf.mxu0
        %877 = vmatprep.mubr.bf16.mxu0 0
        %878 = vmatmul.mubr.bf16.gmra.mxu0 %v779
        %v879 = vpop.f32.mrf.mxu0
        %v880 = vadd.f32 0.0, %v879
        %v881 = vpop.f32.mrf.mxu0
        %v882 = vpop.f32.mrf.mxu0
        %v883 = vadd.f32 0.0, %v882
        %v884 = vpop.f32.mrf.mxu0
        %885 = vmatprep.mubr.bf16.mxu0 0
        %886 = vmatmul.mubr.bf16.gmra.mxu0 %v780
        %v887 = vpop.f32.mrf.mxu0
        %v888 = vadd.f32 0.0, %v887
        %v889 = vpop.f32.mrf.mxu0
        %v890 = vpop.f32.mrf.mxu0
        %v891 = vadd.f32 0.0, %v890
        %v892 = vpop.f32.mrf.mxu0
        %893 = vdwg.mxu0
        %894 = vset.pattern.permute.xlu0 1
        %895 = vperm.xlu0 %894, %v493
        %v896 = vpop.permute.xlu0 %895
        %898 = vset.pattern.permute.xlu0 1
        %899 = vperm.xlu0 %898, %v494
        %v900 = vpop.permute.xlu0 %899
        %902 = vset.pattern.permute.xlu0 1
        %903 = vperm.xlu0 %902, %v495
        %v904 = vpop.permute.xlu0 %903
        %906 = vset.pattern.permute.xlu0 1
        %907 = vperm.xlu0 %906, %v496
        %v908 = vpop.permute.xlu0 %907
        %910 = vset.pattern.permute.xlu0 1
        %911 = vperm.xlu0 %910, %v497
        %v912 = vpop.permute.xlu0 %911
        %914 = vset.pattern.permute.xlu0 1
        %915 = vperm.xlu0 %914, %v498
        %v916 = vpop.permute.xlu0 %915
        %918 = vset.pattern.permute.xlu0 1
        %919 = vperm.xlu0 %918, %v499
        %v920 = vpop.permute.xlu0 %919
        %922 = vset.pattern.permute.xlu0 1
        %923 = vperm.xlu0 %922, %v500
        %v924 = vpop.permute.xlu0 %923
        %v926 = vlaneseq
        %v927 = vshrl.u32 %v926, 7
        %v928 = vsub.s32 1, %v927
        %v929 = vrot.slane %v492, %v928
        %v930 = vadd.f32 %v896, %v929
        %v931 = vadd.f32 %v900, %v929
        %v932 = vadd.f32 %v904, %v929
        %v933 = vadd.f32 %v908, %v929
        %v934 = vadd.f32 %v912, %v929
        %v935 = vadd.f32 %v916, %v929
        %v936 = vadd.f32 %v920, %v929
        %v937 = vadd.f32 %v924, %v929
        %v938 = vmul.f32 %v930, 0.2
        %v939 = vmul.f32 %v931, 0.2
        %v940 = vmul.f32 %v932, 0.2
        %v941 = vmul.f32 %v933, 0.2
        %v942 = vmul.f32 %v934, 0.2
        %v943 = vmul.f32 %v935, 0.2
        %v944 = vmul.f32 %v936, 0.2
        %v945 = vmul.f32 %v937, 0.2
        %v946 = vmax.f32 %v930, %v938
        %v947 = vmax.f32 %v931, %v939
        %v948 = vmax.f32 %v932, %v940
        %v949 = vmax.f32 %v933, %v941
        %v950 = vmax.f32 %v934, %v942
        %v951 = vmax.f32 %v935, %v943
        %v952 = vmax.f32 %v936, %v944
        %v953 = vmax.f32 %v937, %v945
        %v954 = vadd.f32 %v946, %v468
        %v955 = vadd.f32 %v947, %v469
        %v956 = vadd.f32 %v948, %v470
        %v957 = vadd.f32 %v949, %v471
        %v958 = vadd.f32 %v950, %v472
        %v959 = vadd.f32 %v951, %v473
        %v960 = vadd.f32 %v952, %v474
        %v961 = vadd.f32 %v953, %v475
        %962 = vmax.xlane.f32.xlu0 %v954
        %v963 = vpop.xlane.xlu0 %962
        %964 = vmax.xlane.f32.xlu0 %v955
        %v965 = vpop.xlane.xlu0 %964
        %966 = vmax.xlane.f32.xlu0 %v956
        %v967 = vpop.xlane.xlu0 %966
        %968 = vmax.xlane.f32.xlu0 %v957
        %v969 = vpop.xlane.xlu0 %968
        %970 = vmax.xlane.f32.xlu0 %v958
        %v971 = vpop.xlane.xlu0 %970
        %972 = vmax.xlane.f32.xlu0 %v959
        %v973 = vpop.xlane.xlu0 %972
        %974 = vmax.xlane.f32.xlu0 %v960
        %v975 = vpop.xlane.xlu0 %974
        %976 = vmax.xlane.f32.xlu0 %v961
        %v977 = vpop.xlane.xlu0 %976
        %v978 = vmax.f32 %v501, %v963
        %v979 = vmax.f32 %v502, %v965
        %v980 = vmax.f32 %v503, %v967
        %v981 = vmax.f32 %v504, %v969
        %v982 = vmax.f32 %v505, %v971
        %v983 = vmax.f32 %v506, %v973
        %v984 = vmax.f32 %v507, %v975
        %v985 = vmax.f32 %v508, %v977
        %v986 = vsub.f32 %v501, %v978
        %v987 = vsub.f32 %v502, %v979
        %v988 = vsub.f32 %v503, %v980
        %v989 = vsub.f32 %v504, %v981
        %v990 = vsub.f32 %v505, %v982
        %v991 = vsub.f32 %v506, %v983
        %v992 = vsub.f32 %v507, %v984
        %v993 = vsub.f32 %v508, %v985
        %v994 = vmul.f32 %v986, 1.442695
        %v995 = vpow.pop %v994
        %v996 = vmul.f32 %v987, 1.442695
        %v997 = vpow.pop %v996
        %v998 = vmul.f32 %v988, 1.442695
        %v999 = vpow.pop %v998
        %v1000 = vmul.f32 %v989, 1.442695
        %v1001 = vpow.pop %v1000
        %v1002 = vmul.f32 %v990, 1.442695
        %v1003 = vpow.pop %v1002
        %v1004 = vmul.f32 %v991, 1.442695
        %v1005 = vpow.pop %v1004
        %v1006 = vmul.f32 %v992, 1.442695
        %v1007 = vpow.pop %v1006
        %v1008 = vmul.f32 %v993, 1.442695
        %v1009 = vpow.pop %v1008
        %1011 = vset.pattern.permute.xlu0 1
        %1012 = vperm.xlu0 %1011, %v978
        %v1013 = vpop.permute.xlu0 %1012
        %1016 = vset.pattern.permute.xlu0 1
        %1017 = vperm.xlu0 %1016, %v979
        %v1018 = vpop.permute.xlu0 %1017
        %1021 = vset.pattern.permute.xlu0 1
        %1022 = vperm.xlu0 %1021, %v980
        %v1023 = vpop.permute.xlu0 %1022
        %1026 = vset.pattern.permute.xlu0 1
        %1027 = vperm.xlu0 %1026, %v981
        %v1028 = vpop.permute.xlu0 %1027
        %1031 = vset.pattern.permute.xlu0 1
        %1032 = vperm.xlu0 %1031, %v982
        %v1033 = vpop.permute.xlu0 %1032
        %1036 = vset.pattern.permute.xlu0 1
        %1037 = vperm.xlu0 %1036, %v983
        %v1038 = vpop.permute.xlu0 %1037
        %1041 = vset.pattern.permute.xlu0 1
        %1042 = vperm.xlu0 %1041, %v984
        %v1043 = vpop.permute.xlu0 %1042
        %1046 = vset.pattern.permute.xlu0 1
        %1047 = vperm.xlu0 %1046, %v985
        %v1048 = vpop.permute.xlu0 %1047
        %v1050 = vsub.f32 %v954, %v1013
        %v1051 = vsub.f32 %v955, %v1018
        %v1052 = vsub.f32 %v956, %v1023
        %v1053 = vsub.f32 %v957, %v1028
        %v1054 = vsub.f32 %v958, %v1033
        %v1055 = vsub.f32 %v959, %v1038
        %v1056 = vsub.f32 %v960, %v1043
        %v1057 = vsub.f32 %v961, %v1048
        %v1058 = vmul.f32 %v1050, 1.442695
        %v1059 = vpow.pop %v1058
        %v1060 = vmul.f32 %v1051, 1.442695
        %v1061 = vpow.pop %v1060
        %v1062 = vmul.f32 %v1052, 1.442695
        %v1063 = vpow.pop %v1062
        %v1064 = vmul.f32 %v1053, 1.442695
        %v1065 = vpow.pop %v1064
        %v1066 = vmul.f32 %v1054, 1.442695
        %v1067 = vpow.pop %v1066
        %v1068 = vmul.f32 %v1055, 1.442695
        %v1069 = vpow.pop %v1068
        %v1070 = vmul.f32 %v1056, 1.442695
        %v1071 = vpow.pop %v1070
        %v1072 = vmul.f32 %v1057, 1.442695
        %v1073 = vpow.pop %v1072
        %v1074 = vmul.f32 %v995, %v509
        %v1075 = vmul.f32 %v997, %v510
        %v1076 = vmul.f32 %v999, %v511
        %v1077 = vmul.f32 %v1001, %v512
        %v1078 = vmul.f32 %v1003, %v513
        %v1079 = vmul.f32 %v1005, %v514
        %v1080 = vmul.f32 %v1007, %v515
        %v1081 = vmul.f32 %v1009, %v516
        %1082 = vadd.xlane.f32.xlu0 %v1059
        %v1083 = vpop.xlane.xlu0 %1082
        %1084 = vadd.xlane.f32.xlu0 %v1061
        %v1085 = vpop.xlane.xlu0 %1084
        %1086 = vadd.xlane.f32.xlu0 %v1063
        %v1087 = vpop.xlane.xlu0 %1086
        %1088 = vadd.xlane.f32.xlu0 %v1065
        %v1089 = vpop.xlane.xlu0 %1088
        %1090 = vadd.xlane.f32.xlu0 %v1067
        %v1091 = vpop.xlane.xlu0 %1090
        %1092 = vadd.xlane.f32.xlu0 %v1069
        %v1093 = vpop.xlane.xlu0 %1092
        %1094 = vadd.xlane.f32.xlu0 %v1071
        %v1095 = vpop.xlane.xlu0 %1094
        %1096 = vadd.xlane.f32.xlu0 %v1073
        %v1097 = vpop.xlane.xlu0 %1096
        %v1098 = vadd.f32 %v1074, %v1083
        %v1099 = vadd.f32 %v1075, %v1085
        %v1100 = vadd.f32 %v1076, %v1087
        %v1101 = vadd.f32 %v1077, %v1089
        %v1102 = vadd.f32 %v1078, %v1091
        %v1103 = vadd.f32 %v1079, %v1093
        %v1104 = vadd.f32 %v1080, %v1095
        %v1105 = vadd.f32 %v1081, %v1097
        %1107 = vset.pattern.permute.xlu0 1
        %1108 = vperm.xlu0 %1107, %v995
        %v1109 = vpop.permute.xlu0 %1108
        %1112 = vset.pattern.permute.xlu0 1
        %1113 = vperm.xlu0 %1112, %v997
        %v1114 = vpop.permute.xlu0 %1113
        %1117 = vset.pattern.permute.xlu0 1
        %1118 = vperm.xlu0 %1117, %v999
        %v1119 = vpop.permute.xlu0 %1118
        %1122 = vset.pattern.permute.xlu0 1
        %1123 = vperm.xlu0 %1122, %v1001
        %v1124 = vpop.permute.xlu0 %1123
        %1127 = vset.pattern.permute.xlu0 1
        %1128 = vperm.xlu0 %1127, %v1003
        %v1129 = vpop.permute.xlu0 %1128
        %1132 = vset.pattern.permute.xlu0 1
        %1133 = vperm.xlu0 %1132, %v1005
        %v1134 = vpop.permute.xlu0 %1133
        %1137 = vset.pattern.permute.xlu0 1
        %1138 = vperm.xlu0 %1137, %v1007
        %v1139 = vpop.permute.xlu0 %1138
        %1142 = vset.pattern.permute.xlu0 1
        %1143 = vperm.xlu0 %1142, %v1009
        %v1144 = vpop.permute.xlu0 %1143
        %v1146 = vpack.c.bf16 %v1061, %v1059
        %v1147 = vpack.c.bf16 %v1065, %v1063
        %v1148 = vpack.c.bf16 %v1069, %v1067
        %v1149 = vpack.c.bf16 %v1073, %v1071
        %1150 = vrot.lane.b32.xlu0 %v813, 96
        %v1151 = vpop.permute.xlu0 %1150
        %1152 = vrot.lane.b32.xlu0 %v814, 96
        %v1153 = vpop.permute.xlu0 %1152
        %1154 = vrot.lane.b32.xlu0 %v815, 96
        %v1155 = vpop.permute.xlu0 %1154
        %1156 = vrot.lane.b32.xlu0 %v816, 96
        %v1157 = vpop.permute.xlu0 %1156
        %1158 = vrot.lane.b32.xlu0 %v817, 96
        %v1159 = vpop.permute.xlu0 %1158
        %1160 = vrot.lane.b32.xlu0 %v818, 96
        %v1161 = vpop.permute.xlu0 %1160
        %1162 = vrot.lane.b32.xlu0 %v819, 96
        %v1163 = vpop.permute.xlu0 %1162
        %1164 = vrot.lane.b32.xlu0 %v820, 96
        %v1165 = vpop.permute.xlu0 %1164
        %1174 = vmatprep.subr.bf16.mxu0 0
        %1175 = vmatpush1.bf16.msra.mxu0 %v1165
        %1176 = vmatprep.subr.bf16.mxu0 0
        %1177 = vmatpush1.bf16.msra.mxu0 %v1163
        %1178 = vmatprep.subr.bf16.mxu0 0
        %1179 = vmatpush1.bf16.msra.mxu0 %v1161
        %1180 = vmatprep.subr.bf16.mxu0 0
        %1181 = vmatpush1.bf16.msra.mxu0 %v1159
        %1182 = vmatprep.subr.bf16.mxu0 0
        %1183 = vmatpush1.bf16.msra.mxu0 %v1157
        %1184 = vmatprep.subr.bf16.mxu0 0
        %1185 = vmatpush1.bf16.msra.mxu0 %v1155
        %1186 = vmatprep.subr.bf16.mxu0 0
        %1187 = vmatpush1.bf16.msra.mxu0 %v1153
        %1188 = vmatprep.subr.bf16.mxu0 0
        %1189 = vmatpush1.bf16.msra.mxu0 %v1151
        %1190 = vmatprep.subr.bf16.mxu0 0
        %1191 = vmatpush2.bf16.msra.mxu0 0
        %1192 = vmatprep.subr.bf16.mxu0 0
        %1193 = vmatpush2.bf16.msra.mxu0 0
        %1194 = vmatprep.subr.bf16.mxu0 0
        %1195 = vmatpush2.bf16.msra.mxu0 0
        %1196 = vmatprep.subr.bf16.mxu0 0
        %1197 = vmatpush2.bf16.msra.mxu0 0
        %1198 = vmatprep.subr.bf16.mxu0 0
        %1199 = vmatpush2.bf16.msra.mxu0 0
        %1200 = vmatprep.subr.bf16.mxu0 0
        %1201 = vmatpush2.bf16.msra.mxu0 0
        %1202 = vmatprep.subr.bf16.mxu0 0
        %1203 = vmatpush2.bf16.msra.mxu0 0
        %1204 = vmatprep.subr.bf16.mxu0 0
        %1205 = vmatpush2.bf16.msra.mxu0 0
        %1206 = vmatprep.mubr.bf16.mxu0 0
        %1207 = vmatmul.mubr.bf16.gmra.mxu0 %v1146
        %v1208 = vpop.f32.mrf.mxu0
        %v1209 = vadd.f32 0.0, %v1208
        %v1210 = vpop.f32.mrf.mxu0
        %v1211 = vpop.f32.mrf.mxu0
        %v1212 = vadd.f32 0.0, %v1211
        %v1213 = vpop.f32.mrf.mxu0
        %1214 = vmatprep.mubr.bf16.mxu0 0
        %1215 = vmatmul.mubr.bf16.gmra.mxu0 %v1147
        %v1216 = vpop.f32.mrf.mxu0
        %v1217 = vadd.f32 0.0, %v1216
        %v1218 = vpop.f32.mrf.mxu0
        %v1219 = vpop.f32.mrf.mxu0
        %v1220 = vadd.f32 0.0, %v1219
        %v1221 = vpop.f32.mrf.mxu0
        %1222 = vmatprep.mubr.bf16.mxu0 0
        %1223 = vmatmul.mubr.bf16.gmra.mxu0 %v1148
        %v1224 = vpop.f32.mrf.mxu0
        %v1225 = vadd.f32 0.0, %v1224
        %v1226 = vpop.f32.mrf.mxu0
        %v1227 = vpop.f32.mrf.mxu0
        %v1228 = vadd.f32 0.0, %v1227
        %v1229 = vpop.f32.mrf.mxu0
        %1230 = vmatprep.mubr.bf16.mxu0 0
        %1231 = vmatmul.mubr.bf16.gmra.mxu0 %v1149
        %v1232 = vpop.f32.mrf.mxu0
        %v1233 = vadd.f32 0.0, %v1232
        %v1234 = vpop.f32.mrf.mxu0
        %v1235 = vpop.f32.mrf.mxu0
        %v1236 = vadd.f32 0.0, %v1235
        %v1237 = vpop.f32.mrf.mxu0
        %1238 = vdwg.mxu0
        %1239 = vset.pattern.permute.xlu0 2
        %1240 = vperm.xlu0 %1239, %v493
        %v1241 = vpop.permute.xlu0 %1240
        %1243 = vset.pattern.permute.xlu0 2
        %1244 = vperm.xlu0 %1243, %v494
        %v1245 = vpop.permute.xlu0 %1244
        %1247 = vset.pattern.permute.xlu0 2
        %1248 = vperm.xlu0 %1247, %v495
        %v1249 = vpop.permute.xlu0 %1248
        %1251 = vset.pattern.permute.xlu0 2
        %1252 = vperm.xlu0 %1251, %v496
        %v1253 = vpop.permute.xlu0 %1252
        %1255 = vset.pattern.permute.xlu0 2
        %1256 = vperm.xlu0 %1255, %v497
        %v1257 = vpop.permute.xlu0 %1256
        %1259 = vset.pattern.permute.xlu0 2
        %1260 = vperm.xlu0 %1259, %v498
        %v1261 = vpop.permute.xlu0 %1260
        %1263 = vset.pattern.permute.xlu0 2
        %1264 = vperm.xlu0 %1263, %v499
        %v1265 = vpop.permute.xlu0 %1264
        %1267 = vset.pattern.permute.xlu0 2
        %1268 = vperm.xlu0 %1267, %v500
        %v1269 = vpop.permute.xlu0 %1268
        %v1271 = vlaneseq
        %v1272 = vshrl.u32 %v1271, 7
        %v1273 = vsub.s32 2, %v1272
        %v1274 = vrot.slane %v492, %v1273
        %v1275 = vadd.f32 %v1241, %v1274
        %v1276 = vadd.f32 %v1245, %v1274
        %v1277 = vadd.f32 %v1249, %v1274
        %v1278 = vadd.f32 %v1253, %v1274
        %v1279 = vadd.f32 %v1257, %v1274
        %v1280 = vadd.f32 %v1261, %v1274
        %v1281 = vadd.f32 %v1265, %v1274
        %v1282 = vadd.f32 %v1269, %v1274
        %v1283 = vmul.f32 %v1275, 0.2
        %v1284 = vmul.f32 %v1276, 0.2
        %v1285 = vmul.f32 %v1277, 0.2
        %v1286 = vmul.f32 %v1278, 0.2
        %v1287 = vmul.f32 %v1279, 0.2
        %v1288 = vmul.f32 %v1280, 0.2
        %v1289 = vmul.f32 %v1281, 0.2
        %v1290 = vmul.f32 %v1282, 0.2
        %v1291 = vmax.f32 %v1275, %v1283
        %v1292 = vmax.f32 %v1276, %v1284
        %v1293 = vmax.f32 %v1277, %v1285
        %v1294 = vmax.f32 %v1278, %v1286
        %v1295 = vmax.f32 %v1279, %v1287
        %v1296 = vmax.f32 %v1280, %v1288
        %v1297 = vmax.f32 %v1281, %v1289
        %v1298 = vmax.f32 %v1282, %v1290
        %v1299 = vadd.f32 %v1291, %v468
        %v1300 = vadd.f32 %v1292, %v469
        %v1301 = vadd.f32 %v1293, %v470
        %v1302 = vadd.f32 %v1294, %v471
        %v1303 = vadd.f32 %v1295, %v472
        %v1304 = vadd.f32 %v1296, %v473
        %v1305 = vadd.f32 %v1297, %v474
        %v1306 = vadd.f32 %v1298, %v475
        %1307 = vmax.xlane.f32.xlu0 %v1299
        %v1308 = vpop.xlane.xlu0 %1307
        %1309 = vmax.xlane.f32.xlu0 %v1300
        %v1310 = vpop.xlane.xlu0 %1309
        %1311 = vmax.xlane.f32.xlu0 %v1301
        %v1312 = vpop.xlane.xlu0 %1311
        %1313 = vmax.xlane.f32.xlu0 %v1302
        %v1314 = vpop.xlane.xlu0 %1313
        %1315 = vmax.xlane.f32.xlu0 %v1303
        %v1316 = vpop.xlane.xlu0 %1315
        %1317 = vmax.xlane.f32.xlu0 %v1304
        %v1318 = vpop.xlane.xlu0 %1317
        %1319 = vmax.xlane.f32.xlu0 %v1305
        %v1320 = vpop.xlane.xlu0 %1319
        %1321 = vmax.xlane.f32.xlu0 %v1306
        %v1322 = vpop.xlane.xlu0 %1321
        %v1323 = vmax.f32 %v501, %v1308
        %v1324 = vmax.f32 %v502, %v1310
        %v1325 = vmax.f32 %v503, %v1312
        %v1326 = vmax.f32 %v504, %v1314
        %v1327 = vmax.f32 %v505, %v1316
        %v1328 = vmax.f32 %v506, %v1318
        %v1329 = vmax.f32 %v507, %v1320
        %v1330 = vmax.f32 %v508, %v1322
        %v1331 = vsub.f32 %v501, %v1323
        %v1332 = vsub.f32 %v502, %v1324
        %v1333 = vsub.f32 %v503, %v1325
        %v1334 = vsub.f32 %v504, %v1326
        %v1335 = vsub.f32 %v505, %v1327
        %v1336 = vsub.f32 %v506, %v1328
        %v1337 = vsub.f32 %v507, %v1329
        %v1338 = vsub.f32 %v508, %v1330
        %v1339 = vmul.f32 %v1331, 1.442695
        %v1340 = vpow.pop %v1339
        %v1341 = vmul.f32 %v1332, 1.442695
        %v1342 = vpow.pop %v1341
        %v1343 = vmul.f32 %v1333, 1.442695
        %v1344 = vpow.pop %v1343
        %v1345 = vmul.f32 %v1334, 1.442695
        %v1346 = vpow.pop %v1345
        %v1347 = vmul.f32 %v1335, 1.442695
        %v1348 = vpow.pop %v1347
        %v1349 = vmul.f32 %v1336, 1.442695
        %v1350 = vpow.pop %v1349
        %v1351 = vmul.f32 %v1337, 1.442695
        %v1352 = vpow.pop %v1351
        %v1353 = vmul.f32 %v1338, 1.442695
        %v1354 = vpow.pop %v1353
        %1356 = vset.pattern.permute.xlu0 2
        %1357 = vperm.xlu0 %1356, %v1323
        %v1358 = vpop.permute.xlu0 %1357
        %1361 = vset.pattern.permute.xlu0 2
        %1362 = vperm.xlu0 %1361, %v1324
        %v1363 = vpop.permute.xlu0 %1362
        %1366 = vset.pattern.permute.xlu0 2
        %1367 = vperm.xlu0 %1366, %v1325
        %v1368 = vpop.permute.xlu0 %1367
        %1371 = vset.pattern.permute.xlu0 2
        %1372 = vperm.xlu0 %1371, %v1326
        %v1373 = vpop.permute.xlu0 %1372
        %1376 = vset.pattern.permute.xlu0 2
        %1377 = vperm.xlu0 %1376, %v1327
        %v1378 = vpop.permute.xlu0 %1377
        %1381 = vset.pattern.permute.xlu0 2
        %1382 = vperm.xlu0 %1381, %v1328
        %v1383 = vpop.permute.xlu0 %1382
        %1386 = vset.pattern.permute.xlu0 2
        %1387 = vperm.xlu0 %1386, %v1329
        %v1388 = vpop.permute.xlu0 %1387
        %1391 = vset.pattern.permute.xlu0 2
        %1392 = vperm.xlu0 %1391, %v1330
        %v1393 = vpop.permute.xlu0 %1392
        %v1395 = vsub.f32 %v1299, %v1358
        %v1396 = vsub.f32 %v1300, %v1363
        %v1397 = vsub.f32 %v1301, %v1368
        %v1398 = vsub.f32 %v1302, %v1373
        %v1399 = vsub.f32 %v1303, %v1378
        %v1400 = vsub.f32 %v1304, %v1383
        %v1401 = vsub.f32 %v1305, %v1388
        %v1402 = vsub.f32 %v1306, %v1393
        %v1403 = vmul.f32 %v1395, 1.442695
        %v1404 = vpow.pop %v1403
        %v1405 = vmul.f32 %v1396, 1.442695
        %v1406 = vpow.pop %v1405
        %v1407 = vmul.f32 %v1397, 1.442695
        %v1408 = vpow.pop %v1407
        %v1409 = vmul.f32 %v1398, 1.442695
        %v1410 = vpow.pop %v1409
        %v1411 = vmul.f32 %v1399, 1.442695
        %v1412 = vpow.pop %v1411
        %v1413 = vmul.f32 %v1400, 1.442695
        %v1414 = vpow.pop %v1413
        %v1415 = vmul.f32 %v1401, 1.442695
        %v1416 = vpow.pop %v1415
        %v1417 = vmul.f32 %v1402, 1.442695
        %v1418 = vpow.pop %v1417
        %v1419 = vmul.f32 %v1340, %v509
        %v1420 = vmul.f32 %v1342, %v510
        %v1421 = vmul.f32 %v1344, %v511
        %v1422 = vmul.f32 %v1346, %v512
        %v1423 = vmul.f32 %v1348, %v513
        %v1424 = vmul.f32 %v1350, %v514
        %v1425 = vmul.f32 %v1352, %v515
        %v1426 = vmul.f32 %v1354, %v516
        %1427 = vadd.xlane.f32.xlu0 %v1404
        %v1428 = vpop.xlane.xlu0 %1427
        %1429 = vadd.xlane.f32.xlu0 %v1406
        %v1430 = vpop.xlane.xlu0 %1429
        %1431 = vadd.xlane.f32.xlu0 %v1408
        %v1432 = vpop.xlane.xlu0 %1431
        %1433 = vadd.xlane.f32.xlu0 %v1410
        %v1434 = vpop.xlane.xlu0 %1433
        %1435 = vadd.xlane.f32.xlu0 %v1412
        %v1436 = vpop.xlane.xlu0 %1435
        %1437 = vadd.xlane.f32.xlu0 %v1414
        %v1438 = vpop.xlane.xlu0 %1437
        %1439 = vadd.xlane.f32.xlu0 %v1416
        %v1440 = vpop.xlane.xlu0 %1439
        %1441 = vadd.xlane.f32.xlu0 %v1418
        %v1442 = vpop.xlane.xlu0 %1441
        %v1443 = vadd.f32 %v1419, %v1428
        %v1444 = vadd.f32 %v1420, %v1430
        %v1445 = vadd.f32 %v1421, %v1432
        %v1446 = vadd.f32 %v1422, %v1434
        %v1447 = vadd.f32 %v1423, %v1436
        %v1448 = vadd.f32 %v1424, %v1438
        %v1449 = vadd.f32 %v1425, %v1440
        %v1450 = vadd.f32 %v1426, %v1442
        %1452 = vset.pattern.permute.xlu0 2
        %1453 = vperm.xlu0 %1452, %v1340
        %v1454 = vpop.permute.xlu0 %1453
        %1457 = vset.pattern.permute.xlu0 2
        %1458 = vperm.xlu0 %1457, %v1342
        %v1459 = vpop.permute.xlu0 %1458
        %1462 = vset.pattern.permute.xlu0 2
        %1463 = vperm.xlu0 %1462, %v1344
        %v1464 = vpop.permute.xlu0 %1463
        %1467 = vset.pattern.permute.xlu0 2
        %1468 = vperm.xlu0 %1467, %v1346
        %v1469 = vpop.permute.xlu0 %1468
        %1472 = vset.pattern.permute.xlu0 2
        %1473 = vperm.xlu0 %1472, %v1348
        %v1474 = vpop.permute.xlu0 %1473
        %1477 = vset.pattern.permute.xlu0 2
        %1478 = vperm.xlu0 %1477, %v1350
        %v1479 = vpop.permute.xlu0 %1478
        %1482 = vset.pattern.permute.xlu0 2
        %1483 = vperm.xlu0 %1482, %v1352
        %v1484 = vpop.permute.xlu0 %1483
        %1487 = vset.pattern.permute.xlu0 2
        %1488 = vperm.xlu0 %1487, %v1354
        %v1489 = vpop.permute.xlu0 %1488
        %v1491 = vpack.c.bf16 %v1406, %v1404
        %v1492 = vpack.c.bf16 %v1410, %v1408
        %v1493 = vpack.c.bf16 %v1414, %v1412
        %v1494 = vpack.c.bf16 %v1418, %v1416
        %1495 = vrot.lane.b32.xlu0 %v813, 64
        %v1496 = vpop.permute.xlu0 %1495
        %1497 = vrot.lane.b32.xlu0 %v814, 64
        %v1498 = vpop.permute.xlu0 %1497
        %1499 = vrot.lane.b32.xlu0 %v815, 64
        %v1500 = vpop.permute.xlu0 %1499
        %1501 = vrot.lane.b32.xlu0 %v816, 64
        %v1502 = vpop.permute.xlu0 %1501
        %1503 = vrot.lane.b32.xlu0 %v817, 64
        %v1504 = vpop.permute.xlu0 %1503
        %1505 = vrot.lane.b32.xlu0 %v818, 64
        %v1506 = vpop.permute.xlu0 %1505
        %1507 = vrot.lane.b32.xlu0 %v819, 64
        %v1508 = vpop.permute.xlu0 %1507
        %1509 = vrot.lane.b32.xlu0 %v820, 64
        %v1510 = vpop.permute.xlu0 %1509
        %1519 = vmatprep.subr.bf16.mxu0 0
        %1520 = vmatpush1.bf16.msra.mxu0 %v1510
        %1521 = vmatprep.subr.bf16.mxu0 0
        %1522 = vmatpush1.bf16.msra.mxu0 %v1508
        %1523 = vmatprep.subr.bf16.mxu0 0
        %1524 = vmatpush1.bf16.msra.mxu0 %v1506
        %1525 = vmatprep.subr.bf16.mxu0 0
        %1526 = vmatpush1.bf16.msra.mxu0 %v1504
        %1527 = vmatprep.subr.bf16.mxu0 0
        %1528 = vmatpush1.bf16.msra.mxu0 %v1502
        %1529 = vmatprep.subr.bf16.mxu0 0
        %1530 = vmatpush1.bf16.msra.mxu0 %v1500
        %1531 = vmatprep.subr.bf16.mxu0 0
        %1532 = vmatpush1.bf16.msra.mxu0 %v1498
        %1533 = vmatprep.subr.bf16.mxu0 0
        %1534 = vmatpush1.bf16.msra.mxu0 %v1496
        %1535 = vmatprep.subr.bf16.mxu0 0
        %1536 = vmatpush2.bf16.msra.mxu0 0
        %1537 = vmatprep.subr.bf16.mxu0 0
        %1538 = vmatpush2.bf16.msra.mxu0 0
        %1539 = vmatprep.subr.bf16.mxu0 0
        %1540 = vmatpush2.bf16.msra.mxu0 0
        %1541 = vmatprep.subr.bf16.mxu0 0
        %1542 = vmatpush2.bf16.msra.mxu0 0
        %1543 = vmatprep.subr.bf16.mxu0 0
        %1544 = vmatpush2.bf16.msra.mxu0 0
        %1545 = vmatprep.subr.bf16.mxu0 0
        %1546 = vmatpush2.bf16.msra.mxu0 0
        %1547 = vmatprep.subr.bf16.mxu0 0
        %1548 = vmatpush2.bf16.msra.mxu0 0
        %1549 = vmatprep.subr.bf16.mxu0 0
        %1550 = vmatpush2.bf16.msra.mxu0 0
        %1551 = vmatprep.mubr.bf16.mxu0 0
        %1552 = vmatmul.mubr.bf16.gmra.mxu0 %v1491
        %v1553 = vpop.f32.mrf.mxu0
        %v1554 = vadd.f32 0.0, %v1553
        %v1555 = vpop.f32.mrf.mxu0
        %v1556 = vpop.f32.mrf.mxu0
        %v1557 = vadd.f32 0.0, %v1556
        %v1558 = vpop.f32.mrf.mxu0
        %1559 = vmatprep.mubr.bf16.mxu0 0
        %1560 = vmatmul.mubr.bf16.gmra.mxu0 %v1492
        %v1561 = vpop.f32.mrf.mxu0
        %v1562 = vadd.f32 0.0, %v1561
        %v1563 = vpop.f32.mrf.mxu0
        %v1564 = vpop.f32.mrf.mxu0
        %v1565 = vadd.f32 0.0, %v1564
        %v1566 = vpop.f32.mrf.mxu0
        %1567 = vmatprep.mubr.bf16.mxu0 0
        %1568 = vmatmul.mubr.bf16.gmra.mxu0 %v1493
        %v1569 = vpop.f32.mrf.mxu0
        %v1570 = vadd.f32 0.0, %v1569
        %v1571 = vpop.f32.mrf.mxu0
        %v1572 = vpop.f32.mrf.mxu0
        %v1573 = vadd.f32 0.0, %v1572
        %v1574 = vpop.f32.mrf.mxu0
        %1575 = vmatprep.mubr.bf16.mxu0 0
        %1576 = vmatmul.mubr.bf16.gmra.mxu0 %v1494
        %v1577 = vpop.f32.mrf.mxu0
        %v1578 = vadd.f32 0.0, %v1577
        %v1579 = vpop.f32.mrf.mxu0
        %v1580 = vpop.f32.mrf.mxu0
        %v1581 = vadd.f32 0.0, %v1580
        %v1582 = vpop.f32.mrf.mxu0
        %1583 = vdwg.mxu0
        %1584 = vset.pattern.permute.xlu0 3
        %1585 = vperm.xlu0 %1584, %v493
        %v1586 = vpop.permute.xlu0 %1585
        %1588 = vset.pattern.permute.xlu0 3
        %1589 = vperm.xlu0 %1588, %v494
        %v1590 = vpop.permute.xlu0 %1589
        %1592 = vset.pattern.permute.xlu0 3
        %1593 = vperm.xlu0 %1592, %v495
        %v1594 = vpop.permute.xlu0 %1593
        %1596 = vset.pattern.permute.xlu0 3
        %1597 = vperm.xlu0 %1596, %v496
        %v1598 = vpop.permute.xlu0 %1597
        %1600 = vset.pattern.permute.xlu0 3
        %1601 = vperm.xlu0 %1600, %v497
        %v1602 = vpop.permute.xlu0 %1601
        %1604 = vset.pattern.permute.xlu0 3
        %1605 = vperm.xlu0 %1604, %v498
        %v1606 = vpop.permute.xlu0 %1605
        %1608 = vset.pattern.permute.xlu0 3
        %1609 = vperm.xlu0 %1608, %v499
        %v1610 = vpop.permute.xlu0 %1609
        %1612 = vset.pattern.permute.xlu0 3
        %1613 = vperm.xlu0 %1612, %v500
        %v1614 = vpop.permute.xlu0 %1613
        %v1616 = vlaneseq
        %v1617 = vshrl.u32 %v1616, 7
        %v1618 = vsub.s32 3, %v1617
        %v1619 = vrot.slane %v492, %v1618
        %v1620 = vadd.f32 %v1586, %v1619
        %v1621 = vadd.f32 %v1590, %v1619
        %v1622 = vadd.f32 %v1594, %v1619
        %v1623 = vadd.f32 %v1598, %v1619
        %v1624 = vadd.f32 %v1602, %v1619
        %v1625 = vadd.f32 %v1606, %v1619
        %v1626 = vadd.f32 %v1610, %v1619
        %v1627 = vadd.f32 %v1614, %v1619
        %v1628 = vmul.f32 %v1620, 0.2
        %v1629 = vmul.f32 %v1621, 0.2
        %v1630 = vmul.f32 %v1622, 0.2
        %v1631 = vmul.f32 %v1623, 0.2
        %v1632 = vmul.f32 %v1624, 0.2
        %v1633 = vmul.f32 %v1625, 0.2
        %v1634 = vmul.f32 %v1626, 0.2
        %v1635 = vmul.f32 %v1627, 0.2
        %v1636 = vmax.f32 %v1620, %v1628
        %v1637 = vmax.f32 %v1621, %v1629
        %v1638 = vmax.f32 %v1622, %v1630
        %v1639 = vmax.f32 %v1623, %v1631
        %v1640 = vmax.f32 %v1624, %v1632
        %v1641 = vmax.f32 %v1625, %v1633
        %v1642 = vmax.f32 %v1626, %v1634
        %v1643 = vmax.f32 %v1627, %v1635
        %v1644 = vadd.f32 %v1636, %v468
        %v1645 = vadd.f32 %v1637, %v469
        %v1646 = vadd.f32 %v1638, %v470
        %v1647 = vadd.f32 %v1639, %v471
        %v1648 = vadd.f32 %v1640, %v472
        %v1649 = vadd.f32 %v1641, %v473
        %v1650 = vadd.f32 %v1642, %v474
        %v1651 = vadd.f32 %v1643, %v475
        %1652 = vmax.xlane.f32.xlu0 %v1644
        %v1653 = vpop.xlane.xlu0 %1652
        %1654 = vmax.xlane.f32.xlu0 %v1645
        %v1655 = vpop.xlane.xlu0 %1654
        %1656 = vmax.xlane.f32.xlu0 %v1646
        %v1657 = vpop.xlane.xlu0 %1656
        %1658 = vmax.xlane.f32.xlu0 %v1647
        %v1659 = vpop.xlane.xlu0 %1658
        %1660 = vmax.xlane.f32.xlu0 %v1648
        %v1661 = vpop.xlane.xlu0 %1660
        %1662 = vmax.xlane.f32.xlu0 %v1649
        %v1663 = vpop.xlane.xlu0 %1662
        %1664 = vmax.xlane.f32.xlu0 %v1650
        %v1665 = vpop.xlane.xlu0 %1664
        %1666 = vmax.xlane.f32.xlu0 %v1651
        %v1667 = vpop.xlane.xlu0 %1666
        %v1668 = vmax.f32 %v501, %v1653
        %v1669 = vmax.f32 %v502, %v1655
        %v1670 = vmax.f32 %v503, %v1657
        %v1671 = vmax.f32 %v504, %v1659
        %v1672 = vmax.f32 %v505, %v1661
        %v1673 = vmax.f32 %v506, %v1663
        %v1674 = vmax.f32 %v507, %v1665
        %v1675 = vmax.f32 %v508, %v1667
        %v1676 = vsub.f32 %v501, %v1668
        %v1677 = vsub.f32 %v502, %v1669
        %v1678 = vsub.f32 %v503, %v1670
        %v1679 = vsub.f32 %v504, %v1671
        %v1680 = vsub.f32 %v505, %v1672
        %v1681 = vsub.f32 %v506, %v1673
        %v1682 = vsub.f32 %v507, %v1674
        %v1683 = vsub.f32 %v508, %v1675
        %v1684 = vmul.f32 %v1676, 1.442695
        %v1685 = vpow.pop %v1684
        %v1686 = vmul.f32 %v1677, 1.442695
        %v1687 = vpow.pop %v1686
        %v1688 = vmul.f32 %v1678, 1.442695
        %v1689 = vpow.pop %v1688
        %v1690 = vmul.f32 %v1679, 1.442695
        %v1691 = vpow.pop %v1690
        %v1692 = vmul.f32 %v1680, 1.442695
        %v1693 = vpow.pop %v1692
        %v1694 = vmul.f32 %v1681, 1.442695
        %v1695 = vpow.pop %v1694
        %v1696 = vmul.f32 %v1682, 1.442695
        %v1697 = vpow.pop %v1696
        %v1698 = vmul.f32 %v1683, 1.442695
        %v1699 = vpow.pop %v1698
        %1701 = vset.pattern.permute.xlu0 3
        %1702 = vperm.xlu0 %1701, %v1668
        %v1703 = vpop.permute.xlu0 %1702
        %1706 = vset.pattern.permute.xlu0 3
        %1707 = vperm.xlu0 %1706, %v1669
        %v1708 = vpop.permute.xlu0 %1707
        %1711 = vset.pattern.permute.xlu0 3
        %1712 = vperm.xlu0 %1711, %v1670
        %v1713 = vpop.permute.xlu0 %1712
        %1716 = vset.pattern.permute.xlu0 3
        %1717 = vperm.xlu0 %1716, %v1671
        %v1718 = vpop.permute.xlu0 %1717
        %1721 = vset.pattern.permute.xlu0 3
        %1722 = vperm.xlu0 %1721, %v1672
        %v1723 = vpop.permute.xlu0 %1722
        %1726 = vset.pattern.permute.xlu0 3
        %1727 = vperm.xlu0 %1726, %v1673
        %v1728 = vpop.permute.xlu0 %1727
        %1731 = vset.pattern.permute.xlu0 3
        %1732 = vperm.xlu0 %1731, %v1674
        %v1733 = vpop.permute.xlu0 %1732
        %1736 = vset.pattern.permute.xlu0 3
        %1737 = vperm.xlu0 %1736, %v1675
        %v1738 = vpop.permute.xlu0 %1737
        %v1740 = vsub.f32 %v1644, %v1703
        %v1741 = vsub.f32 %v1645, %v1708
        %v1742 = vsub.f32 %v1646, %v1713
        %v1743 = vsub.f32 %v1647, %v1718
        %v1744 = vsub.f32 %v1648, %v1723
        %v1745 = vsub.f32 %v1649, %v1728
        %v1746 = vsub.f32 %v1650, %v1733
        %v1747 = vsub.f32 %v1651, %v1738
        %v1748 = vmul.f32 %v1740, 1.442695
        %v1749 = vpow.pop %v1748
        %v1750 = vmul.f32 %v1741, 1.442695
        %v1751 = vpow.pop %v1750
        %v1752 = vmul.f32 %v1742, 1.442695
        %v1753 = vpow.pop %v1752
        %v1754 = vmul.f32 %v1743, 1.442695
        %v1755 = vpow.pop %v1754
        %v1756 = vmul.f32 %v1744, 1.442695
        %v1757 = vpow.pop %v1756
        %v1758 = vmul.f32 %v1745, 1.442695
        %v1759 = vpow.pop %v1758
        %v1760 = vmul.f32 %v1746, 1.442695
        %v1761 = vpow.pop %v1760
        %v1762 = vmul.f32 %v1747, 1.442695
        %v1763 = vpow.pop %v1762
        %v1764 = vmul.f32 %v1685, %v509
        %v1765 = vmul.f32 %v1687, %v510
        %v1766 = vmul.f32 %v1689, %v511
        %v1767 = vmul.f32 %v1691, %v512
        %v1768 = vmul.f32 %v1693, %v513
        %v1769 = vmul.f32 %v1695, %v514
        %v1770 = vmul.f32 %v1697, %v515
        %v1771 = vmul.f32 %v1699, %v516
        %1772 = vadd.xlane.f32.xlu0 %v1749
        %v1773 = vpop.xlane.xlu0 %1772
        %1774 = vadd.xlane.f32.xlu0 %v1751
        %v1775 = vpop.xlane.xlu0 %1774
        %1776 = vadd.xlane.f32.xlu0 %v1753
        %v1777 = vpop.xlane.xlu0 %1776
        %1778 = vadd.xlane.f32.xlu0 %v1755
        %v1779 = vpop.xlane.xlu0 %1778
        %1780 = vadd.xlane.f32.xlu0 %v1757
        %v1781 = vpop.xlane.xlu0 %1780
        %1782 = vadd.xlane.f32.xlu0 %v1759
        %v1783 = vpop.xlane.xlu0 %1782
        %1784 = vadd.xlane.f32.xlu0 %v1761
        %v1785 = vpop.xlane.xlu0 %1784
        %1786 = vadd.xlane.f32.xlu0 %v1763
        %v1787 = vpop.xlane.xlu0 %1786
        %v1788 = vadd.f32 %v1764, %v1773
        %v1789 = vadd.f32 %v1765, %v1775
        %v1790 = vadd.f32 %v1766, %v1777
        %v1791 = vadd.f32 %v1767, %v1779
        %v1792 = vadd.f32 %v1768, %v1781
        %v1793 = vadd.f32 %v1769, %v1783
        %v1794 = vadd.f32 %v1770, %v1785
        %v1795 = vadd.f32 %v1771, %v1787
        %1797 = vset.pattern.permute.xlu0 3
        %1798 = vperm.xlu0 %1797, %v1685
        %v1799 = vpop.permute.xlu0 %1798
        %1802 = vset.pattern.permute.xlu0 3
        %1803 = vperm.xlu0 %1802, %v1687
        %v1804 = vpop.permute.xlu0 %1803
        %1807 = vset.pattern.permute.xlu0 3
        %1808 = vperm.xlu0 %1807, %v1689
        %v1809 = vpop.permute.xlu0 %1808
        %1812 = vset.pattern.permute.xlu0 3
        %1813 = vperm.xlu0 %1812, %v1691
        %v1814 = vpop.permute.xlu0 %1813
        %1817 = vset.pattern.permute.xlu0 3
        %1818 = vperm.xlu0 %1817, %v1693
        %v1819 = vpop.permute.xlu0 %1818
        %1822 = vset.pattern.permute.xlu0 3
        %1823 = vperm.xlu0 %1822, %v1695
        %v1824 = vpop.permute.xlu0 %1823
        %1827 = vset.pattern.permute.xlu0 3
        %1828 = vperm.xlu0 %1827, %v1697
        %v1829 = vpop.permute.xlu0 %1828
        %1832 = vset.pattern.permute.xlu0 3
        %1833 = vperm.xlu0 %1832, %v1699
        %v1834 = vpop.permute.xlu0 %1833
        %v1836 = vpack.c.bf16 %v1751, %v1749
        %v1837 = vpack.c.bf16 %v1755, %v1753
        %v1838 = vpack.c.bf16 %v1759, %v1757
        %v1839 = vpack.c.bf16 %v1763, %v1761
        %1840 = vrot.lane.b32.xlu0 %v813, 32
        %v1841 = vpop.permute.xlu0 %1840
        %1842 = vrot.lane.b32.xlu0 %v814, 32
        %v1843 = vpop.permute.xlu0 %1842
        %1844 = vrot.lane.b32.xlu0 %v815, 32
        %v1845 = vpop.permute.xlu0 %1844
        %1846 = vrot.lane.b32.xlu0 %v816, 32
        %v1847 = vpop.permute.xlu0 %1846
        %1848 = vrot.lane.b32.xlu0 %v817, 32
        %v1849 = vpop.permute.xlu0 %1848
        %1850 = vrot.lane.b32.xlu0 %v818, 32
        %v1851 = vpop.permute.xlu0 %1850
        %1852 = vrot.lane.b32.xlu0 %v819, 32
        %v1853 = vpop.permute.xlu0 %1852
        %1854 = vrot.lane.b32.xlu0 %v820, 32
        %v1855 = vpop.permute.xlu0 %1854
        %1864 = vmatprep.subr.bf16.mxu0 0
        %1865 = vmatpush1.bf16.msra.mxu0 %v1855
        %1866 = vmatprep.subr.bf16.mxu0 0
        %1867 = vmatpush1.bf16.msra.mxu0 %v1853
        %1868 = vmatprep.subr.bf16.mxu0 0
        %1869 = vmatpush1.bf16.msra.mxu0 %v1851
        %1870 = vmatprep.subr.bf16.mxu0 0
        %1871 = vmatpush1.bf16.msra.mxu0 %v1849
        %1872 = vmatprep.subr.bf16.mxu0 0
        %1873 = vmatpush1.bf16.msra.mxu0 %v1847
        %1874 = vmatprep.subr.bf16.mxu0 0
        %1875 = vmatpush1.bf16.msra.mxu0 %v1845
        %1876 = vmatprep.subr.bf16.mxu0 0
        %1877 = vmatpush1.bf16.msra.mxu0 %v1843
        %1878 = vmatprep.subr.bf16.mxu0 0
        %1879 = vmatpush1.bf16.msra.mxu0 %v1841
        %1880 = vmatprep.subr.bf16.mxu0 0
        %1881 = vmatpush2.bf16.msra.mxu0 0
        %1882 = vmatprep.subr.bf16.mxu0 0
        %1883 = vmatpush2.bf16.msra.mxu0 0
        %1884 = vmatprep.subr.bf16.mxu0 0
        %1885 = vmatpush2.bf16.msra.mxu0 0
        %1886 = vmatprep.subr.bf16.mxu0 0
        %1887 = vmatpush2.bf16.msra.mxu0 0
        %1888 = vmatprep.subr.bf16.mxu0 0
        %1889 = vmatpush2.bf16.msra.mxu0 0
        %1890 = vmatprep.subr.bf16.mxu0 0
        %1891 = vmatpush2.bf16.msra.mxu0 0
        %1892 = vmatprep.subr.bf16.mxu0 0
        %1893 = vmatpush2.bf16.msra.mxu0 0
        %1894 = vmatprep.subr.bf16.mxu0 0
        %1895 = vmatpush2.bf16.msra.mxu0 0
        %1896 = vmatprep.mubr.bf16.mxu0 0
        %1897 = vmatmul.mubr.bf16.gmra.mxu0 %v1836
        %v1898 = vpop.f32.mrf.mxu0
        %v1899 = vadd.f32 0.0, %v1898
        %v1900 = vpop.f32.mrf.mxu0
        %v1901 = vpop.f32.mrf.mxu0
        %v1902 = vadd.f32 0.0, %v1901
        %v1903 = vpop.f32.mrf.mxu0
        %1904 = vmatprep.mubr.bf16.mxu0 0
        %1905 = vmatmul.mubr.bf16.gmra.mxu0 %v1837
        %v1906 = vpop.f32.mrf.mxu0
        %v1907 = vadd.f32 0.0, %v1906
        %v1908 = vpop.f32.mrf.mxu0
        %v1909 = vpop.f32.mrf.mxu0
        %v1910 = vadd.f32 0.0, %v1909
        %v1911 = vpop.f32.mrf.mxu0
        %1912 = vmatprep.mubr.bf16.mxu0 0
        %1913 = vmatmul.mubr.bf16.gmra.mxu0 %v1838
        %v1914 = vpop.f32.mrf.mxu0
        %v1915 = vadd.f32 0.0, %v1914
        %v1916 = vpop.f32.mrf.mxu0
        %v1917 = vpop.f32.mrf.mxu0
        %v1918 = vadd.f32 0.0, %v1917
        %v1919 = vpop.f32.mrf.mxu0
        %1920 = vmatprep.mubr.bf16.mxu0 0
        %1921 = vmatmul.mubr.bf16.gmra.mxu0 %v1839
        %v1922 = vpop.f32.mrf.mxu0
        %v1923 = vadd.f32 0.0, %v1922
        %v1924 = vpop.f32.mrf.mxu0
        %v1925 = vpop.f32.mrf.mxu0
        %v1926 = vadd.f32 0.0, %v1925
        %v1927 = vpop.f32.mrf.mxu0
        %1928 = vdwg.mxu0
        %vm1929 = vcmask 7168
        %v1930 = vsel %vm1929, %v609, %v978
        %v1931 = vsel %vm1929, %v610, %v979
        %v1932 = vsel %vm1929, %v611, %v980
        %v1933 = vsel %vm1929, %v612, %v981
        %v1934 = vsel %vm1929, %v613, %v982
        %v1935 = vsel %vm1929, %v614, %v983
        %v1936 = vsel %vm1929, %v615, %v984
        %v1937 = vsel %vm1929, %v616, %v985
        %vm1938 = vcmask 15360
        %v1939 = vsel %vm1938, %v1930, %v1323
        %v1940 = vsel %vm1938, %v1931, %v1324
        %v1941 = vsel %vm1938, %v1932, %v1325
        %v1942 = vsel %vm1938, %v1933, %v1326
        %v1943 = vsel %vm1938, %v1934, %v1327
        %v1944 = vsel %vm1938, %v1935, %v1328
        %v1945 = vsel %vm1938, %v1936, %v1329
        %v1946 = vsel %vm1938, %v1937, %v1330
        %vm1947 = vcmask 23552
        %v1948 = vsel %vm1947, %v1939, %v1668
        %v1949 = vsel %vm1947, %v1940, %v1669
        %v1950 = vsel %vm1947, %v1941, %v1670
        %v1951 = vsel %vm1947, %v1942, %v1671
        %v1952 = vsel %vm1947, %v1943, %v1672
        %v1953 = vsel %vm1947, %v1944, %v1673
        %v1954 = vsel %vm1947, %v1945, %v1674
        %v1955 = vsel %vm1947, %v1946, %v1675
        %vm1956 = vcmask 31744
        %1957 = vst.msk [vmem:[#allocation2] sm:$0xff] %vm1956, %v1948
        %1958 = vst.msk [vmem:[#allocation2 + $0x8] sm:$0xff] %vm1956, %v1949
        %1959 = vst.msk [vmem:[#allocation2 + $0x10] sm:$0xff] %vm1956, %v1950
        %1960 = vst.msk [vmem:[#allocation2 + $0x18] sm:$0xff] %vm1956, %v1951
        %1961 = vst.msk [vmem:[#allocation2 + $0x20] sm:$0xff] %vm1956, %v1952
        %1962 = vst.msk [vmem:[#allocation2 + $0x28] sm:$0xff] %vm1956, %v1953
        %1963 = vst.msk [vmem:[#allocation2 + $0x30] sm:$0xff] %vm1956, %v1954
        %1964 = vst.msk [vmem:[#allocation2 + $0x38] sm:$0xff] %vm1956, %v1955
        %v1965 = vsel %vm1929, %v729, %v1098
        %v1966 = vsel %vm1929, %v730, %v1099
        %v1967 = vsel %vm1929, %v731, %v1100
        %v1968 = vsel %vm1929, %v732, %v1101
        %v1969 = vsel %vm1929, %v733, %v1102
        %v1970 = vsel %vm1929, %v734, %v1103
        %v1971 = vsel %vm1929, %v735, %v1104
        %v1972 = vsel %vm1929, %v736, %v1105
        %v1973 = vsel %vm1938, %v1965, %v1443
        %v1974 = vsel %vm1938, %v1966, %v1444
        %v1975 = vsel %vm1938, %v1967, %v1445
        %v1976 = vsel %vm1938, %v1968, %v1446
        %v1977 = vsel %vm1938, %v1969, %v1447
        %v1978 = vsel %vm1938, %v1970, %v1448
        %v1979 = vsel %vm1938, %v1971, %v1449
        %v1980 = vsel %vm1938, %v1972, %v1450
        %v1981 = vsel %vm1947, %v1973, %v1788
        %v1982 = vsel %vm1947, %v1974, %v1789
        %v1983 = vsel %vm1947, %v1975, %v1790
        %v1984 = vsel %vm1947, %v1976, %v1791
        %v1985 = vsel %vm1947, %v1977, %v1792
        %v1986 = vsel %vm1947, %v1978, %v1793
        %v1987 = vsel %vm1947, %v1979, %v1794
        %v1988 = vsel %vm1947, %v1980, %v1795
        %1989 = vst.msk [vmem:[#allocation3] sm:$0xff] %vm1956, %v1981
        %1990 = vst.msk [vmem:[#allocation3 + $0x8] sm:$0xff] %vm1956, %v1982
        %1991 = vst.msk [vmem:[#allocation3 + $0x10] sm:$0xff] %vm1956, %v1983
        %1992 = vst.msk [vmem:[#allocation3 + $0x18] sm:$0xff] %vm1956, %v1984
        %1993 = vst.msk [vmem:[#allocation3 + $0x20] sm:$0xff] %vm1956, %v1985
        %1994 = vst.msk [vmem:[#allocation3 + $0x28] sm:$0xff] %vm1956, %v1986
        %1995 = vst.msk [vmem:[#allocation3 + $0x30] sm:$0xff] %vm1956, %v1987
        %1996 = vst.msk [vmem:[#allocation3 + $0x38] sm:$0xff] %vm1956, %v1988
        %vm1997 = vcmask 261120
        %v1998 = vsel %vm1997, %v740, %v1109
        %v1999 = vsel %vm1997, %v745, %v1114
        %v2000 = vsel %vm1997, %v750, %v1119
        %v2001 = vsel %vm1997, %v755, %v1124
        %v2002 = vsel %vm1997, %v760, %v1129
        %v2003 = vsel %vm1997, %v765, %v1134
        %v2004 = vsel %vm1997, %v770, %v1139
        %v2005 = vsel %vm1997, %v775, %v1144
        %vm2006 = vcmask 523264
        %v2007 = vsel %vm2006, %v1998, %v1454
        %v2008 = vsel %vm2006, %v1999, %v1459
        %v2009 = vsel %vm2006, %v2000, %v1464
        %v2010 = vsel %vm2006, %v2001, %v1469
        %v2011 = vsel %vm2006, %v2002, %v1474
        %v2012 = vsel %vm2006, %v2003, %v1479
        %v2013 = vsel %vm2006, %v2004, %v1484
        %v2014 = vsel %vm2006, %v2005, %v1489
        %vm2015 = vcmask 785408
        %v2016 = vsel %vm2015, %v2007, %v1799
        %v2017 = vsel %vm2015, %v2008, %v1804
        %v2018 = vsel %vm2015, %v2009, %v1809
        %v2019 = vsel %vm2015, %v2010, %v1814
        %v2020 = vsel %vm2015, %v2011, %v1819
        %v2021 = vsel %vm2015, %v2012, %v1824
        %v2022 = vsel %vm2015, %v2013, %v1829
        %v2023 = vsel %vm2015, %v2014, %v1834
        %v2024 = vld [vmem:[#allocation4] sm:$0xff]
        %v2025 = vld [vmem:[#allocation4 + $0x8] sm:$0xff]
        %v2026 = vld [vmem:[#allocation4 + $0x10] sm:$0xff]
        %v2027 = vld [vmem:[#allocation4 + $0x18] sm:$0xff]
        %v2028 = vld [vmem:[#allocation4 + $0x20] sm:$0xff]
        %v2029 = vld [vmem:[#allocation4 + $0x28] sm:$0xff]
        %v2030 = vld [vmem:[#allocation4 + $0x30] sm:$0xff]
        %v2031 = vld [vmem:[#allocation4 + $0x38] sm:$0xff]
        %v2032 = vmul.f32 %v2016, %v2024
        %v2033 = vmul.f32 %v2017, %v2025
        %v2034 = vmul.f32 %v2018, %v2026
        %v2035 = vmul.f32 %v2019, %v2027
        %v2036 = vmul.f32 %v2020, %v2028
        %v2037 = vmul.f32 %v2021, %v2029
        %v2038 = vmul.f32 %v2022, %v2030
        %v2039 = vmul.f32 %v2023, %v2031
        %2048 = vrot.lane.b32.xlu0 %v1209, 32
        %v2049 = vpop.permute.xlu0 %2048
        %2050 = vrot.lane.b32.xlu0 %v1212, 32
        %v2051 = vpop.permute.xlu0 %2050
        %2052 = vrot.lane.b32.xlu0 %v1217, 32
        %v2053 = vpop.permute.xlu0 %2052
        %2054 = vrot.lane.b32.xlu0 %v1220, 32
        %v2055 = vpop.permute.xlu0 %2054
        %2056 = vrot.lane.b32.xlu0 %v1225, 32
        %v2057 = vpop.permute.xlu0 %2056
        %2058 = vrot.lane.b32.xlu0 %v1228, 32
        %v2059 = vpop.permute.xlu0 %2058
        %2060 = vrot.lane.b32.xlu0 %v1233, 32
        %v2061 = vpop.permute.xlu0 %2060
        %2062 = vrot.lane.b32.xlu0 %v1236, 32
        %v2063 = vpop.permute.xlu0 %2062
        %2080 = vrot.lane.b32.xlu0 %v1554, 64
        %v2081 = vpop.permute.xlu0 %2080
        %2082 = vrot.lane.b32.xlu0 %v1557, 64
        %v2083 = vpop.permute.xlu0 %2082
        %2084 = vrot.lane.b32.xlu0 %v1562, 64
        %v2085 = vpop.permute.xlu0 %2084
        %2086 = vrot.lane.b32.xlu0 %v1565, 64
        %v2087 = vpop.permute.xlu0 %2086
        %2088 = vrot.lane.b32.xlu0 %v1570, 64
        %v2089 = vpop.permute.xlu0 %2088
        %2090 = vrot.lane.b32.xlu0 %v1573, 64
        %v2091 = vpop.permute.xlu0 %2090
        %2092 = vrot.lane.b32.xlu0 %v1578, 64
        %v2093 = vpop.permute.xlu0 %2092
        %2094 = vrot.lane.b32.xlu0 %v1581, 64
        %v2095 = vpop.permute.xlu0 %2094
        %2112 = vrot.lane.b32.xlu0 %v1899, 96
        %v2113 = vpop.permute.xlu0 %2112
        %2114 = vrot.lane.b32.xlu0 %v1902, 96
        %v2115 = vpop.permute.xlu0 %2114
        %2116 = vrot.lane.b32.xlu0 %v1907, 96
        %v2117 = vpop.permute.xlu0 %2116
        %2118 = vrot.lane.b32.xlu0 %v1910, 96
        %v2119 = vpop.permute.xlu0 %2118
        %2120 = vrot.lane.b32.xlu0 %v1915, 96
        %v2121 = vpop.permute.xlu0 %2120
        %2122 = vrot.lane.b32.xlu0 %v1918, 96
        %v2123 = vpop.permute.xlu0 %2122
        %2124 = vrot.lane.b32.xlu0 %v1923, 96
        %v2125 = vpop.permute.xlu0 %2124
        %2126 = vrot.lane.b32.xlu0 %v1926, 96
        %v2127 = vpop.permute.xlu0 %2126
        %v2136 = vsel %vm1997, %v864, %v2049
        %v2137 = vsel %vm1997, %v867, %v2051
        %v2138 = vsel %vm1997, %v872, %v2053
        %v2139 = vsel %vm1997, %v875, %v2055
        %v2140 = vsel %vm1997, %v880, %v2057
        %v2141 = vsel %vm1997, %v883, %v2059
        %v2142 = vsel %vm1997, %v888, %v2061
        %v2143 = vsel %vm1997, %v891, %v2063
        %v2144 = vsel %vm2006, %v2136, %v2081
        %v2145 = vsel %vm2006, %v2137, %v2083
        %v2146 = vsel %vm2006, %v2138, %v2085
        %v2147 = vsel %vm2006, %v2139, %v2087
        %v2148 = vsel %vm2006, %v2140, %v2089
        %v2149 = vsel %vm2006, %v2141, %v2091
        %v2150 = vsel %vm2006, %v2142, %v2093
        %v2151 = vsel %vm2006, %v2143, %v2095
        %v2152 = vsel %vm2015, %v2144, %v2113
        %v2153 = vsel %vm2015, %v2145, %v2115
        %v2154 = vsel %vm2015, %v2146, %v2117
        %v2155 = vsel %vm2015, %v2147, %v2119
        %v2156 = vsel %vm2015, %v2148, %v2121
        %v2157 = vsel %vm2015, %v2149, %v2123
        %v2158 = vsel %vm2015, %v2150, %v2125
        %v2159 = vsel %vm2015, %v2151, %v2127
        %v2160 = vadd.f32 %v2032, %v2152
        %v2161 = vadd.f32 %v2033, %v2153
        %v2162 = vadd.f32 %v2034, %v2154
        %v2163 = vadd.f32 %v2035, %v2155
        %v2164 = vadd.f32 %v2036, %v2156
        %v2165 = vadd.f32 %v2037, %v2157
        %v2166 = vadd.f32 %v2038, %v2158
        %v2167 = vadd.f32 %v2039, %v2159
        %2168 = vst [vmem:[#allocation4] sm:$0xff] %v2160
        %2169 = vst [vmem:[#allocation4 + $0x8] sm:$0xff] %v2161
        %2170 = vst [vmem:[#allocation4 + $0x10] sm:$0xff] %v2162
        %2171 = vst [vmem:[#allocation4 + $0x18] sm:$0xff] %v2163
        %2172 = vst [vmem:[#allocation4 + $0x20] sm:$0xff] %v2164
        %2173 = vst [vmem:[#allocation4 + $0x28] sm:$0xff] %v2165
        %2174 = vst [vmem:[#allocation4 + $0x30] sm:$0xff] %v2166
        %2175 = vst [vmem:[#allocation4 + $0x38] sm:$0xff] %v2167
        %p2176 = scmp.eq.s32.totalorder %s23, 1
        // Predicated region
        $region94: #{gat_forward.7} parent=84 // pred_check
          %p2177 = pneg %p2176
        $region95: #{gat_forward.7} parent=84 // pred_check_branch
          %2179 = sbr.rel (%p2177) target = $region97
        $region96: #{gat_forward.7} parent=84 // pred_region
          %v2180 = vld [vmem:[#allocation3] sm:$0xff]
          %v2181 = vld [vmem:[#allocation3 + $0x8] sm:$0xff]
          %v2182 = vld [vmem:[#allocation3 + $0x10] sm:$0xff]
          %v2183 = vld [vmem:[#allocation3 + $0x18] sm:$0xff]
          %v2184 = vld [vmem:[#allocation3 + $0x20] sm:$0xff]
          %v2185 = vld [vmem:[#allocation3 + $0x28] sm:$0xff]
          %v2186 = vld [vmem:[#allocation3 + $0x30] sm:$0xff]
          %v2187 = vld [vmem:[#allocation3 + $0x38] sm:$0xff]
          %v2188 = vmax.f32 %v2180, 1e-37
          %v2189 = vmax.f32 %v2181, 1e-37
          %v2190 = vmax.f32 %v2182, 1e-37
          %v2191 = vmax.f32 %v2183, 1e-37
          %v2192 = vmax.f32 %v2184, 1e-37
          %v2193 = vmax.f32 %v2185, 1e-37
          %v2194 = vmax.f32 %v2186, 1e-37
          %v2195 = vmax.f32 %v2187, 1e-37
          %v2196 = vrcp.pop %v2188
          %v2197 = vrcp.pop %v2189
          %v2198 = vrcp.pop %v2190
          %v2199 = vrcp.pop %v2191
          %v2200 = vrcp.pop %v2192
          %v2201 = vrcp.pop %v2193
          %v2202 = vrcp.pop %v2194
          %v2203 = vrcp.pop %v2195
          %2205 = vset.pattern.permute.xlu0 0
          %2206 = vperm.xlu0 %2205, %v2196
          %v2207 = vpop.permute.xlu0 %2206
          %2210 = vset.pattern.permute.xlu0 0
          %2211 = vperm.xlu0 %2210, %v2197
          %v2212 = vpop.permute.xlu0 %2211
          %2215 = vset.pattern.permute.xlu0 0
          %2216 = vperm.xlu0 %2215, %v2198
          %v2217 = vpop.permute.xlu0 %2216
          %2220 = vset.pattern.permute.xlu0 0
          %2221 = vperm.xlu0 %2220, %v2199
          %v2222 = vpop.permute.xlu0 %2221
          %2225 = vset.pattern.permute.xlu0 0
          %2226 = vperm.xlu0 %2225, %v2200
          %v2227 = vpop.permute.xlu0 %2226
          %2230 = vset.pattern.permute.xlu0 0
          %2231 = vperm.xlu0 %2230, %v2201
          %v2232 = vpop.permute.xlu0 %2231
          %2235 = vset.pattern.permute.xlu0 0
          %2236 = vperm.xlu0 %2235, %v2202
          %v2237 = vpop.permute.xlu0 %2236
          %2240 = vset.pattern.permute.xlu0 0
          %2241 = vperm.xlu0 %2240, %v2203
          %v2242 = vpop.permute.xlu0 %2241
          %2244 = vset.pattern.permute.xlu0 1
          %2245 = vperm.xlu0 %2244, %v2196
          %v2246 = vpop.permute.xlu0 %2245
          %2248 = vset.pattern.permute.xlu0 1
          %2249 = vperm.xlu0 %2248, %v2197
          %v2250 = vpop.permute.xlu0 %2249
          %2252 = vset.pattern.permute.xlu0 1
          %2253 = vperm.xlu0 %2252, %v2198
          %v2254 = vpop.permute.xlu0 %2253
          %2256 = vset.pattern.permute.xlu0 1
          %2257 = vperm.xlu0 %2256, %v2199
          %v2258 = vpop.permute.xlu0 %2257
          %2260 = vset.pattern.permute.xlu0 1
          %2261 = vperm.xlu0 %2260, %v2200
          %v2262 = vpop.permute.xlu0 %2261
          %2264 = vset.pattern.permute.xlu0 1
          %2265 = vperm.xlu0 %2264, %v2201
          %v2266 = vpop.permute.xlu0 %2265
          %2268 = vset.pattern.permute.xlu0 1
          %2269 = vperm.xlu0 %2268, %v2202
          %v2270 = vpop.permute.xlu0 %2269
          %2272 = vset.pattern.permute.xlu0 1
          %2273 = vperm.xlu0 %2272, %v2203
          %v2274 = vpop.permute.xlu0 %2273
          %2276 = vset.pattern.permute.xlu0 2
          %2277 = vperm.xlu0 %2276, %v2196
          %v2278 = vpop.permute.xlu0 %2277
          %2280 = vset.pattern.permute.xlu0 2
          %2281 = vperm.xlu0 %2280, %v2197
          %v2282 = vpop.permute.xlu0 %2281
          %2284 = vset.pattern.permute.xlu0 2
          %2285 = vperm.xlu0 %2284, %v2198
          %v2286 = vpop.permute.xlu0 %2285
          %2288 = vset.pattern.permute.xlu0 2
          %2289 = vperm.xlu0 %2288, %v2199
          %v2290 = vpop.permute.xlu0 %2289
          %2292 = vset.pattern.permute.xlu0 2
          %2293 = vperm.xlu0 %2292, %v2200
          %v2294 = vpop.permute.xlu0 %2293
          %2296 = vset.pattern.permute.xlu0 2
          %2297 = vperm.xlu0 %2296, %v2201
          %v2298 = vpop.permute.xlu0 %2297
          %2300 = vset.pattern.permute.xlu0 2
          %2301 = vperm.xlu0 %2300, %v2202
          %v2302 = vpop.permute.xlu0 %2301
          %2304 = vset.pattern.permute.xlu0 2
          %2305 = vperm.xlu0 %2304, %v2203
          %v2306 = vpop.permute.xlu0 %2305
          %2308 = vset.pattern.permute.xlu0 3
          %2309 = vperm.xlu0 %2308, %v2196
          %v2310 = vpop.permute.xlu0 %2309
          %2312 = vset.pattern.permute.xlu0 3
          %2313 = vperm.xlu0 %2312, %v2197
          %v2314 = vpop.permute.xlu0 %2313
          %2316 = vset.pattern.permute.xlu0 3
          %2317 = vperm.xlu0 %2316, %v2198
          %v2318 = vpop.permute.xlu0 %2317
          %2320 = vset.pattern.permute.xlu0 3
          %2321 = vperm.xlu0 %2320, %v2199
          %v2322 = vpop.permute.xlu0 %2321
          %2324 = vset.pattern.permute.xlu0 3
          %2325 = vperm.xlu0 %2324, %v2200
          %v2326 = vpop.permute.xlu0 %2325
          %2328 = vset.pattern.permute.xlu0 3
          %2329 = vperm.xlu0 %2328, %v2201
          %v2330 = vpop.permute.xlu0 %2329
          %2332 = vset.pattern.permute.xlu0 3
          %2333 = vperm.xlu0 %2332, %v2202
          %v2334 = vpop.permute.xlu0 %2333
          %2336 = vset.pattern.permute.xlu0 3
          %2337 = vperm.xlu0 %2336, %v2203
          %v2338 = vpop.permute.xlu0 %2337
          %v2340 = vsel %vm1997, %v2207, %v2246
          %v2341 = vsel %vm1997, %v2212, %v2250
          %v2342 = vsel %vm1997, %v2217, %v2254
          %v2343 = vsel %vm1997, %v2222, %v2258
          %v2344 = vsel %vm1997, %v2227, %v2262
          %v2345 = vsel %vm1997, %v2232, %v2266
          %v2346 = vsel %vm1997, %v2237, %v2270
          %v2347 = vsel %vm1997, %v2242, %v2274
          %v2348 = vsel %vm2006, %v2340, %v2278
          %v2349 = vsel %vm2006, %v2341, %v2282
          %v2350 = vsel %vm2006, %v2342, %v2286
          %v2351 = vsel %vm2006, %v2343, %v2290
          %v2352 = vsel %vm2006, %v2344, %v2294
          %v2353 = vsel %vm2006, %v2345, %v2298
          %v2354 = vsel %vm2006, %v2346, %v2302
          %v2355 = vsel %vm2006, %v2347, %v2306
          %v2356 = vsel %vm2015, %v2348, %v2310
          %v2357 = vsel %vm2015, %v2349, %v2314
          %v2358 = vsel %vm2015, %v2350, %v2318
          %v2359 = vsel %vm2015, %v2351, %v2322
          %v2360 = vsel %vm2015, %v2352, %v2326
          %v2361 = vsel %vm2015, %v2353, %v2330
          %v2362 = vsel %vm2015, %v2354, %v2334
          %v2363 = vsel %vm2015, %v2355, %v2338
          %v2364 = vld [vmem:[#allocation4] sm:$0xff]
          %v2365 = vld [vmem:[#allocation4 + $0x8] sm:$0xff]
          %v2366 = vld [vmem:[#allocation4 + $0x10] sm:$0xff]
          %v2367 = vld [vmem:[#allocation4 + $0x18] sm:$0xff]
          %v2368 = vld [vmem:[#allocation4 + $0x20] sm:$0xff]
          %v2369 = vld [vmem:[#allocation4 + $0x28] sm:$0xff]
          %v2370 = vld [vmem:[#allocation4 + $0x30] sm:$0xff]
          %v2371 = vld [vmem:[#allocation4 + $0x38] sm:$0xff]
          %v2372 = vmul.f32 %v2364, %v2356
          %v2373 = vmul.f32 %v2365, %v2357
          %v2374 = vmul.f32 %v2366, %v2358
          %v2375 = vmul.f32 %v2367, %v2359
          %v2376 = vmul.f32 %v2368, %v2360
          %v2377 = vmul.f32 %v2369, %v2361
          %v2378 = vmul.f32 %v2370, %v2362
          %v2379 = vmul.f32 %v2371, %v2363
          %v2380 = vld [vmem:[%s4] sm:$0x1]
          %v2382 = vlaneseq
          %v2383 = vshrl.u32 %v2382, 7
          %v2384 = vsub.s32 0, %v2383
          %v2385 = vrot.slane %v2380, %v2384
          %v2387 = vadd.f32 %v2372, %v2385
          %v2388 = vadd.f32 %v2373, %v2385
          %v2389 = vadd.f32 %v2374, %v2385
          %v2390 = vadd.f32 %v2375, %v2385
          %v2391 = vadd.f32 %v2376, %v2385
          %v2392 = vadd.f32 %v2377, %v2385
          %v2393 = vadd.f32 %v2378, %v2385
          %v2394 = vadd.f32 %v2379, %v2385
          %v2395 = vmax.f32 %v2387, 0.0
          %v2396 = vmax.f32 %v2388, 0.0
          %v2397 = vmax.f32 %v2389, 0.0
          %v2398 = vmax.f32 %v2390, 0.0
          %v2399 = vmax.f32 %v2391, 0.0
          %v2400 = vmax.f32 %v2392, 0.0
          %v2401 = vmax.f32 %v2393, 0.0
          %v2402 = vmax.f32 %v2394, 0.0
          %v2403 = vld [vmem:[%s5] sm:$0x1]
          %v2405 = vlaneseq
          %v2406 = vshrl.u32 %v2405, 7
          %v2407 = vsub.s32 0, %v2406
          %v2408 = vrot.slane %v2403, %v2407
          %v2410 = vmul.f32 %v2395, %v2408
          %v2411 = vmul.f32 %v2396, %v2408
          %v2412 = vmul.f32 %v2397, %v2408
          %v2413 = vmul.f32 %v2398, %v2408
          %v2414 = vmul.f32 %v2399, %v2408
          %v2415 = vmul.f32 %v2400, %v2408
          %v2416 = vmul.f32 %v2401, %v2408
          %v2417 = vmul.f32 %v2402, %v2408
          %v2418 = vld [vmem:[%s6] sm:$0x1]
          %v2420 = vlaneseq
          %v2421 = vshrl.u32 %v2420, 7
          %v2422 = vsub.s32 0, %v2421
          %v2423 = vrot.slane %v2418, %v2422
          %v2425 = vadd.f32 %v2410, %v2423
          %v2426 = vadd.f32 %v2411, %v2423
          %v2427 = vadd.f32 %v2412, %v2423
          %v2428 = vadd.f32 %v2413, %v2423
          %v2429 = vadd.f32 %v2414, %v2423
          %v2430 = vadd.f32 %v2415, %v2423
          %v2431 = vadd.f32 %v2416, %v2423
          %v2432 = vadd.f32 %v2417, %v2423
          %2433 = vst [vmem:[%s428] sm:$0xff] %v2425
          %2434 = vst [vmem:[%s428 + $0x8] sm:$0xff] %v2426
          %2435 = vst [vmem:[%s428 + $0x10] sm:$0xff] %v2427
          %2436 = vst [vmem:[%s428 + $0x18] sm:$0xff] %v2428
          %2437 = vst [vmem:[%s428 + $0x20] sm:$0xff] %v2429
          %2438 = vst [vmem:[%s428 + $0x28] sm:$0xff] %v2430
          %2439 = vst [vmem:[%s428 + $0x30] sm:$0xff] %v2431
          %2440 = vst [vmem:[%s428 + $0x38] sm:$0xff] %v2432
        $region97: #{gat_forward.7} parent=84 // pred_fallthru
          _
        %s2441 = smul.u32 8, %s22
        %p2442 = scmp.lt.s32.totalorder %s2441, 31
        %s2443 = scalar_select %p2442, %s2441, 31
        %s2444 = smul.addr %s2443, 8
        %s2445 = scalar_lea.vmem %s7, %s2444
        // Predicated region
        $region98: #{gat_forward.7} parent=84 // pred_check
          %p2446 = pneg %p217
        $region99: #{gat_forward.7} parent=84 // pred_check_branch
          %2448 = sbr.rel (%p2446) target = $region101
        $region100: #{gat_forward.7} parent=84 // pred_region
          %s2449 = smul.u32 8, %s22
        $region101: #{gat_forward.7} parent=84 // pred_fallthru
          _
      $region85: #{gat_forward.7} parent=5 // pred_fallthru
        _
      %p2450 = scmp.le.s32.totalorder 2, %s13
      // Predicated region
      $region102: #{gat_forward.7} parent=5 // pred_check
        %p2451 = pneg %p2450
      $region103: #{gat_forward.7} parent=5 // pred_check_branch
        %2453 = sbr.rel (%p2451) target = $region105
      $region104: #{gat_forward.7} parent=5 // pred_region
        %s2454 = ssub.s32 %s13, 2
        // Predicated region
        $region106: #{gat_forward.7} parent=104 // pred_check
          %p2455 = pneg %p223
        $region107: #{gat_forward.7} parent=104 // pred_check_branch
          %2457 = sbr.rel (%p2455) target = $region109
        $region108: #{gat_forward.7} parent=104 // pred_region
          %s2458 = smul.u32 8, %s24
          %p2459 = scmp.lt.s32.totalorder %s2458, 31
          %s2460 = scalar_select %p2459, %s2458, 31
          %s2461 = smul.addr %s2460, 8
          %s2462 = scalar_lea.vmem %s7, %s2461
        $region109: #{gat_forward.7} parent=104 // pred_fallthru
          _
      $region105: #{gat_forward.7} parent=5 // pred_fallthru
        _
    $region6: #{gat_forward.7} parent=1 // loop_footer
      %s17 = sadd.s32 1, %s13
    $region7: #{gat_forward.7} parent=1 // loop_footer_branch
      %12 = sbr.rel target = $region3
    $region8: #{gat_forward.7} parent=1 // loop_exit
      _

// kernel: gat_forward.11
$region0: #{gat_forward.11}
  #allocation0 [shape = 'u32[]', space=smem, size = 0x4, offset = 0x4, fixed_abs, tag = 'smem constant byte address 0x4 - core index']
  #allocation1 [shape = 'u32[144,128]{1,0:T(1,128)}', space=vmem, size = 0x12000, scoped, tag = 'internal scratch']
  #allocation2 [shape = 'f32[64,1]{1,0:T(8,128)}', space=vmem, size = 0x8000, scoped, tag = 'scratch operand']
  #allocation3 [shape = 'f32[64,1]{1,0:T(8,128)}', space=vmem, size = 0x8000, scoped, tag = 'scratch operand']
  #allocation4 [shape = 'f32[64,32]{1,0:T(8,128)}', space=vmem, size = 0x8000, scoped, tag = 'scratch operand']
  #allocation5 [shape = 'f32[4,32]{1,0:T(4,128)}', space=vmem, size = 0x800, scoped, tag = 'scratch operand']
  %s0 = inlined_call_operand.vmem [shape: bf16[256,256], index: 0, kind: input, shape index: {}]
  %s1 = inlined_call_operand.vmem [shape: bf16[256,32], index: 1, kind: input, shape index: {}]
  %s2 = inlined_call_operand.vmem [shape: f32[1,256], index: 2, kind: input, shape index: {}]
  %s3 = inlined_call_operand.vmem [shape: f32[256,1], index: 3, kind: input, shape index: {}]
  %s4 = inlined_call_operand.vmem [shape: f32[1,32], index: 4, kind: input, shape index: {}]
  %s5 = inlined_call_operand.vmem [shape: f32[1,32], index: 5, kind: input, shape index: {}]
  %s6 = inlined_call_operand.vmem [shape: f32[1,32], index: 6, kind: input, shape index: {}]
  %s7 = inlined_call_operand.vmem [shape: f32[256,4], index: 7, kind: input, shape index: {}]
  %s8 = inlined_call_operand.vmem [shape: f32[32,3], index: 8, kind: input, shape index: {}]
  %s9 = inlined_call_operand.vmem [shape: f32[1,3], index: 9, kind: input, shape index: {}]
  %s10 = inlined_call_operand.hbm [shape: f32[4,3], index: 10, kind: output, shape index: {}]
  %s11 = sld [smem:[#allocation0]]
  $region130: #{gat_forward.11} parent=0
    _
  %s13 = ssub.s32 1, %s11
  %s14 = scalar_select 0, %s13, %s11
  $region1: #{gat_forward.11} parent=0
    #allocation6 [shape = 'u8[32768]{0}', space=vmem, size = 0x8000, scoped, tag = 'input window, operand 0']
    #allocation7 [shape = 'u8[2048]{0}', space=vmem, size = 0x800, scoped, tag = 'output window, operand 0, single buffered']
    #allocation8 [shape = 's32[2]{0}', space=sflag, size = 0x8, scoped, tag = 'scoped memory for gat_forward.11']
    %15 = vsyncpa [#allocation8], 0
    loop: start=0, step=1, limit=10
    $region2: #{gat_forward.11} parent=1 // loop_pre_header
      _
    $region3: #{gat_forward.11} parent=1 // loop_header
      %s17 = sphi 0, %s21
      %p18 = scmp.ge.s32.totalorder %s17, 10
      %s24 = sphi 0, %s36
      %s25 = sphi 0, %s32
      %s26 = sphi 0, %s24
      %s27 = sphi 0, %s25
      %s28 = sphi 0, %s26
      %s29 = sphi 0, %s27
      %s41 = sphi 0, %s43
      %s44 = sphi 0, %s41
      %s45 = sphi 0, %s44
      %s61 = sphi 0, %s45
      %s67 = sphi 0, %s69
      %s70 = sphi 0, %s67
      %s71 = sphi 0, %s70
      %s87 = sphi 0, %s71
      %s93 = sphi 0, %s95
      %s96 = sphi 0, %s93
      %s97 = sphi 0, %s96
      %s113 = sphi 0, %s97
      %s119 = sphi 0, %s121
      %s122 = sphi 0, %s119
      %s123 = sphi 0, %s122
      %s139 = sphi 0, %s123
      %s143 = sphi 0, %s143
      %s145 = sphi 0, %s143
      %s146 = sphi 0, %s145
      %s160 = sphi 0, %s146
      %s164 = sphi 0, %s164
      %s166 = sphi 0, %s164
      %s167 = sphi 0, %s166
      %s181 = sphi 0, %s167
      %s185 = sphi 0, %s185
      %s187 = sphi 0, %s185
      %s188 = sphi 0, %s187
      %s202 = sphi 0, %s188
      %s208 = sphi 0, %s210
      %s211 = sphi 0, %s208
      %s212 = sphi 0, %s211
      %s228 = sphi 0, %s212
      %s232 = sphi 0, %s232
      %s234 = sphi 0, %s232
      %s235 = sphi 0, %s234
      %s249 = sphi 0, %s235
      %s253 = sphi 0, %s253
      %s255 = sphi 0, %s253
      %s256 = sphi 0, %s255
      %s270 = sphi 0, %s256
      %s274 = sphi 0, %s274
      %s276 = sphi 0, %s274
      %s277 = sphi 0, %s276
      %s291 = sphi 0, %s277
    $region4: #{gat_forward.11} parent=1 // loop_header_branch
      %20 = sbr.rel (%p18) target = $region8
    $region5: #{gat_forward.11} parent=1 // loop_body
      %s22 = ssub.s32 %s17, 1
      %s23 = ssub.s32 %s17, 2
      %s30 = sadd.s32 1, %s25
      %p31 = scmp.ge.s32.totalorder %s30, 2
      %s32 = scalar_select %p31, 0, %s30
      %s33 = sadd.s32 1, %s24
      %s34 = scalar_select %p31, %s33, %s24
      %p35 = scmp.ge.s32.totalorder %s34, 4
      %s36 = scalar_select %p35, 0, %s34
      %s37 = ssub.s32 %s24, %s36
      %s38 = ssub.s32 %s25, %s32
      %s39 = sor.u32 %s37, %s38
      %p40 = scmp.eq.s32.totalorder %s39, 0
      %s42 = sadd.s32 %s41, 1
      %s43 = scalar_select %p40, %s41, %s42
      %p46 = pneg %p40
      %p47 = scmp.eq.s32.totalorder %s17, 7
      %p48 = por %p46, %p47
      %p49 = scmp.ne.s32.totalorder %s41, %s44
      %p50 = scmp.eq.s32.totalorder %s17, 0
      %p51 = por %p49, %p50
      %p52 = scmp.ne.s32.totalorder %s41, %s44
      %p53 = scmp.eq.s32.totalorder %s22, 7
      %p54 = por %p52, %p53
      %p55 = scmp.ne.s32.totalorder %s44, %s45
      %p56 = scmp.eq.s32.totalorder %s22, 0
      %p57 = por %p55, %p56
      %p58 = scmp.ne.s32.totalorder %s44, %s45
      %p59 = scmp.eq.s32.totalorder %s23, 7
      %p60 = por %p58, %p59
      %p62 = scmp.ne.s32.totalorder %s45, %s61
      %p63 = scmp.eq.s32.totalorder %s23, 0
      %p64 = por %p62, %p63
      %s65 = ssub.s32 %s25, %s32
      %p66 = scmp.eq.s32.totalorder %s65, 0
      %s68 = sadd.s32 %s67, 1
      %s69 = scalar_select %p66, %s67, %s68
      %p72 = pneg %p66
      %p73 = scmp.eq.s32.totalorder %s17, 7
      %p74 = por %p72, %p73
      %p75 = scmp.ne.s32.totalorder %s67, %s70
      %p76 = scmp.eq.s32.totalorder %s17, 0
      %p77 = por %p75, %p76
      %p78 = scmp.ne.s32.totalorder %s67, %s70
      %p79 = scmp.eq.s32.totalorder %s22, 7
      %p80 = por %p78, %p79
      %p81 = scmp.ne.s32.totalorder %s70, %s71
      %p82 = scmp.eq.s32.totalorder %s22, 0
      %p83 = por %p81, %p82
      %p84 = scmp.ne.s32.totalorder %s70, %s71
      %p85 = scmp.eq.s32.totalorder %s23, 7
      %p86 = por %p84, %p85
      %p88 = scmp.ne.s32.totalorder %s71, %s87
      %p89 = scmp.eq.s32.totalorder %s23, 0
      %p90 = por %p88, %p89
      %s91 = ssub.s32 %s25, %s32
      %p92 = scmp.eq.s32.totalorder %s91, 0
      %s94 = sadd.s32 %s93, 1
      %s95 = scalar_select %p92, %s93, %s94
      %p98 = pneg %p92
      %p99 = scmp.eq.s32.totalorder %s17, 7
      %p100 = por %p98, %p99
      %p101 = scmp.ne.s32.totalorder %s93, %s96
      %p102 = scmp.eq.s32.totalorder %s17, 0
      %p103 = por %p101, %p102
      %p104 = scmp.ne.s32.totalorder %s93, %s96
      %p105 = scmp.eq.s32.totalorder %s22, 7
      %p106 = por %p104, %p105
      %p107 = scmp.ne.s32.totalorder %s96, %s97
      %p108 = scmp.eq.s32.totalorder %s22, 0
      %p109 = por %p107, %p108
      %p110 = scmp.ne.s32.totalorder %s96, %s97
      %p111 = scmp.eq.s32.totalorder %s23, 7
      %p112 = por %p110, %p111
      %p114 = scmp.ne.s32.totalorder %s97, %s113
      %p115 = scmp.eq.s32.totalorder %s23, 0
      %p116 = por %p114, %p115
      %s117 = ssub.s32 %s24, %s36
      %p118 = scmp.eq.s32.totalorder %s117, 0
      %s120 = sadd.s32 %s119, 1
      %s121 = scalar_select %p118, %s119, %s120
      %p124 = pneg %p118
      %p125 = scmp.eq.s32.totalorder %s17, 7
      %p126 = por %p124, %p125
      %p127 = scmp.ne.s32.totalorder %s119, %s122
      %p128 = scmp.eq.s32.totalorder %s17, 0
      %p129 = por %p127, %p128
      %p130 = scmp.ne.s32.totalorder %s119, %s122
      %p131 = scmp.eq.s32.totalorder %s22, 7
      %p132 = por %p130, %p131
      %p133 = scmp.ne.s32.totalorder %s122, %s123
      %p134 = scmp.eq.s32.totalorder %s22, 0
      %p135 = por %p133, %p134
      %p136 = scmp.ne.s32.totalorder %s122, %s123
      %p137 = scmp.eq.s32.totalorder %s23, 7
      %p138 = por %p136, %p137
      %p140 = scmp.ne.s32.totalorder %s123, %s139
      %p141 = scmp.eq.s32.totalorder %s23, 0
      %p142 = por %p140, %p141
      %s144 = sadd.s32 %s143, 1
      %p147 = scmp.eq.s32.totalorder %s17, 7
      %p148 = scmp.ne.s32.totalorder %s143, %s145
      %p149 = scmp.eq.s32.totalorder %s17, 0
      %p150 = por %p148, %p149
      %p151 = scmp.ne.s32.totalorder %s143, %s145
      %p152 = scmp.eq.s32.totalorder %s22, 7
      %p153 = por %p151, %p152
      %p154 = scmp.ne.s32.totalorder %s145, %s146
      %p155 = scmp.eq.s32.totalorder %s22, 0
      %p156 = por %p154, %p155
      %p157 = scmp.ne.s32.totalorder %s145, %s146
      %p158 = scmp.eq.s32.totalorder %s23, 7
      %p159 = por %p157, %p158
      %p161 = scmp.ne.s32.totalorder %s146, %s160
      %p162 = scmp.eq.s32.totalorder %s23, 0
      %p163 = por %p161, %p162
      %s165 = sadd.s32 %s164, 1
      %p168 = scmp.eq.s32.totalorder %s17, 7
      %p169 = scmp.ne.s32.totalorder %s164, %s166
      %p170 = scmp.eq.s32.totalorder %s17, 0
      %p171 = por %p169, %p170
      %p172 = scmp.ne.s32.totalorder %s164, %s166
      %p173 = scmp.eq.s32.totalorder %s22, 7
      %p174 = por %p172, %p173
      %p175 = scmp.ne.s32.totalorder %s166, %s167
      %p176 = scmp.eq.s32.totalorder %s22, 0
      %p177 = por %p175, %p176
      %p178 = scmp.ne.s32.totalorder %s166, %s167
      %p179 = scmp.eq.s32.totalorder %s23, 7
      %p180 = por %p178, %p179
      %p182 = scmp.ne.s32.totalorder %s167, %s181
      %p183 = scmp.eq.s32.totalorder %s23, 0
      %p184 = por %p182, %p183
      %s186 = sadd.s32 %s185, 1
      %p189 = scmp.eq.s32.totalorder %s17, 7
      %p190 = scmp.ne.s32.totalorder %s185, %s187
      %p191 = scmp.eq.s32.totalorder %s17, 0
      %p192 = por %p190, %p191
      %p193 = scmp.ne.s32.totalorder %s185, %s187
      %p194 = scmp.eq.s32.totalorder %s22, 7
      %p195 = por %p193, %p194
      %p196 = scmp.ne.s32.totalorder %s187, %s188
      %p197 = scmp.eq.s32.totalorder %s22, 0
      %p198 = por %p196, %p197
      %p199 = scmp.ne.s32.totalorder %s187, %s188
      %p200 = scmp.eq.s32.totalorder %s23, 7
      %p201 = por %p199, %p200
      %p203 = scmp.ne.s32.totalorder %s188, %s202
      %p204 = scmp.eq.s32.totalorder %s23, 0
      %p205 = por %p203, %p204
      %s206 = ssub.s32 %s24, %s36
      %p207 = scmp.eq.s32.totalorder %s206, 0
      %s209 = sadd.s32 %s208, 1
      %s210 = scalar_select %p207, %s208, %s209
      %p213 = pneg %p207
      %p214 = scmp.eq.s32.totalorder %s17, 7
      %p215 = por %p213, %p214
      %p216 = scmp.ne.s32.totalorder %s208, %s211
      %p217 = scmp.eq.s32.totalorder %s17, 0
      %p218 = por %p216, %p217
      %p219 = scmp.ne.s32.totalorder %s208, %s211
      %p220 = scmp.eq.s32.totalorder %s22, 7
      %p221 = por %p219, %p220
      %p222 = scmp.ne.s32.totalorder %s211, %s212
      %p223 = scmp.eq.s32.totalorder %s22, 0
      %p224 = por %p222, %p223
      %p225 = scmp.ne.s32.totalorder %s211, %s212
      %p226 = scmp.eq.s32.totalorder %s23, 7
      %p227 = por %p225, %p226
      %p229 = scmp.ne.s32.totalorder %s212, %s228
      %p230 = scmp.eq.s32.totalorder %s23, 0
      %p231 = por %p229, %p230
      %s233 = sadd.s32 %s232, 1
      %p236 = scmp.eq.s32.totalorder %s17, 7
      %p237 = scmp.ne.s32.totalorder %s232, %s234
      %p238 = scmp.eq.s32.totalorder %s17, 0
      %p239 = por %p237, %p238
      %p240 = scmp.ne.s32.totalorder %s232, %s234
      %p241 = scmp.eq.s32.totalorder %s22, 7
      %p242 = por %p240, %p241
      %p243 = scmp.ne.s32.totalorder %s234, %s235
      %p244 = scmp.eq.s32.totalorder %s22, 0
      %p245 = por %p243, %p244
      %p246 = scmp.ne.s32.totalorder %s234, %s235
      %p247 = scmp.eq.s32.totalorder %s23, 7
      %p248 = por %p246, %p247
      %p250 = scmp.ne.s32.totalorder %s235, %s249
      %p251 = scmp.eq.s32.totalorder %s23, 0
      %p252 = por %p250, %p251
      %s254 = sadd.s32 %s253, 1
      %p257 = scmp.eq.s32.totalorder %s17, 7
      %p258 = scmp.ne.s32.totalorder %s253, %s255
      %p259 = scmp.eq.s32.totalorder %s17, 0
      %p260 = por %p258, %p259
      %p261 = scmp.ne.s32.totalorder %s253, %s255
      %p262 = scmp.eq.s32.totalorder %s22, 7
      %p263 = por %p261, %p262
      %p264 = scmp.ne.s32.totalorder %s255, %s256
      %p265 = scmp.eq.s32.totalorder %s22, 0
      %p266 = por %p264, %p265
      %p267 = scmp.ne.s32.totalorder %s255, %s256
      %p268 = scmp.eq.s32.totalorder %s23, 7
      %p269 = por %p267, %p268
      %p271 = scmp.ne.s32.totalorder %s256, %s270
      %p272 = scmp.eq.s32.totalorder %s23, 0
      %p273 = por %p271, %p272
      %s275 = sadd.s32 %s274, 1
      %p278 = scmp.eq.s32.totalorder %s17, 7
      %p279 = scmp.ne.s32.totalorder %s274, %s276
      %p280 = scmp.eq.s32.totalorder %s17, 0
      %p281 = por %p279, %p280
      %p282 = scmp.ne.s32.totalorder %s274, %s276
      %p283 = scmp.eq.s32.totalorder %s22, 7
      %p284 = por %p282, %p283
      %p285 = scmp.ne.s32.totalorder %s276, %s277
      %p286 = scmp.eq.s32.totalorder %s22, 0
      %p287 = por %p285, %p286
      %p288 = scmp.ne.s32.totalorder %s276, %s277
      %p289 = scmp.eq.s32.totalorder %s23, 7
      %p290 = por %p288, %p289
      %p292 = scmp.ne.s32.totalorder %s277, %s291
      %p293 = scmp.eq.s32.totalorder %s23, 0
      %p294 = por %p292, %p293
      %p295 = scmp.le.s32.totalorder 1, %s17
      %p296 = scmp.lt.s32.totalorder %s17, 9
      %p297 = pnand %p295, %p296
      %p298 = pneg %p297
      // Predicated region
      $region9: #{gat_forward.11} parent=5 // pred_check
        _
      $region10: #{gat_forward.11} parent=5 // pred_check_branch
        %300 = sbr.rel (%p297) target = $region12
      $region11: #{gat_forward.11} parent=5 // pred_region
        %s301 = ssub.s32 %s17, 1
        // Predicated region
        $region13: #{gat_forward.11} parent=11 // pred_check
          %p302 = pneg %p156
        $region14: #{gat_forward.11} parent=11 // pred_check_branch
          %304 = sbr.rel (%p302) target = $region16
        $region15: #{gat_forward.11} parent=11 // pred_region
          _
        $region16: #{gat_forward.11} parent=11 // pred_fallthru
          _
        // Predicated region
        $region17: #{gat_forward.11} parent=11 // pred_check
          %p305 = pneg %p177
        $region18: #{gat_forward.11} parent=11 // pred_check_branch
          %307 = sbr.rel (%p305) target = $region20
        $region19: #{gat_forward.11} parent=11 // pred_region
          _
        $region20: #{gat_forward.11} parent=11 // pred_fallthru
          _
        // Predicated region
        $region21: #{gat_forward.11} parent=11 // pred_check
          %p308 = pneg %p198
        $region22: #{gat_forward.11} parent=11 // pred_check_branch
          %310 = sbr.rel (%p308) target = $region24
        $region23: #{gat_forward.11} parent=11 // pred_region
          _
        $region24: #{gat_forward.11} parent=11 // pred_fallthru
          _
        // Predicated region
        $region25: #{gat_forward.11} parent=11 // pred_check
          %p311 = pneg %p245
        $region26: #{gat_forward.11} parent=11 // pred_check_branch
          %313 = sbr.rel (%p311) target = $region28
        $region27: #{gat_forward.11} parent=11 // pred_region
          _
        $region28: #{gat_forward.11} parent=11 // pred_fallthru
          _
        // Predicated region
        $region29: #{gat_forward.11} parent=11 // pred_check
          %p314 = pneg %p266
        $region30: #{gat_forward.11} parent=11 // pred_check_branch
          %316 = sbr.rel (%p314) target = $region32
        $region31: #{gat_forward.11} parent=11 // pred_region
          _
        $region32: #{gat_forward.11} parent=11 // pred_fallthru
          _
      $region12: #{gat_forward.11} parent=5 // pred_fallthru
        _
      %p317 = scmp.lt.s32.totalorder %s17, 8
      // Predicated region
      $region33: #{gat_forward.11} parent=5 // pred_check
        %p318 = pneg %p317
      $region34: #{gat_forward.11} parent=5 // pred_check_branch
        %320 = sbr.rel (%p318) target = $region36
      $region35: #{gat_forward.11} parent=5 // pred_region
        // Predicated region
        $region37: #{gat_forward.11} parent=35 // pred_check
          %p321 = pneg %p51
        $region38: #{gat_forward.11} parent=35 // pred_check_branch
          %323 = sbr.rel (%p321) target = $region40
        $region39: #{gat_forward.11} parent=35 // pred_region
          %s324 = sand.u32 %s41, 1
          %s325 = sand.u32 %s41, 1
          %s326 = smul.addr %s325, 32
          %s327 = scalar_lea.vmem [#allocation6], %s326
          %s328 = smul.u32 8, %s24
          %s329 = smul.addr %s328, 2
          %s330 = sadd.s32 %s25, %s329
          %s331 = smul.addr %s330, 4
          %s332 = scalar_lea.vmem %s0, %s331
          // Predicated region
          $region41: #{gat_forward.11} parent=39 // pred_check
            _
          $region42: #{gat_forward.11} parent=39 // pred_check_branch
            %334 = sbr.rel (0) target = $region44
          $region43: #{gat_forward.11} parent=39 // pred_region
            // Predicated region
            $region45: #{gat_forward.11} parent=43 // pred_check
              _
            $region46: #{gat_forward.11} parent=43 // pred_check_branch
              %336 = sbr.rel target = $region48
            $region47: #{gat_forward.11} parent=43 // pred_region
              // Predicated region
              $region60: #{gat_forward.11} parent=47 // pred_check
                _
              $region61: #{gat_forward.11} parent=47 // pred_check_branch
                %366 = sbr.rel (0) target = $region63
              $region62: #{gat_forward.11} parent=47 // pred_region
                loop: start=0, step=1, limit=1
                $region64: #{gat_forward.11} parent=62 // loop_pre_header
                  _
                $region65: #{gat_forward.11} parent=62 // loop_header
                  %s368 = sphi 0, %s372
                  %p369 = scmp.ge.s32.totalorder %s368, 1
                  %s373 = sphi %s332, %s332
                  %s374 = sphi %s327, %s327
                $region66: #{gat_forward.11} parent=62 // loop_header_branch
                  %371 = sbr.rel (%p369) target = $region70
                $region67: #{gat_forward.11} parent=62 // loop_body
                  _
                $region68: #{gat_forward.11} parent=62 // loop_footer
                  %s372 = sadd.s32 1, %s368
                $region69: #{gat_forward.11} parent=62 // loop_footer_branch
                  %367 = sbr.rel target = $region65
                $region70: #{gat_forward.11} parent=62 // loop_exit
                  _
                %s376 = ssub.s32 16, 1
                loop: start=0, step=1, limit=1
                $region71: #{gat_forward.11} parent=62 // loop_pre_header
                  _
                $region72: #{gat_forward.11} parent=62 // loop_header
                  %s378 = sphi 0, %s382
                  %p379 = scmp.ge.s32.totalorder %s378, 1
                  %s383 = sphi %s332, %s332
                  %s384 = sphi %s327, %s327
                $region73: #{gat_forward.11} parent=62 // loop_header_branch
                  %381 = sbr.rel (%p379) target = $region77
                $region74: #{gat_forward.11} parent=62 // loop_body
                  %v385 = vld [vmem:[%s383] sm:%s376]
                  %386 = vst [vmem:[%s384] sm:%s376] %v385
                  %v387 = vld [vmem:[%s383 + $0x8] sm:%s376]
                  %388 = vst [vmem:[%s384 + $0x4] sm:%s376] %v387
                  %v389 = vld [vmem:[%s383 + $0x10] sm:%s376]
                  %390 = vst [vmem:[%s384 + $0x8] sm:%s376] %v389
                  %v391 = vld [vmem:[%s383 + $0x18] sm:%s376]
                  %392 = vst [vmem:[%s384 + $0xc] sm:%s376] %v391
                  %v393 = vld [vmem:[%s383 + $0x20] sm:%s376]
                  %394 = vst [vmem:[%s384 + $0x10] sm:%s376] %v393
                  %v395 = vld [vmem:[%s383 + $0x28] sm:%s376]
                  %396 = vst [vmem:[%s384 + $0x14] sm:%s376] %v395
                  %v397 = vld [vmem:[%s383 + $0x30] sm:%s376]
                  %398 = vst [vmem:[%s384 + $0x18] sm:%s376] %v397
                  %v399 = vld [vmem:[%s383 + $0x38] sm:%s376]
                  %400 = vst [vmem:[%s384 + $0x1c] sm:%s376] %v399
                $region75: #{gat_forward.11} parent=62 // loop_footer
                  %s382 = sadd.s32 1, %s378
                $region76: #{gat_forward.11} parent=62 // loop_footer_branch
                  %377 = sbr.rel target = $region72
                $region77: #{gat_forward.11} parent=62 // loop_exit
                  _
              $region63: #{gat_forward.11} parent=47 // pred_fallthru
                _
            $region48: #{gat_forward.11} parent=43 // pred_fallthru
              _
            // Predicated region
            $region49: #{gat_forward.11} parent=43 // pred_check
              _
            $region50: #{gat_forward.11} parent=43 // pred_check_branch
              %338 = sbr.rel (0) target = $region52
            $region51: #{gat_forward.11} parent=43 // pred_region
              %s340 = ssub.s32 16, 1
              loop: start=0, step=1, limit=1
              $region53: #{gat_forward.11} parent=51 // loop_pre_header
                _
              $region54: #{gat_forward.11} parent=51 // loop_header
                %s342 = sphi 0, %s346
                %p343 = scmp.ge.s32.totalorder %s342, 1
                %s347 = sphi %s332, %s332
                %s348 = sphi %s327, %s327
              $region55: #{gat_forward.11} parent=51 // loop_header_branch
                %345 = sbr.rel (%p343) target = $region59
              $region56: #{gat_forward.11} parent=51 // loop_body
                %v349 = vld [vmem:[%s347] sm:%s340]
                %350 = vst [vmem:[%s348] sm:%s340] %v349
                %v351 = vld [vmem:[%s347 + $0x8] sm:%s340]
                %352 = vst [vmem:[%s348 + $0x4] sm:%s340] %v351
                %v353 = vld [vmem:[%s347 + $0x10] sm:%s340]
                %354 = vst [vmem:[%s348 + $0x8] sm:%s340] %v353
                %v355 = vld [vmem:[%s347 + $0x18] sm:%s340]
                %356 = vst [vmem:[%s348 + $0xc] sm:%s340] %v355
                %v357 = vld [vmem:[%s347 + $0x20] sm:%s340]
                %358 = vst [vmem:[%s348 + $0x10] sm:%s340] %v357
                %v359 = vld [vmem:[%s347 + $0x28] sm:%s340]
                %360 = vst [vmem:[%s348 + $0x14] sm:%s340] %v359
                %v361 = vld [vmem:[%s347 + $0x30] sm:%s340]
                %362 = vst [vmem:[%s348 + $0x18] sm:%s340] %v361
                %v363 = vld [vmem:[%s347 + $0x38] sm:%s340]
                %364 = vst [vmem:[%s348 + $0x1c] sm:%s340] %v363
              $region57: #{gat_forward.11} parent=51 // loop_footer
                %s346 = sadd.s32 1, %s342
              $region58: #{gat_forward.11} parent=51 // loop_footer_branch
                %341 = sbr.rel target = $region54
              $region59: #{gat_forward.11} parent=51 // loop_exit
                _
            $region52: #{gat_forward.11} parent=43 // pred_fallthru
              _
          $region44: #{gat_forward.11} parent=39 // pred_fallthru
            _
          %401 = vnop
        $region40: #{gat_forward.11} parent=35 // pred_fallthru
          _
        // Predicated region
        $region78: #{gat_forward.11} parent=35 // pred_check
          %p402 = pneg %p77
        $region79: #{gat_forward.11} parent=35 // pred_check_branch
          %404 = sbr.rel (%p402) target = $region81
        $region80: #{gat_forward.11} parent=35 // pred_region
          %s405 = smul.u32 16, %s25
          %p406 = scmp.lt.s32.totalorder %s405, 31
          %s407 = scalar_select %p406, %s405, 31
          %s408 = smul.addr %s407, 4
          %s409 = scalar_lea.vmem %s1, %s408
          %s410 = smul.u32 16, %s25
        $region81: #{gat_forward.11} parent=35 // pred_fallthru
          _
        // Predicated region
        $region82: #{gat_forward.11} parent=35 // pred_check
          %p411 = pneg %p103
        $region83: #{gat_forward.11} parent=35 // pred_check_branch
          %413 = sbr.rel (%p411) target = $region85
        $region84: #{gat_forward.11} parent=35 // pred_region
          %p414 = scmp.lt.s32.totalorder %s25, 1
          %s415 = scalar_select %p414, %s25, 1
          %s416 = scalar_lea.vmem %s2, %s415
        $region85: #{gat_forward.11} parent=35 // pred_fallthru
          _
        // Predicated region
        $region86: #{gat_forward.11} parent=35 // pred_check
          %p417 = pneg %p129
        $region87: #{gat_forward.11} parent=35 // pred_check_branch
          %419 = sbr.rel (%p417) target = $region89
        $region88: #{gat_forward.11} parent=35 // pred_region
          %s420 = smul.u32 8, %s24
          %p421 = scmp.lt.s32.totalorder %s420, 31
          %s422 = scalar_select %p421, %s420, 31
          %s423 = smul.addr %s422, 8
          %s424 = scalar_lea.vmem %s3, %s423
          %s425 = smul.u32 8, %s24
        $region89: #{gat_forward.11} parent=35 // pred_fallthru
          _
        // Predicated region
        $region90: #{gat_forward.11} parent=35 // pred_check
          %p426 = pneg %p218
        $region91: #{gat_forward.11} parent=35 // pred_check_branch
          %428 = sbr.rel (%p426) target = $region93
        $region92: #{gat_forward.11} parent=35 // pred_region
          %s429 = smul.u32 8, %s24
          %p430 = scmp.lt.s32.totalorder %s429, 31
          %s431 = scalar_select %p430, %s429, 31
          %s432 = smul.addr %s431, 8
          %s433 = scalar_lea.vmem %s7, %s432
          %s434 = smul.u32 8, %s24
        $region93: #{gat_forward.11} parent=35 // pred_fallthru
          _
      $region36: #{gat_forward.11} parent=5 // pred_fallthru
        _
      %p435 = scmp.le.s32.totalorder 1, %s17
      %p436 = scmp.lt.s32.totalorder %s17, 9
      %p437 = pnand %p435, %p436
      %p438 = pneg %p437
      // Predicated region
      $region94: #{gat_forward.11} parent=5 // pred_check
        _
      $region95: #{gat_forward.11} parent=5 // pred_check_branch
        %440 = sbr.rel (%p437) target = $region97
      $region96: #{gat_forward.11} parent=5 // pred_region
        %s441 = ssub.s32 %s17, 1
        %s442 = sand.u32 %s44, 1
        %s443 = sand.u32 %s44, 1
        %s444 = smul.addr %s443, 32
        %s445 = scalar_lea.vmem [#allocation6], %s444
        // Predicated region
        $region98: #{gat_forward.11} parent=96 // pred_check
          %p446 = pneg %p57
        $region99: #{gat_forward.11} parent=96 // pred_check_branch
          %448 = sbr.rel (%p446) target = $region101
        $region100: #{gat_forward.11} parent=96 // pred_region
          _
        $region101: #{gat_forward.11} parent=96 // pred_fallthru
          _
        %s449 = sand.u32 %s44, 1
        %s450 = sand.u32 %s44, 1
        %s451 = smul.addr %s450, 32
        %s452 = scalar_lea.vmem [#allocation6], %s451
        %p453 = pneg %p57
        %p454 = pneg %p54
        %s455 = smul.u32 16, %s27
        %p456 = scmp.lt.s32.totalorder %s455, 31
        %s457 = scalar_select %p456, %s455, 31
        %s458 = smul.addr %s457, 4
        %s459 = scalar_lea.vmem %s1, %s458
        %p460 = pneg %p83
        %p461 = pneg %p80
        %p462 = scmp.lt.s32.totalorder %s27, 1
        %s463 = scalar_select %p462, %s27, 1
        %s464 = scalar_lea.vmem %s2, %s463
        %p465 = pneg %p109
        %p466 = pneg %p106
        %s467 = smul.u32 8, %s26
        %p468 = scmp.lt.s32.totalorder %s467, 31
        %s469 = scalar_select %p468, %s467, 31
        %s470 = smul.addr %s469, 8
        %s471 = scalar_lea.vmem %s3, %s470
        %p472 = pneg %p135
        %p473 = pneg %p132
        %p474 = pneg %p156
        %p475 = pneg %p153
        %p476 = pneg %p177
        %p477 = pneg %p174
        %p478 = pneg %p198
        %p479 = pneg %p195
        %s480 = smul.u32 8, %s26
        %p481 = scmp.lt.s32.totalorder %s480, 31
        %s482 = scalar_select %p481, %s480, 31
        %s483 = smul.addr %s482, 8
        %s484 = scalar_lea.vmem %s7, %s483
        %p485 = pneg %p224
        %p486 = pneg %p221
        %p487 = pneg %p245
        %p488 = pneg %p242
        %p489 = pneg %p266
        %p490 = pneg %p263
        %p491 = pneg %p287
        %p492 = pneg %p284
        %s493 = smul.u32 8, %s26
        %s494 = smul.u32 16, %s27
        %p495 = scmp.lt.s32.totalorder %s494, 31
        %s496 = scalar_select %p495, %s494, 31
        %s497 = smul.addr %s496, 4
        %s498 = scalar_lea.vmem %s1, %s497
        %s499 = smul.u32 16, %s27
        %p500 = scmp.lt.s32.totalorder %s27, 1
        %s501 = scalar_select %p500, %s27, 1
        %s502 = scalar_lea.vmem %s2, %s501
        %s503 = smul.u32 8, %s26
        %p504 = scmp.lt.s32.totalorder %s503, 31
        %s505 = scalar_select %p504, %s503, 31
        %s506 = smul.addr %s505, 8
        %s507 = scalar_lea.vmem %s3, %s506
        %s508 = smul.u32 8, %s26
        %s509 = smul.u32 8, %s26
        %p510 = scmp.lt.s32.totalorder %s509, 31
        %s511 = scalar_select %p510, %s509, 31
        %s512 = smul.addr %s511, 8
        %s513 = scalar_lea.vmem %s7, %s512
        %s514 = smul.u32 8, %s26
        %p516 = scmp.eq.s32.totalorder %s26, 0
        %p517 = scmp.eq.s32.totalorder %s27, 0
        %p518 = pnand %p516, %p517
        %p519 = pneg %p518
        // Predicated region
        $region102: #{gat_forward.11} parent=96 // pred_check
          _
        $region103: #{gat_forward.11} parent=96 // pred_check_branch
          %521 = sbr.rel (%p518) target = $region105
        $region104: #{gat_forward.11} parent=96 // pred_region
          %vm522 = vcmask 257024
          %523 = vst.msk [vmem:[#allocation5] sm:$0xf] %vm522, 0.0
        $region105: #{gat_forward.11} parent=96 // pred_fallthru
          _
        // Predicated region
        $region106: #{gat_forward.11} parent=96 // pred_check
          %p524 = pneg %p517
        $region107: #{gat_forward.11} parent=96 // pred_check_branch
          %526 = sbr.rel (%p524) target = $region109
        $region108: #{gat_forward.11} parent=96 // pred_region
          %vm527 = vcmask 7168
          %528 = vst.msk [vmem:[#allocation2] sm:$0xff] %vm527, -1e+20
          %529 = vst.msk [vmem:[#allocation2 + $0x8] sm:$0xff] %vm527, -1e+20
          %530 = vst.msk [vmem:[#allocation2 + $0x10] sm:$0xff] %vm527, -1e+20
          %531 = vst.msk [vmem:[#allocation2 + $0x18] sm:$0xff] %vm527, -1e+20
          %532 = vst.msk [vmem:[#allocation2 + $0x20] sm:$0xff] %vm527, -1e+20
          %533 = vst.msk [vmem:[#allocation2 + $0x28] sm:$0xff] %vm527, -1e+20
          %534 = vst.msk [vmem:[#allocation2 + $0x30] sm:$0xff] %vm527, -1e+20
          %535 = vst.msk [vmem:[#allocation2 + $0x38] sm:$0xff] %vm527, -1e+20
          %536 = vst.msk [vmem:[#allocation3] sm:$0xff] %vm527, 0.0
          %537 = vst.msk [vmem:[#allocation3 + $0x8] sm:$0xff] %vm527, 0.0
          %538 = vst.msk [vmem:[#allocation3 + $0x10] sm:$0xff] %vm527, 0.0
          %539 = vst.msk [vmem:[#allocation3 + $0x18] sm:$0xff] %vm527, 0.0
          %540 = vst.msk [vmem:[#allocation3 + $0x20] sm:$0xff] %vm527, 0.0
          %541 = vst.msk [vmem:[#allocation3 + $0x28] sm:$0xff] %vm527, 0.0
          %542 = vst.msk [vmem:[#allocation3 + $0x30] sm:$0xff] %vm527, 0.0
          %543 = vst.msk [vmem:[#allocation3 + $0x38] sm:$0xff] %vm527, 0.0
          %vm544 = vcmask 261120
          %545 = vst.msk [vmem:[#allocation4] sm:$0xff] %vm544, 0.0
          %546 = vst.msk [vmem:[#allocation4 + $0x8] sm:$0xff] %vm544, 0.0
          %547 = vst.msk [vmem:[#allocation4 + $0x10] sm:$0xff] %vm544, 0.0
          %548 = vst.msk [vmem:[#allocation4 + $0x18] sm:$0xff] %vm544, 0.0
          %549 = vst.msk [vmem:[#allocation4 + $0x20] sm:$0xff] %vm544, 0.0
          %550 = vst.msk [vmem:[#allocation4 + $0x28] sm:$0xff] %vm544, 0.0
          %551 = vst.msk [vmem:[#allocation4 + $0x30] sm:$0xff] %vm544, 0.0
          %552 = vst.msk [vmem:[#allocation4 + $0x38] sm:$0xff] %vm544, 0.0
        $region109: #{gat_forward.11} parent=96 // pred_fallthru
          _
        %v553 = vld [vmem:[%s507] sm:$0xff]
        %v554 = vld [vmem:[%s507 + $0x8] sm:$0xff]
        %v555 = vld [vmem:[%s507 + $0x10] sm:$0xff]
        %v556 = vld [vmem:[%s507 + $0x18] sm:$0xff]
        %v557 = vld [vmem:[%s507 + $0x20] sm:$0xff]
        %v558 = vld [vmem:[%s507 + $0x28] sm:$0xff]
        %v559 = vld [vmem:[%s507 + $0x30] sm:$0xff]
        %v560 = vld [vmem:[%s507 + $0x38] sm:$0xff]
        %v561 = vld [vmem:[%s502] sm:$0x1]
        %563 = vset.pattern.permute.xlu0 0
        %564 = vperm.xlu0 %563, %v553
        %v565 = vpop.permute.xlu0 %564
        %568 = vset.pattern.permute.xlu0 0
        %569 = vperm.xlu0 %568, %v554
        %v570 = vpop.permute.xlu0 %569
        %573 = vset.pattern.permute.xlu0 0
        %574 = vperm.xlu0 %573, %v555
        %v575 = vpop.permute.xlu0 %574
        %578 = vset.pattern.permute.xlu0 0
        %579 = vperm.xlu0 %578, %v556
        %v580 = vpop.permute.xlu0 %579
        %583 = vset.pattern.permute.xlu0 0
        %584 = vperm.xlu0 %583, %v557
        %v585 = vpop.permute.xlu0 %584
        %588 = vset.pattern.permute.xlu0 0
        %589 = vperm.xlu0 %588, %v558
        %v590 = vpop.permute.xlu0 %589
        %593 = vset.pattern.permute.xlu0 0
        %594 = vperm.xlu0 %593, %v559
        %v595 = vpop.permute.xlu0 %594
        %598 = vset.pattern.permute.xlu0 0
        %599 = vperm.xlu0 %598, %v560
        %v600 = vpop.permute.xlu0 %599
        %v603 = vlaneseq
        %v604 = vshrl.u32 %v603, 7
        %v605 = vsub.s32 0, %v604
        %v606 = vrot.slane %v561, %v605
        %v608 = vadd.f32 %v565, %v606
        %v609 = vadd.f32 %v570, %v606
        %v610 = vadd.f32 %v575, %v606
        %v611 = vadd.f32 %v580, %v606
        %v612 = vadd.f32 %v585, %v606
        %v613 = vadd.f32 %v590, %v606
        %v614 = vadd.f32 %v595, %v606
        %v615 = vadd.f32 %v600, %v606
        %v616 = vmul.f32 %v608, 0.2
        %v617 = vmul.f32 %v609, 0.2
        %v618 = vmul.f32 %v610, 0.2
        %v619 = vmul.f32 %v611, 0.2
        %v620 = vmul.f32 %v612, 0.2
        %v621 = vmul.f32 %v613, 0.2
        %v622 = vmul.f32 %v614, 0.2
        %v623 = vmul.f32 %v615, 0.2
        %v624 = vmax.f32 %v608, %v616
        %v625 = vmax.f32 %v609, %v617
        %v626 = vmax.f32 %v610, %v618
        %v627 = vmax.f32 %v611, %v619
        %v628 = vmax.f32 %v612, %v620
        %v629 = vmax.f32 %v613, %v621
        %v630 = vmax.f32 %v614, %v622
        %v631 = vmax.f32 %v615, %v623
        %v632 = vld [vmem:[%s445] sm:$0xf]
        %v633 = vld [vmem:[%s445 + $0x4] sm:$0xf]
        %v634 = vld [vmem:[%s445 + $0x8] sm:$0xf]
        %v635 = vld [vmem:[%s445 + $0xc] sm:$0xf]
        %v636 = vld [vmem:[%s445 + $0x10] sm:$0xf]
        %v637 = vld [vmem:[%s445 + $0x14] sm:$0xf]
        %v638 = vld [vmem:[%s445 + $0x18] sm:$0xf]
        %v639 = vld [vmem:[%s445 + $0x1c] sm:$0xf]
        %v640 = vunpack.c.l.bf16 %v632
        %v641 = vunpack.c.l.bf16 %v633
        %v642 = vunpack.c.l.bf16 %v634
        %v643 = vunpack.c.l.bf16 %v635
        %v644 = vunpack.c.l.bf16 %v636
        %v645 = vunpack.c.l.bf16 %v637
        %v646 = vunpack.c.l.bf16 %v638
        %v647 = vunpack.c.l.bf16 %v639
        %v648 = vadd.f32 %v624, %v640
        %v649 = vadd.f32 %v625, %v641
        %v650 = vadd.f32 %v626, %v642
        %v651 = vadd.f32 %v627, %v643
        %v652 = vadd.f32 %v628, %v644
        %v653 = vadd.f32 %v629, %v645
        %v654 = vadd.f32 %v630, %v646
        %v655 = vadd.f32 %v631, %v647
        %v656 = vld [vmem:[#allocation2] sm:$0xff]
        %v657 = vld [vmem:[#allocation2 + $0x8] sm:$0xff]
        %v658 = vld [vmem:[#allocation2 + $0x10] sm:$0xff]
        %v659 = vld [vmem:[#allocation2 + $0x18] sm:$0xff]
        %v660 = vld [vmem:[#allocation2 + $0x20] sm:$0xff]
        %v661 = vld [vmem:[#allocation2 + $0x28] sm:$0xff]
        %v662 = vld [vmem:[#allocation2 + $0x30] sm:$0xff]
        %v663 = vld [vmem:[#allocation2 + $0x38] sm:$0xff]
        %664 = vmax.xlane.f32.xlu0 %v648
        %v665 = vpop.xlane.xlu0 %664
        %666 = vmax.xlane.f32.xlu0 %v649
        %v667 = vpop.xlane.xlu0 %666
        %668 = vmax.xlane.f32.xlu0 %v650
        %v669 = vpop.xlane.xlu0 %668
        %670 = vmax.xlane.f32.xlu0 %v651
        %v671 = vpop.xlane.xlu0 %670
        %672 = vmax.xlane.f32.xlu0 %v652
        %v673 = vpop.xlane.xlu0 %672
        %674 = vmax.xlane.f32.xlu0 %v653
        %v675 = vpop.xlane.xlu0 %674
        %676 = vmax.xlane.f32.xlu0 %v654
        %v677 = vpop.xlane.xlu0 %676
        %678 = vmax.xlane.f32.xlu0 %v655
        %v679 = vpop.xlane.xlu0 %678
        %v680 = vmax.f32 %v656, %v665
        %v681 = vmax.f32 %v657, %v667
        %v682 = vmax.f32 %v658, %v669
        %v683 = vmax.f32 %v659, %v671
        %v684 = vmax.f32 %v660, %v673
        %v685 = vmax.f32 %v661, %v675
        %v686 = vmax.f32 %v662, %v677
        %v687 = vmax.f32 %v663, %v679
        %v688 = vsub.f32 %v656, %v680
        %v689 = vsub.f32 %v657, %v681
        %v690 = vsub.f32 %v658, %v682
        %v691 = vsub.f32 %v659, %v683
        %v692 = vsub.f32 %v660, %v684
        %v693 = vsub.f32 %v661, %v685
        %v694 = vsub.f32 %v662, %v686
        %v695 = vsub.f32 %v663, %v687
        %v696 = vmul.f32 %v688, 1.442695
        %v697 = vpow.pop %v696
        %v698 = vmul.f32 %v689, 1.442695
        %v699 = vpow.pop %v698
        %v700 = vmul.f32 %v690, 1.442695
        %v701 = vpow.pop %v700
        %v702 = vmul.f32 %v691, 1.442695
        %v703 = vpow.pop %v702
        %v704 = vmul.f32 %v692, 1.442695
        %v705 = vpow.pop %v704
        %v706 = vmul.f32 %v693, 1.442695
        %v707 = vpow.pop %v706
        %v708 = vmul.f32 %v694, 1.442695
        %v709 = vpow.pop %v708
        %v710 = vmul.f32 %v695, 1.442695
        %v711 = vpow.pop %v710
        %713 = vset.pattern.permute.xlu0 0
        %714 = vperm.xlu0 %713, %v680
        %v715 = vpop.permute.xlu0 %714
        %718 = vset.pattern.permute.xlu0 0
        %719 = vperm.xlu0 %718, %v681
        %v720 = vpop.permute.xlu0 %719
        %723 = vset.pattern.permute.xlu0 0
        %724 = vperm.xlu0 %723, %v682
        %v725 = vpop.permute.xlu0 %724
        %728 = vset.pattern.permute.xlu0 0
        %729 = vperm.xlu0 %728, %v683
        %v730 = vpop.permute.xlu0 %729
        %733 = vset.pattern.permute.xlu0 0
        %734 = vperm.xlu0 %733, %v684
        %v735 = vpop.permute.xlu0 %734
        %738 = vset.pattern.permute.xlu0 0
        %739 = vperm.xlu0 %738, %v685
        %v740 = vpop.permute.xlu0 %739
        %743 = vset.pattern.permute.xlu0 0
        %744 = vperm.xlu0 %743, %v686
        %v745 = vpop.permute.xlu0 %744
        %748 = vset.pattern.permute.xlu0 0
        %749 = vperm.xlu0 %748, %v687
        %v750 = vpop.permute.xlu0 %749
        %v752 = vsub.f32 %v648, %v715
        %v753 = vsub.f32 %v649, %v720
        %v754 = vsub.f32 %v650, %v725
        %v755 = vsub.f32 %v651, %v730
        %v756 = vsub.f32 %v652, %v735
        %v757 = vsub.f32 %v653, %v740
        %v758 = vsub.f32 %v654, %v745
        %v759 = vsub.f32 %v655, %v750
        %v760 = vmul.f32 %v752, 1.442695
        %v761 = vpow.pop %v760
        %v762 = vmul.f32 %v753, 1.442695
        %v763 = vpow.pop %v762
        %v764 = vmul.f32 %v754, 1.442695
        %v765 = vpow.pop %v764
        %v766 = vmul.f32 %v755, 1.442695
        %v767 = vpow.pop %v766
        %v768 = vmul.f32 %v756, 1.442695
        %v769 = vpow.pop %v768
        %v770 = vmul.f32 %v757, 1.442695
        %v771 = vpow.pop %v770
        %v772 = vmul.f32 %v758, 1.442695
        %v773 = vpow.pop %v772
        %v774 = vmul.f32 %v759, 1.442695
        %v775 = vpow.pop %v774
        %v776 = vld [vmem:[#allocation3] sm:$0xff]
        %v777 = vld [vmem:[#allocation3 + $0x8] sm:$0xff]
        %v778 = vld [vmem:[#allocation3 + $0x10] sm:$0xff]
        %v779 = vld [vmem:[#allocation3 + $0x18] sm:$0xff]
        %v780 = vld [vmem:[#allocation3 + $0x20] sm:$0xff]
        %v781 = vld [vmem:[#allocation3 + $0x28] sm:$0xff]
        %v782 = vld [vmem:[#allocation3 + $0x30] sm:$0xff]
        %v783 = vld [vmem:[#allocation3 + $0x38] sm:$0xff]
        %v784 = vmul.f32 %v697, %v776
        %v785 = vmul.f32 %v699, %v777
        %v786 = vmul.f32 %v701, %v778
        %v787 = vmul.f32 %v703, %v779
        %v788 = vmul.f32 %v705, %v780
        %v789 = vmul.f32 %v707, %v781
        %v790 = vmul.f32 %v709, %v782
        %v791 = vmul.f32 %v711, %v783
        %792 = vadd.xlane.f32.xlu0 %v761
        %v793 = vpop.xlane.xlu0 %792
        %794 = vadd.xlane.f32.xlu0 %v763
        %v795 = vpop.xlane.xlu0 %794
        %796 = vadd.xlane.f32.xlu0 %v765
        %v797 = vpop.xlane.xlu0 %796
        %798 = vadd.xlane.f32.xlu0 %v767
        %v799 = vpop.xlane.xlu0 %798
        %800 = vadd.xlane.f32.xlu0 %v769
        %v801 = vpop.xlane.xlu0 %800
        %802 = vadd.xlane.f32.xlu0 %v771
        %v803 = vpop.xlane.xlu0 %802
        %804 = vadd.xlane.f32.xlu0 %v773
        %v805 = vpop.xlane.xlu0 %804
        %806 = vadd.xlane.f32.xlu0 %v775
        %v807 = vpop.xlane.xlu0 %806
        %v808 = vadd.f32 %v784, %v793
        %v809 = vadd.f32 %v785, %v795
        %v810 = vadd.f32 %v786, %v797
        %v811 = vadd.f32 %v787, %v799
        %v812 = vadd.f32 %v788, %v801
        %v813 = vadd.f32 %v789, %v803
        %v814 = vadd.f32 %v790, %v805
        %v815 = vadd.f32 %v791, %v807
        %vm816 = vcmask 7168
        %817 = vst.msk [vmem:[#allocation3] sm:$0xff] %vm816, %v808
        %818 = vst.msk [vmem:[#allocation3 + $0x8] sm:$0xff] %vm816, %v809
        %819 = vst.msk [vmem:[#allocation3 + $0x10] sm:$0xff] %vm816, %v810
        %820 = vst.msk [vmem:[#allocation3 + $0x18] sm:$0xff] %vm816, %v811
        %821 = vst.msk [vmem:[#allocation3 + $0x20] sm:$0xff] %vm816, %v812
        %822 = vst.msk [vmem:[#allocation3 + $0x28] sm:$0xff] %vm816, %v813
        %823 = vst.msk [vmem:[#allocation3 + $0x30] sm:$0xff] %vm816, %v814
        %824 = vst.msk [vmem:[#allocation3 + $0x38] sm:$0xff] %vm816, %v815
        %v825 = vld [vmem:[#allocation4] sm:$0xff]
        %v826 = vld [vmem:[#allocation4 + $0x8] sm:$0xff]
        %v827 = vld [vmem:[#allocation4 + $0x10] sm:$0xff]
        %v828 = vld [vmem:[#allocation4 + $0x18] sm:$0xff]
        %v829 = vld [vmem:[#allocation4 + $0x20] sm:$0xff]
        %v830 = vld [vmem:[#allocation4 + $0x28] sm:$0xff]
        %v831 = vld [vmem:[#allocation4 + $0x30] sm:$0xff]
        %v832 = vld [vmem:[#allocation4 + $0x38] sm:$0xff]
        %834 = vset.pattern.permute.xlu0 0
        %835 = vperm.xlu0 %834, %v697
        %v836 = vpop.permute.xlu0 %835
        %839 = vset.pattern.permute.xlu0 0
        %840 = vperm.xlu0 %839, %v699
        %v841 = vpop.permute.xlu0 %840
        %844 = vset.pattern.permute.xlu0 0
        %845 = vperm.xlu0 %844, %v701
        %v846 = vpop.permute.xlu0 %845
        %849 = vset.pattern.permute.xlu0 0
        %850 = vperm.xlu0 %849, %v703
        %v851 = vpop.permute.xlu0 %850
        %854 = vset.pattern.permute.xlu0 0
        %855 = vperm.xlu0 %854, %v705
        %v856 = vpop.permute.xlu0 %855
        %859 = vset.pattern.permute.xlu0 0
        %860 = vperm.xlu0 %859, %v707
        %v861 = vpop.permute.xlu0 %860
        %864 = vset.pattern.permute.xlu0 0
        %865 = vperm.xlu0 %864, %v709
        %v866 = vpop.permute.xlu0 %865
        %869 = vset.pattern.permute.xlu0 0
        %870 = vperm.xlu0 %869, %v711
        %v871 = vpop.permute.xlu0 %870
        %v873 = vmul.f32 %v836, %v825
        %v874 = vmul.f32 %v841, %v826
        %v875 = vmul.f32 %v846, %v827
        %v876 = vmul.f32 %v851, %v828
        %v877 = vmul.f32 %v856, %v829
        %v878 = vmul.f32 %v861, %v830
        %v879 = vmul.f32 %v866, %v831
        %v880 = vmul.f32 %v871, %v832
        %v881 = vpack.c.bf16 %v763, %v761
        %v882 = vpack.c.bf16 %v767, %v765
        %v883 = vpack.c.bf16 %v771, %v769
        %v884 = vpack.c.bf16 %v775, %v773
        %v885 = vld [vmem:[%s498] sm:$0xf]
        %v886 = vld [vmem:[%s498 + $0x4] sm:$0xf]
        %v887 = vld [vmem:[%s498 + $0x8] sm:$0xf]
        %v888 = vld [vmem:[%s498 + $0xc] sm:$0xf]
        %v889 = vld [vmem:[%s498 + $0x10] sm:$0xf]
        %v890 = vld [vmem:[%s498 + $0x14] sm:$0xf]
        %v891 = vld [vmem:[%s498 + $0x18] sm:$0xf]
        %v892 = vld [vmem:[%s498 + $0x1c] sm:$0xf]
        %v893 = vld [vmem:[%s498 + $0x20] sm:$0xf]
        %v894 = vld [vmem:[%s498 + $0x24] sm:$0xf]
        %v895 = vld [vmem:[%s498 + $0x28] sm:$0xf]
        %v896 = vld [vmem:[%s498 + $0x2c] sm:$0xf]
        %v897 = vld [vmem:[%s498 + $0x30] sm:$0xf]
        %v898 = vld [vmem:[%s498 + $0x34] sm:$0xf]
        %v899 = vld [vmem:[%s498 + $0x38] sm:$0xf]
        %v900 = vld [vmem:[%s498 + $0x3c] sm:$0xf]
        %v917 = vunpack.c.l.b16 %v885
        %v918 = vunpack.c.l.b16 %v886
        %v919 = vunpack.c.l.b16 %v887
        %v920 = vunpack.c.l.b16 %v888
        %v921 = vunpack.c.l.b16 %v889
        %v922 = vunpack.c.l.b16 %v890
        %v923 = vunpack.c.l.b16 %v891
        %v924 = vunpack.c.l.b16 %v892
        %v925 = vunpack.c.l.b16 %v893
        %v926 = vunpack.c.l.b16 %v894
        %v927 = vunpack.c.l.b16 %v895
        %v928 = vunpack.c.l.b16 %v896
        %v929 = vunpack.c.l.b16 %v897
        %v930 = vunpack.c.l.b16 %v898
        %v931 = vunpack.c.l.b16 %v899
        %v932 = vunpack.c.l.b16 %v900
        %v933 = vpack.c.b16 %v918, %v917
        %v934 = vpack.c.b16 %v920, %v919
        %v935 = vpack.c.b16 %v922, %v921
        %v936 = vpack.c.b16 %v924, %v923
        %v937 = vpack.c.b16 %v926, %v925
        %v938 = vpack.c.b16 %v928, %v927
        %v939 = vpack.c.b16 %v930, %v929
        %v940 = vpack.c.b16 %v932, %v931
        %949 = vmatprep.subr.bf16.mxu0 0
        %950 = vmatpush1.bf16.msra.mxu0 %v940
        %951 = vmatprep.subr.bf16.mxu0 0
        %952 = vmatpush1.bf16.msra.mxu0 %v939
        %953 = vmatprep.subr.bf16.mxu0 0
        %954 = vmatpush1.bf16.msra.mxu0 %v938
        %955 = vmatprep.subr.bf16.mxu0 0
        %956 = vmatpush1.bf16.msra.mxu0 %v937
        %957 = vmatprep.subr.bf16.mxu0 0
        %958 = vmatpush1.bf16.msra.mxu0 %v936
        %959 = vmatprep.subr.bf16.mxu0 0
        %960 = vmatpush1.bf16.msra.mxu0 %v935
        %961 = vmatprep.subr.bf16.mxu0 0
        %962 = vmatpush1.bf16.msra.mxu0 %v934
        %963 = vmatprep.subr.bf16.mxu0 0
        %964 = vmatpush1.bf16.msra.mxu0 %v933
        %965 = vmatprep.subr.bf16.mxu0 0
        %966 = vmatpush2.bf16.msra.mxu0 0
        %967 = vmatprep.subr.bf16.mxu0 0
        %968 = vmatpush2.bf16.msra.mxu0 0
        %969 = vmatprep.subr.bf16.mxu0 0
        %970 = vmatpush2.bf16.msra.mxu0 0
        %971 = vmatprep.subr.bf16.mxu0 0
        %972 = vmatpush2.bf16.msra.mxu0 0
        %973 = vmatprep.subr.bf16.mxu0 0
        %974 = vmatpush2.bf16.msra.mxu0 0
        %975 = vmatprep.subr.bf16.mxu0 0
        %976 = vmatpush2.bf16.msra.mxu0 0
        %977 = vmatprep.subr.bf16.mxu0 0
        %978 = vmatpush2.bf16.msra.mxu0 0
        %979 = vmatprep.subr.bf16.mxu0 0
        %980 = vmatpush2.bf16.msra.mxu0 0
        %981 = vmatprep.mubr.bf16.mxu0 0
        %982 = vmatmul.mubr.bf16.gmra.mxu0 %v881
        %v983 = vpop.f32.mrf.mxu0
        %v984 = vadd.f32 0.0, %v983
        %v985 = vpop.f32.mrf.mxu0
        %v986 = vpop.f32.mrf.mxu0
        %v987 = vadd.f32 0.0, %v986
        %v988 = vpop.f32.mrf.mxu0
        %989 = vmatprep.mubr.bf16.mxu0 0
        %990 = vmatmul.mubr.bf16.gmra.mxu0 %v882
        %v991 = vpop.f32.mrf.mxu0
        %v992 = vadd.f32 0.0, %v991
        %v993 = vpop.f32.mrf.mxu0
        %v994 = vpop.f32.mrf.mxu0
        %v995 = vadd.f32 0.0, %v994
        %v996 = vpop.f32.mrf.mxu0
        %997 = vmatprep.mubr.bf16.mxu0 0
        %998 = vmatmul.mubr.bf16.gmra.mxu0 %v883
        %v999 = vpop.f32.mrf.mxu0
        %v1000 = vadd.f32 0.0, %v999
        %v1001 = vpop.f32.mrf.mxu0
        %v1002 = vpop.f32.mrf.mxu0
        %v1003 = vadd.f32 0.0, %v1002
        %v1004 = vpop.f32.mrf.mxu0
        %1005 = vmatprep.mubr.bf16.mxu0 0
        %1006 = vmatmul.mubr.bf16.gmra.mxu0 %v884
        %v1007 = vpop.f32.mrf.mxu0
        %v1008 = vadd.f32 0.0, %v1007
        %v1009 = vpop.f32.mrf.mxu0
        %v1010 = vpop.f32.mrf.mxu0
        %v1011 = vadd.f32 0.0, %v1010
        %v1012 = vpop.f32.mrf.mxu0
        %1013 = vdwg.mxu0
        %v1014 = vadd.f32 %v873, %v984
        %v1015 = vadd.f32 %v874, %v987
        %v1016 = vadd.f32 %v875, %v992
        %v1017 = vadd.f32 %v876, %v995
        %v1018 = vadd.f32 %v877, %v1000
        %v1019 = vadd.f32 %v878, %v1003
        %v1020 = vadd.f32 %v879, %v1008
        %v1021 = vadd.f32 %v880, %v1011
        %vm1022 = vcmask 261120
        %1023 = vst.msk [vmem:[#allocation4] sm:$0xff] %vm1022, %v1014
        %1024 = vst.msk [vmem:[#allocation4 + $0x8] sm:$0xff] %vm1022, %v1015
        %1025 = vst.msk [vmem:[#allocation4 + $0x10] sm:$0xff] %vm1022, %v1016
        %1026 = vst.msk [vmem:[#allocation4 + $0x18] sm:$0xff] %vm1022, %v1017
        %1027 = vst.msk [vmem:[#allocation4 + $0x20] sm:$0xff] %vm1022, %v1018
        %1028 = vst.msk [vmem:[#allocation4 + $0x28] sm:$0xff] %vm1022, %v1019
        %1029 = vst.msk [vmem:[#allocation4 + $0x30] sm:$0xff] %vm1022, %v1020
        %1030 = vst.msk [vmem:[#allocation4 + $0x38] sm:$0xff] %vm1022, %v1021
        %1031 = vst.msk [vmem:[#allocation2] sm:$0xff] %vm816, %v680
        %1032 = vst.msk [vmem:[#allocation2 + $0x8] sm:$0xff] %vm816, %v681
        %1033 = vst.msk [vmem:[#allocation2 + $0x10] sm:$0xff] %vm816, %v682
        %1034 = vst.msk [vmem:[#allocation2 + $0x18] sm:$0xff] %vm816, %v683
        %1035 = vst.msk [vmem:[#allocation2 + $0x20] sm:$0xff] %vm816, %v684
        %1036 = vst.msk [vmem:[#allocation2 + $0x28] sm:$0xff] %vm816, %v685
        %1037 = vst.msk [vmem:[#allocation2 + $0x30] sm:$0xff] %vm816, %v686
        %1038 = vst.msk [vmem:[#allocation2 + $0x38] sm:$0xff] %vm816, %v687
        %p1039 = scmp.eq.s32.totalorder %s27, 1
        // Predicated region
        $region110: #{gat_forward.11} parent=96 // pred_check
          %p1040 = pneg %p1039
        $region111: #{gat_forward.11} parent=96 // pred_check_branch
          %1042 = sbr.rel (%p1040) target = $region113
        $region112: #{gat_forward.11} parent=96 // pred_region
          %v1043 = vld [vmem:[#allocation3] sm:$0xff]
          %v1044 = vld [vmem:[#allocation3 + $0x8] sm:$0xff]
          %v1045 = vld [vmem:[#allocation3 + $0x10] sm:$0xff]
          %v1046 = vld [vmem:[#allocation3 + $0x18] sm:$0xff]
          %v1047 = vld [vmem:[#allocation3 + $0x20] sm:$0xff]
          %v1048 = vld [vmem:[#allocation3 + $0x28] sm:$0xff]
          %v1049 = vld [vmem:[#allocation3 + $0x30] sm:$0xff]
          %v1050 = vld [vmem:[#allocation3 + $0x38] sm:$0xff]
          %v1051 = vmax.f32 %v1043, 1e-37
          %v1052 = vmax.f32 %v1044, 1e-37
          %v1053 = vmax.f32 %v1045, 1e-37
          %v1054 = vmax.f32 %v1046, 1e-37
          %v1055 = vmax.f32 %v1047, 1e-37
          %v1056 = vmax.f32 %v1048, 1e-37
          %v1057 = vmax.f32 %v1049, 1e-37
          %v1058 = vmax.f32 %v1050, 1e-37
          %v1059 = vrcp.pop %v1051
          %v1060 = vrcp.pop %v1052
          %v1061 = vrcp.pop %v1053
          %v1062 = vrcp.pop %v1054
          %v1063 = vrcp.pop %v1055
          %v1064 = vrcp.pop %v1056
          %v1065 = vrcp.pop %v1057
          %v1066 = vrcp.pop %v1058
          %v1067 = vld [vmem:[#allocation4] sm:$0xff]
          %v1068 = vld [vmem:[#allocation4 + $0x8] sm:$0xff]
          %v1069 = vld [vmem:[#allocation4 + $0x10] sm:$0xff]
          %v1070 = vld [vmem:[#allocation4 + $0x18] sm:$0xff]
          %v1071 = vld [vmem:[#allocation4 + $0x20] sm:$0xff]
          %v1072 = vld [vmem:[#allocation4 + $0x28] sm:$0xff]
          %v1073 = vld [vmem:[#allocation4 + $0x30] sm:$0xff]
          %v1074 = vld [vmem:[#allocation4 + $0x38] sm:$0xff]
          %1076 = vset.pattern.permute.xlu0 0
          %1077 = vperm.xlu0 %1076, %v1059
          %v1078 = vpop.permute.xlu0 %1077
          %1081 = vset.pattern.permute.xlu0 0
          %1082 = vperm.xlu0 %1081, %v1060
          %v1083 = vpop.permute.xlu0 %1082
          %1086 = vset.pattern.permute.xlu0 0
          %1087 = vperm.xlu0 %1086, %v1061
          %v1088 = vpop.permute.xlu0 %1087
          %1091 = vset.pattern.permute.xlu0 0
          %1092 = vperm.xlu0 %1091, %v1062
          %v1093 = vpop.permute.xlu0 %1092
          %1096 = vset.pattern.permute.xlu0 0
          %1097 = vperm.xlu0 %1096, %v1063
          %v1098 = vpop.permute.xlu0 %1097
          %1101 = vset.pattern.permute.xlu0 0
          %1102 = vperm.xlu0 %1101, %v1064
          %v1103 = vpop.permute.xlu0 %1102
          %1106 = vset.pattern.permute.xlu0 0
          %1107 = vperm.xlu0 %1106, %v1065
          %v1108 = vpop.permute.xlu0 %1107
          %1111 = vset.pattern.permute.xlu0 0
          %1112 = vperm.xlu0 %1111, %v1066
          %v1113 = vpop.permute.xlu0 %1112
          %v1115 = vmul.f32 %v1067, %v1078
          %v1116 = vmul.f32 %v1068, %v1083
          %v1117 = vmul.f32 %v1069, %v1088
          %v1118 = vmul.f32 %v1070, %v1093
          %v1119 = vmul.f32 %v1071, %v1098
          %v1120 = vmul.f32 %v1072, %v1103
          %v1121 = vmul.f32 %v1073, %v1108
          %v1122 = vmul.f32 %v1074, %v1113
          %v1123 = vld [vmem:[%s4] sm:$0x1]
          %v1125 = vlaneseq
          %v1126 = vshrl.u32 %v1125, 7
          %v1127 = vsub.s32 0, %v1126
          %v1128 = vrot.slane %v1123, %v1127
          %v1130 = vadd.f32 %v1115, %v1128
          %v1131 = vadd.f32 %v1116, %v1128
          %v1132 = vadd.f32 %v1117, %v1128
          %v1133 = vadd.f32 %v1118, %v1128
          %v1134 = vadd.f32 %v1119, %v1128
          %v1135 = vadd.f32 %v1120, %v1128
          %v1136 = vadd.f32 %v1121, %v1128
          %v1137 = vadd.f32 %v1122, %v1128
          %v1138 = vmax.f32 %v1130, 0.0
          %v1139 = vmax.f32 %v1131, 0.0
          %v1140 = vmax.f32 %v1132, 0.0
          %v1141 = vmax.f32 %v1133, 0.0
          %v1142 = vmax.f32 %v1134, 0.0
          %v1143 = vmax.f32 %v1135, 0.0
          %v1144 = vmax.f32 %v1136, 0.0
          %v1145 = vmax.f32 %v1137, 0.0
          %v1146 = vld [vmem:[%s5] sm:$0x1]
          %v1148 = vlaneseq
          %v1149 = vshrl.u32 %v1148, 7
          %v1150 = vsub.s32 0, %v1149
          %v1151 = vrot.slane %v1146, %v1150
          %v1153 = vmul.f32 %v1138, %v1151
          %v1154 = vmul.f32 %v1139, %v1151
          %v1155 = vmul.f32 %v1140, %v1151
          %v1156 = vmul.f32 %v1141, %v1151
          %v1157 = vmul.f32 %v1142, %v1151
          %v1158 = vmul.f32 %v1143, %v1151
          %v1159 = vmul.f32 %v1144, %v1151
          %v1160 = vmul.f32 %v1145, %v1151
          %v1161 = vld [vmem:[%s6] sm:$0x1]
          %v1163 = vlaneseq
          %v1164 = vshrl.u32 %v1163, 7
          %v1165 = vsub.s32 0, %v1164
          %v1166 = vrot.slane %v1161, %v1165
          %v1168 = vadd.f32 %v1153, %v1166
          %v1169 = vadd.f32 %v1154, %v1166
          %v1170 = vadd.f32 %v1155, %v1166
          %v1171 = vadd.f32 %v1156, %v1166
          %v1172 = vadd.f32 %v1157, %v1166
          %v1173 = vadd.f32 %v1158, %v1166
          %v1174 = vadd.f32 %v1159, %v1166
          %v1175 = vadd.f32 %v1160, %v1166
          %v1176 = vld [vmem:[#allocation5] sm:$0xf]
          %v1177 = vld [vmem:[%s513] sm:$0xff]
          %v1178 = vld [vmem:[%s513 + $0x8] sm:$0xff]
          %v1179 = vld [vmem:[%s513 + $0x10] sm:$0xff]
          %v1180 = vld [vmem:[%s513 + $0x18] sm:$0xff]
          %v1181 = vld [vmem:[%s513 + $0x20] sm:$0xff]
          %v1182 = vld [vmem:[%s513 + $0x28] sm:$0xff]
          %v1183 = vld [vmem:[%s513 + $0x30] sm:$0xff]
          %v1184 = vld [vmem:[%s513 + $0x38] sm:$0xff]
          %1185 = vxpose.xlu0.b32.start [1/16] %v1177, 128
          %1186 = vxpose.xlu0.b32.cont [2/16] %v1178, 128
          %1187 = vxpose.xlu0.b32.cont [3/16] %v1179, 128
          %1188 = vxpose.xlu0.b32.cont [4/16] %v1180, 128
          %1189 = vxpose.xlu0.b32.cont [5/16] %v1181, 128
          %1190 = vxpose.xlu0.b32.cont [6/16] %v1182, 128
          %1191 = vxpose.xlu0.b32.cont [7/16] %v1183, 128
          %1192 = vxpose.xlu0.b32.cont [8/16] %v1184, 128
          %1193 = vxpose.xlu0.b32.cont [9/16] 0.0, 128
          %1194 = vxpose.xlu0.b32.cont [10/16] 0.0, 128
          %1195 = vxpose.xlu0.b32.cont [11/16] 0.0, 128
          %1196 = vxpose.xlu0.b32.cont [12/16] 0.0, 128
          %1197 = vxpose.xlu0.b32.cont [13/16] 0.0, 128
          %1198 = vxpose.xlu0.b32.cont [14/16] 0.0, 128
          %1199 = vxpose.xlu0.b32.cont [15/16] 0.0, 128
          %1200 = vxpose.xlu0.b32.end [16/16] 0.0, 128
          %v1201 = vpop.trf.xlu0
          %v1202 = vpop.trf.xlu0
          %v1203 = vpop.trf.xlu0
          %v1204 = vpop.trf.xlu0
          %v1205 = vpop.trf.xlu0
          %v1206 = vpop.trf.xlu0
          %v1207 = vpop.trf.xlu0
          %v1208 = vpop.trf.xlu0
          %v1209 = vpop.trf.xlu0
          %v1210 = vpop.trf.xlu0
          %v1211 = vpop.trf.xlu0
          %v1212 = vpop.trf.xlu0
          %v1213 = vpop.trf.xlu0
          %v1214 = vpop.trf.xlu0
          %v1215 = vpop.trf.xlu0
          %v1216 = vpop.trf.xlu0
          %vm1217 = vcmask 523264
          %v1219 = vsel %vm1217, %v1201, 0
          %1221 = vmatprep.subr.mxu0 0.0
          %1222 = vmatpush1.msra.mxu0 0.0
          %1223 = vmatprep.subr.mxu0 0.0
          %1224 = vmatpush1.msra.mxu0 0.0
          %1225 = vmatprep.subr.mxu0 0.0
          %1226 = vmatpush1.msra.mxu0 0.0
          %1227 = vmatprep.subr.mxu0 0.0
          %1228 = vmatpush1.msra.mxu0 0.0
          %1229 = vmatprep.subr.mxu0 0.0
          %1230 = vmatpush1.msra.mxu0 0.0
          %1231 = vmatprep.subr.mxu0 0.0
          %1232 = vmatpush1.msra.mxu0 0.0
          %1233 = vmatprep.subr.mxu0 0.0
          %1234 = vmatpush1.msra.mxu0 0.0
          %1235 = vmatprep.subr.mxu0 0.0
          %1236 = vmatpush1.msra.mxu0 0.0
          %1237 = vmatprep.subr.mxu0 0.0
          %1238 = vmatpush1.msra.mxu0 %v1175
          %1239 = vmatprep.subr.mxu0 0.0
          %1240 = vmatpush1.msra.mxu0 %v1174
          %1241 = vmatprep.subr.mxu0 0.0
          %1242 = vmatpush1.msra.mxu0 %v1173
          %1243 = vmatprep.subr.mxu0 0.0
          %1244 = vmatpush1.msra.mxu0 %v1172
          %1245 = vmatprep.subr.mxu0 0.0
          %1246 = vmatpush1.msra.mxu0 %v1171
          %1247 = vmatprep.subr.mxu0 0.0
          %1248 = vmatpush1.msra.mxu0 %v1170
          %1249 = vmatprep.subr.mxu0 0.0
          %1250 = vmatpush1.msra.mxu0 %v1169
          %1251 = vmatprep.subr.mxu0 0.0
          %1252 = vmatpush1.msra.mxu0 %v1168
          %1253 = vmatprep.subr.mxu0 0.0
          %1254 = vmatpush2.msra.mxu0 0.0
          %1255 = vmatprep.subr.mxu0 0.0
          %1256 = vmatpush2.msra.mxu0 0.0
          %1257 = vmatprep.subr.mxu0 0.0
          %1258 = vmatpush2.msra.mxu0 0.0
          %1259 = vmatprep.subr.mxu0 0.0
          %1260 = vmatpush2.msra.mxu0 0.0
          %1261 = vmatprep.subr.mxu0 0.0
          %1262 = vmatpush2.msra.mxu0 0.0
          %1263 = vmatprep.subr.mxu0 0.0
          %1264 = vmatpush2.msra.mxu0 0.0
          %1265 = vmatprep.subr.mxu0 0.0
          %1266 = vmatpush2.msra.mxu0 0.0
          %1267 = vmatprep.subr.mxu0 0.0
          %1268 = vmatpush2.msra.mxu0 0.0
          %1269 = vmatprep.subr.mxu0 0.0
          %1270 = vmatpush2.msra.mxu0 0.0
          %1271 = vmatprep.subr.mxu0 0.0
          %1272 = vmatpush2.msra.mxu0 0.0
          %1273 = vmatprep.subr.mxu0 0.0
          %1274 = vmatpush2.msra.mxu0 0.0
          %1275 = vmatprep.subr.mxu0 0.0
          %1276 = vmatpush2.msra.mxu0 0.0
          %1277 = vmatprep.subr.mxu0 0.0
          %1278 = vmatpush2.msra.mxu0 0.0
          %1279 = vmatprep.subr.mxu0 0.0
          %1280 = vmatpush2.msra.mxu0 0.0
          %1281 = vmatprep.subr.mxu0 0.0
          %1282 = vmatpush2.msra.mxu0 0.0
          %1283 = vmatprep.subr.mxu0 0.0
          %1284 = vmatpush2.msra.mxu0 0.0
          %1285 = vmatprep.mubr.f32.mxu0 0.0
          %1286 = vmatmul.mubr.f32.gmra.mxu0 %v1219
          %v1287 = vpop.f32.mrf.mxu0
          %v1288 = vadd.f32 0.0, %v1287
          %v1289 = vpop.f32.mrf.mxu0
          %1290 = vdwg.mxu0
          %v1291 = vadd.f32 %v1176, %v1288
          %vm1292 = vcmask 257024
          %1293 = vst.msk [vmem:[#allocation5] sm:$0xf] %vm1292, %v1291
        $region113: #{gat_forward.11} parent=96 // pred_fallthru
          _
        %p1294 = scmp.eq.s32.totalorder %s26, 3
        %p1295 = pnand %p1294, %p1039
        %p1296 = pneg %p1295
        // Predicated region
        $region114: #{gat_forward.11} parent=96 // pred_check
          _
        $region115: #{gat_forward.11} parent=96 // pred_check_branch
          %1298 = sbr.rel (%p1295) target = $region117
        $region116: #{gat_forward.11} parent=96 // pred_region
          %v1299 = vld [vmem:[#allocation5] sm:$0xf]
          %v1300 = vld [vmem:[%s8] sm:$0xff]
          %v1301 = vld [vmem:[%s8 + $0x8] sm:$0xff]
          %v1302 = vld [vmem:[%s8 + $0x10] sm:$0xff]
          %v1303 = vld [vmem:[%s8 + $0x18] sm:$0xff]
          %v1304 = vld [vmem:[%s9] sm:$0x1]
          %v1306 = vlaneseq
          %v1307 = vshrl.u32 %v1306, 7
          %v1308 = vsub.s32 0, %v1307
          %v1309 = vrot.slane %v1304, %v1308
          %v1312 = vsel %vm1022, %v1299, 0
          %1314 = vmatprep.subr.mxu0 0.0
          %1315 = vmatpush1.msra.mxu0 0.0
          %1316 = vmatprep.subr.mxu0 0.0
          %1317 = vmatpush1.msra.mxu0 0.0
          %1318 = vmatprep.subr.mxu0 0.0
          %1319 = vmatpush1.msra.mxu0 0.0
          %1320 = vmatprep.subr.mxu0 0.0
          %1321 = vmatpush1.msra.mxu0 0.0
          %1322 = vmatprep.subr.mxu0 0.0
          %1323 = vmatpush1.msra.mxu0 0.0
          %1324 = vmatprep.subr.mxu0 0.0
          %1325 = vmatpush1.msra.mxu0 0.0
          %1326 = vmatprep.subr.mxu0 0.0
          %1327 = vmatpush1.msra.mxu0 0.0
          %1328 = vmatprep.subr.mxu0 0.0
          %1329 = vmatpush1.msra.mxu0 0.0
          %1330 = vmatprep.subr.mxu0 0.0
          %1331 = vmatpush1.msra.mxu0 0.0
          %1332 = vmatprep.subr.mxu0 0.0
          %1333 = vmatpush1.msra.mxu0 0.0
          %1334 = vmatprep.subr.mxu0 0.0
          %1335 = vmatpush1.msra.mxu0 0.0
          %1336 = vmatprep.subr.mxu0 0.0
          %1337 = vmatpush1.msra.mxu0 0.0
          %1338 = vmatprep.subr.mxu0 0.0
          %1339 = vmatpush1.msra.mxu0 %v1303
          %1340 = vmatprep.subr.mxu0 0.0
          %1341 = vmatpush1.msra.mxu0 %v1302
          %1342 = vmatprep.subr.mxu0 0.0
          %1343 = vmatpush1.msra.mxu0 %v1301
          %1344 = vmatprep.subr.mxu0 0.0
          %1345 = vmatpush1.msra.mxu0 %v1300
          %1346 = vmatprep.subr.mxu0 0.0
          %1347 = vmatpush2.msra.mxu0 0.0
          %1348 = vmatprep.subr.mxu0 0.0
          %1349 = vmatpush2.msra.mxu0 0.0
          %1350 = vmatprep.subr.mxu0 0.0
          %1351 = vmatpush2.msra.mxu0 0.0
          %1352 = vmatprep.subr.mxu0 0.0
          %1353 = vmatpush2.msra.mxu0 0.0
          %1354 = vmatprep.subr.mxu0 0.0
          %1355 = vmatpush2.msra.mxu0 0.0
          %1356 = vmatprep.subr.mxu0 0.0
          %1357 = vmatpush2.msra.mxu0 0.0
          %1358 = vmatprep.subr.mxu0 0.0
          %1359 = vmatpush2.msra.mxu0 0.0
          %1360 = vmatprep.subr.mxu0 0.0
          %1361 = vmatpush2.msra.mxu0 0.0
          %1362 = vmatprep.subr.mxu0 0.0
          %1363 = vmatpush2.msra.mxu0 0.0
          %1364 = vmatprep.subr.mxu0 0.0
          %1365 = vmatpush2.msra.mxu0 0.0
          %1366 = vmatprep.subr.mxu0 0.0
          %1367 = vmatpush2.msra.mxu0 0.0
          %1368 = vmatprep.subr.mxu0 0.0
          %1369 = vmatpush2.msra.mxu0 0.0
          %1370 = vmatprep.subr.mxu0 0.0
          %1371 = vmatpush2.msra.mxu0 0.0
          %1372 = vmatprep.subr.mxu0 0.0
          %1373 = vmatpush2.msra.mxu0 0.0
          %1374 = vmatprep.subr.mxu0 0.0
          %1375 = vmatpush2.msra.mxu0 0.0
          %1376 = vmatprep.subr.mxu0 0.0
          %1377 = vmatpush2.msra.mxu0 0.0
          %1378 = vmatprep.mubr.f32.mxu0 0.0
          %1379 = vmatmul.mubr.f32.gmra.mxu0 %v1312
          %v1380 = vpop.f32.mrf.mxu0
          %v1381 = vadd.f32 %v1309, %v1380
          %v1382 = vpop.f32.mrf.mxu0
          %1383 = vdwg.mxu0
          %vm1384 = vcmask 19456
          %1385 = vst.msk [vmem:[#allocation7] sm:$0xf] %vm1384, %v1381
        $region117: #{gat_forward.11} parent=96 // pred_fallthru
          _
        // Predicated region
        $region118: #{gat_forward.11} parent=96 // pred_check
          %p1386 = pneg %p284
        $region119: #{gat_forward.11} parent=96 // pred_check_branch
          %1388 = sbr.rel (%p1386) target = $region121
        $region120: #{gat_forward.11} parent=96 // pred_region
          %s1390 = ssub.s32 64, 64
          %1391 = vsyncadd [#allocation8], %s1390
          %s1393 = sshll.u32 [#allocation7], 4
          %s1394 = int_to_ptr.vmem [resolvable:$true] %s1393
          %1396 = dma.vmem_to_hbm [thread:$0]  %s1394, 64, %s10, [#allocation8]
        $region121: #{gat_forward.11} parent=96 // pred_fallthru
          _
        // Predicated region
        $region122: #{gat_forward.11} parent=96 // pred_check
          %p1397 = pneg %p284
        $region123: #{gat_forward.11} parent=96 // pred_check_branch
          %1399 = sbr.rel (%p1397) target = $region125
        $region124: #{gat_forward.11} parent=96 // pred_region
          %1400 = dma.done [#allocation8], 64
        $region125: #{gat_forward.11} parent=96 // pred_fallthru
          _
      $region97: #{gat_forward.11} parent=5 // pred_fallthru
        _
      %p1401 = scmp.le.s32.totalorder 2, %s17
      // Predicated region
      $region126: #{gat_forward.11} parent=5 // pred_check
        %p1402 = pneg %p1401
      $region127: #{gat_forward.11} parent=5 // pred_check_branch
        %1404 = sbr.rel (%p1402) target = $region129
      $region128: #{gat_forward.11} parent=5 // pred_region
        %s1405 = ssub.s32 %s17, 2
      $region129: #{gat_forward.11} parent=5 // pred_fallthru
        _
    $region6: #{gat_forward.11} parent=1 // loop_footer
      %s21 = sadd.s32 1, %s17
    $region7: #{gat_forward.11} parent=1 // loop_footer_branch
      %16 = sbr.rel target = $region3
    $region8: #{gat_forward.11} parent=1 // loop_exit
      _
    %1406 = vsyncpa [#allocation8], 1
    %s1407 = scalar_lea.sflag [#allocation8], 1
    %1408 = vsyncpa %s1407, 1

</llo_original>
